<compile_context>
chip_gen: v7x
topology: tpu7x:2x2x1
jax: 0.10.0
libtpu: 0.0.40
codegen_flags: <defaults>
</compile_context>

<pallas_src>
import functools
import math

import jax
import jax.numpy as jnp
import numpy as np
from jax.experimental import pallas as pl
from jax.experimental.pallas import tpu as pltpu


# --------------------------- static layer configs -------------------------- #
# (cin, cout, k, stride, pad, act)
_ENC_CFG = (
    (3, 16, 2, 2, 1, "relu"),
    (16, 32, 2, 2, 1, "relu"),
    (32, 64, 2, 2, 1, "relu"),
    (64, 64, 2, 2, 1, "relu"),
    (64, 128, 2, 1, 0, "none"),
)
# (cin, cout, k, stride, pad, output_pad, act)
_DEC_CFG = (
    (128, 64, 2, 1, 0, 0, "relu"),
    (64, 64, 2, 2, 1, 1, "relu"),
    (64, 32, 2, 2, 1, 1, "relu"),
    (32, 16, 2, 2, 1, 1, "relu"),
    (16, 3, 2, 2, 1, 0, "sigmoid"),
)


def _round8(n):
    return ((n + 7) // 8) * 8


def _make_plan(h, w):
    """Static per-layer geometry (Python ints resolved at trace time)."""
    plan = []
    hh, ww = h, w
    rin = h * w                       # rows of the incoming activation matrix
    for cin, cout, k, s, p, act in _ENC_CFG:
        ho = (hh + 2 * p - k) // s + 1
        wo = (ww + 2 * p - k) // s + 1
        rout = _round8(ho * wo)
        plan.append(dict(kind="conv", cin=cin, cout=cout, k=k, s=s, p=p,
                         act=act, hin=hh, win=ww, ho=ho, wo=wo,
                         rin=rin, rout=rout))
        hh, ww, rin = ho, wo, rout
    for cin, cout, k, s, p, op, act in _DEC_CFG:
        ho = (hh - 1) * s - 2 * p + k + op
        wo = (ww - 1) * s - 2 * p + k + op
        rout = _round8(ho * wo)
        plan.append(dict(kind="convt", cin=cin, cout=cout, k=k, s=s, p=p,
                         act=act, hin=hh, win=ww, ho=ho, wo=wo,
                         rin=rin, rout=rout))
        hh, ww, rin = ho, wo, rout
    return plan


# -------------------- host-side constant selection matrices ---------------- #
def _build_selection(cfg):
    """0/1 matrix G[rout, k*k*rin].

    Column t*rin + (y*win + x) routes input pixel (y, x) through kernel tap
    t = i*k + j into output pixel row oh*wo + ow.  Conv padding = missing
    entries (zero rows/cols); transposed-conv sub-pixel scatter = exactly one
    entry per valid (output pixel, tap) pair.  Rows >= ho*wo stay all-zero
    (alignment padding; never consumed downstream).
    """
    k, s, p = cfg["k"], cfg["s"], cfg["p"]
    hin, win, ho, wo = cfg["hin"], cfg["win"], cfg["ho"], cfg["wo"]
    rin, rout = cfg["rin"], cfg["rout"]
    g = np.zeros((rout, k * k * rin), np.float32)
    for oh in range(ho):
        for ow in range(wo):
            m = oh * wo + ow
            for i in range(k):
                for j in range(k):
                    t = i * k + j
                    if cfg["kind"] == "conv":
                        y, x = s * oh + i - p, s * ow + j - p
                    else:   # transposed conv: s*y - p + i == oh
                        ny, nx = oh + p - i, ow + p - j
                        if ny % s or nx % s:
                            continue
                        y, x = ny // s, nx // s
                    if 0 <= y < hin and 0 <= x < win:
                        g[m, t * rin + y * win + x] += 1.0
    return g


def _prep_layer_arrays(params, plan):
    """Per layer: (W[k*k, cin, cout] bf16, bias[1, cout] f32, G bf16)."""
    enc, dec = params
    flat = []
    for cfg, (w, b) in zip(plan, list(enc) + list(dec)):
        k, cin, cout = cfg["k"], cfg["cin"], cfg["cout"]
        if cfg["kind"] == "conv":            # torch layout [cout, cin, kh, kw]
            wt = jnp.transpose(w, (2, 3, 1, 0))
        else:                                # torch layout [cin, cout, kh, kw]
            wt = jnp.transpose(w, (2, 3, 0, 1))
        wt = wt.reshape(k * k, cin, cout).astype(jnp.bfloat16)
        g = jnp.asarray(_build_selection(cfg), jnp.bfloat16)
        flat += [wt, b.reshape(1, cout).astype(jnp.float32), g]
    return flat


# ----------------------------- fused Pallas kernel ------------------------- #
def _fused_ae_kernel(*refs, plan):
    x_ref, o_ref, prm = refs[0], refs[-1], refs[1:-1]
    a = x_ref[0].astype(jnp.float32)                    # [rin0, cin0]
    for li, cfg in enumerate(plan):
        w_ref = prm[3 * li]
        b_ref = prm[3 * li + 1]
        g_ref = prm[3 * li + 2]
        kk = cfg["k"] * cfg["k"]

        a_bf = a.astype(jnp.bfloat16)
        # Per-tap pixel contributions (dense MXU matmuls, f32 accumulate).
        taps = [jnp.dot(a_bf, w_ref[t], preferred_element_type=jnp.float32)
                for t in range(kk)]
        # Stack taps along rows (all pieces are multiples of 8 rows).
        stacked = jnp.concatenate(taps, axis=0).astype(jnp.bfloat16)
        # Spatial gather/scatter + tap reduction as one constant 0/1 matmul.
        z = jnp.dot(g_ref[...], stacked, preferred_element_type=jnp.float32)
        z = z + b_ref[...]
        if cfg["act"] == "relu":
            z = jnp.maximum(z, 0.0)
        elif cfg["act"] == "sigmoid":
            z = jax.nn.sigmoid(z)
        a = z                                            # [rout, cout]
    o_ref[0] = a


# ------------------------------- host wrapper ------------------------------ #
def _const_spec(a):
    nd = a.ndim
    return pl.BlockSpec(a.shape, lambda n, _nd=nd: (0,) * _nd)


def cnn_ae_forward(params, x):
    """x: [N, 3, H, W] float32 (NCHW, PyTorch convention) -> [N, 3, H, W]."""
    nb, cin0, h, w = x.shape
    plan = _make_plan(h, w)
    last = plan[-1]
    flat = _prep_layer_arrays(params, plan)

    # NCHW -> row-major pixel matrix [N, H*W, C], once, in XLA.
    x_rows = jnp.transpose(x, (0, 2, 3, 1)).reshape(nb, h * w, cin0)
    x_rows = x_rows.astype(jnp.float32)

    rout, cout = last["rout"], last["cout"]
    kernel = functools.partial(_fused_ae_kernel, plan=plan)
    out_rows = pl.pallas_call(
        kernel,
        out_shape=jax.ShapeDtypeStruct((nb, rout, cout), jnp.float32),
        grid=(nb,),
        in_specs=[pl.BlockSpec((1, h * w, cin0), lambda n: (n, 0, 0))]
                 + [_const_spec(a) for a in flat],
        out_specs=pl.BlockSpec((1, rout, cout), lambda n: (n, 0, 0)),
        compiler_params=pltpu.CompilerParams(
            dimension_semantics=("parallel",)),
    )(x_rows, *flat)

    ho, wo = last["ho"], last["wo"]
    out = out_rows[:, :ho * wo, :].reshape(nb, ho, wo, cout)
    return jnp.transpose(out, (0, 3, 1, 2))


# -------------------------------- parameters -------------------------------- #
def _init_conv(key, cout, cin, k):
    fan_in = cin * k * k
    bound = 1.0 / math.sqrt(fan_in)
    k1, k2 = jax.random.split(key)
    w = jax.random.uniform(k1, (cout, cin, k, k), jnp.float32, -bound, bound)
    b = jax.random.uniform(k2, (cout,), jnp.float32, -bound, bound)
    return w, b


def _init_convt(key, cin, cout, k):
    fan_in = cout * k * k
    bound = 1.0 / math.sqrt(fan_in)
    k1, k2 = jax.random.split(key)
    w = jax.random.uniform(k1, (cin, cout, k, k), jnp.float32, -bound, bound)
    b = jax.random.uniform(k2, (cout,), jnp.float32, -bound, bound)
    return w, b


def init_params(key):
    keys = jax.random.split(key, 10)
    enc = [_init_conv(keys[i], c[1], c[0], c[2]) for i, c in enumerate(_ENC_CFG)]
    dec = [_init_convt(keys[5 + i], c[0], c[1], c[2]) for i, c in enumerate(_DEC_CFG)]
    return enc, dec


# ------------------------- pure-XLA reference (f32) ------------------------- #
def reference_forward(params, x):
    enc, dec = params
    a = x
    for (w, b), (cin, cout, k, s, p, act) in zip(enc, _ENC_CFG):
        a = jax.lax.conv_general_dilated(
            a, w, (s, s), [(p, p), (p, p)],
            dimension_numbers=("NCHW", "OIHW", "NCHW"))
        a = a + b.reshape(1, -1, 1, 1)
        if act == "relu":
            a = jnp.maximum(a, 0.0)
    for (w, b), (cin, cout, k, s, p, op, act) in zip(dec, _DEC_CFG):
        wc = jnp.transpose(jnp.flip(w, (2, 3)), (1, 0, 2, 3))   # -> OIHW, flipped
        pad = (k - 1 - p, k - 1 - p + op)
        a = jax.lax.conv_general_dilated(
            a, wc, (1, 1), [pad, pad], lhs_dilation=(s, s),
            dimension_numbers=("NCHW", "OIHW", "NCHW"))
        a = a + b.reshape(1, -1, 1, 1)
        if act == "relu":
            a = jnp.maximum(a, 0.0)
        elif act == "sigmoid":
            a = jax.nn.sigmoid(a)
    return a


if __name__ == "__main__":
    key = jax.random.PRNGKey(0)
    k_params, k_x = jax.random.split(key)
    params = init_params(k_params)
    # NCHW input, like PyTorch: batch=2, channels=3, 16x16 spatial
    x = jax.random.uniform(k_x, (2, 3, 16, 16), jnp.float32)

    fwd = jax.jit(cnn_ae_forward)
    y = fwd(params, x)
    jax.block_until_ready(y)

    assert y.shape == x.shape, f"expected {x.shape}, got {y.shape}"
    assert y.dtype == jnp.float32
    assert bool(jnp.all(jnp.isfinite(y)))
    assert bool(jnp.all((y >= 0.0) & (y <= 1.0)))      # sigmoid output range

    y_ref = reference_forward(params, x)
    max_err = float(jnp.max(jnp.abs(y - y_ref)))
    assert max_err < 5e-2, f"mismatch vs XLA reference: {max_err}"

    print("KERNEL_OK")
</pallas_src>

<mosaic_0001>
module attributes {stable_mosaic.version = 11 : i64} {
  func.func @_fused_ae_kernel(%arg0: i32, %arg1: memref<1x256x3xf32, #tpu.memory_space<vmem>>, %arg2: memref<4x3x16xbf16, #tpu.memory_space<vmem>>, %arg3: memref<1x16xf32, #tpu.memory_space<vmem>>, %arg4: memref<88x1024xbf16, #tpu.memory_space<vmem>>, %arg5: memref<4x16x32xbf16, #tpu.memory_space<vmem>>, %arg6: memref<1x32xf32, #tpu.memory_space<vmem>>, %arg7: memref<32x352xbf16, #tpu.memory_space<vmem>>, %arg8: memref<4x32x64xbf16, #tpu.memory_space<vmem>>, %arg9: memref<1x64xf32, #tpu.memory_space<vmem>>, %arg10: memref<16x128xbf16, #tpu.memory_space<vmem>>, %arg11: memref<4x64x64xbf16, #tpu.memory_space<vmem>>, %arg12: memref<1x64xf32, #tpu.memory_space<vmem>>, %arg13: memref<8x64xbf16, #tpu.memory_space<vmem>>, %arg14: memref<4x64x128xbf16, #tpu.memory_space<vmem>>, %arg15: memref<1x128xf32, #tpu.memory_space<vmem>>, %arg16: memref<8x32xbf16, #tpu.memory_space<vmem>>, %arg17: memref<4x128x64xbf16, #tpu.memory_space<vmem>>, %arg18: memref<1x64xf32, #tpu.memory_space<vmem>>, %arg19: memref<8x32xbf16, #tpu.memory_space<vmem>>, %arg20: memref<4x64x64xbf16, #tpu.memory_space<vmem>>, %arg21: memref<1x64xf32, #tpu.memory_space<vmem>>, %arg22: memref<16x32xbf16, #tpu.memory_space<vmem>>, %arg23: memref<4x64x32xbf16, #tpu.memory_space<vmem>>, %arg24: memref<1x32xf32, #tpu.memory_space<vmem>>, %arg25: memref<32x64xbf16, #tpu.memory_space<vmem>>, %arg26: memref<4x32x16xbf16, #tpu.memory_space<vmem>>, %arg27: memref<1x16xf32, #tpu.memory_space<vmem>>, %arg28: memref<88x128xbf16, #tpu.memory_space<vmem>>, %arg29: memref<4x16x3xbf16, #tpu.memory_space<vmem>>, %arg30: memref<1x3xf32, #tpu.memory_space<vmem>>, %arg31: memref<256x352xbf16, #tpu.memory_space<vmem>>, %arg32: memref<1x256x3xf32, #tpu.memory_space<vmem>>) attributes {dimension_semantics = [#tpu.dimension_semantics<parallel>], iteration_bounds = array<i64: 2>, scalar_prefetch = 0 : i64, scratch_operands = 0 : i64, tpu.core_type = #tpu.core_type<tc>, window_params = [{transform_indices = @transform_0, window_bounds = array<i64: 1, 256, 3>}, {pipeline_mode = #tpu.pipeline_mode<synchronous>, transform_indices = @transform_1, window_bounds = array<i64: 4, 3, 16>}, {pipeline_mode = #tpu.pipeline_mode<synchronous>, transform_indices = @transform_2, window_bounds = array<i64: 1, 16>}, {pipeline_mode = #tpu.pipeline_mode<synchronous>, transform_indices = @transform_3, window_bounds = array<i64: 88, 1024>}, {pipeline_mode = #tpu.pipeline_mode<synchronous>, transform_indices = @transform_4, window_bounds = array<i64: 4, 16, 32>}, {pipeline_mode = #tpu.pipeline_mode<synchronous>, transform_indices = @transform_5, window_bounds = array<i64: 1, 32>}, {pipeline_mode = #tpu.pipeline_mode<synchronous>, transform_indices = @transform_6, window_bounds = array<i64: 32, 352>}, {pipeline_mode = #tpu.pipeline_mode<synchronous>, transform_indices = @transform_7, window_bounds = array<i64: 4, 32, 64>}, {pipeline_mode = #tpu.pipeline_mode<synchronous>, transform_indices = @transform_8, window_bounds = array<i64: 1, 64>}, {pipeline_mode = #tpu.pipeline_mode<synchronous>, transform_indices = @transform_9, window_bounds = array<i64: 16, 128>}, {pipeline_mode = #tpu.pipeline_mode<synchronous>, transform_indices = @transform_10, window_bounds = array<i64: 4, 64, 64>}, {pipeline_mode = #tpu.pipeline_mode<synchronous>, transform_indices = @transform_11, window_bounds = array<i64: 1, 64>}, {pipeline_mode = #tpu.pipeline_mode<synchronous>, transform_indices = @transform_12, window_bounds = array<i64: 8, 64>}, {pipeline_mode = #tpu.pipeline_mode<synchronous>, transform_indices = @transform_13, window_bounds = array<i64: 4, 64, 128>}, {pipeline_mode = #tpu.pipeline_mode<synchronous>, transform_indices = @transform_14, window_bounds = array<i64: 1, 128>}, {pipeline_mode = #tpu.pipeline_mode<synchronous>, transform_indices = @transform_15, window_bounds = array<i64: 8, 32>}, {pipeline_mode = #tpu.pipeline_mode<synchronous>, transform_indices = @transform_16, window_bounds = array<i64: 4, 128, 64>}, {pipeline_mode = #tpu.pipeline_mode<synchronous>, transform_indices = @transform_17, window_bounds = array<i64: 1, 64>}, {pipeline_mode = #tpu.pipeline_mode<synchronous>, transform_indices = @transform_18, window_bounds = array<i64: 8, 32>}, {pipeline_mode = #tpu.pipeline_mode<synchronous>, transform_indices = @transform_19, window_bounds = array<i64: 4, 64, 64>}, {pipeline_mode = #tpu.pipeline_mode<synchronous>, transform_indices = @transform_20, window_bounds = array<i64: 1, 64>}, {pipeline_mode = #tpu.pipeline_mode<synchronous>, transform_indices = @transform_21, window_bounds = array<i64: 16, 32>}, {pipeline_mode = #tpu.pipeline_mode<synchronous>, transform_indices = @transform_22, window_bounds = array<i64: 4, 64, 32>}, {pipeline_mode = #tpu.pipeline_mode<synchronous>, transform_indices = @transform_23, window_bounds = array<i64: 1, 32>}, {pipeline_mode = #tpu.pipeline_mode<synchronous>, transform_indices = @transform_24, window_bounds = array<i64: 32, 64>}, {pipeline_mode = #tpu.pipeline_mode<synchronous>, transform_indices = @transform_25, window_bounds = array<i64: 4, 32, 16>}, {pipeline_mode = #tpu.pipeline_mode<synchronous>, transform_indices = @transform_26, window_bounds = array<i64: 1, 16>}, {pipeline_mode = #tpu.pipeline_mode<synchronous>, transform_indices = @transform_27, window_bounds = array<i64: 88, 128>}, {pipeline_mode = #tpu.pipeline_mode<synchronous>, transform_indices = @transform_28, window_bounds = array<i64: 4, 16, 3>}, {pipeline_mode = #tpu.pipeline_mode<synchronous>, transform_indices = @transform_29, window_bounds = array<i64: 1, 3>}, {pipeline_mode = #tpu.pipeline_mode<synchronous>, transform_indices = @transform_30, window_bounds = array<i64: 256, 352>}, {transform_indices = @transform_31, window_bounds = array<i64: 1, 256, 3>}]} {
    %c0 = arith.constant 0 : index
    %c0_0 = arith.constant 0 : index
    %c0_1 = arith.constant 0 : index
    %0 = vector.load %arg1[%c0, %c0_0, %c0_1] : memref<1x256x3xf32, #tpu.memory_space<vmem>>, vector<1x256x3xf32>
    %1 = vector.shape_cast %0 : vector<1x256x3xf32> to vector<256x3xf32>
    %2 = arith.truncf %1 : vector<256x3xf32> to vector<256x3xbf16>
    %c0_2 = arith.constant 0 : index
    %c0_3 = arith.constant 0 : index
    %c0_4 = arith.constant 0 : index
    %3 = vector.load %arg2[%c0_2, %c0_3, %c0_4] : memref<4x3x16xbf16, #tpu.memory_space<vmem>>, vector<1x3x16xbf16>
    %4 = vector.shape_cast %3 : vector<1x3x16xbf16> to vector<3x16xbf16>
    %cst = arith.constant dense<0.000000e+00> : vector<256x16xf32>
    %5 = tpu.matmul %2, %4, %cst {dimension_numbers = #tpu.dot_dimension_numbers<[1], [0], [0], [1], [0, 0, 1, 1], [], []>} : vector<256x3xbf16>, vector<3x16xbf16>, vector<256x16xf32> -> vector<256x16xf32>
    %c1 = arith.constant 1 : index
    %c0_5 = arith.constant 0 : index
    %c0_6 = arith.constant 0 : index
    %6 = vector.load %arg2[%c1, %c0_5, %c0_6] : memref<4x3x16xbf16, #tpu.memory_space<vmem>>, vector<1x3x16xbf16>
    %7 = vector.shape_cast %6 : vector<1x3x16xbf16> to vector<3x16xbf16>
    %cst_7 = arith.constant dense<0.000000e+00> : vector<256x16xf32>
    %8 = tpu.matmul %2, %7, %cst_7 {dimension_numbers = #tpu.dot_dimension_numbers<[1], [0], [0], [1], [0, 0, 1, 1], [], []>} : vector<256x3xbf16>, vector<3x16xbf16>, vector<256x16xf32> -> vector<256x16xf32>
    %c2 = arith.constant 2 : index
    %c0_8 = arith.constant 0 : index
    %c0_9 = arith.constant 0 : index
    %9 = vector.load %arg2[%c2, %c0_8, %c0_9] : memref<4x3x16xbf16, #tpu.memory_space<vmem>>, vector<1x3x16xbf16>
    %10 = vector.shape_cast %9 : vector<1x3x16xbf16> to vector<3x16xbf16>
    %cst_10 = arith.constant dense<0.000000e+00> : vector<256x16xf32>
    %11 = tpu.matmul %2, %10, %cst_10 {dimension_numbers = #tpu.dot_dimension_numbers<[1], [0], [0], [1], [0, 0, 1, 1], [], []>} : vector<256x3xbf16>, vector<3x16xbf16>, vector<256x16xf32> -> vector<256x16xf32>
    %c3 = arith.constant 3 : index
    %c0_11 = arith.constant 0 : index
    %c0_12 = arith.constant 0 : index
    %12 = vector.load %arg2[%c3, %c0_11, %c0_12] : memref<4x3x16xbf16, #tpu.memory_space<vmem>>, vector<1x3x16xbf16>
    %13 = vector.shape_cast %12 : vector<1x3x16xbf16> to vector<3x16xbf16>
    %cst_13 = arith.constant dense<0.000000e+00> : vector<256x16xf32>
    %14 = tpu.matmul %2, %13, %cst_13 {dimension_numbers = #tpu.dot_dimension_numbers<[1], [0], [0], [1], [0, 0, 1, 1], [], []>} : vector<256x3xbf16>, vector<3x16xbf16>, vector<256x16xf32> -> vector<256x16xf32>
    %15 = tpu.concatenate %5, %8, %11, %14 in 0 : vector<256x16xf32>, vector<256x16xf32>, vector<256x16xf32>, vector<256x16xf32> -> vector<1024x16xf32>
    %16 = arith.truncf %15 : vector<1024x16xf32> to vector<1024x16xbf16>
    %c0_14 = arith.constant 0 : index
    %c0_15 = arith.constant 0 : index
    %17 = vector.load %arg4[%c0_14, %c0_15] : memref<88x1024xbf16, #tpu.memory_space<vmem>>, vector<88x1024xbf16>
    %cst_16 = arith.constant dense<0.000000e+00> : vector<88x16xf32>
    %18 = tpu.matmul %17, %16, %cst_16 {dimension_numbers = #tpu.dot_dimension_numbers<[1], [0], [0], [1], [0, 0, 1, 1], [], []>} : vector<88x1024xbf16>, vector<1024x16xbf16>, vector<88x16xf32> -> vector<88x16xf32>
    %c0_17 = arith.constant 0 : index
    %c0_18 = arith.constant 0 : index
    %19 = vector.load %arg3[%c0_17, %c0_18] : memref<1x16xf32, #tpu.memory_space<vmem>>, vector<1x16xf32>
    %20 = vector.broadcast %19 : vector<1x16xf32> to vector<88x16xf32>
    %21 = arith.addf %18, %20 : vector<88x16xf32>
    %cst_19 = arith.constant 0.000000e+00 : f32
    %22 = vector.broadcast %cst_19 : f32 to vector<88x16xf32>
    %23 = arith.maximumf %21, %22 : vector<88x16xf32>
    %24 = arith.truncf %23 : vector<88x16xf32> to vector<88x16xbf16>
    %c0_20 = arith.constant 0 : index
    %c0_21 = arith.constant 0 : index
    %c0_22 = arith.constant 0 : index
    %25 = vector.load %arg5[%c0_20, %c0_21, %c0_22] : memref<4x16x32xbf16, #tpu.memory_space<vmem>>, vector<1x16x32xbf16>
    %26 = vector.shape_cast %25 : vector<1x16x32xbf16> to vector<16x32xbf16>
    %cst_23 = arith.constant dense<0.000000e+00> : vector<88x32xf32>
    %27 = tpu.matmul %24, %26, %cst_23 {dimension_numbers = #tpu.dot_dimension_numbers<[1], [0], [0], [1], [0, 0, 1, 1], [], []>} : vector<88x16xbf16>, vector<16x32xbf16>, vector<88x32xf32> -> vector<88x32xf32>
    %c1_24 = arith.constant 1 : index
    %c0_25 = arith.constant 0 : index
    %c0_26 = arith.constant 0 : index
    %28 = vector.load %arg5[%c1_24, %c0_25, %c0_26] : memref<4x16x32xbf16, #tpu.memory_space<vmem>>, vector<1x16x32xbf16>
    %29 = vector.shape_cast %28 : vector<1x16x32xbf16> to vector<16x32xbf16>
    %cst_27 = arith.constant dense<0.000000e+00> : vector<88x32xf32>
    %30 = tpu.matmul %24, %29, %cst_27 {dimension_numbers = #tpu.dot_dimension_numbers<[1], [0], [0], [1], [0, 0, 1, 1], [], []>} : vector<88x16xbf16>, vector<16x32xbf16>, vector<88x32xf32> -> vector<88x32xf32>
    %c2_28 = arith.constant 2 : index
    %c0_29 = arith.constant 0 : index
    %c0_30 = arith.constant 0 : index
    %31 = vector.load %arg5[%c2_28, %c0_29, %c0_30] : memref<4x16x32xbf16, #tpu.memory_space<vmem>>, vector<1x16x32xbf16>
    %32 = vector.shape_cast %31 : vector<1x16x32xbf16> to vector<16x32xbf16>
    %cst_31 = arith.constant dense<0.000000e+00> : vector<88x32xf32>
    %33 = tpu.matmul %24, %32, %cst_31 {dimension_numbers = #tpu.dot_dimension_numbers<[1], [0], [0], [1], [0, 0, 1, 1], [], []>} : vector<88x16xbf16>, vector<16x32xbf16>, vector<88x32xf32> -> vector<88x32xf32>
    %c3_32 = arith.constant 3 : index
    %c0_33 = arith.constant 0 : index
    %c0_34 = arith.constant 0 : index
    %34 = vector.load %arg5[%c3_32, %c0_33, %c0_34] : memref<4x16x32xbf16, #tpu.memory_space<vmem>>, vector<1x16x32xbf16>
    %35 = vector.shape_cast %34 : vector<1x16x32xbf16> to vector<16x32xbf16>
    %cst_35 = arith.constant dense<0.000000e+00> : vector<88x32xf32>
    %36 = tpu.matmul %24, %35, %cst_35 {dimension_numbers = #tpu.dot_dimension_numbers<[1], [0], [0], [1], [0, 0, 1, 1], [], []>} : vector<88x16xbf16>, vector<16x32xbf16>, vector<88x32xf32> -> vector<88x32xf32>
    %37 = tpu.concatenate %27, %30, %33, %36 in 0 : vector<88x32xf32>, vector<88x32xf32>, vector<88x32xf32>, vector<88x32xf32> -> vector<352x32xf32>
    %38 = arith.truncf %37 : vector<352x32xf32> to vector<352x32xbf16>
    %c0_36 = arith.constant 0 : index
    %c0_37 = arith.constant 0 : index
    %39 = vector.load %arg7[%c0_36, %c0_37] : memref<32x352xbf16, #tpu.memory_space<vmem>>, vector<32x352xbf16>
    %cst_38 = arith.constant dense<0.000000e+00> : vector<32x32xf32>
    %40 = tpu.matmul %39, %38, %cst_38 {dimension_numbers = #tpu.dot_dimension_numbers<[1], [0], [0], [1], [0, 0, 1, 1], [], []>} : vector<32x352xbf16>, vector<352x32xbf16>, vector<32x32xf32> -> vector<32x32xf32>
    %c0_39 = arith.constant 0 : index
    %c0_40 = arith.constant 0 : index
    %41 = vector.load %arg6[%c0_39, %c0_40] : memref<1x32xf32, #tpu.memory_space<vmem>>, vector<1x32xf32>
    %42 = vector.broadcast %41 : vector<1x32xf32> to vector<32x32xf32>
    %43 = arith.addf %40, %42 : vector<32x32xf32>
    %cst_41 = arith.constant 0.000000e+00 : f32
    %44 = vector.broadcast %cst_41 : f32 to vector<32x32xf32>
    %45 = arith.maximumf %43, %44 : vector<32x32xf32>
    %46 = arith.truncf %45 : vector<32x32xf32> to vector<32x32xbf16>
    %c0_42 = arith.constant 0 : index
    %c0_43 = arith.constant 0 : index
    %c0_44 = arith.constant 0 : index
    %47 = vector.load %arg8[%c0_42, %c0_43, %c0_44] : memref<4x32x64xbf16, #tpu.memory_space<vmem>>, vector<1x32x64xbf16>
    %48 = vector.shape_cast %47 : vector<1x32x64xbf16> to vector<32x64xbf16>
    %cst_45 = arith.constant dense<0.000000e+00> : vector<32x64xf32>
    %49 = tpu.matmul %46, %48, %cst_45 {dimension_numbers = #tpu.dot_dimension_numbers<[1], [0], [0], [1], [0, 0, 1, 1], [], []>} : vector<32x32xbf16>, vector<32x64xbf16>, vector<32x64xf32> -> vector<32x64xf32>
    %c1_46 = arith.constant 1 : index
    %c0_47 = arith.constant 0 : index
    %c0_48 = arith.constant 0 : index
    %50 = vector.load %arg8[%c1_46, %c0_47, %c0_48] : memref<4x32x64xbf16, #tpu.memory_space<vmem>>, vector<1x32x64xbf16>
    %51 = vector.shape_cast %50 : vector<1x32x64xbf16> to vector<32x64xbf16>
    %cst_49 = arith.constant dense<0.000000e+00> : vector<32x64xf32>
    %52 = tpu.matmul %46, %51, %cst_49 {dimension_numbers = #tpu.dot_dimension_numbers<[1], [0], [0], [1], [0, 0, 1, 1], [], []>} : vector<32x32xbf16>, vector<32x64xbf16>, vector<32x64xf32> -> vector<32x64xf32>
    %c2_50 = arith.constant 2 : index
    %c0_51 = arith.constant 0 : index
    %c0_52 = arith.constant 0 : index
    %53 = vector.load %arg8[%c2_50, %c0_51, %c0_52] : memref<4x32x64xbf16, #tpu.memory_space<vmem>>, vector<1x32x64xbf16>
    %54 = vector.shape_cast %53 : vector<1x32x64xbf16> to vector<32x64xbf16>
    %cst_53 = arith.constant dense<0.000000e+00> : vector<32x64xf32>
    %55 = tpu.matmul %46, %54, %cst_53 {dimension_numbers = #tpu.dot_dimension_numbers<[1], [0], [0], [1], [0, 0, 1, 1], [], []>} : vector<32x32xbf16>, vector<32x64xbf16>, vector<32x64xf32> -> vector<32x64xf32>
    %c3_54 = arith.constant 3 : index
    %c0_55 = arith.constant 0 : index
    %c0_56 = arith.constant 0 : index
    %56 = vector.load %arg8[%c3_54, %c0_55, %c0_56] : memref<4x32x64xbf16, #tpu.memory_space<vmem>>, vector<1x32x64xbf16>
    %57 = vector.shape_cast %56 : vector<1x32x64xbf16> to vector<32x64xbf16>
    %cst_57 = arith.constant dense<0.000000e+00> : vector<32x64xf32>
    %58 = tpu.matmul %46, %57, %cst_57 {dimension_numbers = #tpu.dot_dimension_numbers<[1], [0], [0], [1], [0, 0, 1, 1], [], []>} : vector<32x32xbf16>, vector<32x64xbf16>, vector<32x64xf32> -> vector<32x64xf32>
    %59 = tpu.concatenate %49, %52, %55, %58 in 0 : vector<32x64xf32>, vector<32x64xf32>, vector<32x64xf32>, vector<32x64xf32> -> vector<128x64xf32>
    %60 = arith.truncf %59 : vector<128x64xf32> to vector<128x64xbf16>
    %c0_58 = arith.constant 0 : index
    %c0_59 = arith.constant 0 : index
    %61 = vector.load %arg10[%c0_58, %c0_59] : memref<16x128xbf16, #tpu.memory_space<vmem>>, vector<16x128xbf16>
    %cst_60 = arith.constant dense<0.000000e+00> : vector<16x64xf32>
    %62 = tpu.matmul %61, %60, %cst_60 {dimension_numbers = #tpu.dot_dimension_numbers<[1], [0], [0], [1], [0, 0, 1, 1], [], []>} : vector<16x128xbf16>, vector<128x64xbf16>, vector<16x64xf32> -> vector<16x64xf32>
    %c0_61 = arith.constant 0 : index
    %c0_62 = arith.constant 0 : index
    %63 = vector.load %arg9[%c0_61, %c0_62] : memref<1x64xf32, #tpu.memory_space<vmem>>, vector<1x64xf32>
    %64 = vector.broadcast %63 : vector<1x64xf32> to vector<16x64xf32>
    %65 = arith.addf %62, %64 : vector<16x64xf32>
    %cst_63 = arith.constant 0.000000e+00 : f32
    %66 = vector.broadcast %cst_63 : f32 to vector<16x64xf32>
    %67 = arith.maximumf %65, %66 : vector<16x64xf32>
    %68 = arith.truncf %67 : vector<16x64xf32> to vector<16x64xbf16>
    %c0_64 = arith.constant 0 : index
    %c0_65 = arith.constant 0 : index
    %c0_66 = arith.constant 0 : index
    %69 = vector.load %arg11[%c0_64, %c0_65, %c0_66] : memref<4x64x64xbf16, #tpu.memory_space<vmem>>, vector<1x64x64xbf16>
    %70 = vector.shape_cast %69 : vector<1x64x64xbf16> to vector<64x64xbf16>
    %cst_67 = arith.constant dense<0.000000e+00> : vector<16x64xf32>
    %71 = tpu.matmul %68, %70, %cst_67 {dimension_numbers = #tpu.dot_dimension_numbers<[1], [0], [0], [1], [0, 0, 1, 1], [], []>} : vector<16x64xbf16>, vector<64x64xbf16>, vector<16x64xf32> -> vector<16x64xf32>
    %c1_68 = arith.constant 1 : index
    %c0_69 = arith.constant 0 : index
    %c0_70 = arith.constant 0 : index
    %72 = vector.load %arg11[%c1_68, %c0_69, %c0_70] : memref<4x64x64xbf16, #tpu.memory_space<vmem>>, vector<1x64x64xbf16>
    %73 = vector.shape_cast %72 : vector<1x64x64xbf16> to vector<64x64xbf16>
    %cst_71 = arith.constant dense<0.000000e+00> : vector<16x64xf32>
    %74 = tpu.matmul %68, %73, %cst_71 {dimension_numbers = #tpu.dot_dimension_numbers<[1], [0], [0], [1], [0, 0, 1, 1], [], []>} : vector<16x64xbf16>, vector<64x64xbf16>, vector<16x64xf32> -> vector<16x64xf32>
    %c2_72 = arith.constant 2 : index
    %c0_73 = arith.constant 0 : index
    %c0_74 = arith.constant 0 : index
    %75 = vector.load %arg11[%c2_72, %c0_73, %c0_74] : memref<4x64x64xbf16, #tpu.memory_space<vmem>>, vector<1x64x64xbf16>
    %76 = vector.shape_cast %75 : vector<1x64x64xbf16> to vector<64x64xbf16>
    %cst_75 = arith.constant dense<0.000000e+00> : vector<16x64xf32>
    %77 = tpu.matmul %68, %76, %cst_75 {dimension_numbers = #tpu.dot_dimension_numbers<[1], [0], [0], [1], [0, 0, 1, 1], [], []>} : vector<16x64xbf16>, vector<64x64xbf16>, vector<16x64xf32> -> vector<16x64xf32>
    %c3_76 = arith.constant 3 : index
    %c0_77 = arith.constant 0 : index
    %c0_78 = arith.constant 0 : index
    %78 = vector.load %arg11[%c3_76, %c0_77, %c0_78] : memref<4x64x64xbf16, #tpu.memory_space<vmem>>, vector<1x64x64xbf16>
    %79 = vector.shape_cast %78 : vector<1x64x64xbf16> to vector<64x64xbf16>
    %cst_79 = arith.constant dense<0.000000e+00> : vector<16x64xf32>
    %80 = tpu.matmul %68, %79, %cst_79 {dimension_numbers = #tpu.dot_dimension_numbers<[1], [0], [0], [1], [0, 0, 1, 1], [], []>} : vector<16x64xbf16>, vector<64x64xbf16>, vector<16x64xf32> -> vector<16x64xf32>
    %81 = tpu.concatenate %71, %74, %77, %80 in 0 : vector<16x64xf32>, vector<16x64xf32>, vector<16x64xf32>, vector<16x64xf32> -> vector<64x64xf32>
    %82 = arith.truncf %81 : vector<64x64xf32> to vector<64x64xbf16>
    %c0_80 = arith.constant 0 : index
    %c0_81 = arith.constant 0 : index
    %83 = vector.load %arg13[%c0_80, %c0_81] : memref<8x64xbf16, #tpu.memory_space<vmem>>, vector<8x64xbf16>
    %cst_82 = arith.constant dense<0.000000e+00> : vector<8x64xf32>
    %84 = tpu.matmul %83, %82, %cst_82 {dimension_numbers = #tpu.dot_dimension_numbers<[1], [0], [0], [1], [0, 0, 1, 1], [], []>} : vector<8x64xbf16>, vector<64x64xbf16>, vector<8x64xf32> -> vector<8x64xf32>
    %c0_83 = arith.constant 0 : index
    %c0_84 = arith.constant 0 : index
    %85 = vector.load %arg12[%c0_83, %c0_84] : memref<1x64xf32, #tpu.memory_space<vmem>>, vector<1x64xf32>
    %86 = vector.broadcast %85 : vector<1x64xf32> to vector<8x64xf32>
    %87 = arith.addf %84, %86 : vector<8x64xf32>
    %cst_85 = arith.constant 0.000000e+00 : f32
    %88 = vector.broadcast %cst_85 : f32 to vector<8x64xf32>
    %89 = arith.maximumf %87, %88 : vector<8x64xf32>
    %90 = arith.truncf %89 : vector<8x64xf32> to vector<8x64xbf16>
    %c0_86 = arith.constant 0 : index
    %c0_87 = arith.constant 0 : index
    %c0_88 = arith.constant 0 : index
    %91 = vector.load %arg14[%c0_86, %c0_87, %c0_88] : memref<4x64x128xbf16, #tpu.memory_space<vmem>>, vector<1x64x128xbf16>
    %92 = vector.shape_cast %91 : vector<1x64x128xbf16> to vector<64x128xbf16>
    %cst_89 = arith.constant dense<0.000000e+00> : vector<8x128xf32>
    %93 = tpu.matmul %90, %92, %cst_89 {dimension_numbers = #tpu.dot_dimension_numbers<[1], [0], [0], [1], [0, 0, 1, 1], [], []>} : vector<8x64xbf16>, vector<64x128xbf16>, vector<8x128xf32> -> vector<8x128xf32>
    %c1_90 = arith.constant 1 : index
    %c0_91 = arith.constant 0 : index
    %c0_92 = arith.constant 0 : index
    %94 = vector.load %arg14[%c1_90, %c0_91, %c0_92] : memref<4x64x128xbf16, #tpu.memory_space<vmem>>, vector<1x64x128xbf16>
    %95 = vector.shape_cast %94 : vector<1x64x128xbf16> to vector<64x128xbf16>
    %cst_93 = arith.constant dense<0.000000e+00> : vector<8x128xf32>
    %96 = tpu.matmul %90, %95, %cst_93 {dimension_numbers = #tpu.dot_dimension_numbers<[1], [0], [0], [1], [0, 0, 1, 1], [], []>} : vector<8x64xbf16>, vector<64x128xbf16>, vector<8x128xf32> -> vector<8x128xf32>
    %c2_94 = arith.constant 2 : index
    %c0_95 = arith.constant 0 : index
    %c0_96 = arith.constant 0 : index
    %97 = vector.load %arg14[%c2_94, %c0_95, %c0_96] : memref<4x64x128xbf16, #tpu.memory_space<vmem>>, vector<1x64x128xbf16>
    %98 = vector.shape_cast %97 : vector<1x64x128xbf16> to vector<64x128xbf16>
    %cst_97 = arith.constant dense<0.000000e+00> : vector<8x128xf32>
    %99 = tpu.matmul %90, %98, %cst_97 {dimension_numbers = #tpu.dot_dimension_numbers<[1], [0], [0], [1], [0, 0, 1, 1], [], []>} : vector<8x64xbf16>, vector<64x128xbf16>, vector<8x128xf32> -> vector<8x128xf32>
    %c3_98 = arith.constant 3 : index
    %c0_99 = arith.constant 0 : index
    %c0_100 = arith.constant 0 : index
    %100 = vector.load %arg14[%c3_98, %c0_99, %c0_100] : memref<4x64x128xbf16, #tpu.memory_space<vmem>>, vector<1x64x128xbf16>
    %101 = vector.shape_cast %100 : vector<1x64x128xbf16> to vector<64x128xbf16>
    %cst_101 = arith.constant dense<0.000000e+00> : vector<8x128xf32>
    %102 = tpu.matmul %90, %101, %cst_101 {dimension_numbers = #tpu.dot_dimension_numbers<[1], [0], [0], [1], [0, 0, 1, 1], [], []>} : vector<8x64xbf16>, vector<64x128xbf16>, vector<8x128xf32> -> vector<8x128xf32>
    %103 = tpu.concatenate %93, %96, %99, %102 in 0 : vector<8x128xf32>, vector<8x128xf32>, vector<8x128xf32>, vector<8x128xf32> -> vector<32x128xf32>
    %104 = arith.truncf %103 : vector<32x128xf32> to vector<32x128xbf16>
    %c0_102 = arith.constant 0 : index
    %c0_103 = arith.constant 0 : index
    %105 = vector.load %arg16[%c0_102, %c0_103] : memref<8x32xbf16, #tpu.memory_space<vmem>>, vector<8x32xbf16>
    %cst_104 = arith.constant dense<0.000000e+00> : vector<8x128xf32>
    %106 = tpu.matmul %105, %104, %cst_104 {dimension_numbers = #tpu.dot_dimension_numbers<[1], [0], [0], [1], [0, 0, 1, 1], [], []>} : vector<8x32xbf16>, vector<32x128xbf16>, vector<8x128xf32> -> vector<8x128xf32>
    %c0_105 = arith.constant 0 : index
    %c0_106 = arith.constant 0 : index
    %107 = vector.load %arg15[%c0_105, %c0_106] : memref<1x128xf32, #tpu.memory_space<vmem>>, vector<1x128xf32>
    %108 = vector.broadcast %107 : vector<1x128xf32> to vector<8x128xf32>
    %109 = arith.addf %106, %108 : vector<8x128xf32>
    %110 = arith.truncf %109 : vector<8x128xf32> to vector<8x128xbf16>
    %c0_107 = arith.constant 0 : index
    %c0_108 = arith.constant 0 : index
    %c0_109 = arith.constant 0 : index
    %111 = vector.load %arg17[%c0_107, %c0_108, %c0_109] : memref<4x128x64xbf16, #tpu.memory_space<vmem>>, vector<1x128x64xbf16>
    %112 = vector.shape_cast %111 : vector<1x128x64xbf16> to vector<128x64xbf16>
    %cst_110 = arith.constant dense<0.000000e+00> : vector<8x64xf32>
    %113 = tpu.matmul %110, %112, %cst_110 {dimension_numbers = #tpu.dot_dimension_numbers<[1], [0], [0], [1], [0, 0, 1, 1], [], []>} : vector<8x128xbf16>, vector<128x64xbf16>, vector<8x64xf32> -> vector<8x64xf32>
    %c1_111 = arith.constant 1 : index
    %c0_112 = arith.constant 0 : index
    %c0_113 = arith.constant 0 : index
    %114 = vector.load %arg17[%c1_111, %c0_112, %c0_113] : memref<4x128x64xbf16, #tpu.memory_space<vmem>>, vector<1x128x64xbf16>
    %115 = vector.shape_cast %114 : vector<1x128x64xbf16> to vector<128x64xbf16>
    %cst_114 = arith.constant dense<0.000000e+00> : vector<8x64xf32>
    %116 = tpu.matmul %110, %115, %cst_114 {dimension_numbers = #tpu.dot_dimension_numbers<[1], [0], [0], [1], [0, 0, 1, 1], [], []>} : vector<8x128xbf16>, vector<128x64xbf16>, vector<8x64xf32> -> vector<8x64xf32>
    %c2_115 = arith.constant 2 : index
    %c0_116 = arith.constant 0 : index
    %c0_117 = arith.constant 0 : index
    %117 = vector.load %arg17[%c2_115, %c0_116, %c0_117] : memref<4x128x64xbf16, #tpu.memory_space<vmem>>, vector<1x128x64xbf16>
    %118 = vector.shape_cast %117 : vector<1x128x64xbf16> to vector<128x64xbf16>
    %cst_118 = arith.constant dense<0.000000e+00> : vector<8x64xf32>
    %119 = tpu.matmul %110, %118, %cst_118 {dimension_numbers = #tpu.dot_dimension_numbers<[1], [0], [0], [1], [0, 0, 1, 1], [], []>} : vector<8x128xbf16>, vector<128x64xbf16>, vector<8x64xf32> -> vector<8x64xf32>
    %c3_119 = arith.constant 3 : index
    %c0_120 = arith.constant 0 : index
    %c0_121 = arith.constant 0 : index
    %120 = vector.load %arg17[%c3_119, %c0_120, %c0_121] : memref<4x128x64xbf16, #tpu.memory_space<vmem>>, vector<1x128x64xbf16>
    %121 = vector.shape_cast %120 : vector<1x128x64xbf16> to vector<128x64xbf16>
    %cst_122 = arith.constant dense<0.000000e+00> : vector<8x64xf32>
    %122 = tpu.matmul %110, %121, %cst_122 {dimension_numbers = #tpu.dot_dimension_numbers<[1], [0], [0], [1], [0, 0, 1, 1], [], []>} : vector<8x128xbf16>, vector<128x64xbf16>, vector<8x64xf32> -> vector<8x64xf32>
    %123 = tpu.concatenate %113, %116, %119, %122 in 0 : vector<8x64xf32>, vector<8x64xf32>, vector<8x64xf32>, vector<8x64xf32> -> vector<32x64xf32>
    %124 = arith.truncf %123 : vector<32x64xf32> to vector<32x64xbf16>
    %c0_123 = arith.constant 0 : index
    %c0_124 = arith.constant 0 : index
    %125 = vector.load %arg19[%c0_123, %c0_124] : memref<8x32xbf16, #tpu.memory_space<vmem>>, vector<8x32xbf16>
    %cst_125 = arith.constant dense<0.000000e+00> : vector<8x64xf32>
    %126 = tpu.matmul %125, %124, %cst_125 {dimension_numbers = #tpu.dot_dimension_numbers<[1], [0], [0], [1], [0, 0, 1, 1], [], []>} : vector<8x32xbf16>, vector<32x64xbf16>, vector<8x64xf32> -> vector<8x64xf32>
    %c0_126 = arith.constant 0 : index
    %c0_127 = arith.constant 0 : index
    %127 = vector.load %arg18[%c0_126, %c0_127] : memref<1x64xf32, #tpu.memory_space<vmem>>, vector<1x64xf32>
    %128 = vector.broadcast %127 : vector<1x64xf32> to vector<8x64xf32>
    %129 = arith.addf %126, %128 : vector<8x64xf32>
    %cst_128 = arith.constant 0.000000e+00 : f32
    %130 = vector.broadcast %cst_128 : f32 to vector<8x64xf32>
    %131 = arith.maximumf %129, %130 : vector<8x64xf32>
    %132 = arith.truncf %131 : vector<8x64xf32> to vector<8x64xbf16>
    %c0_129 = arith.constant 0 : index
    %c0_130 = arith.constant 0 : index
    %c0_131 = arith.constant 0 : index
    %133 = vector.load %arg20[%c0_129, %c0_130, %c0_131] : memref<4x64x64xbf16, #tpu.memory_space<vmem>>, vector<1x64x64xbf16>
    %134 = vector.shape_cast %133 : vector<1x64x64xbf16> to vector<64x64xbf16>
    %cst_132 = arith.constant dense<0.000000e+00> : vector<8x64xf32>
    %135 = tpu.matmul %132, %134, %cst_132 {dimension_numbers = #tpu.dot_dimension_numbers<[1], [0], [0], [1], [0, 0, 1, 1], [], []>} : vector<8x64xbf16>, vector<64x64xbf16>, vector<8x64xf32> -> vector<8x64xf32>
    %c1_133 = arith.constant 1 : index
    %c0_134 = arith.constant 0 : index
    %c0_135 = arith.constant 0 : index
    %136 = vector.load %arg20[%c1_133, %c0_134, %c0_135] : memref<4x64x64xbf16, #tpu.memory_space<vmem>>, vector<1x64x64xbf16>
    %137 = vector.shape_cast %136 : vector<1x64x64xbf16> to vector<64x64xbf16>
    %cst_136 = arith.constant dense<0.000000e+00> : vector<8x64xf32>
    %138 = tpu.matmul %132, %137, %cst_136 {dimension_numbers = #tpu.dot_dimension_numbers<[1], [0], [0], [1], [0, 0, 1, 1], [], []>} : vector<8x64xbf16>, vector<64x64xbf16>, vector<8x64xf32> -> vector<8x64xf32>
    %c2_137 = arith.constant 2 : index
    %c0_138 = arith.constant 0 : index
    %c0_139 = arith.constant 0 : index
    %139 = vector.load %arg20[%c2_137, %c0_138, %c0_139] : memref<4x64x64xbf16, #tpu.memory_space<vmem>>, vector<1x64x64xbf16>
    %140 = vector.shape_cast %139 : vector<1x64x64xbf16> to vector<64x64xbf16>
    %cst_140 = arith.constant dense<0.000000e+00> : vector<8x64xf32>
    %141 = tpu.matmul %132, %140, %cst_140 {dimension_numbers = #tpu.dot_dimension_numbers<[1], [0], [0], [1], [0, 0, 1, 1], [], []>} : vector<8x64xbf16>, vector<64x64xbf16>, vector<8x64xf32> -> vector<8x64xf32>
    %c3_141 = arith.constant 3 : index
    %c0_142 = arith.constant 0 : index
    %c0_143 = arith.constant 0 : index
    %142 = vector.load %arg20[%c3_141, %c0_142, %c0_143] : memref<4x64x64xbf16, #tpu.memory_space<vmem>>, vector<1x64x64xbf16>
    %143 = vector.shape_cast %142 : vector<1x64x64xbf16> to vector<64x64xbf16>
    %cst_144 = arith.constant dense<0.000000e+00> : vector<8x64xf32>
    %144 = tpu.matmul %132, %143, %cst_144 {dimension_numbers = #tpu.dot_dimension_numbers<[1], [0], [0], [1], [0, 0, 1, 1], [], []>} : vector<8x64xbf16>, vector<64x64xbf16>, vector<8x64xf32> -> vector<8x64xf32>
    %145 = tpu.concatenate %135, %138, %141, %144 in 0 : vector<8x64xf32>, vector<8x64xf32>, vector<8x64xf32>, vector<8x64xf32> -> vector<32x64xf32>
    %146 = arith.truncf %145 : vector<32x64xf32> to vector<32x64xbf16>
    %c0_145 = arith.constant 0 : index
    %c0_146 = arith.constant 0 : index
    %147 = vector.load %arg22[%c0_145, %c0_146] : memref<16x32xbf16, #tpu.memory_space<vmem>>, vector<16x32xbf16>
    %cst_147 = arith.constant dense<0.000000e+00> : vector<16x64xf32>
    %148 = tpu.matmul %147, %146, %cst_147 {dimension_numbers = #tpu.dot_dimension_numbers<[1], [0], [0], [1], [0, 0, 1, 1], [], []>} : vector<16x32xbf16>, vector<32x64xbf16>, vector<16x64xf32> -> vector<16x64xf32>
    %c0_148 = arith.constant 0 : index
    %c0_149 = arith.constant 0 : index
    %149 = vector.load %arg21[%c0_148, %c0_149] : memref<1x64xf32, #tpu.memory_space<vmem>>, vector<1x64xf32>
    %150 = vector.broadcast %149 : vector<1x64xf32> to vector<16x64xf32>
    %151 = arith.addf %148, %150 : vector<16x64xf32>
    %cst_150 = arith.constant 0.000000e+00 : f32
    %152 = vector.broadcast %cst_150 : f32 to vector<16x64xf32>
    %153 = arith.maximumf %151, %152 : vector<16x64xf32>
    %154 = arith.truncf %153 : vector<16x64xf32> to vector<16x64xbf16>
    %c0_151 = arith.constant 0 : index
    %c0_152 = arith.constant 0 : index
    %c0_153 = arith.constant 0 : index
    %155 = vector.load %arg23[%c0_151, %c0_152, %c0_153] : memref<4x64x32xbf16, #tpu.memory_space<vmem>>, vector<1x64x32xbf16>
    %156 = vector.shape_cast %155 : vector<1x64x32xbf16> to vector<64x32xbf16>
    %cst_154 = arith.constant dense<0.000000e+00> : vector<16x32xf32>
    %157 = tpu.matmul %154, %156, %cst_154 {dimension_numbers = #tpu.dot_dimension_numbers<[1], [0], [0], [1], [0, 0, 1, 1], [], []>} : vector<16x64xbf16>, vector<64x32xbf16>, vector<16x32xf32> -> vector<16x32xf32>
    %c1_155 = arith.constant 1 : index
    %c0_156 = arith.constant 0 : index
    %c0_157 = arith.constant 0 : index
    %158 = vector.load %arg23[%c1_155, %c0_156, %c0_157] : memref<4x64x32xbf16, #tpu.memory_space<vmem>>, vector<1x64x32xbf16>
    %159 = vector.shape_cast %158 : vector<1x64x32xbf16> to vector<64x32xbf16>
    %cst_158 = arith.constant dense<0.000000e+00> : vector<16x32xf32>
    %160 = tpu.matmul %154, %159, %cst_158 {dimension_numbers = #tpu.dot_dimension_numbers<[1], [0], [0], [1], [0, 0, 1, 1], [], []>} : vector<16x64xbf16>, vector<64x32xbf16>, vector<16x32xf32> -> vector<16x32xf32>
    %c2_159 = arith.constant 2 : index
    %c0_160 = arith.constant 0 : index
    %c0_161 = arith.constant 0 : index
    %161 = vector.load %arg23[%c2_159, %c0_160, %c0_161] : memref<4x64x32xbf16, #tpu.memory_space<vmem>>, vector<1x64x32xbf16>
    %162 = vector.shape_cast %161 : vector<1x64x32xbf16> to vector<64x32xbf16>
    %cst_162 = arith.constant dense<0.000000e+00> : vector<16x32xf32>
    %163 = tpu.matmul %154, %162, %cst_162 {dimension_numbers = #tpu.dot_dimension_numbers<[1], [0], [0], [1], [0, 0, 1, 1], [], []>} : vector<16x64xbf16>, vector<64x32xbf16>, vector<16x32xf32> -> vector<16x32xf32>
    %c3_163 = arith.constant 3 : index
    %c0_164 = arith.constant 0 : index
    %c0_165 = arith.constant 0 : index
    %164 = vector.load %arg23[%c3_163, %c0_164, %c0_165] : memref<4x64x32xbf16, #tpu.memory_space<vmem>>, vector<1x64x32xbf16>
    %165 = vector.shape_cast %164 : vector<1x64x32xbf16> to vector<64x32xbf16>
    %cst_166 = arith.constant dense<0.000000e+00> : vector<16x32xf32>
    %166 = tpu.matmul %154, %165, %cst_166 {dimension_numbers = #tpu.dot_dimension_numbers<[1], [0], [0], [1], [0, 0, 1, 1], [], []>} : vector<16x64xbf16>, vector<64x32xbf16>, vector<16x32xf32> -> vector<16x32xf32>
    %167 = tpu.concatenate %157, %160, %163, %166 in 0 : vector<16x32xf32>, vector<16x32xf32>, vector<16x32xf32>, vector<16x32xf32> -> vector<64x32xf32>
    %168 = arith.truncf %167 : vector<64x32xf32> to vector<64x32xbf16>
    %c0_167 = arith.constant 0 : index
    %c0_168 = arith.constant 0 : index
    %169 = vector.load %arg25[%c0_167, %c0_168] : memref<32x64xbf16, #tpu.memory_space<vmem>>, vector<32x64xbf16>
    %cst_169 = arith.constant dense<0.000000e+00> : vector<32x32xf32>
    %170 = tpu.matmul %169, %168, %cst_169 {dimension_numbers = #tpu.dot_dimension_numbers<[1], [0], [0], [1], [0, 0, 1, 1], [], []>} : vector<32x64xbf16>, vector<64x32xbf16>, vector<32x32xf32> -> vector<32x32xf32>
    %c0_170 = arith.constant 0 : index
    %c0_171 = arith.constant 0 : index
    %171 = vector.load %arg24[%c0_170, %c0_171] : memref<1x32xf32, #tpu.memory_space<vmem>>, vector<1x32xf32>
    %172 = vector.broadcast %171 : vector<1x32xf32> to vector<32x32xf32>
    %173 = arith.addf %170, %172 : vector<32x32xf32>
    %cst_172 = arith.constant 0.000000e+00 : f32
    %174 = vector.broadcast %cst_172 : f32 to vector<32x32xf32>
    %175 = arith.maximumf %173, %174 : vector<32x32xf32>
    %176 = arith.truncf %175 : vector<32x32xf32> to vector<32x32xbf16>
    %c0_173 = arith.constant 0 : index
    %c0_174 = arith.constant 0 : index
    %c0_175 = arith.constant 0 : index
    %177 = vector.load %arg26[%c0_173, %c0_174, %c0_175] : memref<4x32x16xbf16, #tpu.memory_space<vmem>>, vector<1x32x16xbf16>
    %178 = vector.shape_cast %177 : vector<1x32x16xbf16> to vector<32x16xbf16>
    %cst_176 = arith.constant dense<0.000000e+00> : vector<32x16xf32>
    %179 = tpu.matmul %176, %178, %cst_176 {dimension_numbers = #tpu.dot_dimension_numbers<[1], [0], [0], [1], [0, 0, 1, 1], [], []>} : vector<32x32xbf16>, vector<32x16xbf16>, vector<32x16xf32> -> vector<32x16xf32>
    %c1_177 = arith.constant 1 : index
    %c0_178 = arith.constant 0 : index
    %c0_179 = arith.constant 0 : index
    %180 = vector.load %arg26[%c1_177, %c0_178, %c0_179] : memref<4x32x16xbf16, #tpu.memory_space<vmem>>, vector<1x32x16xbf16>
    %181 = vector.shape_cast %180 : vector<1x32x16xbf16> to vector<32x16xbf16>
    %cst_180 = arith.constant dense<0.000000e+00> : vector<32x16xf32>
    %182 = tpu.matmul %176, %181, %cst_180 {dimension_numbers = #tpu.dot_dimension_numbers<[1], [0], [0], [1], [0, 0, 1, 1], [], []>} : vector<32x32xbf16>, vector<32x16xbf16>, vector<32x16xf32> -> vector<32x16xf32>
    %c2_181 = arith.constant 2 : index
    %c0_182 = arith.constant 0 : index
    %c0_183 = arith.constant 0 : index
    %183 = vector.load %arg26[%c2_181, %c0_182, %c0_183] : memref<4x32x16xbf16, #tpu.memory_space<vmem>>, vector<1x32x16xbf16>
    %184 = vector.shape_cast %183 : vector<1x32x16xbf16> to vector<32x16xbf16>
    %cst_184 = arith.constant dense<0.000000e+00> : vector<32x16xf32>
    %185 = tpu.matmul %176, %184, %cst_184 {dimension_numbers = #tpu.dot_dimension_numbers<[1], [0], [0], [1], [0, 0, 1, 1], [], []>} : vector<32x32xbf16>, vector<32x16xbf16>, vector<32x16xf32> -> vector<32x16xf32>
    %c3_185 = arith.constant 3 : index
    %c0_186 = arith.constant 0 : index
    %c0_187 = arith.constant 0 : index
    %186 = vector.load %arg26[%c3_185, %c0_186, %c0_187] : memref<4x32x16xbf16, #tpu.memory_space<vmem>>, vector<1x32x16xbf16>
    %187 = vector.shape_cast %186 : vector<1x32x16xbf16> to vector<32x16xbf16>
    %cst_188 = arith.constant dense<0.000000e+00> : vector<32x16xf32>
    %188 = tpu.matmul %176, %187, %cst_188 {dimension_numbers = #tpu.dot_dimension_numbers<[1], [0], [0], [1], [0, 0, 1, 1], [], []>} : vector<32x32xbf16>, vector<32x16xbf16>, vector<32x16xf32> -> vector<32x16xf32>
    %189 = tpu.concatenate %179, %182, %185, %188 in 0 : vector<32x16xf32>, vector<32x16xf32>, vector<32x16xf32>, vector<32x16xf32> -> vector<128x16xf32>
    %190 = arith.truncf %189 : vector<128x16xf32> to vector<128x16xbf16>
    %c0_189 = arith.constant 0 : index
    %c0_190 = arith.constant 0 : index
    %191 = vector.load %arg28[%c0_189, %c0_190] : memref<88x128xbf16, #tpu.memory_space<vmem>>, vector<88x128xbf16>
    %cst_191 = arith.constant dense<0.000000e+00> : vector<88x16xf32>
    %192 = tpu.matmul %191, %190, %cst_191 {dimension_numbers = #tpu.dot_dimension_numbers<[1], [0], [0], [1], [0, 0, 1, 1], [], []>} : vector<88x128xbf16>, vector<128x16xbf16>, vector<88x16xf32> -> vector<88x16xf32>
    %c0_192 = arith.constant 0 : index
    %c0_193 = arith.constant 0 : index
    %193 = vector.load %arg27[%c0_192, %c0_193] : memref<1x16xf32, #tpu.memory_space<vmem>>, vector<1x16xf32>
    %194 = vector.broadcast %193 : vector<1x16xf32> to vector<88x16xf32>
    %195 = arith.addf %192, %194 : vector<88x16xf32>
    %cst_194 = arith.constant 0.000000e+00 : f32
    %196 = vector.broadcast %cst_194 : f32 to vector<88x16xf32>
    %197 = arith.maximumf %195, %196 : vector<88x16xf32>
    %198 = arith.truncf %197 : vector<88x16xf32> to vector<88x16xbf16>
    %c0_195 = arith.constant 0 : index
    %c0_196 = arith.constant 0 : index
    %c0_197 = arith.constant 0 : index
    %199 = vector.load %arg29[%c0_195, %c0_196, %c0_197] : memref<4x16x3xbf16, #tpu.memory_space<vmem>>, vector<1x16x3xbf16>
    %200 = vector.shape_cast %199 : vector<1x16x3xbf16> to vector<16x3xbf16>
    %cst_198 = arith.constant dense<0.000000e+00> : vector<88x3xf32>
    %201 = tpu.matmul %198, %200, %cst_198 {dimension_numbers = #tpu.dot_dimension_numbers<[1], [0], [0], [1], [0, 0, 1, 1], [], []>} : vector<88x16xbf16>, vector<16x3xbf16>, vector<88x3xf32> -> vector<88x3xf32>
    %c1_199 = arith.constant 1 : index
    %c0_200 = arith.constant 0 : index
    %c0_201 = arith.constant 0 : index
    %202 = vector.load %arg29[%c1_199, %c0_200, %c0_201] : memref<4x16x3xbf16, #tpu.memory_space<vmem>>, vector<1x16x3xbf16>
    %203 = vector.shape_cast %202 : vector<1x16x3xbf16> to vector<16x3xbf16>
    %cst_202 = arith.constant dense<0.000000e+00> : vector<88x3xf32>
    %204 = tpu.matmul %198, %203, %cst_202 {dimension_numbers = #tpu.dot_dimension_numbers<[1], [0], [0], [1], [0, 0, 1, 1], [], []>} : vector<88x16xbf16>, vector<16x3xbf16>, vector<88x3xf32> -> vector<88x3xf32>
    %c2_203 = arith.constant 2 : index
    %c0_204 = arith.constant 0 : index
    %c0_205 = arith.constant 0 : index
    %205 = vector.load %arg29[%c2_203, %c0_204, %c0_205] : memref<4x16x3xbf16, #tpu.memory_space<vmem>>, vector<1x16x3xbf16>
    %206 = vector.shape_cast %205 : vector<1x16x3xbf16> to vector<16x3xbf16>
    %cst_206 = arith.constant dense<0.000000e+00> : vector<88x3xf32>
    %207 = tpu.matmul %198, %206, %cst_206 {dimension_numbers = #tpu.dot_dimension_numbers<[1], [0], [0], [1], [0, 0, 1, 1], [], []>} : vector<88x16xbf16>, vector<16x3xbf16>, vector<88x3xf32> -> vector<88x3xf32>
    %c3_207 = arith.constant 3 : index
    %c0_208 = arith.constant 0 : index
    %c0_209 = arith.constant 0 : index
    %208 = vector.load %arg29[%c3_207, %c0_208, %c0_209] : memref<4x16x3xbf16, #tpu.memory_space<vmem>>, vector<1x16x3xbf16>
    %209 = vector.shape_cast %208 : vector<1x16x3xbf16> to vector<16x3xbf16>
    %cst_210 = arith.constant dense<0.000000e+00> : vector<88x3xf32>
    %210 = tpu.matmul %198, %209, %cst_210 {dimension_numbers = #tpu.dot_dimension_numbers<[1], [0], [0], [1], [0, 0, 1, 1], [], []>} : vector<88x16xbf16>, vector<16x3xbf16>, vector<88x3xf32> -> vector<88x3xf32>
    %211 = tpu.concatenate %201, %204, %207, %210 in 0 : vector<88x3xf32>, vector<88x3xf32>, vector<88x3xf32>, vector<88x3xf32> -> vector<352x3xf32>
    %212 = arith.truncf %211 : vector<352x3xf32> to vector<352x3xbf16>
    %c0_211 = arith.constant 0 : index
    %c0_212 = arith.constant 0 : index
    %213 = vector.load %arg31[%c0_211, %c0_212] : memref<256x352xbf16, #tpu.memory_space<vmem>>, vector<256x352xbf16>
    %cst_213 = arith.constant dense<0.000000e+00> : vector<256x3xf32>
    %214 = tpu.matmul %213, %212, %cst_213 {dimension_numbers = #tpu.dot_dimension_numbers<[1], [0], [0], [1], [0, 0, 1, 1], [], []>} : vector<256x352xbf16>, vector<352x3xbf16>, vector<256x3xf32> -> vector<256x3xf32>
    %c0_214 = arith.constant 0 : index
    %c0_215 = arith.constant 0 : index
    %215 = vector.load %arg30[%c0_214, %c0_215] : memref<1x3xf32, #tpu.memory_space<vmem>>, vector<1x3xf32>
    %216 = vector.broadcast %215 : vector<1x3xf32> to vector<256x3xf32>
    %217 = arith.addf %214, %216 : vector<256x3xf32>
    %218 = arith.negf %217 : vector<256x3xf32>
    %219 = math.exp %218 : vector<256x3xf32>
    %cst_216 = arith.constant 1.000000e+00 : f32
    %220 = vector.broadcast %cst_216 : f32 to vector<256x3xf32>
    %221 = arith.addf %220, %219 : vector<256x3xf32>
    %222 = arith.divf %220, %221 : vector<256x3xf32>
    %c0_217 = arith.constant 0 : index
    %c0_218 = arith.constant 0 : index
    %c0_219 = arith.constant 0 : index
    %223 = vector.load %arg32[%c0_217, %c0_218, %c0_219] : memref<1x256x3xf32, #tpu.memory_space<vmem>>, vector<1x256x3xf32>
    %224 = vector.shape_cast %223 : vector<1x256x3xf32> to vector<256x3xf32>
    %225 = vector.shape_cast %222 : vector<256x3xf32> to vector<1x256x3xf32>
    tpu.vector_store %arg32[%c0_217, %c0_218, %c0_219], %225 {strides = array<i32>} : memref<1x256x3xf32, #tpu.memory_space<vmem>>, vector<1x256x3xf32>,
    return
  }
  func.func @transform_0(%arg0: i32) -> (i32, i32, i32) {
    %c0_i32 = arith.constant 0 : i32
    %c0_i32_0 = arith.constant 0 : i32
    %c0_i32_1 = arith.constant 0 : i32
    return %arg0, %c0_i32, %c0_i32_0 : i32, i32, i32
  }
  func.func @transform_1(%arg0: i32) -> (i32, i32, i32) {
    %c0_i32 = arith.constant 0 : i32
    %c0_i32_0 = arith.constant 0 : i32
    %c0_i32_1 = arith.constant 0 : i32
    %c0_i32_2 = arith.constant 0 : i32
    return %c0_i32, %c0_i32_0, %c0_i32_1 : i32, i32, i32
  }
  func.func @transform_2(%arg0: i32) -> (i32, i32) {
    %c0_i32 = arith.constant 0 : i32
    %c0_i32_0 = arith.constant 0 : i32
    %c0_i32_1 = arith.constant 0 : i32
    return %c0_i32, %c0_i32_0 : i32, i32
  }
  func.func @transform_3(%arg0: i32) -> (i32, i32) {
    %c0_i32 = arith.constant 0 : i32
    %c0_i32_0 = arith.constant 0 : i32
    %c0_i32_1 = arith.constant 0 : i32
    return %c0_i32, %c0_i32_0 : i32, i32
  }
  func.func @transform_4(%arg0: i32) -> (i32, i32, i32) {
    %c0_i32 = arith.constant 0 : i32
    %c0_i32_0 = arith.constant 0 : i32
    %c0_i32_1 = arith.constant 0 : i32
    %c0_i32_2 = arith.constant 0 : i32
    return %c0_i32, %c0_i32_0, %c0_i32_1 : i32, i32, i32
  }
  func.func @transform_5(%arg0: i32) -> (i32, i32) {
    %c0_i32 = arith.constant 0 : i32
    %c0_i32_0 = arith.constant 0 : i32
    %c0_i32_1 = arith.constant 0 : i32
    return %c0_i32, %c0_i32_0 : i32, i32
  }
  func.func @transform_6(%arg0: i32) -> (i32, i32) {
    %c0_i32 = arith.constant 0 : i32
    %c0_i32_0 = arith.constant 0 : i32
    %c0_i32_1 = arith.constant 0 : i32
    return %c0_i32, %c0_i32_0 : i32, i32
  }
  func.func @transform_7(%arg0: i32) -> (i32, i32, i32) {
    %c0_i32 = arith.constant 0 : i32
    %c0_i32_0 = arith.constant 0 : i32
    %c0_i32_1 = arith.constant 0 : i32
    %c0_i32_2 = arith.constant 0 : i32
    return %c0_i32, %c0_i32_0, %c0_i32_1 : i32, i32, i32
  }
  func.func @transform_8(%arg0: i32) -> (i32, i32) {
    %c0_i32 = arith.constant 0 : i32
    %c0_i32_0 = arith.constant 0 : i32
    %c0_i32_1 = arith.constant 0 : i32
    return %c0_i32, %c0_i32_0 : i32, i32
  }
  func.func @transform_9(%arg0: i32) -> (i32, i32) {
    %c0_i32 = arith.constant 0 : i32
    %c0_i32_0 = arith.constant 0 : i32
    %c0_i32_1 = arith.constant 0 : i32
    return %c0_i32, %c0_i32_0 : i32, i32
  }
  func.func @transform_10(%arg0: i32) -> (i32, i32, i32) {
    %c0_i32 = arith.constant 0 : i32
    %c0_i32_0 = arith.constant 0 : i32
    %c0_i32_1 = arith.constant 0 : i32
    %c0_i32_2 = arith.constant 0 : i32
    return %c0_i32, %c0_i32_0, %c0_i32_1 : i32, i32, i32
  }
  func.func @transform_11(%arg0: i32) -> (i32, i32) {
    %c0_i32 = arith.constant 0 : i32
    %c0_i32_0 = arith.constant 0 : i32
    %c0_i32_1 = arith.constant 0 : i32
    return %c0_i32, %c0_i32_0 : i32, i32
  }
  func.func @transform_12(%arg0: i32) -> (i32, i32) {
    %c0_i32 = arith.constant 0 : i32
    %c0_i32_0 = arith.constant 0 : i32
    %c0_i32_1 = arith.constant 0 : i32
    return %c0_i32, %c0_i32_0 : i32, i32
  }
  func.func @transform_13(%arg0: i32) -> (i32, i32, i32) {
    %c0_i32 = arith.constant 0 : i32
    %c0_i32_0 = arith.constant 0 : i32
    %c0_i32_1 = arith.constant 0 : i32
    %c0_i32_2 = arith.constant 0 : i32
    return %c0_i32, %c0_i32_0, %c0_i32_1 : i32, i32, i32
  }
  func.func @transform_14(%arg0: i32) -> (i32, i32) {
    %c0_i32 = arith.constant 0 : i32
    %c0_i32_0 = arith.constant 0 : i32
    %c0_i32_1 = arith.constant 0 : i32
    return %c0_i32, %c0_i32_0 : i32, i32
  }
  func.func @transform_15(%arg0: i32) -> (i32, i32) {
    %c0_i32 = arith.constant 0 : i32
    %c0_i32_0 = arith.constant 0 : i32
    %c0_i32_1 = arith.constant 0 : i32
    return %c0_i32, %c0_i32_0 : i32, i32
  }
  func.func @transform_16(%arg0: i32) -> (i32, i32, i32) {
    %c0_i32 = arith.constant 0 : i32
    %c0_i32_0 = arith.constant 0 : i32
    %c0_i32_1 = arith.constant 0 : i32
    %c0_i32_2 = arith.constant 0 : i32
    return %c0_i32, %c0_i32_0, %c0_i32_1 : i32, i32, i32
  }
  func.func @transform_17(%arg0: i32) -> (i32, i32) {
    %c0_i32 = arith.constant 0 : i32
    %c0_i32_0 = arith.constant 0 : i32
    %c0_i32_1 = arith.constant 0 : i32
    return %c0_i32, %c0_i32_0 : i32, i32
  }
  func.func @transform_18(%arg0: i32) -> (i32, i32) {
    %c0_i32 = arith.constant 0 : i32
    %c0_i32_0 = arith.constant 0 : i32
    %c0_i32_1 = arith.constant 0 : i32
    return %c0_i32, %c0_i32_0 : i32, i32
  }
  func.func @transform_19(%arg0: i32) -> (i32, i32, i32) {
    %c0_i32 = arith.constant 0 : i32
    %c0_i32_0 = arith.constant 0 : i32
    %c0_i32_1 = arith.constant 0 : i32
    %c0_i32_2 = arith.constant 0 : i32
    return %c0_i32, %c0_i32_0, %c0_i32_1 : i32, i32, i32
  }
  func.func @transform_20(%arg0: i32) -> (i32, i32) {
    %c0_i32 = arith.constant 0 : i32
    %c0_i32_0 = arith.constant 0 : i32
    %c0_i32_1 = arith.constant 0 : i32
    return %c0_i32, %c0_i32_0 : i32, i32
  }
  func.func @transform_21(%arg0: i32) -> (i32, i32) {
    %c0_i32 = arith.constant 0 : i32
    %c0_i32_0 = arith.constant 0 : i32
    %c0_i32_1 = arith.constant 0 : i32
    return %c0_i32, %c0_i32_0 : i32, i32
  }
  func.func @transform_22(%arg0: i32) -> (i32, i32, i32) {
    %c0_i32 = arith.constant 0 : i32
    %c0_i32_0 = arith.constant 0 : i32
    %c0_i32_1 = arith.constant 0 : i32
    %c0_i32_2 = arith.constant 0 : i32
    return %c0_i32, %c0_i32_0, %c0_i32_1 : i32, i32, i32
  }
  func.func @transform_23(%arg0: i32) -> (i32, i32) {
    %c0_i32 = arith.constant 0 : i32
    %c0_i32_0 = arith.constant 0 : i32
    %c0_i32_1 = arith.constant 0 : i32
    return %c0_i32, %c0_i32_0 : i32, i32
  }
  func.func @transform_24(%arg0: i32) -> (i32, i32) {
    %c0_i32 = arith.constant 0 : i32
    %c0_i32_0 = arith.constant 0 : i32
    %c0_i32_1 = arith.constant 0 : i32
    return %c0_i32, %c0_i32_0 : i32, i32
  }
  func.func @transform_25(%arg0: i32) -> (i32, i32, i32) {
    %c0_i32 = arith.constant 0 : i32
    %c0_i32_0 = arith.constant 0 : i32
    %c0_i32_1 = arith.constant 0 : i32
    %c0_i32_2 = arith.constant 0 : i32
    return %c0_i32, %c0_i32_0, %c0_i32_1 : i32, i32, i32
  }
  func.func @transform_26(%arg0: i32) -> (i32, i32) {
    %c0_i32 = arith.constant 0 : i32
    %c0_i32_0 = arith.constant 0 : i32
    %c0_i32_1 = arith.constant 0 : i32
    return %c0_i32, %c0_i32_0 : i32, i32
  }
  func.func @transform_27(%arg0: i32) -> (i32, i32) {
    %c0_i32 = arith.constant 0 : i32
    %c0_i32_0 = arith.constant 0 : i32
    %c0_i32_1 = arith.constant 0 : i32
    return %c0_i32, %c0_i32_0 : i32, i32
  }
  func.func @transform_28(%arg0: i32) -> (i32, i32, i32) {
    %c0_i32 = arith.constant 0 : i32
    %c0_i32_0 = arith.constant 0 : i32
    %c0_i32_1 = arith.constant 0 : i32
    %c0_i32_2 = arith.constant 0 : i32
    return %c0_i32, %c0_i32_0, %c0_i32_1 : i32, i32, i32
  }
  func.func @transform_29(%arg0: i32) -> (i32, i32) {
    %c0_i32 = arith.constant 0 : i32
    %c0_i32_0 = arith.constant 0 : i32
    %c0_i32_1 = arith.constant 0 : i32
    return %c0_i32, %c0_i32_0 : i32, i32
  }
  func.func @transform_30(%arg0: i32) -> (i32, i32) {
    %c0_i32 = arith.constant 0 : i32
    %c0_i32_0 = arith.constant 0 : i32
    %c0_i32_1 = arith.constant 0 : i32
    return %c0_i32, %c0_i32_0 : i32, i32
  }
  func.func @transform_31(%arg0: i32) -> (i32, i32, i32) {
    %c0_i32 = arith.constant 0 : i32
    %c0_i32_0 = arith.constant 0 : i32
    %c0_i32_1 = arith.constant 0 : i32
    return %arg0, %c0_i32, %c0_i32_0 : i32, i32, i32
  }
}

</mosaic_0001>

<llo_original>
// kernel: cnn_ae_forward.1
$region0: #{cnn_ae_forward.1}
  #allocation0 [shape = 'u32[]', space=smem, size = 0x4, offset = 0x4, fixed_abs, tag = 'smem constant byte address 0x4 - core index']
  #allocation1 [shape = 'u32[144,128]{1,0:T(1,128)}', space=vmem, size = 0x12000, scoped, tag = 'internal scratch']
  %s0 = inlined_call_operand.smem [shape: u32[32], index: -1, kind: input, shape index: {}]
  %s1 = sld [smem:[%s0]]
  %s2 = scalar_lea.smem %s0, 1
  %s3 = sld [smem:[%s2]]
  %s4 = scalar_lea.smem %s0, 2
  %s5 = sld [smem:[%s4]]
  %s6 = scalar_lea.smem %s0, 3
  %s7 = sld [smem:[%s6]]
  %s8 = scalar_lea.smem %s0, 4
  %s9 = sld [smem:[%s8]]
  %s10 = scalar_lea.smem %s0, 5
  %s11 = sld [smem:[%s10]]
  %s12 = scalar_lea.smem %s0, 6
  %s13 = sld [smem:[%s12]]
  %s14 = scalar_lea.smem %s0, 7
  %s15 = sld [smem:[%s14]]
  %s16 = scalar_lea.smem %s0, 8
  %s17 = sld [smem:[%s16]]
  %s18 = scalar_lea.smem %s0, 9
  %s19 = sld [smem:[%s18]]
  %s20 = scalar_lea.smem %s0, 10
  %s21 = sld [smem:[%s20]]
  %s22 = scalar_lea.smem %s0, 11
  %s23 = sld [smem:[%s22]]
  %s24 = scalar_lea.smem %s0, 12
  %s25 = sld [smem:[%s24]]
  %s26 = scalar_lea.smem %s0, 13
  %s27 = sld [smem:[%s26]]
  %s28 = scalar_lea.smem %s0, 14
  %s29 = sld [smem:[%s28]]
  %s30 = scalar_lea.smem %s0, 15
  %s31 = sld [smem:[%s30]]
  %s32 = scalar_lea.smem %s0, 16
  %s33 = sld [smem:[%s32]]
  %s34 = scalar_lea.smem %s0, 17
  %s35 = sld [smem:[%s34]]
  %s36 = scalar_lea.smem %s0, 18
  %s37 = sld [smem:[%s36]]
  %s38 = scalar_lea.smem %s0, 19
  %s39 = sld [smem:[%s38]]
  %s40 = scalar_lea.smem %s0, 20
  %s41 = sld [smem:[%s40]]
  %s42 = scalar_lea.smem %s0, 21
  %s43 = sld [smem:[%s42]]
  %s44 = scalar_lea.smem %s0, 22
  %s45 = sld [smem:[%s44]]
  %s46 = scalar_lea.smem %s0, 23
  %s47 = sld [smem:[%s46]]
  %s48 = scalar_lea.smem %s0, 24
  %s49 = sld [smem:[%s48]]
  %s50 = scalar_lea.smem %s0, 25
  %s51 = sld [smem:[%s50]]
  %s52 = scalar_lea.smem %s0, 26
  %s53 = sld [smem:[%s52]]
  %s54 = scalar_lea.smem %s0, 27
  %s55 = sld [smem:[%s54]]
  %s56 = scalar_lea.smem %s0, 28
  %s57 = sld [smem:[%s56]]
  %s58 = scalar_lea.smem %s0, 29
  %s59 = sld [smem:[%s58]]
  %s60 = scalar_lea.smem %s0, 30
  %s61 = sld [smem:[%s60]]
  %s62 = scalar_lea.smem %s0, 31
  %s63 = sld [smem:[%s62]]
  %s64 = sld [smem:[#allocation0]]
  $region157: #{cnn_ae_forward.1} parent=0
    _
  %s66 = ssub.s32 1, %s64
  %s67 = scalar_select 0, %s66, %s64
  loop: start=0, step=1, limit=4
  $region2: #{cnn_ae_forward.1} parent=0 // loop_pre_header
    _
  $region3: #{cnn_ae_forward.1} parent=0 // loop_header
    %s69 = sphi 0, %s73
    %p70 = scmp.ge.s32.totalorder %s69, 4
    %s79 = sphi 0, %s81
    %s82 = sphi 0, %s79
    %s83 = sphi 0, %s82
    %s99 = sphi 0, %s83
    %s103 = sphi 0, %s103
    %s105 = sphi 0, %s103
    %s106 = sphi 0, %s105
    %s120 = sphi 0, %s106
    %s124 = sphi 0, %s124
    %s126 = sphi 0, %s124
    %s127 = sphi 0, %s126
    %s141 = sphi 0, %s127
    %s145 = sphi 0, %s145
    %s147 = sphi 0, %s145
    %s148 = sphi 0, %s147
    %s162 = sphi 0, %s148
    %s166 = sphi 0, %s166
    %s168 = sphi 0, %s166
    %s169 = sphi 0, %s168
    %s183 = sphi 0, %s169
    %s187 = sphi 0, %s187
    %s189 = sphi 0, %s187
    %s190 = sphi 0, %s189
    %s204 = sphi 0, %s190
    %s208 = sphi 0, %s208
    %s210 = sphi 0, %s208
    %s211 = sphi 0, %s210
    %s225 = sphi 0, %s211
    %s229 = sphi 0, %s229
    %s231 = sphi 0, %s229
    %s232 = sphi 0, %s231
    %s246 = sphi 0, %s232
    %s250 = sphi 0, %s250
    %s252 = sphi 0, %s250
    %s253 = sphi 0, %s252
    %s267 = sphi 0, %s253
    %s271 = sphi 0, %s271
    %s273 = sphi 0, %s271
    %s274 = sphi 0, %s273
    %s288 = sphi 0, %s274
    %s292 = sphi 0, %s292
    %s294 = sphi 0, %s292
    %s295 = sphi 0, %s294
    %s309 = sphi 0, %s295
    %s313 = sphi 0, %s313
    %s315 = sphi 0, %s313
    %s316 = sphi 0, %s315
    %s330 = sphi 0, %s316
    %s334 = sphi 0, %s334
    %s336 = sphi 0, %s334
    %s337 = sphi 0, %s336
    %s351 = sphi 0, %s337
    %s355 = sphi 0, %s355
    %s357 = sphi 0, %s355
    %s358 = sphi 0, %s357
    %s372 = sphi 0, %s358
    %s376 = sphi 0, %s376
    %s378 = sphi 0, %s376
    %s379 = sphi 0, %s378
    %s393 = sphi 0, %s379
    %s397 = sphi 0, %s397
    %s399 = sphi 0, %s397
    %s400 = sphi 0, %s399
    %s414 = sphi 0, %s400
    %s418 = sphi 0, %s418
    %s420 = sphi 0, %s418
    %s421 = sphi 0, %s420
    %s435 = sphi 0, %s421
    %s439 = sphi 0, %s439
    %s441 = sphi 0, %s439
    %s442 = sphi 0, %s441
    %s456 = sphi 0, %s442
    %s460 = sphi 0, %s460
    %s462 = sphi 0, %s460
    %s463 = sphi 0, %s462
    %s477 = sphi 0, %s463
    %s481 = sphi 0, %s481
    %s483 = sphi 0, %s481
    %s484 = sphi 0, %s483
    %s498 = sphi 0, %s484
    %s502 = sphi 0, %s502
    %s504 = sphi 0, %s502
    %s505 = sphi 0, %s504
    %s519 = sphi 0, %s505
    %s523 = sphi 0, %s523
    %s525 = sphi 0, %s523
    %s526 = sphi 0, %s525
    %s540 = sphi 0, %s526
    %s544 = sphi 0, %s544
    %s546 = sphi 0, %s544
    %s547 = sphi 0, %s546
    %s561 = sphi 0, %s547
    %s565 = sphi 0, %s565
    %s567 = sphi 0, %s565
    %s568 = sphi 0, %s567
    %s582 = sphi 0, %s568
    %s586 = sphi 0, %s586
    %s588 = sphi 0, %s586
    %s589 = sphi 0, %s588
    %s603 = sphi 0, %s589
    %s607 = sphi 0, %s607
    %s609 = sphi 0, %s607
    %s610 = sphi 0, %s609
    %s624 = sphi 0, %s610
    %s628 = sphi 0, %s628
    %s630 = sphi 0, %s628
    %s631 = sphi 0, %s630
    %s645 = sphi 0, %s631
    %s649 = sphi 0, %s649
    %s651 = sphi 0, %s649
    %s652 = sphi 0, %s651
    %s666 = sphi 0, %s652
    %s670 = sphi 0, %s670
    %s672 = sphi 0, %s670
    %s673 = sphi 0, %s672
    %s687 = sphi 0, %s673
    %s691 = sphi 0, %s691
    %s693 = sphi 0, %s691
    %s694 = sphi 0, %s693
    %s708 = sphi 0, %s694
    %s712 = sphi 0, %s712
    %s714 = sphi 0, %s712
    %s715 = sphi 0, %s714
    %s729 = sphi 0, %s715
    %s735 = sphi 0, %s737
    %s738 = sphi 0, %s735
    %s739 = sphi 0, %s738
    %s755 = sphi 0, %s739
  $region4: #{cnn_ae_forward.1} parent=0 // loop_header_branch
    %72 = sbr.rel (%p70) target = $region8
  $region5: #{cnn_ae_forward.1} parent=0 // loop_body
    %s74 = ssub.s32 %s69, 1
    %s75 = ssub.s32 %s69, 2
    %s76 = sadd.s32 %s69, 1
    %s77 = ssub.s32 %s69, %s76
    %p78 = scmp.eq.s32.totalorder %s77, 0
    %s80 = sadd.s32 %s79, 1
    %s81 = scalar_select %p78, %s79, %s80
    %p84 = pneg %p78
    %p85 = scmp.eq.s32.totalorder %s69, 1
    %p86 = por %p84, %p85
    %p87 = scmp.ne.s32.totalorder %s79, %s82
    %p88 = scmp.eq.s32.totalorder %s69, 0
    %p89 = por %p87, %p88
    %p90 = scmp.ne.s32.totalorder %s79, %s82
    %p91 = scmp.eq.s32.totalorder %s74, 1
    %p92 = por %p90, %p91
    %p93 = scmp.ne.s32.totalorder %s82, %s83
    %p94 = scmp.eq.s32.totalorder %s74, 0
    %p95 = por %p93, %p94
    %p96 = scmp.ne.s32.totalorder %s82, %s83
    %p97 = scmp.eq.s32.totalorder %s75, 1
    %p98 = por %p96, %p97
    %p100 = scmp.ne.s32.totalorder %s83, %s99
    %p101 = scmp.eq.s32.totalorder %s75, 0
    %p102 = por %p100, %p101
    %s104 = sadd.s32 %s103, 1
    %p107 = scmp.eq.s32.totalorder %s69, 1
    %p108 = scmp.ne.s32.totalorder %s103, %s105
    %p109 = scmp.eq.s32.totalorder %s69, 0
    %p110 = por %p108, %p109
    %p111 = scmp.ne.s32.totalorder %s103, %s105
    %p112 = scmp.eq.s32.totalorder %s74, 1
    %p113 = por %p111, %p112
    %p114 = scmp.ne.s32.totalorder %s105, %s106
    %p115 = scmp.eq.s32.totalorder %s74, 0
    %p116 = por %p114, %p115
    %p117 = scmp.ne.s32.totalorder %s105, %s106
    %p118 = scmp.eq.s32.totalorder %s75, 1
    %p119 = por %p117, %p118
    %p121 = scmp.ne.s32.totalorder %s106, %s120
    %p122 = scmp.eq.s32.totalorder %s75, 0
    %p123 = por %p121, %p122
    %s125 = sadd.s32 %s124, 1
    %p128 = scmp.eq.s32.totalorder %s69, 1
    %p129 = scmp.ne.s32.totalorder %s124, %s126
    %p130 = scmp.eq.s32.totalorder %s69, 0
    %p131 = por %p129, %p130
    %p132 = scmp.ne.s32.totalorder %s124, %s126
    %p133 = scmp.eq.s32.totalorder %s74, 1
    %p134 = por %p132, %p133
    %p135 = scmp.ne.s32.totalorder %s126, %s127
    %p136 = scmp.eq.s32.totalorder %s74, 0
    %p137 = por %p135, %p136
    %p138 = scmp.ne.s32.totalorder %s126, %s127
    %p139 = scmp.eq.s32.totalorder %s75, 1
    %p140 = por %p138, %p139
    %p142 = scmp.ne.s32.totalorder %s127, %s141
    %p143 = scmp.eq.s32.totalorder %s75, 0
    %p144 = por %p142, %p143
    %s146 = sadd.s32 %s145, 1
    %p149 = scmp.eq.s32.totalorder %s69, 1
    %p150 = scmp.ne.s32.totalorder %s145, %s147
    %p151 = scmp.eq.s32.totalorder %s69, 0
    %p152 = por %p150, %p151
    %p153 = scmp.ne.s32.totalorder %s145, %s147
    %p154 = scmp.eq.s32.totalorder %s74, 1
    %p155 = por %p153, %p154
    %p156 = scmp.ne.s32.totalorder %s147, %s148
    %p157 = scmp.eq.s32.totalorder %s74, 0
    %p158 = por %p156, %p157
    %p159 = scmp.ne.s32.totalorder %s147, %s148
    %p160 = scmp.eq.s32.totalorder %s75, 1
    %p161 = por %p159, %p160
    %p163 = scmp.ne.s32.totalorder %s148, %s162
    %p164 = scmp.eq.s32.totalorder %s75, 0
    %p165 = por %p163, %p164
    %s167 = sadd.s32 %s166, 1
    %p170 = scmp.eq.s32.totalorder %s69, 1
    %p171 = scmp.ne.s32.totalorder %s166, %s168
    %p172 = scmp.eq.s32.totalorder %s69, 0
    %p173 = por %p171, %p172
    %p174 = scmp.ne.s32.totalorder %s166, %s168
    %p175 = scmp.eq.s32.totalorder %s74, 1
    %p176 = por %p174, %p175
    %p177 = scmp.ne.s32.totalorder %s168, %s169
    %p178 = scmp.eq.s32.totalorder %s74, 0
    %p179 = por %p177, %p178
    %p180 = scmp.ne.s32.totalorder %s168, %s169
    %p181 = scmp.eq.s32.totalorder %s75, 1
    %p182 = por %p180, %p181
    %p184 = scmp.ne.s32.totalorder %s169, %s183
    %p185 = scmp.eq.s32.totalorder %s75, 0
    %p186 = por %p184, %p185
    %s188 = sadd.s32 %s187, 1
    %p191 = scmp.eq.s32.totalorder %s69, 1
    %p192 = scmp.ne.s32.totalorder %s187, %s189
    %p193 = scmp.eq.s32.totalorder %s69, 0
    %p194 = por %p192, %p193
    %p195 = scmp.ne.s32.totalorder %s187, %s189
    %p196 = scmp.eq.s32.totalorder %s74, 1
    %p197 = por %p195, %p196
    %p198 = scmp.ne.s32.totalorder %s189, %s190
    %p199 = scmp.eq.s32.totalorder %s74, 0
    %p200 = por %p198, %p199
    %p201 = scmp.ne.s32.totalorder %s189, %s190
    %p202 = scmp.eq.s32.totalorder %s75, 1
    %p203 = por %p201, %p202
    %p205 = scmp.ne.s32.totalorder %s190, %s204
    %p206 = scmp.eq.s32.totalorder %s75, 0
    %p207 = por %p205, %p206
    %s209 = sadd.s32 %s208, 1
    %p212 = scmp.eq.s32.totalorder %s69, 1
    %p213 = scmp.ne.s32.totalorder %s208, %s210
    %p214 = scmp.eq.s32.totalorder %s69, 0
    %p215 = por %p213, %p214
    %p216 = scmp.ne.s32.totalorder %s208, %s210
    %p217 = scmp.eq.s32.totalorder %s74, 1
    %p218 = por %p216, %p217
    %p219 = scmp.ne.s32.totalorder %s210, %s211
    %p220 = scmp.eq.s32.totalorder %s74, 0
    %p221 = por %p219, %p220
    %p222 = scmp.ne.s32.totalorder %s210, %s211
    %p223 = scmp.eq.s32.totalorder %s75, 1
    %p224 = por %p222, %p223
    %p226 = scmp.ne.s32.totalorder %s211, %s225
    %p227 = scmp.eq.s32.totalorder %s75, 0
    %p228 = por %p226, %p227
    %s230 = sadd.s32 %s229, 1
    %p233 = scmp.eq.s32.totalorder %s69, 1
    %p234 = scmp.ne.s32.totalorder %s229, %s231
    %p235 = scmp.eq.s32.totalorder %s69, 0
    %p236 = por %p234, %p235
    %p237 = scmp.ne.s32.totalorder %s229, %s231
    %p238 = scmp.eq.s32.totalorder %s74, 1
    %p239 = por %p237, %p238
    %p240 = scmp.ne.s32.totalorder %s231, %s232
    %p241 = scmp.eq.s32.totalorder %s74, 0
    %p242 = por %p240, %p241
    %p243 = scmp.ne.s32.totalorder %s231, %s232
    %p244 = scmp.eq.s32.totalorder %s75, 1
    %p245 = por %p243, %p244
    %p247 = scmp.ne.s32.totalorder %s232, %s246
    %p248 = scmp.eq.s32.totalorder %s75, 0
    %p249 = por %p247, %p248
    %s251 = sadd.s32 %s250, 1
    %p254 = scmp.eq.s32.totalorder %s69, 1
    %p255 = scmp.ne.s32.totalorder %s250, %s252
    %p256 = scmp.eq.s32.totalorder %s69, 0
    %p257 = por %p255, %p256
    %p258 = scmp.ne.s32.totalorder %s250, %s252
    %p259 = scmp.eq.s32.totalorder %s74, 1
    %p260 = por %p258, %p259
    %p261 = scmp.ne.s32.totalorder %s252, %s253
    %p262 = scmp.eq.s32.totalorder %s74, 0
    %p263 = por %p261, %p262
    %p264 = scmp.ne.s32.totalorder %s252, %s253
    %p265 = scmp.eq.s32.totalorder %s75, 1
    %p266 = por %p264, %p265
    %p268 = scmp.ne.s32.totalorder %s253, %s267
    %p269 = scmp.eq.s32.totalorder %s75, 0
    %p270 = por %p268, %p269
    %s272 = sadd.s32 %s271, 1
    %p275 = scmp.eq.s32.totalorder %s69, 1
    %p276 = scmp.ne.s32.totalorder %s271, %s273
    %p277 = scmp.eq.s32.totalorder %s69, 0
    %p278 = por %p276, %p277
    %p279 = scmp.ne.s32.totalorder %s271, %s273
    %p280 = scmp.eq.s32.totalorder %s74, 1
    %p281 = por %p279, %p280
    %p282 = scmp.ne.s32.totalorder %s273, %s274
    %p283 = scmp.eq.s32.totalorder %s74, 0
    %p284 = por %p282, %p283
    %p285 = scmp.ne.s32.totalorder %s273, %s274
    %p286 = scmp.eq.s32.totalorder %s75, 1
    %p287 = por %p285, %p286
    %p289 = scmp.ne.s32.totalorder %s274, %s288
    %p290 = scmp.eq.s32.totalorder %s75, 0
    %p291 = por %p289, %p290
    %s293 = sadd.s32 %s292, 1
    %p296 = scmp.eq.s32.totalorder %s69, 1
    %p297 = scmp.ne.s32.totalorder %s292, %s294
    %p298 = scmp.eq.s32.totalorder %s69, 0
    %p299 = por %p297, %p298
    %p300 = scmp.ne.s32.totalorder %s292, %s294
    %p301 = scmp.eq.s32.totalorder %s74, 1
    %p302 = por %p300, %p301
    %p303 = scmp.ne.s32.totalorder %s294, %s295
    %p304 = scmp.eq.s32.totalorder %s74, 0
    %p305 = por %p303, %p304
    %p306 = scmp.ne.s32.totalorder %s294, %s295
    %p307 = scmp.eq.s32.totalorder %s75, 1
    %p308 = por %p306, %p307
    %p310 = scmp.ne.s32.totalorder %s295, %s309
    %p311 = scmp.eq.s32.totalorder %s75, 0
    %p312 = por %p310, %p311
    %s314 = sadd.s32 %s313, 1
    %p317 = scmp.eq.s32.totalorder %s69, 1
    %p318 = scmp.ne.s32.totalorder %s313, %s315
    %p319 = scmp.eq.s32.totalorder %s69, 0
    %p320 = por %p318, %p319
    %p321 = scmp.ne.s32.totalorder %s313, %s315
    %p322 = scmp.eq.s32.totalorder %s74, 1
    %p323 = por %p321, %p322
    %p324 = scmp.ne.s32.totalorder %s315, %s316
    %p325 = scmp.eq.s32.totalorder %s74, 0
    %p326 = por %p324, %p325
    %p327 = scmp.ne.s32.totalorder %s315, %s316
    %p328 = scmp.eq.s32.totalorder %s75, 1
    %p329 = por %p327, %p328
    %p331 = scmp.ne.s32.totalorder %s316, %s330
    %p332 = scmp.eq.s32.totalorder %s75, 0
    %p333 = por %p331, %p332
    %s335 = sadd.s32 %s334, 1
    %p338 = scmp.eq.s32.totalorder %s69, 1
    %p339 = scmp.ne.s32.totalorder %s334, %s336
    %p340 = scmp.eq.s32.totalorder %s69, 0
    %p341 = por %p339, %p340
    %p342 = scmp.ne.s32.totalorder %s334, %s336
    %p343 = scmp.eq.s32.totalorder %s74, 1
    %p344 = por %p342, %p343
    %p345 = scmp.ne.s32.totalorder %s336, %s337
    %p346 = scmp.eq.s32.totalorder %s74, 0
    %p347 = por %p345, %p346
    %p348 = scmp.ne.s32.totalorder %s336, %s337
    %p349 = scmp.eq.s32.totalorder %s75, 1
    %p350 = por %p348, %p349
    %p352 = scmp.ne.s32.totalorder %s337, %s351
    %p353 = scmp.eq.s32.totalorder %s75, 0
    %p354 = por %p352, %p353
    %s356 = sadd.s32 %s355, 1
    %p359 = scmp.eq.s32.totalorder %s69, 1
    %p360 = scmp.ne.s32.totalorder %s355, %s357
    %p361 = scmp.eq.s32.totalorder %s69, 0
    %p362 = por %p360, %p361
    %p363 = scmp.ne.s32.totalorder %s355, %s357
    %p364 = scmp.eq.s32.totalorder %s74, 1
    %p365 = por %p363, %p364
    %p366 = scmp.ne.s32.totalorder %s357, %s358
    %p367 = scmp.eq.s32.totalorder %s74, 0
    %p368 = por %p366, %p367
    %p369 = scmp.ne.s32.totalorder %s357, %s358
    %p370 = scmp.eq.s32.totalorder %s75, 1
    %p371 = por %p369, %p370
    %p373 = scmp.ne.s32.totalorder %s358, %s372
    %p374 = scmp.eq.s32.totalorder %s75, 0
    %p375 = por %p373, %p374
    %s377 = sadd.s32 %s376, 1
    %p380 = scmp.eq.s32.totalorder %s69, 1
    %p381 = scmp.ne.s32.totalorder %s376, %s378
    %p382 = scmp.eq.s32.totalorder %s69, 0
    %p383 = por %p381, %p382
    %p384 = scmp.ne.s32.totalorder %s376, %s378
    %p385 = scmp.eq.s32.totalorder %s74, 1
    %p386 = por %p384, %p385
    %p387 = scmp.ne.s32.totalorder %s378, %s379
    %p388 = scmp.eq.s32.totalorder %s74, 0
    %p389 = por %p387, %p388
    %p390 = scmp.ne.s32.totalorder %s378, %s379
    %p391 = scmp.eq.s32.totalorder %s75, 1
    %p392 = por %p390, %p391
    %p394 = scmp.ne.s32.totalorder %s379, %s393
    %p395 = scmp.eq.s32.totalorder %s75, 0
    %p396 = por %p394, %p395
    %s398 = sadd.s32 %s397, 1
    %p401 = scmp.eq.s32.totalorder %s69, 1
    %p402 = scmp.ne.s32.totalorder %s397, %s399
    %p403 = scmp.eq.s32.totalorder %s69, 0
    %p404 = por %p402, %p403
    %p405 = scmp.ne.s32.totalorder %s397, %s399
    %p406 = scmp.eq.s32.totalorder %s74, 1
    %p407 = por %p405, %p406
    %p408 = scmp.ne.s32.totalorder %s399, %s400
    %p409 = scmp.eq.s32.totalorder %s74, 0
    %p410 = por %p408, %p409
    %p411 = scmp.ne.s32.totalorder %s399, %s400
    %p412 = scmp.eq.s32.totalorder %s75, 1
    %p413 = por %p411, %p412
    %p415 = scmp.ne.s32.totalorder %s400, %s414
    %p416 = scmp.eq.s32.totalorder %s75, 0
    %p417 = por %p415, %p416
    %s419 = sadd.s32 %s418, 1
    %p422 = scmp.eq.s32.totalorder %s69, 1
    %p423 = scmp.ne.s32.totalorder %s418, %s420
    %p424 = scmp.eq.s32.totalorder %s69, 0
    %p425 = por %p423, %p424
    %p426 = scmp.ne.s32.totalorder %s418, %s420
    %p427 = scmp.eq.s32.totalorder %s74, 1
    %p428 = por %p426, %p427
    %p429 = scmp.ne.s32.totalorder %s420, %s421
    %p430 = scmp.eq.s32.totalorder %s74, 0
    %p431 = por %p429, %p430
    %p432 = scmp.ne.s32.totalorder %s420, %s421
    %p433 = scmp.eq.s32.totalorder %s75, 1
    %p434 = por %p432, %p433
    %p436 = scmp.ne.s32.totalorder %s421, %s435
    %p437 = scmp.eq.s32.totalorder %s75, 0
    %p438 = por %p436, %p437
    %s440 = sadd.s32 %s439, 1
    %p443 = scmp.eq.s32.totalorder %s69, 1
    %p444 = scmp.ne.s32.totalorder %s439, %s441
    %p445 = scmp.eq.s32.totalorder %s69, 0
    %p446 = por %p444, %p445
    %p447 = scmp.ne.s32.totalorder %s439, %s441
    %p448 = scmp.eq.s32.totalorder %s74, 1
    %p449 = por %p447, %p448
    %p450 = scmp.ne.s32.totalorder %s441, %s442
    %p451 = scmp.eq.s32.totalorder %s74, 0
    %p452 = por %p450, %p451
    %p453 = scmp.ne.s32.totalorder %s441, %s442
    %p454 = scmp.eq.s32.totalorder %s75, 1
    %p455 = por %p453, %p454
    %p457 = scmp.ne.s32.totalorder %s442, %s456
    %p458 = scmp.eq.s32.totalorder %s75, 0
    %p459 = por %p457, %p458
    %s461 = sadd.s32 %s460, 1
    %p464 = scmp.eq.s32.totalorder %s69, 1
    %p465 = scmp.ne.s32.totalorder %s460, %s462
    %p466 = scmp.eq.s32.totalorder %s69, 0
    %p467 = por %p465, %p466
    %p468 = scmp.ne.s32.totalorder %s460, %s462
    %p469 = scmp.eq.s32.totalorder %s74, 1
    %p470 = por %p468, %p469
    %p471 = scmp.ne.s32.totalorder %s462, %s463
    %p472 = scmp.eq.s32.totalorder %s74, 0
    %p473 = por %p471, %p472
    %p474 = scmp.ne.s32.totalorder %s462, %s463
    %p475 = scmp.eq.s32.totalorder %s75, 1
    %p476 = por %p474, %p475
    %p478 = scmp.ne.s32.totalorder %s463, %s477
    %p479 = scmp.eq.s32.totalorder %s75, 0
    %p480 = por %p478, %p479
    %s482 = sadd.s32 %s481, 1
    %p485 = scmp.eq.s32.totalorder %s69, 1
    %p486 = scmp.ne.s32.totalorder %s481, %s483
    %p487 = scmp.eq.s32.totalorder %s69, 0
    %p488 = por %p486, %p487
    %p489 = scmp.ne.s32.totalorder %s481, %s483
    %p490 = scmp.eq.s32.totalorder %s74, 1
    %p491 = por %p489, %p490
    %p492 = scmp.ne.s32.totalorder %s483, %s484
    %p493 = scmp.eq.s32.totalorder %s74, 0
    %p494 = por %p492, %p493
    %p495 = scmp.ne.s32.totalorder %s483, %s484
    %p496 = scmp.eq.s32.totalorder %s75, 1
    %p497 = por %p495, %p496
    %p499 = scmp.ne.s32.totalorder %s484, %s498
    %p500 = scmp.eq.s32.totalorder %s75, 0
    %p501 = por %p499, %p500
    %s503 = sadd.s32 %s502, 1
    %p506 = scmp.eq.s32.totalorder %s69, 1
    %p507 = scmp.ne.s32.totalorder %s502, %s504
    %p508 = scmp.eq.s32.totalorder %s69, 0
    %p509 = por %p507, %p508
    %p510 = scmp.ne.s32.totalorder %s502, %s504
    %p511 = scmp.eq.s32.totalorder %s74, 1
    %p512 = por %p510, %p511
    %p513 = scmp.ne.s32.totalorder %s504, %s505
    %p514 = scmp.eq.s32.totalorder %s74, 0
    %p515 = por %p513, %p514
    %p516 = scmp.ne.s32.totalorder %s504, %s505
    %p517 = scmp.eq.s32.totalorder %s75, 1
    %p518 = por %p516, %p517
    %p520 = scmp.ne.s32.totalorder %s505, %s519
    %p521 = scmp.eq.s32.totalorder %s75, 0
    %p522 = por %p520, %p521
    %s524 = sadd.s32 %s523, 1
    %p527 = scmp.eq.s32.totalorder %s69, 1
    %p528 = scmp.ne.s32.totalorder %s523, %s525
    %p529 = scmp.eq.s32.totalorder %s69, 0
    %p530 = por %p528, %p529
    %p531 = scmp.ne.s32.totalorder %s523, %s525
    %p532 = scmp.eq.s32.totalorder %s74, 1
    %p533 = por %p531, %p532
    %p534 = scmp.ne.s32.totalorder %s525, %s526
    %p535 = scmp.eq.s32.totalorder %s74, 0
    %p536 = por %p534, %p535
    %p537 = scmp.ne.s32.totalorder %s525, %s526
    %p538 = scmp.eq.s32.totalorder %s75, 1
    %p539 = por %p537, %p538
    %p541 = scmp.ne.s32.totalorder %s526, %s540
    %p542 = scmp.eq.s32.totalorder %s75, 0
    %p543 = por %p541, %p542
    %s545 = sadd.s32 %s544, 1
    %p548 = scmp.eq.s32.totalorder %s69, 1
    %p549 = scmp.ne.s32.totalorder %s544, %s546
    %p550 = scmp.eq.s32.totalorder %s69, 0
    %p551 = por %p549, %p550
    %p552 = scmp.ne.s32.totalorder %s544, %s546
    %p553 = scmp.eq.s32.totalorder %s74, 1
    %p554 = por %p552, %p553
    %p555 = scmp.ne.s32.totalorder %s546, %s547
    %p556 = scmp.eq.s32.totalorder %s74, 0
    %p557 = por %p555, %p556
    %p558 = scmp.ne.s32.totalorder %s546, %s547
    %p559 = scmp.eq.s32.totalorder %s75, 1
    %p560 = por %p558, %p559
    %p562 = scmp.ne.s32.totalorder %s547, %s561
    %p563 = scmp.eq.s32.totalorder %s75, 0
    %p564 = por %p562, %p563
    %s566 = sadd.s32 %s565, 1
    %p569 = scmp.eq.s32.totalorder %s69, 1
    %p570 = scmp.ne.s32.totalorder %s565, %s567
    %p571 = scmp.eq.s32.totalorder %s69, 0
    %p572 = por %p570, %p571
    %p573 = scmp.ne.s32.totalorder %s565, %s567
    %p574 = scmp.eq.s32.totalorder %s74, 1
    %p575 = por %p573, %p574
    %p576 = scmp.ne.s32.totalorder %s567, %s568
    %p577 = scmp.eq.s32.totalorder %s74, 0
    %p578 = por %p576, %p577
    %p579 = scmp.ne.s32.totalorder %s567, %s568
    %p580 = scmp.eq.s32.totalorder %s75, 1
    %p581 = por %p579, %p580
    %p583 = scmp.ne.s32.totalorder %s568, %s582
    %p584 = scmp.eq.s32.totalorder %s75, 0
    %p585 = por %p583, %p584
    %s587 = sadd.s32 %s586, 1
    %p590 = scmp.eq.s32.totalorder %s69, 1
    %p591 = scmp.ne.s32.totalorder %s586, %s588
    %p592 = scmp.eq.s32.totalorder %s69, 0
    %p593 = por %p591, %p592
    %p594 = scmp.ne.s32.totalorder %s586, %s588
    %p595 = scmp.eq.s32.totalorder %s74, 1
    %p596 = por %p594, %p595
    %p597 = scmp.ne.s32.totalorder %s588, %s589
    %p598 = scmp.eq.s32.totalorder %s74, 0
    %p599 = por %p597, %p598
    %p600 = scmp.ne.s32.totalorder %s588, %s589
    %p601 = scmp.eq.s32.totalorder %s75, 1
    %p602 = por %p600, %p601
    %p604 = scmp.ne.s32.totalorder %s589, %s603
    %p605 = scmp.eq.s32.totalorder %s75, 0
    %p606 = por %p604, %p605
    %s608 = sadd.s32 %s607, 1
    %p611 = scmp.eq.s32.totalorder %s69, 1
    %p612 = scmp.ne.s32.totalorder %s607, %s609
    %p613 = scmp.eq.s32.totalorder %s69, 0
    %p614 = por %p612, %p613
    %p615 = scmp.ne.s32.totalorder %s607, %s609
    %p616 = scmp.eq.s32.totalorder %s74, 1
    %p617 = por %p615, %p616
    %p618 = scmp.ne.s32.totalorder %s609, %s610
    %p619 = scmp.eq.s32.totalorder %s74, 0
    %p620 = por %p618, %p619
    %p621 = scmp.ne.s32.totalorder %s609, %s610
    %p622 = scmp.eq.s32.totalorder %s75, 1
    %p623 = por %p621, %p622
    %p625 = scmp.ne.s32.totalorder %s610, %s624
    %p626 = scmp.eq.s32.totalorder %s75, 0
    %p627 = por %p625, %p626
    %s629 = sadd.s32 %s628, 1
    %p632 = scmp.eq.s32.totalorder %s69, 1
    %p633 = scmp.ne.s32.totalorder %s628, %s630
    %p634 = scmp.eq.s32.totalorder %s69, 0
    %p635 = por %p633, %p634
    %p636 = scmp.ne.s32.totalorder %s628, %s630
    %p637 = scmp.eq.s32.totalorder %s74, 1
    %p638 = por %p636, %p637
    %p639 = scmp.ne.s32.totalorder %s630, %s631
    %p640 = scmp.eq.s32.totalorder %s74, 0
    %p641 = por %p639, %p640
    %p642 = scmp.ne.s32.totalorder %s630, %s631
    %p643 = scmp.eq.s32.totalorder %s75, 1
    %p644 = por %p642, %p643
    %p646 = scmp.ne.s32.totalorder %s631, %s645
    %p647 = scmp.eq.s32.totalorder %s75, 0
    %p648 = por %p646, %p647
    %s650 = sadd.s32 %s649, 1
    %p653 = scmp.eq.s32.totalorder %s69, 1
    %p654 = scmp.ne.s32.totalorder %s649, %s651
    %p655 = scmp.eq.s32.totalorder %s69, 0
    %p656 = por %p654, %p655
    %p657 = scmp.ne.s32.totalorder %s649, %s651
    %p658 = scmp.eq.s32.totalorder %s74, 1
    %p659 = por %p657, %p658
    %p660 = scmp.ne.s32.totalorder %s651, %s652
    %p661 = scmp.eq.s32.totalorder %s74, 0
    %p662 = por %p660, %p661
    %p663 = scmp.ne.s32.totalorder %s651, %s652
    %p664 = scmp.eq.s32.totalorder %s75, 1
    %p665 = por %p663, %p664
    %p667 = scmp.ne.s32.totalorder %s652, %s666
    %p668 = scmp.eq.s32.totalorder %s75, 0
    %p669 = por %p667, %p668
    %s671 = sadd.s32 %s670, 1
    %p674 = scmp.eq.s32.totalorder %s69, 1
    %p675 = scmp.ne.s32.totalorder %s670, %s672
    %p676 = scmp.eq.s32.totalorder %s69, 0
    %p677 = por %p675, %p676
    %p678 = scmp.ne.s32.totalorder %s670, %s672
    %p679 = scmp.eq.s32.totalorder %s74, 1
    %p680 = por %p678, %p679
    %p681 = scmp.ne.s32.totalorder %s672, %s673
    %p682 = scmp.eq.s32.totalorder %s74, 0
    %p683 = por %p681, %p682
    %p684 = scmp.ne.s32.totalorder %s672, %s673
    %p685 = scmp.eq.s32.totalorder %s75, 1
    %p686 = por %p684, %p685
    %p688 = scmp.ne.s32.totalorder %s673, %s687
    %p689 = scmp.eq.s32.totalorder %s75, 0
    %p690 = por %p688, %p689
    %s692 = sadd.s32 %s691, 1
    %p695 = scmp.eq.s32.totalorder %s69, 1
    %p696 = scmp.ne.s32.totalorder %s691, %s693
    %p697 = scmp.eq.s32.totalorder %s69, 0
    %p698 = por %p696, %p697
    %p699 = scmp.ne.s32.totalorder %s691, %s693
    %p700 = scmp.eq.s32.totalorder %s74, 1
    %p701 = por %p699, %p700
    %p702 = scmp.ne.s32.totalorder %s693, %s694
    %p703 = scmp.eq.s32.totalorder %s74, 0
    %p704 = por %p702, %p703
    %p705 = scmp.ne.s32.totalorder %s693, %s694
    %p706 = scmp.eq.s32.totalorder %s75, 1
    %p707 = por %p705, %p706
    %p709 = scmp.ne.s32.totalorder %s694, %s708
    %p710 = scmp.eq.s32.totalorder %s75, 0
    %p711 = por %p709, %p710
    %s713 = sadd.s32 %s712, 1
    %p716 = scmp.eq.s32.totalorder %s69, 1
    %p717 = scmp.ne.s32.totalorder %s712, %s714
    %p718 = scmp.eq.s32.totalorder %s69, 0
    %p719 = por %p717, %p718
    %p720 = scmp.ne.s32.totalorder %s712, %s714
    %p721 = scmp.eq.s32.totalorder %s74, 1
    %p722 = por %p720, %p721
    %p723 = scmp.ne.s32.totalorder %s714, %s715
    %p724 = scmp.eq.s32.totalorder %s74, 0
    %p725 = por %p723, %p724
    %p726 = scmp.ne.s32.totalorder %s714, %s715
    %p727 = scmp.eq.s32.totalorder %s75, 1
    %p728 = por %p726, %p727
    %p730 = scmp.ne.s32.totalorder %s715, %s729
    %p731 = scmp.eq.s32.totalorder %s75, 0
    %p732 = por %p730, %p731
    %s733 = ssub.s32 %s69, %s76
    %p734 = scmp.eq.s32.totalorder %s733, 0
    %s736 = sadd.s32 %s735, 1
    %s737 = scalar_select %p734, %s735, %s736
    %p740 = pneg %p734
    %p741 = scmp.eq.s32.totalorder %s69, 1
    %p742 = por %p740, %p741
    %p743 = scmp.ne.s32.totalorder %s735, %s738
    %p744 = scmp.eq.s32.totalorder %s69, 0
    %p745 = por %p743, %p744
    %p746 = scmp.ne.s32.totalorder %s735, %s738
    %p747 = scmp.eq.s32.totalorder %s74, 1
    %p748 = por %p746, %p747
    %p749 = scmp.ne.s32.totalorder %s738, %s739
    %p750 = scmp.eq.s32.totalorder %s74, 0
    %p751 = por %p749, %p750
    %p752 = scmp.ne.s32.totalorder %s738, %s739
    %p753 = scmp.eq.s32.totalorder %s75, 1
    %p754 = por %p752, %p753
    %p756 = scmp.ne.s32.totalorder %s739, %s755
    %p757 = scmp.eq.s32.totalorder %s75, 0
    %p758 = por %p756, %p757
    %p759 = scmp.le.s32.totalorder 1, %s69
    %p760 = scmp.lt.s32.totalorder %s69, 3
    %p761 = pnand %p759, %p760
    %p762 = pneg %p761
    // Predicated region
    $region9: #{cnn_ae_forward.1} parent=5 // pred_check
      _
    $region10: #{cnn_ae_forward.1} parent=5 // pred_check_branch
      %764 = sbr.rel (%p761) target = $region12
    $region11: #{cnn_ae_forward.1} parent=5 // pred_region
      %s765 = ssub.s32 %s69, 1
      // Predicated region
      $region13: #{cnn_ae_forward.1} parent=11 // pred_check
        %p766 = pneg %p116
      $region14: #{cnn_ae_forward.1} parent=11 // pred_check_branch
        %768 = sbr.rel (%p766) target = $region16
      $region15: #{cnn_ae_forward.1} parent=11 // pred_region
        _
      $region16: #{cnn_ae_forward.1} parent=11 // pred_fallthru
        _
      // Predicated region
      $region17: #{cnn_ae_forward.1} parent=11 // pred_check
        %p769 = pneg %p137
      $region18: #{cnn_ae_forward.1} parent=11 // pred_check_branch
        %771 = sbr.rel (%p769) target = $region20
      $region19: #{cnn_ae_forward.1} parent=11 // pred_region
        _
      $region20: #{cnn_ae_forward.1} parent=11 // pred_fallthru
        _
      // Predicated region
      $region21: #{cnn_ae_forward.1} parent=11 // pred_check
        %p772 = pneg %p158
      $region22: #{cnn_ae_forward.1} parent=11 // pred_check_branch
        %774 = sbr.rel (%p772) target = $region24
      $region23: #{cnn_ae_forward.1} parent=11 // pred_region
        _
      $region24: #{cnn_ae_forward.1} parent=11 // pred_fallthru
        _
      // Predicated region
      $region25: #{cnn_ae_forward.1} parent=11 // pred_check
        %p775 = pneg %p179
      $region26: #{cnn_ae_forward.1} parent=11 // pred_check_branch
        %777 = sbr.rel (%p775) target = $region28
      $region27: #{cnn_ae_forward.1} parent=11 // pred_region
        _
      $region28: #{cnn_ae_forward.1} parent=11 // pred_fallthru
        _
      // Predicated region
      $region29: #{cnn_ae_forward.1} parent=11 // pred_check
        %p778 = pneg %p200
      $region30: #{cnn_ae_forward.1} parent=11 // pred_check_branch
        %780 = sbr.rel (%p778) target = $region32
      $region31: #{cnn_ae_forward.1} parent=11 // pred_region
        _
      $region32: #{cnn_ae_forward.1} parent=11 // pred_fallthru
        _
      // Predicated region
      $region33: #{cnn_ae_forward.1} parent=11 // pred_check
        %p781 = pneg %p221
      $region34: #{cnn_ae_forward.1} parent=11 // pred_check_branch
        %783 = sbr.rel (%p781) target = $region36
      $region35: #{cnn_ae_forward.1} parent=11 // pred_region
        _
      $region36: #{cnn_ae_forward.1} parent=11 // pred_fallthru
        _
      // Predicated region
      $region37: #{cnn_ae_forward.1} parent=11 // pred_check
        %p784 = pneg %p242
      $region38: #{cnn_ae_forward.1} parent=11 // pred_check_branch
        %786 = sbr.rel (%p784) target = $region40
      $region39: #{cnn_ae_forward.1} parent=11 // pred_region
        _
      $region40: #{cnn_ae_forward.1} parent=11 // pred_fallthru
        _
      // Predicated region
      $region41: #{cnn_ae_forward.1} parent=11 // pred_check
        %p787 = pneg %p263
      $region42: #{cnn_ae_forward.1} parent=11 // pred_check_branch
        %789 = sbr.rel (%p787) target = $region44
      $region43: #{cnn_ae_forward.1} parent=11 // pred_region
        _
      $region44: #{cnn_ae_forward.1} parent=11 // pred_fallthru
        _
      // Predicated region
      $region45: #{cnn_ae_forward.1} parent=11 // pred_check
        %p790 = pneg %p284
      $region46: #{cnn_ae_forward.1} parent=11 // pred_check_branch
        %792 = sbr.rel (%p790) target = $region48
      $region47: #{cnn_ae_forward.1} parent=11 // pred_region
        _
      $region48: #{cnn_ae_forward.1} parent=11 // pred_fallthru
        _
      // Predicated region
      $region49: #{cnn_ae_forward.1} parent=11 // pred_check
        %p793 = pneg %p305
      $region50: #{cnn_ae_forward.1} parent=11 // pred_check_branch
        %795 = sbr.rel (%p793) target = $region52
      $region51: #{cnn_ae_forward.1} parent=11 // pred_region
        _
      $region52: #{cnn_ae_forward.1} parent=11 // pred_fallthru
        _
      // Predicated region
      $region53: #{cnn_ae_forward.1} parent=11 // pred_check
        %p796 = pneg %p326
      $region54: #{cnn_ae_forward.1} parent=11 // pred_check_branch
        %798 = sbr.rel (%p796) target = $region56
      $region55: #{cnn_ae_forward.1} parent=11 // pred_region
        _
      $region56: #{cnn_ae_forward.1} parent=11 // pred_fallthru
        _
      // Predicated region
      $region57: #{cnn_ae_forward.1} parent=11 // pred_check
        %p799 = pneg %p347
      $region58: #{cnn_ae_forward.1} parent=11 // pred_check_branch
        %801 = sbr.rel (%p799) target = $region60
      $region59: #{cnn_ae_forward.1} parent=11 // pred_region
        _
      $region60: #{cnn_ae_forward.1} parent=11 // pred_fallthru
        _
      // Predicated region
      $region61: #{cnn_ae_forward.1} parent=11 // pred_check
        %p802 = pneg %p368
      $region62: #{cnn_ae_forward.1} parent=11 // pred_check_branch
        %804 = sbr.rel (%p802) target = $region64
      $region63: #{cnn_ae_forward.1} parent=11 // pred_region
        _
      $region64: #{cnn_ae_forward.1} parent=11 // pred_fallthru
        _
      // Predicated region
      $region65: #{cnn_ae_forward.1} parent=11 // pred_check
        %p805 = pneg %p389
      $region66: #{cnn_ae_forward.1} parent=11 // pred_check_branch
        %807 = sbr.rel (%p805) target = $region68
      $region67: #{cnn_ae_forward.1} parent=11 // pred_region
        _
      $region68: #{cnn_ae_forward.1} parent=11 // pred_fallthru
        _
      // Predicated region
      $region69: #{cnn_ae_forward.1} parent=11 // pred_check
        %p808 = pneg %p410
      $region70: #{cnn_ae_forward.1} parent=11 // pred_check_branch
        %810 = sbr.rel (%p808) target = $region72
      $region71: #{cnn_ae_forward.1} parent=11 // pred_region
        _
      $region72: #{cnn_ae_forward.1} parent=11 // pred_fallthru
        _
      // Predicated region
      $region73: #{cnn_ae_forward.1} parent=11 // pred_check
        %p811 = pneg %p431
      $region74: #{cnn_ae_forward.1} parent=11 // pred_check_branch
        %813 = sbr.rel (%p811) target = $region76
      $region75: #{cnn_ae_forward.1} parent=11 // pred_region
        _
      $region76: #{cnn_ae_forward.1} parent=11 // pred_fallthru
        _
      // Predicated region
      $region77: #{cnn_ae_forward.1} parent=11 // pred_check
        %p814 = pneg %p452
      $region78: #{cnn_ae_forward.1} parent=11 // pred_check_branch
        %816 = sbr.rel (%p814) target = $region80
      $region79: #{cnn_ae_forward.1} parent=11 // pred_region
        _
      $region80: #{cnn_ae_forward.1} parent=11 // pred_fallthru
        _
      // Predicated region
      $region81: #{cnn_ae_forward.1} parent=11 // pred_check
        %p817 = pneg %p473
      $region82: #{cnn_ae_forward.1} parent=11 // pred_check_branch
        %819 = sbr.rel (%p817) target = $region84
      $region83: #{cnn_ae_forward.1} parent=11 // pred_region
        _
      $region84: #{cnn_ae_forward.1} parent=11 // pred_fallthru
        _
      // Predicated region
      $region85: #{cnn_ae_forward.1} parent=11 // pred_check
        %p820 = pneg %p494
      $region86: #{cnn_ae_forward.1} parent=11 // pred_check_branch
        %822 = sbr.rel (%p820) target = $region88
      $region87: #{cnn_ae_forward.1} parent=11 // pred_region
        _
      $region88: #{cnn_ae_forward.1} parent=11 // pred_fallthru
        _
      // Predicated region
      $region89: #{cnn_ae_forward.1} parent=11 // pred_check
        %p823 = pneg %p515
      $region90: #{cnn_ae_forward.1} parent=11 // pred_check_branch
        %825 = sbr.rel (%p823) target = $region92
      $region91: #{cnn_ae_forward.1} parent=11 // pred_region
        _
      $region92: #{cnn_ae_forward.1} parent=11 // pred_fallthru
        _
      // Predicated region
      $region93: #{cnn_ae_forward.1} parent=11 // pred_check
        %p826 = pneg %p536
      $region94: #{cnn_ae_forward.1} parent=11 // pred_check_branch
        %828 = sbr.rel (%p826) target = $region96
      $region95: #{cnn_ae_forward.1} parent=11 // pred_region
        _
      $region96: #{cnn_ae_forward.1} parent=11 // pred_fallthru
        _
      // Predicated region
      $region97: #{cnn_ae_forward.1} parent=11 // pred_check
        %p829 = pneg %p557
      $region98: #{cnn_ae_forward.1} parent=11 // pred_check_branch
        %831 = sbr.rel (%p829) target = $region100
      $region99: #{cnn_ae_forward.1} parent=11 // pred_region
        _
      $region100: #{cnn_ae_forward.1} parent=11 // pred_fallthru
        _
      // Predicated region
      $region101: #{cnn_ae_forward.1} parent=11 // pred_check
        %p832 = pneg %p578
      $region102: #{cnn_ae_forward.1} parent=11 // pred_check_branch
        %834 = sbr.rel (%p832) target = $region104
      $region103: #{cnn_ae_forward.1} parent=11 // pred_region
        _
      $region104: #{cnn_ae_forward.1} parent=11 // pred_fallthru
        _
      // Predicated region
      $region105: #{cnn_ae_forward.1} parent=11 // pred_check
        %p835 = pneg %p599
      $region106: #{cnn_ae_forward.1} parent=11 // pred_check_branch
        %837 = sbr.rel (%p835) target = $region108
      $region107: #{cnn_ae_forward.1} parent=11 // pred_region
        _
      $region108: #{cnn_ae_forward.1} parent=11 // pred_fallthru
        _
      // Predicated region
      $region109: #{cnn_ae_forward.1} parent=11 // pred_check
        %p838 = pneg %p620
      $region110: #{cnn_ae_forward.1} parent=11 // pred_check_branch
        %840 = sbr.rel (%p838) target = $region112
      $region111: #{cnn_ae_forward.1} parent=11 // pred_region
        _
      $region112: #{cnn_ae_forward.1} parent=11 // pred_fallthru
        _
      // Predicated region
      $region113: #{cnn_ae_forward.1} parent=11 // pred_check
        %p841 = pneg %p641
      $region114: #{cnn_ae_forward.1} parent=11 // pred_check_branch
        %843 = sbr.rel (%p841) target = $region116
      $region115: #{cnn_ae_forward.1} parent=11 // pred_region
        _
      $region116: #{cnn_ae_forward.1} parent=11 // pred_fallthru
        _
      // Predicated region
      $region117: #{cnn_ae_forward.1} parent=11 // pred_check
        %p844 = pneg %p662
      $region118: #{cnn_ae_forward.1} parent=11 // pred_check_branch
        %846 = sbr.rel (%p844) target = $region120
      $region119: #{cnn_ae_forward.1} parent=11 // pred_region
        _
      $region120: #{cnn_ae_forward.1} parent=11 // pred_fallthru
        _
      // Predicated region
      $region121: #{cnn_ae_forward.1} parent=11 // pred_check
        %p847 = pneg %p683
      $region122: #{cnn_ae_forward.1} parent=11 // pred_check_branch
        %849 = sbr.rel (%p847) target = $region124
      $region123: #{cnn_ae_forward.1} parent=11 // pred_region
        _
      $region124: #{cnn_ae_forward.1} parent=11 // pred_fallthru
        _
      // Predicated region
      $region125: #{cnn_ae_forward.1} parent=11 // pred_check
        %p850 = pneg %p704
      $region126: #{cnn_ae_forward.1} parent=11 // pred_check_branch
        %852 = sbr.rel (%p850) target = $region128
      $region127: #{cnn_ae_forward.1} parent=11 // pred_region
        _
      $region128: #{cnn_ae_forward.1} parent=11 // pred_fallthru
        _
      // Predicated region
      $region129: #{cnn_ae_forward.1} parent=11 // pred_check
        %p853 = pneg %p725
      $region130: #{cnn_ae_forward.1} parent=11 // pred_check_branch
        %855 = sbr.rel (%p853) target = $region132
      $region131: #{cnn_ae_forward.1} parent=11 // pred_region
        _
      $region132: #{cnn_ae_forward.1} parent=11 // pred_fallthru
        _
    $region12: #{cnn_ae_forward.1} parent=5 // pred_fallthru
      _
    %p856 = scmp.lt.s32.totalorder %s69, 2
    // Predicated region
    $region133: #{cnn_ae_forward.1} parent=5 // pred_check
      %p857 = pneg %p856
    $region134: #{cnn_ae_forward.1} parent=5 // pred_check_branch
      %859 = sbr.rel (%p857) target = $region136
    $region135: #{cnn_ae_forward.1} parent=5 // pred_region
      // Predicated region
      $region137: #{cnn_ae_forward.1} parent=135 // pred_check
        %p860 = pneg %p89
      $region138: #{cnn_ae_forward.1} parent=135 // pred_check_branch
        %862 = sbr.rel (%p860) target = $region140
      $region139: #{cnn_ae_forward.1} parent=135 // pred_region
        %p863 = scmp.lt.s32.totalorder %s69, 1
        %s864 = scalar_select %p863, %s69, 1
        %s865 = smul.addr %s864, 32
        %s866 = smul.addr %s865, 8
        %s867 = scalar_lea.vmem %s1, %s866
      $region140: #{cnn_ae_forward.1} parent=135 // pred_fallthru
        _
    $region136: #{cnn_ae_forward.1} parent=5 // pred_fallthru
      _
    %p868 = scmp.le.s32.totalorder 1, %s69
    %p869 = scmp.lt.s32.totalorder %s69, 3
    %p870 = pnand %p868, %p869
    %p871 = pneg %p870
    // Predicated region
    $region141: #{cnn_ae_forward.1} parent=5 // pred_check
      _
    $region142: #{cnn_ae_forward.1} parent=5 // pred_check_branch
      %873 = sbr.rel (%p870) target = $region144
    $region143: #{cnn_ae_forward.1} parent=5 // pred_region
      %s874 = ssub.s32 %s69, 1
      %p875 = scmp.lt.s32.totalorder %s74, 1
      %s876 = scalar_select %p875, %s74, 1
      %s877 = smul.addr %s876, 32
      %s878 = smul.addr %s877, 8
      %s879 = scalar_lea.vmem %s1, %s878
      %p880 = pneg %p95
      %p881 = pneg %p92
      %p882 = pneg %p116
      %p883 = pneg %p113
      %p884 = pneg %p137
      %p885 = pneg %p134
      %p886 = pneg %p158
      %p887 = pneg %p155
      %p888 = pneg %p179
      %p889 = pneg %p176
      %p890 = pneg %p200
      %p891 = pneg %p197
      %p892 = pneg %p221
      %p893 = pneg %p218
      %p894 = pneg %p242
      %p895 = pneg %p239
      %p896 = pneg %p263
      %p897 = pneg %p260
      %p898 = pneg %p284
      %p899 = pneg %p281
      %p900 = pneg %p305
      %p901 = pneg %p302
      %p902 = pneg %p326
      %p903 = pneg %p323
      %p904 = pneg %p347
      %p905 = pneg %p344
      %p906 = pneg %p368
      %p907 = pneg %p365
      %p908 = pneg %p389
      %p909 = pneg %p386
      %p910 = pneg %p410
      %p911 = pneg %p407
      %p912 = pneg %p431
      %p913 = pneg %p428
      %p914 = pneg %p452
      %p915 = pneg %p449
      %p916 = pneg %p473
      %p917 = pneg %p470
      %p918 = pneg %p494
      %p919 = pneg %p491
      %p920 = pneg %p515
      %p921 = pneg %p512
      %p922 = pneg %p536
      %p923 = pneg %p533
      %p924 = pneg %p557
      %p925 = pneg %p554
      %p926 = pneg %p578
      %p927 = pneg %p575
      %p928 = pneg %p599
      %p929 = pneg %p596
      %p930 = pneg %p620
      %p931 = pneg %p617
      %p932 = pneg %p641
      %p933 = pneg %p638
      %p934 = pneg %p662
      %p935 = pneg %p659
      %p936 = pneg %p683
      %p937 = pneg %p680
      %p938 = pneg %p704
      %p939 = pneg %p701
      %p940 = pneg %p725
      %p941 = pneg %p722
      %p942 = pneg %p751
      %p943 = pneg %p748
      %p944 = scmp.lt.s32.totalorder %s74, 1
      %s945 = scalar_select %p944, %s74, 1
      %s946 = smul.addr %s945, 32
      %s947 = smul.addr %s946, 8
      %s948 = scalar_lea.vmem %s63, %s947
      %p949 = scmp.lt.s32.totalorder %s74, 1
      %s950 = scalar_select %p949, %s74, 1
      %s951 = smul.addr %s950, 32
      %s952 = smul.addr %s951, 8
      %s953 = scalar_lea.vmem %s1, %s952
      %p954 = scmp.lt.s32.totalorder %s74, 1
      %s955 = scalar_select %p954, %s74, 1
      %s956 = smul.addr %s955, 32
      %s957 = smul.addr %s956, 8
      %s958 = scalar_lea.vmem %s63, %s957
      %v960 = vld [vmem:[%s953] sm:$0xff]
      %v961 = vld [vmem:[%s953 + $0x8] sm:$0xff]
      %v962 = vld [vmem:[%s953 + $0x10] sm:$0xff]
      %v963 = vld [vmem:[%s953 + $0x18] sm:$0xff]
      %v964 = vld [vmem:[%s953 + $0x20] sm:$0xff]
      %v965 = vld [vmem:[%s953 + $0x28] sm:$0xff]
      %v966 = vld [vmem:[%s953 + $0x30] sm:$0xff]
      %v967 = vld [vmem:[%s953 + $0x38] sm:$0xff]
      %v968 = vld [vmem:[%s953 + $0x40] sm:$0xff]
      %v969 = vld [vmem:[%s953 + $0x48] sm:$0xff]
      %v970 = vld [vmem:[%s953 + $0x50] sm:$0xff]
      %v971 = vld [vmem:[%s953 + $0x58] sm:$0xff]
      %v972 = vld [vmem:[%s953 + $0x60] sm:$0xff]
      %v973 = vld [vmem:[%s953 + $0x68] sm:$0xff]
      %v974 = vld [vmem:[%s953 + $0x70] sm:$0xff]
      %v975 = vld [vmem:[%s953 + $0x78] sm:$0xff]
      %v976 = vld [vmem:[%s953 + $0x80] sm:$0xff]
      %v977 = vld [vmem:[%s953 + $0x88] sm:$0xff]
      %v978 = vld [vmem:[%s953 + $0x90] sm:$0xff]
      %v979 = vld [vmem:[%s953 + $0x98] sm:$0xff]
      %v980 = vld [vmem:[%s953 + $0xa0] sm:$0xff]
      %v981 = vld [vmem:[%s953 + $0xa8] sm:$0xff]
      %v982 = vld [vmem:[%s953 + $0xb0] sm:$0xff]
      %v983 = vld [vmem:[%s953 + $0xb8] sm:$0xff]
      %v984 = vld [vmem:[%s953 + $0xc0] sm:$0xff]
      %v985 = vld [vmem:[%s953 + $0xc8] sm:$0xff]
      %v986 = vld [vmem:[%s953 + $0xd0] sm:$0xff]
      %v987 = vld [vmem:[%s953 + $0xd8] sm:$0xff]
      %v988 = vld [vmem:[%s953 + $0xe0] sm:$0xff]
      %v989 = vld [vmem:[%s953 + $0xe8] sm:$0xff]
      %v990 = vld [vmem:[%s953 + $0xf0] sm:$0xff]
      %v991 = vld [vmem:[%s953 + $0xf8] sm:$0xff]
      %v992 = vpack.c.bf16 %v961, %v960
      %v993 = vpack.c.bf16 %v963, %v962
      %v994 = vpack.c.bf16 %v965, %v964
      %v995 = vpack.c.bf16 %v967, %v966
      %v996 = vpack.c.bf16 %v969, %v968
      %v997 = vpack.c.bf16 %v971, %v970
      %v998 = vpack.c.bf16 %v973, %v972
      %v999 = vpack.c.bf16 %v975, %v974
      %v1000 = vpack.c.bf16 %v977, %v976
      %v1001 = vpack.c.bf16 %v979, %v978
      %v1002 = vpack.c.bf16 %v981, %v980
      %v1003 = vpack.c.bf16 %v983, %v982
      %v1004 = vpack.c.bf16 %v985, %v984
      %v1005 = vpack.c.bf16 %v987, %v986
      %v1006 = vpack.c.bf16 %v989, %v988
      %v1007 = vpack.c.bf16 %v991, %v990
      %v1008 = vld [vmem:[%s3] sm:$0x3]
      %vm1009 = vcmask 23552
      %v1011 = vsel %vm1009, %v992, 0
      %v1014 = vsel %vm1009, %v993, 0
      %v1017 = vsel %vm1009, %v994, 0
      %v1020 = vsel %vm1009, %v995, 0
      %v1023 = vsel %vm1009, %v996, 0
      %v1026 = vsel %vm1009, %v997, 0
      %v1029 = vsel %vm1009, %v998, 0
      %v1032 = vsel %vm1009, %v999, 0
      %v1035 = vsel %vm1009, %v1000, 0
      %v1038 = vsel %vm1009, %v1001, 0
      %v1041 = vsel %vm1009, %v1002, 0
      %v1044 = vsel %vm1009, %v1003, 0
      %v1047 = vsel %vm1009, %v1004, 0
      %v1050 = vsel %vm1009, %v1005, 0
      %v1053 = vsel %vm1009, %v1006, 0
      %v1056 = vsel %vm1009, %v1007, 0
      %vm1058 = vcmask 1040384
      %vm1059 = vcmask 1041408
      %v1060 = vsel %vm1058, 4294967295, 65535
      %v1061 = vsel %vm1059, %v1060, 0
      %v1063 = vand.u32 %v1008, %v1061
      %1065 = vmatprep.subr.bf16.mxu0 0
      %1066 = vmatpush1.bf16.msra.mxu0 %v1063
      %1067 = vmatprep.subr.bf16.mxu0 0
      %1068 = vmatpush1.bf16.msra.mxu0 0
      %1069 = vmatprep.subr.bf16.mxu0 0
      %1070 = vmatpush1.bf16.msra.mxu0 0
      %1071 = vmatprep.subr.bf16.mxu0 0
      %1072 = vmatpush1.bf16.msra.mxu0 0
      %1073 = vmatprep.subr.bf16.mxu0 0
      %1074 = vmatpush1.bf16.msra.mxu0 0
      %1075 = vmatprep.subr.bf16.mxu0 0
      %1076 = vmatpush1.bf16.msra.mxu0 0
      %1077 = vmatprep.subr.bf16.mxu0 0
      %1078 = vmatpush1.bf16.msra.mxu0 0
      %1079 = vmatprep.subr.bf16.mxu0 0
      %1080 = vmatpush1.bf16.msra.mxu0 0
      %1081 = vmatprep.subr.bf16.mxu0 0
      %1082 = vmatpush1.bf16.msra.mxu0 0
      %1083 = vmatprep.subr.bf16.mxu0 0
      %1084 = vmatpush1.bf16.msra.mxu0 0
      %1085 = vmatprep.subr.bf16.mxu0 0
      %1086 = vmatpush1.bf16.msra.mxu0 0
      %1087 = vmatprep.subr.bf16.mxu0 0
      %1088 = vmatpush1.bf16.msra.mxu0 0
      %1089 = vmatprep.subr.bf16.mxu0 0
      %1090 = vmatpush1.bf16.msra.mxu0 0
      %1091 = vmatprep.subr.bf16.mxu0 0
      %1092 = vmatpush1.bf16.msra.mxu0 0
      %1093 = vmatprep.subr.bf16.mxu0 0
      %1094 = vmatpush1.bf16.msra.mxu0 0
      %1095 = vmatprep.subr.bf16.mxu0 0
      %1096 = vmatpush1.bf16.msra.mxu0 0
      %1097 = vmatprep.mubr.bf16.mxu0 0
      %1098 = vmatmul.mubr.bf16.gmra.mrb[0].mxu0 %v1011
      %v1099 = vpop.f32.mrb[0].mxu0
      %v1100 = vadd.f32 0.0, %v1099
      %v1101 = vpop.f32.mrb[0].mxu0
      %v1102 = vpop.f32.mrb[0].mxu0
      %v1103 = vadd.f32 0.0, %v1102
      %v1104 = vpop.f32.mrb[0].mxu0
      %1105 = vmatprep.mubr.bf16.mxu0 0
      %1106 = vmatmul.mubr.bf16.gmra.mrb[0].mxu0 %v1014
      %v1107 = vpop.f32.mrb[0].mxu0
      %v1108 = vadd.f32 0.0, %v1107
      %v1109 = vpop.f32.mrb[0].mxu0
      %v1110 = vpop.f32.mrb[0].mxu0
      %v1111 = vadd.f32 0.0, %v1110
      %v1112 = vpop.f32.mrb[0].mxu0
      %1113 = vmatprep.mubr.bf16.mxu0 0
      %1114 = vmatmul.mubr.bf16.gmra.mrb[0].mxu0 %v1017
      %v1115 = vpop.f32.mrb[0].mxu0
      %v1116 = vadd.f32 0.0, %v1115
      %v1117 = vpop.f32.mrb[0].mxu0
      %v1118 = vpop.f32.mrb[0].mxu0
      %v1119 = vadd.f32 0.0, %v1118
      %v1120 = vpop.f32.mrb[0].mxu0
      %1121 = vmatprep.mubr.bf16.mxu0 0
      %1122 = vmatmul.mubr.bf16.gmra.mrb[0].mxu0 %v1020
      %v1123 = vpop.f32.mrb[0].mxu0
      %v1124 = vadd.f32 0.0, %v1123
      %v1125 = vpop.f32.mrb[0].mxu0
      %v1126 = vpop.f32.mrb[0].mxu0
      %v1127 = vadd.f32 0.0, %v1126
      %v1128 = vpop.f32.mrb[0].mxu0
      %1129 = vmatprep.mubr.bf16.mxu0 0
      %1130 = vmatmul.mubr.bf16.gmra.mrb[0].mxu0 %v1023
      %v1131 = vpop.f32.mrb[0].mxu0
      %v1132 = vadd.f32 0.0, %v1131
      %v1133 = vpop.f32.mrb[0].mxu0
      %v1134 = vpop.f32.mrb[0].mxu0
      %v1135 = vadd.f32 0.0, %v1134
      %v1136 = vpop.f32.mrb[0].mxu0
      %1137 = vmatprep.mubr.bf16.mxu0 0
      %1138 = vmatmul.mubr.bf16.gmra.mrb[0].mxu0 %v1026
      %v1139 = vpop.f32.mrb[0].mxu0
      %v1140 = vadd.f32 0.0, %v1139
      %v1141 = vpop.f32.mrb[0].mxu0
      %v1142 = vpop.f32.mrb[0].mxu0
      %v1143 = vadd.f32 0.0, %v1142
      %v1144 = vpop.f32.mrb[0].mxu0
      %1145 = vmatprep.mubr.bf16.mxu0 0
      %1146 = vmatmul.mubr.bf16.gmra.mrb[0].mxu0 %v1029
      %v1147 = vpop.f32.mrb[0].mxu0
      %v1148 = vadd.f32 0.0, %v1147
      %v1149 = vpop.f32.mrb[0].mxu0
      %v1150 = vpop.f32.mrb[0].mxu0
      %v1151 = vadd.f32 0.0, %v1150
      %v1152 = vpop.f32.mrb[0].mxu0
      %1153 = vmatprep.mubr.bf16.mxu0 0
      %1154 = vmatmul.mubr.bf16.gmra.mrb[0].mxu0 %v1032
      %v1155 = vpop.f32.mrb[0].mxu0
      %v1156 = vadd.f32 0.0, %v1155
      %v1157 = vpop.f32.mrb[0].mxu0
      %v1158 = vpop.f32.mrb[0].mxu0
      %v1159 = vadd.f32 0.0, %v1158
      %v1160 = vpop.f32.mrb[0].mxu0
      %1161 = vmatprep.mubr.bf16.mxu0 0
      %1162 = vmatmul.mubr.bf16.gmra.mrb[0].mxu0 %v1035
      %v1163 = vpop.f32.mrb[0].mxu0
      %v1164 = vadd.f32 0.0, %v1163
      %v1165 = vpop.f32.mrb[0].mxu0
      %v1166 = vpop.f32.mrb[0].mxu0
      %v1167 = vadd.f32 0.0, %v1166
      %v1168 = vpop.f32.mrb[0].mxu0
      %1169 = vmatprep.mubr.bf16.mxu0 0
      %1170 = vmatmul.mubr.bf16.gmra.mrb[0].mxu0 %v1038
      %v1171 = vpop.f32.mrb[0].mxu0
      %v1172 = vadd.f32 0.0, %v1171
      %v1173 = vpop.f32.mrb[0].mxu0
      %v1174 = vpop.f32.mrb[0].mxu0
      %v1175 = vadd.f32 0.0, %v1174
      %v1176 = vpop.f32.mrb[0].mxu0
      %1177 = vmatprep.mubr.bf16.mxu0 0
      %1178 = vmatmul.mubr.bf16.gmra.mrb[0].mxu0 %v1041
      %v1179 = vpop.f32.mrb[0].mxu0
      %v1180 = vadd.f32 0.0, %v1179
      %v1181 = vpop.f32.mrb[0].mxu0
      %v1182 = vpop.f32.mrb[0].mxu0
      %v1183 = vadd.f32 0.0, %v1182
      %v1184 = vpop.f32.mrb[0].mxu0
      %1185 = vmatprep.mubr.bf16.mxu0 0
      %1186 = vmatmul.mubr.bf16.gmra.mrb[0].mxu0 %v1044
      %v1187 = vpop.f32.mrb[0].mxu0
      %v1188 = vadd.f32 0.0, %v1187
      %v1189 = vpop.f32.mrb[0].mxu0
      %v1190 = vpop.f32.mrb[0].mxu0
      %v1191 = vadd.f32 0.0, %v1190
      %v1192 = vpop.f32.mrb[0].mxu0
      %1193 = vmatprep.mubr.bf16.mxu0 0
      %1194 = vmatmul.mubr.bf16.gmra.mrb[0].mxu0 %v1047
      %v1195 = vpop.f32.mrb[0].mxu0
      %v1196 = vadd.f32 0.0, %v1195
      %v1197 = vpop.f32.mrb[0].mxu0
      %v1198 = vpop.f32.mrb[0].mxu0
      %v1199 = vadd.f32 0.0, %v1198
      %v1200 = vpop.f32.mrb[0].mxu0
      %1201 = vmatprep.mubr.bf16.mxu0 0
      %1202 = vmatmul.mubr.bf16.gmra.mrb[0].mxu0 %v1050
      %v1203 = vpop.f32.mrb[0].mxu0
      %v1204 = vadd.f32 0.0, %v1203
      %v1205 = vpop.f32.mrb[0].mxu0
      %v1206 = vpop.f32.mrb[0].mxu0
      %v1207 = vadd.f32 0.0, %v1206
      %v1208 = vpop.f32.mrb[0].mxu0
      %1209 = vmatprep.mubr.bf16.mxu0 0
      %1210 = vmatmul.mubr.bf16.gmra.mrb[0].mxu0 %v1053
      %v1211 = vpop.f32.mrb[0].mxu0
      %v1212 = vadd.f32 0.0, %v1211
      %v1213 = vpop.f32.mrb[0].mxu0
      %v1214 = vpop.f32.mrb[0].mxu0
      %v1215 = vadd.f32 0.0, %v1214
      %v1216 = vpop.f32.mrb[0].mxu0
      %1217 = vmatprep.mubr.bf16.mxu0 0
      %1218 = vmatmul.mubr.bf16.gmra.mrb[0].mxu0 %v1056
      %v1219 = vpop.f32.mrb[0].mxu0
      %v1220 = vadd.f32 0.0, %v1219
      %v1221 = vpop.f32.mrb[0].mxu0
      %v1222 = vpop.f32.mrb[0].mxu0
      %v1223 = vadd.f32 0.0, %v1222
      %v1224 = vpop.f32.mrb[0].mxu0
      %1225 = vdwg.mxu0
      %s1226 = scalar_lea.vmem %s3, 2
      %v1227 = vld [vmem:[%s1226] sm:$0x3]
      %v1229 = vand.u32 %v1227, %v1061
      %1231 = vmatprep.subr.bf16.mxu0 0
      %1232 = vmatpush1.bf16.msra.mxu0 %v1229
      %1233 = vmatprep.subr.bf16.mxu0 0
      %1234 = vmatpush1.bf16.msra.mxu0 0
      %1235 = vmatprep.subr.bf16.mxu0 0
      %1236 = vmatpush1.bf16.msra.mxu0 0
      %1237 = vmatprep.subr.bf16.mxu0 0
      %1238 = vmatpush1.bf16.msra.mxu0 0
      %1239 = vmatprep.subr.bf16.mxu0 0
      %1240 = vmatpush1.bf16.msra.mxu0 0
      %1241 = vmatprep.subr.bf16.mxu0 0
      %1242 = vmatpush1.bf16.msra.mxu0 0
      %1243 = vmatprep.subr.bf16.mxu0 0
      %1244 = vmatpush1.bf16.msra.mxu0 0
      %1245 = vmatprep.subr.bf16.mxu0 0
      %1246 = vmatpush1.bf16.msra.mxu0 0
      %1247 = vmatprep.subr.bf16.mxu0 0
      %1248 = vmatpush1.bf16.msra.mxu0 0
      %1249 = vmatprep.subr.bf16.mxu0 0
      %1250 = vmatpush1.bf16.msra.mxu0 0
      %1251 = vmatprep.subr.bf16.mxu0 0
      %1252 = vmatpush1.bf16.msra.mxu0 0
      %1253 = vmatprep.subr.bf16.mxu0 0
      %1254 = vmatpush1.bf16.msra.mxu0 0
      %1255 = vmatprep.subr.bf16.mxu0 0
      %1256 = vmatpush1.bf16.msra.mxu0 0
      %1257 = vmatprep.subr.bf16.mxu0 0
      %1258 = vmatpush1.bf16.msra.mxu0 0
      %1259 = vmatprep.subr.bf16.mxu0 0
      %1260 = vmatpush1.bf16.msra.mxu0 0
      %1261 = vmatprep.subr.bf16.mxu0 0
      %1262 = vmatpush1.bf16.msra.mxu0 0
      %1263 = vmatprep.mubr.bf16.mxu0 0
      %1264 = vmatmul.mubr.bf16.gmra.mrb[0].mxu0 %v1011
      %v1265 = vpop.f32.mrb[0].mxu0
      %v1266 = vadd.f32 0.0, %v1265
      %v1267 = vpop.f32.mrb[0].mxu0
      %v1268 = vpop.f32.mrb[0].mxu0
      %v1269 = vadd.f32 0.0, %v1268
      %v1270 = vpop.f32.mrb[0].mxu0
      %1271 = vmatprep.mubr.bf16.mxu0 0
      %1272 = vmatmul.mubr.bf16.gmra.mrb[0].mxu0 %v1014
      %v1273 = vpop.f32.mrb[0].mxu0
      %v1274 = vadd.f32 0.0, %v1273
      %v1275 = vpop.f32.mrb[0].mxu0
      %v1276 = vpop.f32.mrb[0].mxu0
      %v1277 = vadd.f32 0.0, %v1276
      %v1278 = vpop.f32.mrb[0].mxu0
      %1279 = vmatprep.mubr.bf16.mxu0 0
      %1280 = vmatmul.mubr.bf16.gmra.mrb[0].mxu0 %v1017
      %v1281 = vpop.f32.mrb[0].mxu0
      %v1282 = vadd.f32 0.0, %v1281
      %v1283 = vpop.f32.mrb[0].mxu0
      %v1284 = vpop.f32.mrb[0].mxu0
      %v1285 = vadd.f32 0.0, %v1284
      %v1286 = vpop.f32.mrb[0].mxu0
      %1287 = vmatprep.mubr.bf16.mxu0 0
      %1288 = vmatmul.mubr.bf16.gmra.mrb[0].mxu0 %v1020
      %v1289 = vpop.f32.mrb[0].mxu0
      %v1290 = vadd.f32 0.0, %v1289
      %v1291 = vpop.f32.mrb[0].mxu0
      %v1292 = vpop.f32.mrb[0].mxu0
      %v1293 = vadd.f32 0.0, %v1292
      %v1294 = vpop.f32.mrb[0].mxu0
      %1295 = vmatprep.mubr.bf16.mxu0 0
      %1296 = vmatmul.mubr.bf16.gmra.mrb[0].mxu0 %v1023
      %v1297 = vpop.f32.mrb[0].mxu0
      %v1298 = vadd.f32 0.0, %v1297
      %v1299 = vpop.f32.mrb[0].mxu0
      %v1300 = vpop.f32.mrb[0].mxu0
      %v1301 = vadd.f32 0.0, %v1300
      %v1302 = vpop.f32.mrb[0].mxu0
      %1303 = vmatprep.mubr.bf16.mxu0 0
      %1304 = vmatmul.mubr.bf16.gmra.mrb[0].mxu0 %v1026
      %v1305 = vpop.f32.mrb[0].mxu0
      %v1306 = vadd.f32 0.0, %v1305
      %v1307 = vpop.f32.mrb[0].mxu0
      %v1308 = vpop.f32.mrb[0].mxu0
      %v1309 = vadd.f32 0.0, %v1308
      %v1310 = vpop.f32.mrb[0].mxu0
      %1311 = vmatprep.mubr.bf16.mxu0 0
      %1312 = vmatmul.mubr.bf16.gmra.mrb[0].mxu0 %v1029
      %v1313 = vpop.f32.mrb[0].mxu0
      %v1314 = vadd.f32 0.0, %v1313
      %v1315 = vpop.f32.mrb[0].mxu0
      %v1316 = vpop.f32.mrb[0].mxu0
      %v1317 = vadd.f32 0.0, %v1316
      %v1318 = vpop.f32.mrb[0].mxu0
      %1319 = vmatprep.mubr.bf16.mxu0 0
      %1320 = vmatmul.mubr.bf16.gmra.mrb[0].mxu0 %v1032
      %v1321 = vpop.f32.mrb[0].mxu0
      %v1322 = vadd.f32 0.0, %v1321
      %v1323 = vpop.f32.mrb[0].mxu0
      %v1324 = vpop.f32.mrb[0].mxu0
      %v1325 = vadd.f32 0.0, %v1324
      %v1326 = vpop.f32.mrb[0].mxu0
      %1327 = vmatprep.mubr.bf16.mxu0 0
      %1328 = vmatmul.mubr.bf16.gmra.mrb[0].mxu0 %v1035
      %v1329 = vpop.f32.mrb[0].mxu0
      %v1330 = vadd.f32 0.0, %v1329
      %v1331 = vpop.f32.mrb[0].mxu0
      %v1332 = vpop.f32.mrb[0].mxu0
      %v1333 = vadd.f32 0.0, %v1332
      %v1334 = vpop.f32.mrb[0].mxu0
      %1335 = vmatprep.mubr.bf16.mxu0 0
      %1336 = vmatmul.mubr.bf16.gmra.mrb[0].mxu0 %v1038
      %v1337 = vpop.f32.mrb[0].mxu0
      %v1338 = vadd.f32 0.0, %v1337
      %v1339 = vpop.f32.mrb[0].mxu0
      %v1340 = vpop.f32.mrb[0].mxu0
      %v1341 = vadd.f32 0.0, %v1340
      %v1342 = vpop.f32.mrb[0].mxu0
      %1343 = vmatprep.mubr.bf16.mxu0 0
      %1344 = vmatmul.mubr.bf16.gmra.mrb[0].mxu0 %v1041
      %v1345 = vpop.f32.mrb[0].mxu0
      %v1346 = vadd.f32 0.0, %v1345
      %v1347 = vpop.f32.mrb[0].mxu0
      %v1348 = vpop.f32.mrb[0].mxu0
      %v1349 = vadd.f32 0.0, %v1348
      %v1350 = vpop.f32.mrb[0].mxu0
      %1351 = vmatprep.mubr.bf16.mxu0 0
      %1352 = vmatmul.mubr.bf16.gmra.mrb[0].mxu0 %v1044
      %v1353 = vpop.f32.mrb[0].mxu0
      %v1354 = vadd.f32 0.0, %v1353
      %v1355 = vpop.f32.mrb[0].mxu0
      %v1356 = vpop.f32.mrb[0].mxu0
      %v1357 = vadd.f32 0.0, %v1356
      %v1358 = vpop.f32.mrb[0].mxu0
      %1359 = vmatprep.mubr.bf16.mxu0 0
      %1360 = vmatmul.mubr.bf16.gmra.mrb[0].mxu0 %v1047
      %v1361 = vpop.f32.mrb[0].mxu0
      %v1362 = vadd.f32 0.0, %v1361
      %v1363 = vpop.f32.mrb[0].mxu0
      %v1364 = vpop.f32.mrb[0].mxu0
      %v1365 = vadd.f32 0.0, %v1364
      %v1366 = vpop.f32.mrb[0].mxu0
      %1367 = vmatprep.mubr.bf16.mxu0 0
      %1368 = vmatmul.mubr.bf16.gmra.mrb[0].mxu0 %v1050
      %v1369 = vpop.f32.mrb[0].mxu0
      %v1370 = vadd.f32 0.0, %v1369
      %v1371 = vpop.f32.mrb[0].mxu0
      %v1372 = vpop.f32.mrb[0].mxu0
      %v1373 = vadd.f32 0.0, %v1372
      %v1374 = vpop.f32.mrb[0].mxu0
      %1375 = vmatprep.mubr.bf16.mxu0 0
      %1376 = vmatmul.mubr.bf16.gmra.mrb[0].mxu0 %v1053
      %v1377 = vpop.f32.mrb[0].mxu0
      %v1378 = vadd.f32 0.0, %v1377
      %v1379 = vpop.f32.mrb[0].mxu0
      %v1380 = vpop.f32.mrb[0].mxu0
      %v1381 = vadd.f32 0.0, %v1380
      %v1382 = vpop.f32.mrb[0].mxu0
      %1383 = vmatprep.mubr.bf16.mxu0 0
      %1384 = vmatmul.mubr.bf16.gmra.mrb[0].mxu0 %v1056
      %v1385 = vpop.f32.mrb[0].mxu0
      %v1386 = vadd.f32 0.0, %v1385
      %v1387 = vpop.f32.mrb[0].mxu0
      %v1388 = vpop.f32.mrb[0].mxu0
      %v1389 = vadd.f32 0.0, %v1388
      %v1390 = vpop.f32.mrb[0].mxu0
      %1391 = vdwg.mxu0
      %s1392 = scalar_lea.vmem %s3, 4
      %v1393 = vld [vmem:[%s1392] sm:$0x3]
      %v1395 = vand.u32 %v1393, %v1061
      %1397 = vmatprep.subr.bf16.mxu0 0
      %1398 = vmatpush1.bf16.msra.mxu0 %v1395
      %1399 = vmatprep.subr.bf16.mxu0 0
      %1400 = vmatpush1.bf16.msra.mxu0 0
      %1401 = vmatprep.subr.bf16.mxu0 0
      %1402 = vmatpush1.bf16.msra.mxu0 0
      %1403 = vmatprep.subr.bf16.mxu0 0
      %1404 = vmatpush1.bf16.msra.mxu0 0
      %1405 = vmatprep.subr.bf16.mxu0 0
      %1406 = vmatpush1.bf16.msra.mxu0 0
      %1407 = vmatprep.subr.bf16.mxu0 0
      %1408 = vmatpush1.bf16.msra.mxu0 0
      %1409 = vmatprep.subr.bf16.mxu0 0
      %1410 = vmatpush1.bf16.msra.mxu0 0
      %1411 = vmatprep.subr.bf16.mxu0 0
      %1412 = vmatpush1.bf16.msra.mxu0 0
      %1413 = vmatprep.subr.bf16.mxu0 0
      %1414 = vmatpush1.bf16.msra.mxu0 0
      %1415 = vmatprep.subr.bf16.mxu0 0
      %1416 = vmatpush1.bf16.msra.mxu0 0
      %1417 = vmatprep.subr.bf16.mxu0 0
      %1418 = vmatpush1.bf16.msra.mxu0 0
      %1419 = vmatprep.subr.bf16.mxu0 0
      %1420 = vmatpush1.bf16.msra.mxu0 0
      %1421 = vmatprep.subr.bf16.mxu0 0
      %1422 = vmatpush1.bf16.msra.mxu0 0
      %1423 = vmatprep.subr.bf16.mxu0 0
      %1424 = vmatpush1.bf16.msra.mxu0 0
      %1425 = vmatprep.subr.bf16.mxu0 0
      %1426 = vmatpush1.bf16.msra.mxu0 0
      %1427 = vmatprep.subr.bf16.mxu0 0
      %1428 = vmatpush1.bf16.msra.mxu0 0
      %1429 = vmatprep.mubr.bf16.mxu0 0
      %1430 = vmatmul.mubr.bf16.gmra.mrb[0].mxu0 %v1011
      %v1431 = vpop.f32.mrb[0].mxu0
      %v1432 = vadd.f32 0.0, %v1431
      %v1433 = vpop.f32.mrb[0].mxu0
      %v1434 = vpop.f32.mrb[0].mxu0
      %v1435 = vadd.f32 0.0, %v1434
      %v1436 = vpop.f32.mrb[0].mxu0
      %1437 = vmatprep.mubr.bf16.mxu0 0
      %1438 = vmatmul.mubr.bf16.gmra.mrb[0].mxu0 %v1014
      %v1439 = vpop.f32.mrb[0].mxu0
      %v1440 = vadd.f32 0.0, %v1439
      %v1441 = vpop.f32.mrb[0].mxu0
      %v1442 = vpop.f32.mrb[0].mxu0
      %v1443 = vadd.f32 0.0, %v1442
      %v1444 = vpop.f32.mrb[0].mxu0
      %1445 = vmatprep.mubr.bf16.mxu0 0
      %1446 = vmatmul.mubr.bf16.gmra.mrb[0].mxu0 %v1017
      %v1447 = vpop.f32.mrb[0].mxu0
      %v1448 = vadd.f32 0.0, %v1447
      %v1449 = vpop.f32.mrb[0].mxu0
      %v1450 = vpop.f32.mrb[0].mxu0
      %v1451 = vadd.f32 0.0, %v1450
      %v1452 = vpop.f32.mrb[0].mxu0
      %1453 = vmatprep.mubr.bf16.mxu0 0
      %1454 = vmatmul.mubr.bf16.gmra.mrb[0].mxu0 %v1020
      %v1455 = vpop.f32.mrb[0].mxu0
      %v1456 = vadd.f32 0.0, %v1455
      %v1457 = vpop.f32.mrb[0].mxu0
      %v1458 = vpop.f32.mrb[0].mxu0
      %v1459 = vadd.f32 0.0, %v1458
      %v1460 = vpop.f32.mrb[0].mxu0
      %1461 = vmatprep.mubr.bf16.mxu0 0
      %1462 = vmatmul.mubr.bf16.gmra.mrb[0].mxu0 %v1023
      %v1463 = vpop.f32.mrb[0].mxu0
      %v1464 = vadd.f32 0.0, %v1463
      %v1465 = vpop.f32.mrb[0].mxu0
      %v1466 = vpop.f32.mrb[0].mxu0
      %v1467 = vadd.f32 0.0, %v1466
      %v1468 = vpop.f32.mrb[0].mxu0
      %1469 = vmatprep.mubr.bf16.mxu0 0
      %1470 = vmatmul.mubr.bf16.gmra.mrb[0].mxu0 %v1026
      %v1471 = vpop.f32.mrb[0].mxu0
      %v1472 = vadd.f32 0.0, %v1471
      %v1473 = vpop.f32.mrb[0].mxu0
      %v1474 = vpop.f32.mrb[0].mxu0
      %v1475 = vadd.f32 0.0, %v1474
      %v1476 = vpop.f32.mrb[0].mxu0
      %1477 = vmatprep.mubr.bf16.mxu0 0
      %1478 = vmatmul.mubr.bf16.gmra.mrb[0].mxu0 %v1029
      %v1479 = vpop.f32.mrb[0].mxu0
      %v1480 = vadd.f32 0.0, %v1479
      %v1481 = vpop.f32.mrb[0].mxu0
      %v1482 = vpop.f32.mrb[0].mxu0
      %v1483 = vadd.f32 0.0, %v1482
      %v1484 = vpop.f32.mrb[0].mxu0
      %1485 = vmatprep.mubr.bf16.mxu0 0
      %1486 = vmatmul.mubr.bf16.gmra.mrb[0].mxu0 %v1032
      %v1487 = vpop.f32.mrb[0].mxu0
      %v1488 = vadd.f32 0.0, %v1487
      %v1489 = vpop.f32.mrb[0].mxu0
      %v1490 = vpop.f32.mrb[0].mxu0
      %v1491 = vadd.f32 0.0, %v1490
      %v1492 = vpop.f32.mrb[0].mxu0
      %1493 = vmatprep.mubr.bf16.mxu0 0
      %1494 = vmatmul.mubr.bf16.gmra.mrb[0].mxu0 %v1035
      %v1495 = vpop.f32.mrb[0].mxu0
      %v1496 = vadd.f32 0.0, %v1495
      %v1497 = vpop.f32.mrb[0].mxu0
      %v1498 = vpop.f32.mrb[0].mxu0
      %v1499 = vadd.f32 0.0, %v1498
      %v1500 = vpop.f32.mrb[0].mxu0
      %1501 = vmatprep.mubr.bf16.mxu0 0
      %1502 = vmatmul.mubr.bf16.gmra.mrb[0].mxu0 %v1038
      %v1503 = vpop.f32.mrb[0].mxu0
      %v1504 = vadd.f32 0.0, %v1503
      %v1505 = vpop.f32.mrb[0].mxu0
      %v1506 = vpop.f32.mrb[0].mxu0
      %v1507 = vadd.f32 0.0, %v1506
      %v1508 = vpop.f32.mrb[0].mxu0
      %1509 = vmatprep.mubr.bf16.mxu0 0
      %1510 = vmatmul.mubr.bf16.gmra.mrb[0].mxu0 %v1041
      %v1511 = vpop.f32.mrb[0].mxu0
      %v1512 = vadd.f32 0.0, %v1511
      %v1513 = vpop.f32.mrb[0].mxu0
      %v1514 = vpop.f32.mrb[0].mxu0
      %v1515 = vadd.f32 0.0, %v1514
      %v1516 = vpop.f32.mrb[0].mxu0
      %1517 = vmatprep.mubr.bf16.mxu0 0
      %1518 = vmatmul.mubr.bf16.gmra.mrb[0].mxu0 %v1044
      %v1519 = vpop.f32.mrb[0].mxu0
      %v1520 = vadd.f32 0.0, %v1519
      %v1521 = vpop.f32.mrb[0].mxu0
      %v1522 = vpop.f32.mrb[0].mxu0
      %v1523 = vadd.f32 0.0, %v1522
      %v1524 = vpop.f32.mrb[0].mxu0
      %1525 = vmatprep.mubr.bf16.mxu0 0
      %1526 = vmatmul.mubr.bf16.gmra.mrb[0].mxu0 %v1047
      %v1527 = vpop.f32.mrb[0].mxu0
      %v1528 = vadd.f32 0.0, %v1527
      %v1529 = vpop.f32.mrb[0].mxu0
      %v1530 = vpop.f32.mrb[0].mxu0
      %v1531 = vadd.f32 0.0, %v1530
      %v1532 = vpop.f32.mrb[0].mxu0
      %1533 = vmatprep.mubr.bf16.mxu0 0
      %1534 = vmatmul.mubr.bf16.gmra.mrb[0].mxu0 %v1050
      %v1535 = vpop.f32.mrb[0].mxu0
      %v1536 = vadd.f32 0.0, %v1535
      %v1537 = vpop.f32.mrb[0].mxu0
      %v1538 = vpop.f32.mrb[0].mxu0
      %v1539 = vadd.f32 0.0, %v1538
      %v1540 = vpop.f32.mrb[0].mxu0
      %1541 = vmatprep.mubr.bf16.mxu0 0
      %1542 = vmatmul.mubr.bf16.gmra.mrb[0].mxu0 %v1053
      %v1543 = vpop.f32.mrb[0].mxu0
      %v1544 = vadd.f32 0.0, %v1543
      %v1545 = vpop.f32.mrb[0].mxu0
      %v1546 = vpop.f32.mrb[0].mxu0
      %v1547 = vadd.f32 0.0, %v1546
      %v1548 = vpop.f32.mrb[0].mxu0
      %1549 = vmatprep.mubr.bf16.mxu0 0
      %1550 = vmatmul.mubr.bf16.gmra.mrb[0].mxu0 %v1056
      %v1551 = vpop.f32.mrb[0].mxu0
      %v1552 = vadd.f32 0.0, %v1551
      %v1553 = vpop.f32.mrb[0].mxu0
      %v1554 = vpop.f32.mrb[0].mxu0
      %v1555 = vadd.f32 0.0, %v1554
      %v1556 = vpop.f32.mrb[0].mxu0
      %1557 = vdwg.mxu0
      %s1558 = scalar_lea.vmem %s3, 6
      %v1559 = vld [vmem:[%s1558] sm:$0x3]
      %v1561 = vand.u32 %v1559, %v1061
      %1563 = vmatprep.subr.bf16.mxu0 0
      %1564 = vmatpush1.bf16.msra.mxu0 %v1561
      %1565 = vmatprep.subr.bf16.mxu0 0
      %1566 = vmatpush1.bf16.msra.mxu0 0
      %1567 = vmatprep.subr.bf16.mxu0 0
      %1568 = vmatpush1.bf16.msra.mxu0 0
      %1569 = vmatprep.subr.bf16.mxu0 0
      %1570 = vmatpush1.bf16.msra.mxu0 0
      %1571 = vmatprep.subr.bf16.mxu0 0
      %1572 = vmatpush1.bf16.msra.mxu0 0
      %1573 = vmatprep.subr.bf16.mxu0 0
      %1574 = vmatpush1.bf16.msra.mxu0 0
      %1575 = vmatprep.subr.bf16.mxu0 0
      %1576 = vmatpush1.bf16.msra.mxu0 0
      %1577 = vmatprep.subr.bf16.mxu0 0
      %1578 = vmatpush1.bf16.msra.mxu0 0
      %1579 = vmatprep.subr.bf16.mxu0 0
      %1580 = vmatpush1.bf16.msra.mxu0 0
      %1581 = vmatprep.subr.bf16.mxu0 0
      %1582 = vmatpush1.bf16.msra.mxu0 0
      %1583 = vmatprep.subr.bf16.mxu0 0
      %1584 = vmatpush1.bf16.msra.mxu0 0
      %1585 = vmatprep.subr.bf16.mxu0 0
      %1586 = vmatpush1.bf16.msra.mxu0 0
      %1587 = vmatprep.subr.bf16.mxu0 0
      %1588 = vmatpush1.bf16.msra.mxu0 0
      %1589 = vmatprep.subr.bf16.mxu0 0
      %1590 = vmatpush1.bf16.msra.mxu0 0
      %1591 = vmatprep.subr.bf16.mxu0 0
      %1592 = vmatpush1.bf16.msra.mxu0 0
      %1593 = vmatprep.subr.bf16.mxu0 0
      %1594 = vmatpush1.bf16.msra.mxu0 0
      %1595 = vmatprep.mubr.bf16.mxu0 0
      %1596 = vmatmul.mubr.bf16.gmra.mrb[0].mxu0 %v1011
      %v1597 = vpop.f32.mrb[0].mxu0
      %v1598 = vadd.f32 0.0, %v1597
      %v1599 = vpop.f32.mrb[0].mxu0
      %v1600 = vpop.f32.mrb[0].mxu0
      %v1601 = vadd.f32 0.0, %v1600
      %v1602 = vpop.f32.mrb[0].mxu0
      %1603 = vmatprep.mubr.bf16.mxu0 0
      %1604 = vmatmul.mubr.bf16.gmra.mrb[0].mxu0 %v1014
      %v1605 = vpop.f32.mrb[0].mxu0
      %v1606 = vadd.f32 0.0, %v1605
      %v1607 = vpop.f32.mrb[0].mxu0
      %v1608 = vpop.f32.mrb[0].mxu0
      %v1609 = vadd.f32 0.0, %v1608
      %v1610 = vpop.f32.mrb[0].mxu0
      %1611 = vmatprep.mubr.bf16.mxu0 0
      %1612 = vmatmul.mubr.bf16.gmra.mrb[0].mxu0 %v1017
      %v1613 = vpop.f32.mrb[0].mxu0
      %v1614 = vadd.f32 0.0, %v1613
      %v1615 = vpop.f32.mrb[0].mxu0
      %v1616 = vpop.f32.mrb[0].mxu0
      %v1617 = vadd.f32 0.0, %v1616
      %v1618 = vpop.f32.mrb[0].mxu0
      %1619 = vmatprep.mubr.bf16.mxu0 0
      %1620 = vmatmul.mubr.bf16.gmra.mrb[0].mxu0 %v1020
      %v1621 = vpop.f32.mrb[0].mxu0
      %v1622 = vadd.f32 0.0, %v1621
      %v1623 = vpop.f32.mrb[0].mxu0
      %v1624 = vpop.f32.mrb[0].mxu0
      %v1625 = vadd.f32 0.0, %v1624
      %v1626 = vpop.f32.mrb[0].mxu0
      %1627 = vmatprep.mubr.bf16.mxu0 0
      %1628 = vmatmul.mubr.bf16.gmra.mrb[0].mxu0 %v1023
      %v1629 = vpop.f32.mrb[0].mxu0
      %v1630 = vadd.f32 0.0, %v1629
      %v1631 = vpop.f32.mrb[0].mxu0
      %v1632 = vpop.f32.mrb[0].mxu0
      %v1633 = vadd.f32 0.0, %v1632
      %v1634 = vpop.f32.mrb[0].mxu0
      %1635 = vmatprep.mubr.bf16.mxu0 0
      %1636 = vmatmul.mubr.bf16.gmra.mrb[0].mxu0 %v1026
      %v1637 = vpop.f32.mrb[0].mxu0
      %v1638 = vadd.f32 0.0, %v1637
      %v1639 = vpop.f32.mrb[0].mxu0
      %v1640 = vpop.f32.mrb[0].mxu0
      %v1641 = vadd.f32 0.0, %v1640
      %v1642 = vpop.f32.mrb[0].mxu0
      %1643 = vmatprep.mubr.bf16.mxu0 0
      %1644 = vmatmul.mubr.bf16.gmra.mrb[0].mxu0 %v1029
      %v1645 = vpop.f32.mrb[0].mxu0
      %v1646 = vadd.f32 0.0, %v1645
      %v1647 = vpop.f32.mrb[0].mxu0
      %v1648 = vpop.f32.mrb[0].mxu0
      %v1649 = vadd.f32 0.0, %v1648
      %v1650 = vpop.f32.mrb[0].mxu0
      %1651 = vmatprep.mubr.bf16.mxu0 0
      %1652 = vmatmul.mubr.bf16.gmra.mrb[0].mxu0 %v1032
      %v1653 = vpop.f32.mrb[0].mxu0
      %v1654 = vadd.f32 0.0, %v1653
      %v1655 = vpop.f32.mrb[0].mxu0
      %v1656 = vpop.f32.mrb[0].mxu0
      %v1657 = vadd.f32 0.0, %v1656
      %v1658 = vpop.f32.mrb[0].mxu0
      %1659 = vmatprep.mubr.bf16.mxu0 0
      %1660 = vmatmul.mubr.bf16.gmra.mrb[0].mxu0 %v1035
      %v1661 = vpop.f32.mrb[0].mxu0
      %v1662 = vadd.f32 0.0, %v1661
      %v1663 = vpop.f32.mrb[0].mxu0
      %v1664 = vpop.f32.mrb[0].mxu0
      %v1665 = vadd.f32 0.0, %v1664
      %v1666 = vpop.f32.mrb[0].mxu0
      %1667 = vmatprep.mubr.bf16.mxu0 0
      %1668 = vmatmul.mubr.bf16.gmra.mrb[0].mxu0 %v1038
      %v1669 = vpop.f32.mrb[0].mxu0
      %v1670 = vadd.f32 0.0, %v1669
      %v1671 = vpop.f32.mrb[0].mxu0
      %v1672 = vpop.f32.mrb[0].mxu0
      %v1673 = vadd.f32 0.0, %v1672
      %v1674 = vpop.f32.mrb[0].mxu0
      %1675 = vmatprep.mubr.bf16.mxu0 0
      %1676 = vmatmul.mubr.bf16.gmra.mrb[0].mxu0 %v1041
      %v1677 = vpop.f32.mrb[0].mxu0
      %v1678 = vadd.f32 0.0, %v1677
      %v1679 = vpop.f32.mrb[0].mxu0
      %v1680 = vpop.f32.mrb[0].mxu0
      %v1681 = vadd.f32 0.0, %v1680
      %v1682 = vpop.f32.mrb[0].mxu0
      %1683 = vmatprep.mubr.bf16.mxu0 0
      %1684 = vmatmul.mubr.bf16.gmra.mrb[0].mxu0 %v1044
      %v1685 = vpop.f32.mrb[0].mxu0
      %v1686 = vadd.f32 0.0, %v1685
      %v1687 = vpop.f32.mrb[0].mxu0
      %v1688 = vpop.f32.mrb[0].mxu0
      %v1689 = vadd.f32 0.0, %v1688
      %v1690 = vpop.f32.mrb[0].mxu0
      %1691 = vmatprep.mubr.bf16.mxu0 0
      %1692 = vmatmul.mubr.bf16.gmra.mrb[0].mxu0 %v1047
      %v1693 = vpop.f32.mrb[0].mxu0
      %v1694 = vadd.f32 0.0, %v1693
      %v1695 = vpop.f32.mrb[0].mxu0
      %v1696 = vpop.f32.mrb[0].mxu0
      %v1697 = vadd.f32 0.0, %v1696
      %v1698 = vpop.f32.mrb[0].mxu0
      %1699 = vmatprep.mubr.bf16.mxu0 0
      %1700 = vmatmul.mubr.bf16.gmra.mrb[0].mxu0 %v1050
      %v1701 = vpop.f32.mrb[0].mxu0
      %v1702 = vadd.f32 0.0, %v1701
      %v1703 = vpop.f32.mrb[0].mxu0
      %v1704 = vpop.f32.mrb[0].mxu0
      %v1705 = vadd.f32 0.0, %v1704
      %v1706 = vpop.f32.mrb[0].mxu0
      %1707 = vmatprep.mubr.bf16.mxu0 0
      %1708 = vmatmul.mubr.bf16.gmra.mrb[0].mxu0 %v1053
      %v1709 = vpop.f32.mrb[0].mxu0
      %v1710 = vadd.f32 0.0, %v1709
      %v1711 = vpop.f32.mrb[0].mxu0
      %v1712 = vpop.f32.mrb[0].mxu0
      %v1713 = vadd.f32 0.0, %v1712
      %v1714 = vpop.f32.mrb[0].mxu0
      %1715 = vmatprep.mubr.bf16.mxu0 0
      %1716 = vmatmul.mubr.bf16.gmra.mrb[0].mxu0 %v1056
      %v1717 = vpop.f32.mrb[0].mxu0
      %v1718 = vadd.f32 0.0, %v1717
      %v1719 = vpop.f32.mrb[0].mxu0
      %v1720 = vpop.f32.mrb[0].mxu0
      %v1721 = vadd.f32 0.0, %v1720
      %v1722 = vpop.f32.mrb[0].mxu0
      %1723 = vdwg.mxu0
      %v1724 = vpack.c.bf16 %v1103, %v1100
      %v1725 = vpack.c.bf16 %v1111, %v1108
      %v1726 = vpack.c.bf16 %v1119, %v1116
      %v1727 = vpack.c.bf16 %v1127, %v1124
      %v1728 = vpack.c.bf16 %v1135, %v1132
      %v1729 = vpack.c.bf16 %v1143, %v1140
      %v1730 = vpack.c.bf16 %v1151, %v1148
      %v1731 = vpack.c.bf16 %v1159, %v1156
      %v1732 = vpack.c.bf16 %v1167, %v1164
      %v1733 = vpack.c.bf16 %v1175, %v1172
      %v1734 = vpack.c.bf16 %v1183, %v1180
      %v1735 = vpack.c.bf16 %v1191, %v1188
      %v1736 = vpack.c.bf16 %v1199, %v1196
      %v1737 = vpack.c.bf16 %v1207, %v1204
      %v1738 = vpack.c.bf16 %v1215, %v1212
      %v1739 = vpack.c.bf16 %v1223, %v1220
      %v1740 = vpack.c.bf16 %v1269, %v1266
      %v1741 = vpack.c.bf16 %v1277, %v1274
      %v1742 = vpack.c.bf16 %v1285, %v1282
      %v1743 = vpack.c.bf16 %v1293, %v1290
      %v1744 = vpack.c.bf16 %v1301, %v1298
      %v1745 = vpack.c.bf16 %v1309, %v1306
      %v1746 = vpack.c.bf16 %v1317, %v1314
      %v1747 = vpack.c.bf16 %v1325, %v1322
      %v1748 = vpack.c.bf16 %v1333, %v1330
      %v1749 = vpack.c.bf16 %v1341, %v1338
      %v1750 = vpack.c.bf16 %v1349, %v1346
      %v1751 = vpack.c.bf16 %v1357, %v1354
      %v1752 = vpack.c.bf16 %v1365, %v1362
      %v1753 = vpack.c.bf16 %v1373, %v1370
      %v1754 = vpack.c.bf16 %v1381, %v1378
      %v1755 = vpack.c.bf16 %v1389, %v1386
      %v1756 = vpack.c.bf16 %v1435, %v1432
      %v1757 = vpack.c.bf16 %v1443, %v1440
      %v1758 = vpack.c.bf16 %v1451, %v1448
      %v1759 = vpack.c.bf16 %v1459, %v1456
      %v1760 = vpack.c.bf16 %v1467, %v1464
      %v1761 = vpack.c.bf16 %v1475, %v1472
      %v1762 = vpack.c.bf16 %v1483, %v1480
      %v1763 = vpack.c.bf16 %v1491, %v1488
      %v1764 = vpack.c.bf16 %v1499, %v1496
      %v1765 = vpack.c.bf16 %v1507, %v1504
      %v1766 = vpack.c.bf16 %v1515, %v1512
      %v1767 = vpack.c.bf16 %v1523, %v1520
      %v1768 = vpack.c.bf16 %v1531, %v1528
      %v1769 = vpack.c.bf16 %v1539, %v1536
      %v1770 = vpack.c.bf16 %v1547, %v1544
      %v1771 = vpack.c.bf16 %v1555, %v1552
      %v1772 = vpack.c.bf16 %v1601, %v1598
      %v1773 = vpack.c.bf16 %v1609, %v1606
      %v1774 = vpack.c.bf16 %v1617, %v1614
      %v1775 = vpack.c.bf16 %v1625, %v1622
      %v1776 = vpack.c.bf16 %v1633, %v1630
      %v1777 = vpack.c.bf16 %v1641, %v1638
      %v1778 = vpack.c.bf16 %v1649, %v1646
      %v1779 = vpack.c.bf16 %v1657, %v1654
      %v1780 = vpack.c.bf16 %v1665, %v1662
      %v1781 = vpack.c.bf16 %v1673, %v1670
      %v1782 = vpack.c.bf16 %v1681, %v1678
      %v1783 = vpack.c.bf16 %v1689, %v1686
      %v1784 = vpack.c.bf16 %v1697, %v1694
      %v1785 = vpack.c.bf16 %v1705, %v1702
      %v1786 = vpack.c.bf16 %v1713, %v1710
      %v1787 = vpack.c.bf16 %v1721, %v1718
      %v1788 = vld [vmem:[%s7] sm:$0xff]
      %v1789 = vld [vmem:[%s7 + $0x8] sm:$0xff]
      %v1790 = vld [vmem:[%s7 + $0x10] sm:$0xff]
      %v1791 = vld [vmem:[%s7 + $0x18] sm:$0xff]
      %v1792 = vld [vmem:[%s7 + $0x20] sm:$0xff]
      %v1793 = vld [vmem:[%s7 + $0x28] sm:$0xff]
      %v1794 = vld [vmem:[%s7 + $0x30] sm:$0xff]
      %v1795 = vld [vmem:[%s7 + $0x38] sm:$0xff]
      %v1796 = vld [vmem:[%s7 + $0x40] sm:$0xff]
      %v1797 = vld [vmem:[%s7 + $0x48] sm:$0xff]
      %v1798 = vld [vmem:[%s7 + $0x50] sm:$0xff]
      %v1799 = vld [vmem:[%s7 + $0x58] sm:$0xff]
      %v1800 = vld [vmem:[%s7 + $0x60] sm:$0xff]
      %v1801 = vld [vmem:[%s7 + $0x68] sm:$0xff]
      %v1802 = vld [vmem:[%s7 + $0x70] sm:$0xff]
      %v1803 = vld [vmem:[%s7 + $0x78] sm:$0xff]
      %v1804 = vld [vmem:[%s7 + $0x80] sm:$0xff]
      %v1805 = vld [vmem:[%s7 + $0x88] sm:$0xff]
      %v1806 = vld [vmem:[%s7 + $0x90] sm:$0xff]
      %v1807 = vld [vmem:[%s7 + $0x98] sm:$0xff]
      %v1808 = vld [vmem:[%s7 + $0xa0] sm:$0xff]
      %v1809 = vld [vmem:[%s7 + $0xa8] sm:$0xff]
      %v1810 = vld [vmem:[%s7 + $0xb0] sm:$0xff]
      %v1811 = vld [vmem:[%s7 + $0xb8] sm:$0xff]
      %v1812 = vld [vmem:[%s7 + $0xc0] sm:$0xff]
      %v1813 = vld [vmem:[%s7 + $0xc8] sm:$0xff]
      %v1814 = vld [vmem:[%s7 + $0xd0] sm:$0xff]
      %v1815 = vld [vmem:[%s7 + $0xd8] sm:$0xff]
      %v1816 = vld [vmem:[%s7 + $0xe0] sm:$0xff]
      %v1817 = vld [vmem:[%s7 + $0xe8] sm:$0xff]
      %v1818 = vld [vmem:[%s7 + $0xf0] sm:$0xff]
      %v1819 = vld [vmem:[%s7 + $0xf8] sm:$0xff]
      %v1820 = vld [vmem:[%s7 + $0x100] sm:$0xff]
      %v1821 = vld [vmem:[%s7 + $0x108] sm:$0xff]
      %v1822 = vld [vmem:[%s7 + $0x110] sm:$0xff]
      %v1823 = vld [vmem:[%s7 + $0x118] sm:$0xff]
      %v1824 = vld [vmem:[%s7 + $0x120] sm:$0xff]
      %v1825 = vld [vmem:[%s7 + $0x128] sm:$0xff]
      %v1826 = vld [vmem:[%s7 + $0x130] sm:$0xff]
      %v1827 = vld [vmem:[%s7 + $0x138] sm:$0xff]
      %v1828 = vld [vmem:[%s7 + $0x140] sm:$0xff]
      %v1829 = vld [vmem:[%s7 + $0x148] sm:$0xff]
      %v1830 = vld [vmem:[%s7 + $0x150] sm:$0xff]
      %v1831 = vld [vmem:[%s7 + $0x158] sm:$0xff]
      %v1832 = vld [vmem:[%s5] sm:$0x1]
      %v1834 = vlaneseq
      %v1835 = vshrl.u32 %v1834, 7
      %v1836 = vsub.s32 0, %v1835
      %v1837 = vrot.slane %v1832, %v1836
      %v1883 = vunpack.c.l.b16 %v1788
      %v1884 = vunpack.c.h.b16 %v1788
      %v1885 = vunpack.c.l.b16 %v1789
      %v1886 = vunpack.c.h.b16 %v1789
      %v1887 = vunpack.c.l.b16 %v1790
      %v1888 = vunpack.c.h.b16 %v1790
      %v1889 = vunpack.c.l.b16 %v1791
      %v1890 = vunpack.c.h.b16 %v1791
      %v1891 = vunpack.c.l.b16 %v1792
      %v1892 = vunpack.c.h.b16 %v1792
      %v1893 = vunpack.c.l.b16 %v1793
      %v1894 = vunpack.c.h.b16 %v1793
      %v1895 = vunpack.c.l.b16 %v1794
      %v1896 = vunpack.c.h.b16 %v1794
      %v1897 = vunpack.c.l.b16 %v1795
      %v1898 = vunpack.c.h.b16 %v1795
      %v1899 = vunpack.c.l.b16 %v1796
      %v1900 = vunpack.c.h.b16 %v1796
      %v1901 = vunpack.c.l.b16 %v1797
      %v1902 = vunpack.c.h.b16 %v1797
      %v1903 = vunpack.c.l.b16 %v1798
      %v1904 = vunpack.c.h.b16 %v1798
      %v1905 = vunpack.c.l.b16 %v1799
      %v1906 = vunpack.c.h.b16 %v1799
      %v1907 = vunpack.c.l.b16 %v1800
      %v1908 = vunpack.c.h.b16 %v1800
      %v1909 = vunpack.c.l.b16 %v1801
      %v1910 = vunpack.c.h.b16 %v1801
      %v1911 = vunpack.c.l.b16 %v1802
      %v1912 = vunpack.c.h.b16 %v1802
      %v1913 = vunpack.c.l.b16 %v1803
      %v1914 = vunpack.c.h.b16 %v1803
      %v1915 = vunpack.c.l.b16 %v1804
      %v1916 = vunpack.c.h.b16 %v1804
      %v1917 = vunpack.c.l.b16 %v1805
      %v1918 = vunpack.c.h.b16 %v1805
      %v1919 = vunpack.c.l.b16 %v1806
      %v1920 = vunpack.c.h.b16 %v1806
      %v1921 = vunpack.c.l.b16 %v1807
      %v1922 = vunpack.c.h.b16 %v1807
      %v1923 = vunpack.c.l.b16 %v1808
      %v1924 = vunpack.c.h.b16 %v1808
      %v1925 = vunpack.c.l.b16 %v1809
      %v1926 = vunpack.c.h.b16 %v1809
      %v1927 = vunpack.c.l.b16 %v1810
      %v1928 = vunpack.c.h.b16 %v1810
      %v1929 = vunpack.c.l.b16 %v1811
      %v1930 = vunpack.c.h.b16 %v1811
      %v1931 = vunpack.c.l.b16 %v1812
      %v1932 = vunpack.c.h.b16 %v1812
      %v1933 = vunpack.c.l.b16 %v1813
      %v1934 = vunpack.c.h.b16 %v1813
      %v1935 = vunpack.c.l.b16 %v1814
      %v1936 = vunpack.c.h.b16 %v1814
      %v1937 = vunpack.c.l.b16 %v1815
      %v1938 = vunpack.c.h.b16 %v1815
      %v1939 = vunpack.c.l.b16 %v1816
      %v1940 = vunpack.c.h.b16 %v1816
      %v1941 = vunpack.c.l.b16 %v1817
      %v1942 = vunpack.c.h.b16 %v1817
      %v1943 = vunpack.c.l.b16 %v1818
      %v1944 = vunpack.c.h.b16 %v1818
      %v1945 = vunpack.c.l.b16 %v1819
      %v1946 = vunpack.c.h.b16 %v1819
      %v1947 = vunpack.c.l.b16 %v1820
      %v1948 = vunpack.c.h.b16 %v1820
      %v1949 = vunpack.c.l.b16 %v1821
      %v1950 = vunpack.c.h.b16 %v1821
      %v1951 = vunpack.c.l.b16 %v1822
      %v1952 = vunpack.c.h.b16 %v1822
      %v1953 = vunpack.c.l.b16 %v1823
      %v1954 = vunpack.c.h.b16 %v1823
      %v1955 = vunpack.c.l.b16 %v1824
      %v1956 = vunpack.c.h.b16 %v1824
      %v1957 = vunpack.c.l.b16 %v1825
      %v1958 = vunpack.c.h.b16 %v1825
      %v1959 = vunpack.c.l.b16 %v1826
      %v1960 = vunpack.c.h.b16 %v1826
      %v1961 = vunpack.c.l.b16 %v1827
      %v1962 = vunpack.c.h.b16 %v1827
      %v1963 = vunpack.c.l.b16 %v1828
      %v1964 = vunpack.c.h.b16 %v1828
      %v1965 = vunpack.c.l.b16 %v1829
      %v1966 = vunpack.c.h.b16 %v1829
      %v1967 = vunpack.c.l.b16 %v1830
      %v1968 = vunpack.c.h.b16 %v1830
      %v1969 = vunpack.c.l.b16 %v1831
      %v1970 = vunpack.c.h.b16 %v1831
      %v1971 = vpack.c.b16 %v1891, %v1883
      %v1972 = vpack.c.b16 %v1892, %v1884
      %v1973 = vpack.c.b16 %v1893, %v1885
      %v1974 = vpack.c.b16 %v1894, %v1886
      %v1975 = vpack.c.b16 %v1895, %v1887
      %v1976 = vpack.c.b16 %v1896, %v1888
      %v1977 = vpack.c.b16 %v1897, %v1889
      %v1978 = vpack.c.b16 %v1898, %v1890
      %v1979 = vpack.c.b16 %v1907, %v1899
      %v1980 = vpack.c.b16 %v1908, %v1900
      %v1981 = vpack.c.b16 %v1909, %v1901
      %v1982 = vpack.c.b16 %v1910, %v1902
      %v1983 = vpack.c.b16 %v1911, %v1903
      %v1984 = vpack.c.b16 %v1912, %v1904
      %v1985 = vpack.c.b16 %v1913, %v1905
      %v1986 = vpack.c.b16 %v1914, %v1906
      %v1987 = vpack.c.b16 %v1923, %v1915
      %v1988 = vpack.c.b16 %v1924, %v1916
      %v1989 = vpack.c.b16 %v1925, %v1917
      %v1990 = vpack.c.b16 %v1926, %v1918
      %v1991 = vpack.c.b16 %v1927, %v1919
      %v1992 = vpack.c.b16 %v1928, %v1920
      %v1993 = vpack.c.b16 %v1929, %v1921
      %v1994 = vpack.c.b16 %v1930, %v1922
      %v1995 = vpack.c.b16 %v1939, %v1931
      %v1996 = vpack.c.b16 %v1940, %v1932
      %v1997 = vpack.c.b16 %v1941, %v1933
      %v1998 = vpack.c.b16 %v1942, %v1934
      %v1999 = vpack.c.b16 %v1943, %v1935
      %v2000 = vpack.c.b16 %v1944, %v1936
      %v2001 = vpack.c.b16 %v1945, %v1937
      %v2002 = vpack.c.b16 %v1946, %v1938
      %v2003 = vpack.c.b16 %v1955, %v1947
      %v2004 = vpack.c.b16 %v1956, %v1948
      %v2005 = vpack.c.b16 %v1957, %v1949
      %v2006 = vpack.c.b16 %v1958, %v1950
      %v2007 = vpack.c.b16 %v1959, %v1951
      %v2008 = vpack.c.b16 %v1960, %v1952
      %v2009 = vpack.c.b16 %v1961, %v1953
      %v2010 = vpack.c.b16 %v1962, %v1954
      %v2011 = vpack.c.b16 %v1963, %v1963
      %v2012 = vpack.c.b16 %v1964, %v1964
      %v2013 = vpack.c.b16 %v1965, %v1965
      %v2014 = vpack.c.b16 %v1966, %v1966
      %v2015 = vpack.c.b16 %v1967, %v1967
      %v2016 = vpack.c.b16 %v1968, %v1968
      %v2017 = vpack.c.b16 %v1969, %v1969
      %v2018 = vpack.c.b16 %v1970, %v1970
      %2067 = vmatprep.subr.bf16.mxu0 0
      %2068 = vmatpush1.bf16.msra.mxu0 %v1724
      %2069 = vmatprep.subr.bf16.mxu0 0
      %2070 = vmatpush1.bf16.msra.mxu0 %v1725
      %2071 = vmatprep.subr.bf16.mxu0 0
      %2072 = vmatpush1.bf16.msra.mxu0 %v1726
      %2073 = vmatprep.subr.bf16.mxu0 0
      %2074 = vmatpush1.bf16.msra.mxu0 %v1727
      %2075 = vmatprep.subr.bf16.mxu0 0
      %2076 = vmatpush1.bf16.msra.mxu0 %v1728
      %2077 = vmatprep.subr.bf16.mxu0 0
      %2078 = vmatpush1.bf16.msra.mxu0 %v1729
      %2079 = vmatprep.subr.bf16.mxu0 0
      %2080 = vmatpush1.bf16.msra.mxu0 %v1730
      %2081 = vmatprep.subr.bf16.mxu0 0
      %2082 = vmatpush1.bf16.msra.mxu0 %v1731
      %2083 = vmatprep.subr.bf16.mxu0 0
      %2084 = vmatpush1.bf16.msra.mxu0 %v1732
      %2085 = vmatprep.subr.bf16.mxu0 0
      %2086 = vmatpush1.bf16.msra.mxu0 %v1733
      %2087 = vmatprep.subr.bf16.mxu0 0
      %2088 = vmatpush1.bf16.msra.mxu0 %v1734
      %2089 = vmatprep.subr.bf16.mxu0 0
      %2090 = vmatpush1.bf16.msra.mxu0 %v1735
      %2091 = vmatprep.subr.bf16.mxu0 0
      %2092 = vmatpush1.bf16.msra.mxu0 %v1736
      %2093 = vmatprep.subr.bf16.mxu0 0
      %2094 = vmatpush1.bf16.msra.mxu0 %v1737
      %2095 = vmatprep.subr.bf16.mxu0 0
      %2096 = vmatpush1.bf16.msra.mxu0 %v1738
      %2097 = vmatprep.subr.bf16.mxu0 0
      %2098 = vmatpush1.bf16.msra.mxu0 %v1739
      %2099 = vmatprep.mubr.bf16.mxu0 %v1972
      %2100 = vmatmul.mubr.bf16.gmra.mrb[0].mxu0 %v1971
      %v2101 = vpop.f32.mrb[0].mxu0
      %v2102 = vadd.f32 %v1837, %v2101
      %v2103 = vpop.f32.mrb[0].mxu0
      %v2104 = vpop.f32.mrb[0].mxu0
      %v2105 = vadd.f32 %v1837, %v2104
      %v2106 = vpop.f32.mrb[0].mxu0
      %2107 = vmatprep.mubr.bf16.mxu0 %v1980
      %2108 = vmatmul.mubr.bf16.gmra.mrb[0].mxu0 %v1979
      %v2109 = vpop.f32.mrb[0].mxu0
      %v2110 = vadd.f32 %v1837, %v2109
      %v2111 = vpop.f32.mrb[0].mxu0
      %v2112 = vpop.f32.mrb[0].mxu0
      %v2113 = vadd.f32 %v1837, %v2112
      %v2114 = vpop.f32.mrb[0].mxu0
      %2115 = vmatprep.mubr.bf16.mxu0 %v1988
      %2116 = vmatmul.mubr.bf16.gmra.mrb[0].mxu0 %v1987
      %v2117 = vpop.f32.mrb[0].mxu0
      %v2118 = vadd.f32 %v1837, %v2117
      %v2119 = vpop.f32.mrb[0].mxu0
      %v2120 = vpop.f32.mrb[0].mxu0
      %v2121 = vadd.f32 %v1837, %v2120
      %v2122 = vpop.f32.mrb[0].mxu0
      %2123 = vmatprep.mubr.bf16.mxu0 %v1996
      %2124 = vmatmul.mubr.bf16.gmra.mrb[0].mxu0 %v1995
      %v2125 = vpop.f32.mrb[0].mxu0
      %v2126 = vadd.f32 %v1837, %v2125
      %v2127 = vpop.f32.mrb[0].mxu0
      %v2128 = vpop.f32.mrb[0].mxu0
      %v2129 = vadd.f32 %v1837, %v2128
      %v2130 = vpop.f32.mrb[0].mxu0
      %2131 = vmatprep.mubr.bf16.mxu0 %v2004
      %2132 = vmatmul.mubr.bf16.gmra.mrb[0].mxu0 %v2003
      %v2133 = vpop.f32.mrb[0].mxu0
      %v2134 = vadd.f32 %v1837, %v2133
      %v2135 = vpop.f32.mrb[0].mxu0
      %v2136 = vpop.f32.mrb[0].mxu0
      %v2137 = vadd.f32 %v1837, %v2136
      %v2138 = vpop.f32.mrb[0].mxu0
      %2139 = vmatprep.mubr.bf16.mxu0 %v2012
      %2140 = vmatmul.mubr.bf16.gmra.mrb[0].mxu0 %v2011
      %v2141 = vpop.f32.mrb[0].mxu0
      %v2142 = vadd.f32 %v1837, %v2141
      %v2143 = vpop.f32.mrb[0].mxu0
      %v2144 = vpop.f32.mrb[0].mxu0
      %v2145 = vpop.f32.mrb[0].mxu0
      %2146 = vdwg.mxu0
      %2147 = vmatprep.subr.bf16.mxu0 0
      %2148 = vmatpush1.bf16.msra.mxu0 %v1740
      %2149 = vmatprep.subr.bf16.mxu0 0
      %2150 = vmatpush1.bf16.msra.mxu0 %v1741
      %2151 = vmatprep.subr.bf16.mxu0 0
      %2152 = vmatpush1.bf16.msra.mxu0 %v1742
      %2153 = vmatprep.subr.bf16.mxu0 0
      %2154 = vmatpush1.bf16.msra.mxu0 %v1743
      %2155 = vmatprep.subr.bf16.mxu0 0
      %2156 = vmatpush1.bf16.msra.mxu0 %v1744
      %2157 = vmatprep.subr.bf16.mxu0 0
      %2158 = vmatpush1.bf16.msra.mxu0 %v1745
      %2159 = vmatprep.subr.bf16.mxu0 0
      %2160 = vmatpush1.bf16.msra.mxu0 %v1746
      %2161 = vmatprep.subr.bf16.mxu0 0
      %2162 = vmatpush1.bf16.msra.mxu0 %v1747
      %2163 = vmatprep.subr.bf16.mxu0 0
      %2164 = vmatpush1.bf16.msra.mxu0 %v1748
      %2165 = vmatprep.subr.bf16.mxu0 0
      %2166 = vmatpush1.bf16.msra.mxu0 %v1749
      %2167 = vmatprep.subr.bf16.mxu0 0
      %2168 = vmatpush1.bf16.msra.mxu0 %v1750
      %2169 = vmatprep.subr.bf16.mxu0 0
      %2170 = vmatpush1.bf16.msra.mxu0 %v1751
      %2171 = vmatprep.subr.bf16.mxu0 0
      %2172 = vmatpush1.bf16.msra.mxu0 %v1752
      %2173 = vmatprep.subr.bf16.mxu0 0
      %2174 = vmatpush1.bf16.msra.mxu0 %v1753
      %2175 = vmatprep.subr.bf16.mxu0 0
      %2176 = vmatpush1.bf16.msra.mxu0 %v1754
      %2177 = vmatprep.subr.bf16.mxu0 0
      %2178 = vmatpush1.bf16.msra.mxu0 %v1755
      %2179 = vmatprep.mubr.bf16.mxu0 %v1974
      %2180 = vmatmul.mubr.bf16.gmra.mrb[0].mxu0 %v1973
      %v2181 = vpop.f32.mrb[0].mxu0
      %v2182 = vadd.f32 %v2102, %v2181
      %v2183 = vpop.f32.mrb[0].mxu0
      %v2184 = vpop.f32.mrb[0].mxu0
      %v2185 = vadd.f32 %v2105, %v2184
      %v2186 = vpop.f32.mrb[0].mxu0
      %2187 = vmatprep.mubr.bf16.mxu0 %v1982
      %2188 = vmatmul.mubr.bf16.gmra.mrb[0].mxu0 %v1981
      %v2189 = vpop.f32.mrb[0].mxu0
      %v2190 = vadd.f32 %v2110, %v2189
      %v2191 = vpop.f32.mrb[0].mxu0
      %v2192 = vpop.f32.mrb[0].mxu0
      %v2193 = vadd.f32 %v2113, %v2192
      %v2194 = vpop.f32.mrb[0].mxu0
      %2195 = vmatprep.mubr.bf16.mxu0 %v1990
      %2196 = vmatmul.mubr.bf16.gmra.mrb[0].mxu0 %v1989
      %v2197 = vpop.f32.mrb[0].mxu0
      %v2198 = vadd.f32 %v2118, %v2197
      %v2199 = vpop.f32.mrb[0].mxu0
      %v2200 = vpop.f32.mrb[0].mxu0
      %v2201 = vadd.f32 %v2121, %v2200
      %v2202 = vpop.f32.mrb[0].mxu0
      %2203 = vmatprep.mubr.bf16.mxu0 %v1998
      %2204 = vmatmul.mubr.bf16.gmra.mrb[0].mxu0 %v1997
      %v2205 = vpop.f32.mrb[0].mxu0
      %v2206 = vadd.f32 %v2126, %v2205
      %v2207 = vpop.f32.mrb[0].mxu0
      %v2208 = vpop.f32.mrb[0].mxu0
      %v2209 = vadd.f32 %v2129, %v2208
      %v2210 = vpop.f32.mrb[0].mxu0
      %2211 = vmatprep.mubr.bf16.mxu0 %v2006
      %2212 = vmatmul.mubr.bf16.gmra.mrb[0].mxu0 %v2005
      %v2213 = vpop.f32.mrb[0].mxu0
      %v2214 = vadd.f32 %v2134, %v2213
      %v2215 = vpop.f32.mrb[0].mxu0
      %v2216 = vpop.f32.mrb[0].mxu0
      %v2217 = vadd.f32 %v2137, %v2216
      %v2218 = vpop.f32.mrb[0].mxu0
      %2219 = vmatprep.mubr.bf16.mxu0 %v2014
      %2220 = vmatmul.mubr.bf16.gmra.mrb[0].mxu0 %v2013
      %v2221 = vpop.f32.mrb[0].mxu0
      %v2222 = vadd.f32 %v2142, %v2221
      %v2223 = vpop.f32.mrb[0].mxu0
      %v2224 = vpop.f32.mrb[0].mxu0
      %v2225 = vpop.f32.mrb[0].mxu0
      %2226 = vdwg.mxu0
      %2227 = vmatprep.subr.bf16.mxu0 0
      %2228 = vmatpush1.bf16.msra.mxu0 %v1756
      %2229 = vmatprep.subr.bf16.mxu0 0
      %2230 = vmatpush1.bf16.msra.mxu0 %v1757
      %2231 = vmatprep.subr.bf16.mxu0 0
      %2232 = vmatpush1.bf16.msra.mxu0 %v1758
      %2233 = vmatprep.subr.bf16.mxu0 0
      %2234 = vmatpush1.bf16.msra.mxu0 %v1759
      %2235 = vmatprep.subr.bf16.mxu0 0
      %2236 = vmatpush1.bf16.msra.mxu0 %v1760
      %2237 = vmatprep.subr.bf16.mxu0 0
      %2238 = vmatpush1.bf16.msra.mxu0 %v1761
      %2239 = vmatprep.subr.bf16.mxu0 0
      %2240 = vmatpush1.bf16.msra.mxu0 %v1762
      %2241 = vmatprep.subr.bf16.mxu0 0
      %2242 = vmatpush1.bf16.msra.mxu0 %v1763
      %2243 = vmatprep.subr.bf16.mxu0 0
      %2244 = vmatpush1.bf16.msra.mxu0 %v1764
      %2245 = vmatprep.subr.bf16.mxu0 0
      %2246 = vmatpush1.bf16.msra.mxu0 %v1765
      %2247 = vmatprep.subr.bf16.mxu0 0
      %2248 = vmatpush1.bf16.msra.mxu0 %v1766
      %2249 = vmatprep.subr.bf16.mxu0 0
      %2250 = vmatpush1.bf16.msra.mxu0 %v1767
      %2251 = vmatprep.subr.bf16.mxu0 0
      %2252 = vmatpush1.bf16.msra.mxu0 %v1768
      %2253 = vmatprep.subr.bf16.mxu0 0
      %2254 = vmatpush1.bf16.msra.mxu0 %v1769
      %2255 = vmatprep.subr.bf16.mxu0 0
      %2256 = vmatpush1.bf16.msra.mxu0 %v1770
      %2257 = vmatprep.subr.bf16.mxu0 0
      %2258 = vmatpush1.bf16.msra.mxu0 %v1771
      %2259 = vmatprep.mubr.bf16.mxu0 %v1976
      %2260 = vmatmul.mubr.bf16.gmra.mrb[0].mxu0 %v1975
      %v2261 = vpop.f32.mrb[0].mxu0
      %v2262 = vadd.f32 %v2182, %v2261
      %v2263 = vpop.f32.mrb[0].mxu0
      %v2264 = vpop.f32.mrb[0].mxu0
      %v2265 = vadd.f32 %v2185, %v2264
      %v2266 = vpop.f32.mrb[0].mxu0
      %2267 = vmatprep.mubr.bf16.mxu0 %v1984
      %2268 = vmatmul.mubr.bf16.gmra.mrb[0].mxu0 %v1983
      %v2269 = vpop.f32.mrb[0].mxu0
      %v2270 = vadd.f32 %v2190, %v2269
      %v2271 = vpop.f32.mrb[0].mxu0
      %v2272 = vpop.f32.mrb[0].mxu0
      %v2273 = vadd.f32 %v2193, %v2272
      %v2274 = vpop.f32.mrb[0].mxu0
      %2275 = vmatprep.mubr.bf16.mxu0 %v1992
      %2276 = vmatmul.mubr.bf16.gmra.mrb[0].mxu0 %v1991
      %v2277 = vpop.f32.mrb[0].mxu0
      %v2278 = vadd.f32 %v2198, %v2277
      %v2279 = vpop.f32.mrb[0].mxu0
      %v2280 = vpop.f32.mrb[0].mxu0
      %v2281 = vadd.f32 %v2201, %v2280
      %v2282 = vpop.f32.mrb[0].mxu0
      %2283 = vmatprep.mubr.bf16.mxu0 %v2000
      %2284 = vmatmul.mubr.bf16.gmra.mrb[0].mxu0 %v1999
      %v2285 = vpop.f32.mrb[0].mxu0
      %v2286 = vadd.f32 %v2206, %v2285
      %v2287 = vpop.f32.mrb[0].mxu0
      %v2288 = vpop.f32.mrb[0].mxu0
      %v2289 = vadd.f32 %v2209, %v2288
      %v2290 = vpop.f32.mrb[0].mxu0
      %2291 = vmatprep.mubr.bf16.mxu0 %v2008
      %2292 = vmatmul.mubr.bf16.gmra.mrb[0].mxu0 %v2007
      %v2293 = vpop.f32.mrb[0].mxu0
      %v2294 = vadd.f32 %v2214, %v2293
      %v2295 = vpop.f32.mrb[0].mxu0
      %v2296 = vpop.f32.mrb[0].mxu0
      %v2297 = vadd.f32 %v2217, %v2296
      %v2298 = vpop.f32.mrb[0].mxu0
      %2299 = vmatprep.mubr.bf16.mxu0 %v2016
      %2300 = vmatmul.mubr.bf16.gmra.mrb[0].mxu0 %v2015
      %v2301 = vpop.f32.mrb[0].mxu0
      %v2302 = vadd.f32 %v2222, %v2301
      %v2303 = vpop.f32.mrb[0].mxu0
      %v2304 = vpop.f32.mrb[0].mxu0
      %v2305 = vpop.f32.mrb[0].mxu0
      %2306 = vdwg.mxu0
      %2307 = vmatprep.subr.bf16.mxu0 0
      %2308 = vmatpush1.bf16.msra.mxu0 %v1772
      %2309 = vmatprep.subr.bf16.mxu0 0
      %2310 = vmatpush1.bf16.msra.mxu0 %v1773
      %2311 = vmatprep.subr.bf16.mxu0 0
      %2312 = vmatpush1.bf16.msra.mxu0 %v1774
      %2313 = vmatprep.subr.bf16.mxu0 0
      %2314 = vmatpush1.bf16.msra.mxu0 %v1775
      %2315 = vmatprep.subr.bf16.mxu0 0
      %2316 = vmatpush1.bf16.msra.mxu0 %v1776
      %2317 = vmatprep.subr.bf16.mxu0 0
      %2318 = vmatpush1.bf16.msra.mxu0 %v1777
      %2319 = vmatprep.subr.bf16.mxu0 0
      %2320 = vmatpush1.bf16.msra.mxu0 %v1778
      %2321 = vmatprep.subr.bf16.mxu0 0
      %2322 = vmatpush1.bf16.msra.mxu0 %v1779
      %2323 = vmatprep.subr.bf16.mxu0 0
      %2324 = vmatpush1.bf16.msra.mxu0 %v1780
      %2325 = vmatprep.subr.bf16.mxu0 0
      %2326 = vmatpush1.bf16.msra.mxu0 %v1781
      %2327 = vmatprep.subr.bf16.mxu0 0
      %2328 = vmatpush1.bf16.msra.mxu0 %v1782
      %2329 = vmatprep.subr.bf16.mxu0 0
      %2330 = vmatpush1.bf16.msra.mxu0 %v1783
      %2331 = vmatprep.subr.bf16.mxu0 0
      %2332 = vmatpush1.bf16.msra.mxu0 %v1784
      %2333 = vmatprep.subr.bf16.mxu0 0
      %2334 = vmatpush1.bf16.msra.mxu0 %v1785
      %2335 = vmatprep.subr.bf16.mxu0 0
      %2336 = vmatpush1.bf16.msra.mxu0 %v1786
      %2337 = vmatprep.subr.bf16.mxu0 0
      %2338 = vmatpush1.bf16.msra.mxu0 %v1787
      %2339 = vmatprep.mubr.bf16.mxu0 %v1978
      %2340 = vmatmul.mubr.bf16.gmra.mrb[0].mxu0 %v1977
      %v2341 = vpop.f32.mrb[0].mxu0
      %v2342 = vadd.f32 %v2262, %v2341
      %v2343 = vpop.f32.mrb[0].mxu0
      %v2344 = vpop.f32.mrb[0].mxu0
      %v2345 = vadd.f32 %v2265, %v2344
      %v2346 = vpop.f32.mrb[0].mxu0
      %2347 = vmatprep.mubr.bf16.mxu0 %v1986
      %2348 = vmatmul.mubr.bf16.gmra.mrb[0].mxu0 %v1985
      %v2349 = vpop.f32.mrb[0].mxu0
      %v2350 = vadd.f32 %v2270, %v2349
      %v2351 = vpop.f32.mrb[0].mxu0
      %v2352 = vpop.f32.mrb[0].mxu0
      %v2353 = vadd.f32 %v2273, %v2352
      %v2354 = vpop.f32.mrb[0].mxu0
      %2355 = vmatprep.mubr.bf16.mxu0 %v1994
      %2356 = vmatmul.mubr.bf16.gmra.mrb[0].mxu0 %v1993
      %v2357 = vpop.f32.mrb[0].mxu0
      %v2358 = vadd.f32 %v2278, %v2357
      %v2359 = vpop.f32.mrb[0].mxu0
      %v2360 = vpop.f32.mrb[0].mxu0
      %v2361 = vadd.f32 %v2281, %v2360
      %v2362 = vpop.f32.mrb[0].mxu0
      %2363 = vmatprep.mubr.bf16.mxu0 %v2002
      %2364 = vmatmul.mubr.bf16.gmra.mrb[0].mxu0 %v2001
      %v2365 = vpop.f32.mrb[0].mxu0
      %v2366 = vadd.f32 %v2286, %v2365
      %v2367 = vpop.f32.mrb[0].mxu0
      %v2368 = vpop.f32.mrb[0].mxu0
      %v2369 = vadd.f32 %v2289, %v2368
      %v2370 = vpop.f32.mrb[0].mxu0
      %2371 = vmatprep.mubr.bf16.mxu0 %v2010
      %2372 = vmatmul.mubr.bf16.gmra.mrb[0].mxu0 %v2009
      %v2373 = vpop.f32.mrb[0].mxu0
      %v2374 = vadd.f32 %v2294, %v2373
      %v2375 = vpop.f32.mrb[0].mxu0
      %v2376 = vpop.f32.mrb[0].mxu0
      %v2377 = vadd.f32 %v2297, %v2376
      %v2378 = vpop.f32.mrb[0].mxu0
      %2379 = vmatprep.mubr.bf16.mxu0 %v2018
      %2380 = vmatmul.mubr.bf16.gmra.mrb[0].mxu0 %v2017
      %v2381 = vpop.f32.mrb[0].mxu0
      %v2382 = vadd.f32 %v2302, %v2381
      %v2383 = vpop.f32.mrb[0].mxu0
      %v2384 = vpop.f32.mrb[0].mxu0
      %v2385 = vpop.f32.mrb[0].mxu0
      %2386 = vdwg.mxu0
      %v2387 = vmax.f32 %v2342, 0.0
      %v2388 = vmax.f32 %v2345, 0.0
      %v2389 = vmax.f32 %v2350, 0.0
      %v2390 = vmax.f32 %v2353, 0.0
      %v2391 = vmax.f32 %v2358, 0.0
      %v2392 = vmax.f32 %v2361, 0.0
      %v2393 = vmax.f32 %v2366, 0.0
      %v2394 = vmax.f32 %v2369, 0.0
      %v2395 = vmax.f32 %v2374, 0.0
      %v2396 = vmax.f32 %v2377, 0.0
      %v2397 = vmax.f32 %v2382, 0.0
      %v2398 = vpack.c.bf16 %v2388, %v2387
      %v2399 = vpack.c.bf16 %v2390, %v2389
      %v2400 = vpack.c.bf16 %v2392, %v2391
      %v2401 = vpack.c.bf16 %v2394, %v2393
      %v2402 = vpack.c.bf16 %v2396, %v2395
      %v2403 = vpack.c.bf16 %v2397, %v2397
      %v2404 = vld [vmem:[%s9] sm:$0xf]
      %v2405 = vld [vmem:[%s9 + $0x4] sm:$0xf]
      %v2408 = vunpack.c.l.b16 %v2404
      %v2409 = vunpack.c.l.b16 %v2405
      %v2410 = vpack.c.b16 %v2409, %v2408
      %vm2412 = vcmask 130048
      %v2414 = vsel %vm2412, %v2398, 0
      %v2417 = vsel %vm2412, %v2399, 0
      %v2420 = vsel %vm2412, %v2400, 0
      %v2423 = vsel %vm2412, %v2401, 0
      %v2426 = vsel %vm2412, %v2402, 0
      %v2429 = vsel %vm2412, %v2403, 0
      %2431 = vmatprep.subr.bf16.mxu0 0
      %2432 = vmatpush1.bf16.msra.mxu0 %v2410
      %2433 = vmatprep.subr.bf16.mxu0 0
      %2434 = vmatpush1.bf16.msra.mxu0 0
      %2435 = vmatprep.subr.bf16.mxu0 0
      %2436 = vmatpush1.bf16.msra.mxu0 0
      %2437 = vmatprep.subr.bf16.mxu0 0
      %2438 = vmatpush1.bf16.msra.mxu0 0
      %2439 = vmatprep.subr.bf16.mxu0 0
      %2440 = vmatpush1.bf16.msra.mxu0 0
      %2441 = vmatprep.subr.bf16.mxu0 0
      %2442 = vmatpush1.bf16.msra.mxu0 0
      %2443 = vmatprep.subr.bf16.mxu0 0
      %2444 = vmatpush1.bf16.msra.mxu0 0
      %2445 = vmatprep.subr.bf16.mxu0 0
      %2446 = vmatpush1.bf16.msra.mxu0 0
      %2447 = vmatprep.subr.bf16.mxu0 0
      %2448 = vmatpush1.bf16.msra.mxu0 0
      %2449 = vmatprep.subr.bf16.mxu0 0
      %2450 = vmatpush1.bf16.msra.mxu0 0
      %2451 = vmatprep.subr.bf16.mxu0 0
      %2452 = vmatpush1.bf16.msra.mxu0 0
      %2453 = vmatprep.subr.bf16.mxu0 0
      %2454 = vmatpush1.bf16.msra.mxu0 0
      %2455 = vmatprep.subr.bf16.mxu0 0
      %2456 = vmatpush1.bf16.msra.mxu0 0
      %2457 = vmatprep.subr.bf16.mxu0 0
      %2458 = vmatpush1.bf16.msra.mxu0 0
      %2459 = vmatprep.subr.bf16.mxu0 0
      %2460 = vmatpush1.bf16.msra.mxu0 0
      %2461 = vmatprep.subr.bf16.mxu0 0
      %2462 = vmatpush1.bf16.msra.mxu0 0
      %2463 = vmatprep.mubr.bf16.mxu0 0
      %2464 = vmatmul.mubr.bf16.gmra.mrb[0].mxu0 %v2414
      %v2465 = vpop.f32.mrb[0].mxu0
      %v2466 = vadd.f32 0.0, %v2465
      %v2467 = vpop.f32.mrb[0].mxu0
      %v2468 = vpop.f32.mrb[0].mxu0
      %v2469 = vadd.f32 0.0, %v2468
      %v2470 = vpop.f32.mrb[0].mxu0
      %2471 = vmatprep.mubr.bf16.mxu0 0
      %2472 = vmatmul.mubr.bf16.gmra.mrb[0].mxu0 %v2417
      %v2473 = vpop.f32.mrb[0].mxu0
      %v2474 = vadd.f32 0.0, %v2473
      %v2475 = vpop.f32.mrb[0].mxu0
      %v2476 = vpop.f32.mrb[0].mxu0
      %v2477 = vadd.f32 0.0, %v2476
      %v2478 = vpop.f32.mrb[0].mxu0
      %2479 = vmatprep.mubr.bf16.mxu0 0
      %2480 = vmatmul.mubr.bf16.gmra.mrb[0].mxu0 %v2420
      %v2481 = vpop.f32.mrb[0].mxu0
      %v2482 = vadd.f32 0.0, %v2481
      %v2483 = vpop.f32.mrb[0].mxu0
      %v2484 = vpop.f32.mrb[0].mxu0
      %v2485 = vadd.f32 0.0, %v2484
      %v2486 = vpop.f32.mrb[0].mxu0
      %2487 = vmatprep.mubr.bf16.mxu0 0
      %2488 = vmatmul.mubr.bf16.gmra.mrb[0].mxu0 %v2423
      %v2489 = vpop.f32.mrb[0].mxu0
      %v2490 = vadd.f32 0.0, %v2489
      %v2491 = vpop.f32.mrb[0].mxu0
      %v2492 = vpop.f32.mrb[0].mxu0
      %v2493 = vadd.f32 0.0, %v2492
      %v2494 = vpop.f32.mrb[0].mxu0
      %2495 = vmatprep.mubr.bf16.mxu0 0
      %2496 = vmatmul.mubr.bf16.gmra.mrb[0].mxu0 %v2426
      %v2497 = vpop.f32.mrb[0].mxu0
      %v2498 = vadd.f32 0.0, %v2497
      %v2499 = vpop.f32.mrb[0].mxu0
      %v2500 = vpop.f32.mrb[0].mxu0
      %v2501 = vadd.f32 0.0, %v2500
      %v2502 = vpop.f32.mrb[0].mxu0
      %2503 = vmatprep.mubr.bf16.mxu0 0
      %2504 = vmatmul.mubr.bf16.gmra.mrb[0].mxu0 %v2429
      %v2505 = vpop.f32.mrb[0].mxu0
      %v2506 = vadd.f32 0.0, %v2505
      %v2507 = vpop.f32.mrb[0].mxu0
      %v2508 = vpop.f32.mrb[0].mxu0
      %v2509 = vpop.f32.mrb[0].mxu0
      %2510 = vdwg.mxu0
      %s2511 = scalar_lea.vmem %s9, 8
      %v2512 = vld [vmem:[%s2511] sm:$0xf]
      %v2513 = vld [vmem:[%s2511 + $0x4] sm:$0xf]
      %v2516 = vunpack.c.l.b16 %v2512
      %v2517 = vunpack.c.l.b16 %v2513
      %v2518 = vpack.c.b16 %v2517, %v2516
      %2520 = vmatprep.subr.bf16.mxu0 0
      %2521 = vmatpush1.bf16.msra.mxu0 %v2518
      %2522 = vmatprep.subr.bf16.mxu0 0
      %2523 = vmatpush1.bf16.msra.mxu0 0
      %2524 = vmatprep.subr.bf16.mxu0 0
      %2525 = vmatpush1.bf16.msra.mxu0 0
      %2526 = vmatprep.subr.bf16.mxu0 0
      %2527 = vmatpush1.bf16.msra.mxu0 0
      %2528 = vmatprep.subr.bf16.mxu0 0
      %2529 = vmatpush1.bf16.msra.mxu0 0
      %2530 = vmatprep.subr.bf16.mxu0 0
      %2531 = vmatpush1.bf16.msra.mxu0 0
      %2532 = vmatprep.subr.bf16.mxu0 0
      %2533 = vmatpush1.bf16.msra.mxu0 0
      %2534 = vmatprep.subr.bf16.mxu0 0
      %2535 = vmatpush1.bf16.msra.mxu0 0
      %2536 = vmatprep.subr.bf16.mxu0 0
      %2537 = vmatpush1.bf16.msra.mxu0 0
      %2538 = vmatprep.subr.bf16.mxu0 0
      %2539 = vmatpush1.bf16.msra.mxu0 0
      %2540 = vmatprep.subr.bf16.mxu0 0
      %2541 = vmatpush1.bf16.msra.mxu0 0
      %2542 = vmatprep.subr.bf16.mxu0 0
      %2543 = vmatpush1.bf16.msra.mxu0 0
      %2544 = vmatprep.subr.bf16.mxu0 0
      %2545 = vmatpush1.bf16.msra.mxu0 0
      %2546 = vmatprep.subr.bf16.mxu0 0
      %2547 = vmatpush1.bf16.msra.mxu0 0
      %2548 = vmatprep.subr.bf16.mxu0 0
      %2549 = vmatpush1.bf16.msra.mxu0 0
      %2550 = vmatprep.subr.bf16.mxu0 0
      %2551 = vmatpush1.bf16.msra.mxu0 0
      %2552 = vmatprep.mubr.bf16.mxu0 0
      %2553 = vmatmul.mubr.bf16.gmra.mrb[0].mxu0 %v2414
      %v2554 = vpop.f32.mrb[0].mxu0
      %v2555 = vadd.f32 0.0, %v2554
      %v2556 = vpop.f32.mrb[0].mxu0
      %v2557 = vpop.f32.mrb[0].mxu0
      %v2558 = vadd.f32 0.0, %v2557
      %v2559 = vpop.f32.mrb[0].mxu0
      %2560 = vmatprep.mubr.bf16.mxu0 0
      %2561 = vmatmul.mubr.bf16.gmra.mrb[0].mxu0 %v2417
      %v2562 = vpop.f32.mrb[0].mxu0
      %v2563 = vadd.f32 0.0, %v2562
      %v2564 = vpop.f32.mrb[0].mxu0
      %v2565 = vpop.f32.mrb[0].mxu0
      %v2566 = vadd.f32 0.0, %v2565
      %v2567 = vpop.f32.mrb[0].mxu0
      %2568 = vmatprep.mubr.bf16.mxu0 0
      %2569 = vmatmul.mubr.bf16.gmra.mrb[0].mxu0 %v2420
      %v2570 = vpop.f32.mrb[0].mxu0
      %v2571 = vadd.f32 0.0, %v2570
      %v2572 = vpop.f32.mrb[0].mxu0
      %v2573 = vpop.f32.mrb[0].mxu0
      %v2574 = vadd.f32 0.0, %v2573
      %v2575 = vpop.f32.mrb[0].mxu0
      %2576 = vmatprep.mubr.bf16.mxu0 0
      %2577 = vmatmul.mubr.bf16.gmra.mrb[0].mxu0 %v2423
      %v2578 = vpop.f32.mrb[0].mxu0
      %v2579 = vadd.f32 0.0, %v2578
      %v2580 = vpop.f32.mrb[0].mxu0
      %v2581 = vpop.f32.mrb[0].mxu0
      %v2582 = vadd.f32 0.0, %v2581
      %v2583 = vpop.f32.mrb[0].mxu0
      %2584 = vmatprep.mubr.bf16.mxu0 0
      %2585 = vmatmul.mubr.bf16.gmra.mrb[0].mxu0 %v2426
      %v2586 = vpop.f32.mrb[0].mxu0
      %v2587 = vadd.f32 0.0, %v2586
      %v2588 = vpop.f32.mrb[0].mxu0
      %v2589 = vpop.f32.mrb[0].mxu0
      %v2590 = vadd.f32 0.0, %v2589
      %v2591 = vpop.f32.mrb[0].mxu0
      %2592 = vmatprep.mubr.bf16.mxu0 0
      %2593 = vmatmul.mubr.bf16.gmra.mrb[0].mxu0 %v2429
      %v2594 = vpop.f32.mrb[0].mxu0
      %v2595 = vadd.f32 0.0, %v2594
      %v2596 = vpop.f32.mrb[0].mxu0
      %v2597 = vpop.f32.mrb[0].mxu0
      %v2598 = vpop.f32.mrb[0].mxu0
      %2599 = vdwg.mxu0
      %s2600 = scalar_lea.vmem %s9, 16
      %v2601 = vld [vmem:[%s2600] sm:$0xf]
      %v2602 = vld [vmem:[%s2600 + $0x4] sm:$0xf]
      %v2605 = vunpack.c.l.b16 %v2601
      %v2606 = vunpack.c.l.b16 %v2602
      %v2607 = vpack.c.b16 %v2606, %v2605
      %2609 = vmatprep.subr.bf16.mxu0 0
      %2610 = vmatpush1.bf16.msra.mxu0 %v2607
      %2611 = vmatprep.subr.bf16.mxu0 0
      %2612 = vmatpush1.bf16.msra.mxu0 0
      %2613 = vmatprep.subr.bf16.mxu0 0
      %2614 = vmatpush1.bf16.msra.mxu0 0
      %2615 = vmatprep.subr.bf16.mxu0 0
      %2616 = vmatpush1.bf16.msra.mxu0 0
      %2617 = vmatprep.subr.bf16.mxu0 0
      %2618 = vmatpush1.bf16.msra.mxu0 0
      %2619 = vmatprep.subr.bf16.mxu0 0
      %2620 = vmatpush1.bf16.msra.mxu0 0
      %2621 = vmatprep.subr.bf16.mxu0 0
      %2622 = vmatpush1.bf16.msra.mxu0 0
      %2623 = vmatprep.subr.bf16.mxu0 0
      %2624 = vmatpush1.bf16.msra.mxu0 0
      %2625 = vmatprep.subr.bf16.mxu0 0
      %2626 = vmatpush1.bf16.msra.mxu0 0
      %2627 = vmatprep.subr.bf16.mxu0 0
      %2628 = vmatpush1.bf16.msra.mxu0 0
      %2629 = vmatprep.subr.bf16.mxu0 0
      %2630 = vmatpush1.bf16.msra.mxu0 0
      %2631 = vmatprep.subr.bf16.mxu0 0
      %2632 = vmatpush1.bf16.msra.mxu0 0
      %2633 = vmatprep.subr.bf16.mxu0 0
      %2634 = vmatpush1.bf16.msra.mxu0 0
      %2635 = vmatprep.subr.bf16.mxu0 0
      %2636 = vmatpush1.bf16.msra.mxu0 0
      %2637 = vmatprep.subr.bf16.mxu0 0
      %2638 = vmatpush1.bf16.msra.mxu0 0
      %2639 = vmatprep.subr.bf16.mxu0 0
      %2640 = vmatpush1.bf16.msra.mxu0 0
      %2641 = vmatprep.mubr.bf16.mxu0 0
      %2642 = vmatmul.mubr.bf16.gmra.mrb[0].mxu0 %v2414
      %v2643 = vpop.f32.mrb[0].mxu0
      %v2644 = vadd.f32 0.0, %v2643
      %v2645 = vpop.f32.mrb[0].mxu0
      %v2646 = vpop.f32.mrb[0].mxu0
      %v2647 = vadd.f32 0.0, %v2646
      %v2648 = vpop.f32.mrb[0].mxu0
      %2649 = vmatprep.mubr.bf16.mxu0 0
      %2650 = vmatmul.mubr.bf16.gmra.mrb[0].mxu0 %v2417
      %v2651 = vpop.f32.mrb[0].mxu0
      %v2652 = vadd.f32 0.0, %v2651
      %v2653 = vpop.f32.mrb[0].mxu0
      %v2654 = vpop.f32.mrb[0].mxu0
      %v2655 = vadd.f32 0.0, %v2654
      %v2656 = vpop.f32.mrb[0].mxu0
      %2657 = vmatprep.mubr.bf16.mxu0 0
      %2658 = vmatmul.mubr.bf16.gmra.mrb[0].mxu0 %v2420
      %v2659 = vpop.f32.mrb[0].mxu0
      %v2660 = vadd.f32 0.0, %v2659
      %v2661 = vpop.f32.mrb[0].mxu0
      %v2662 = vpop.f32.mrb[0].mxu0
      %v2663 = vadd.f32 0.0, %v2662
      %v2664 = vpop.f32.mrb[0].mxu0
      %2665 = vmatprep.mubr.bf16.mxu0 0
      %2666 = vmatmul.mubr.bf16.gmra.mrb[0].mxu0 %v2423
      %v2667 = vpop.f32.mrb[0].mxu0
      %v2668 = vadd.f32 0.0, %v2667
      %v2669 = vpop.f32.mrb[0].mxu0
      %v2670 = vpop.f32.mrb[0].mxu0
      %v2671 = vadd.f32 0.0, %v2670
      %v2672 = vpop.f32.mrb[0].mxu0
      %2673 = vmatprep.mubr.bf16.mxu0 0
      %2674 = vmatmul.mubr.bf16.gmra.mrb[0].mxu0 %v2426
      %v2675 = vpop.f32.mrb[0].mxu0
      %v2676 = vadd.f32 0.0, %v2675
      %v2677 = vpop.f32.mrb[0].mxu0
      %v2678 = vpop.f32.mrb[0].mxu0
      %v2679 = vadd.f32 0.0, %v2678
      %v2680 = vpop.f32.mrb[0].mxu0
      %2681 = vmatprep.mubr.bf16.mxu0 0
      %2682 = vmatmul.mubr.bf16.gmra.mrb[0].mxu0 %v2429
      %v2683 = vpop.f32.mrb[0].mxu0
      %v2684 = vadd.f32 0.0, %v2683
      %v2685 = vpop.f32.mrb[0].mxu0
      %v2686 = vpop.f32.mrb[0].mxu0
      %v2687 = vpop.f32.mrb[0].mxu0
      %2688 = vdwg.mxu0
      %s2689 = scalar_lea.vmem %s9, 24
      %v2690 = vld [vmem:[%s2689] sm:$0xf]
      %v2691 = vld [vmem:[%s2689 + $0x4] sm:$0xf]
      %v2694 = vunpack.c.l.b16 %v2690
      %v2695 = vunpack.c.l.b16 %v2691
      %v2696 = vpack.c.b16 %v2695, %v2694
      %2698 = vmatprep.subr.bf16.mxu0 0
      %2699 = vmatpush1.bf16.msra.mxu0 %v2696
      %2700 = vmatprep.subr.bf16.mxu0 0
      %2701 = vmatpush1.bf16.msra.mxu0 0
      %2702 = vmatprep.subr.bf16.mxu0 0
      %2703 = vmatpush1.bf16.msra.mxu0 0
      %2704 = vmatprep.subr.bf16.mxu0 0
      %2705 = vmatpush1.bf16.msra.mxu0 0
      %2706 = vmatprep.subr.bf16.mxu0 0
      %2707 = vmatpush1.bf16.msra.mxu0 0
      %2708 = vmatprep.subr.bf16.mxu0 0
      %2709 = vmatpush1.bf16.msra.mxu0 0
      %2710 = vmatprep.subr.bf16.mxu0 0
      %2711 = vmatpush1.bf16.msra.mxu0 0
      %2712 = vmatprep.subr.bf16.mxu0 0
      %2713 = vmatpush1.bf16.msra.mxu0 0
      %2714 = vmatprep.subr.bf16.mxu0 0
      %2715 = vmatpush1.bf16.msra.mxu0 0
      %2716 = vmatprep.subr.bf16.mxu0 0
      %2717 = vmatpush1.bf16.msra.mxu0 0
      %2718 = vmatprep.subr.bf16.mxu0 0
      %2719 = vmatpush1.bf16.msra.mxu0 0
      %2720 = vmatprep.subr.bf16.mxu0 0
      %2721 = vmatpush1.bf16.msra.mxu0 0
      %2722 = vmatprep.subr.bf16.mxu0 0
      %2723 = vmatpush1.bf16.msra.mxu0 0
      %2724 = vmatprep.subr.bf16.mxu0 0
      %2725 = vmatpush1.bf16.msra.mxu0 0
      %2726 = vmatprep.subr.bf16.mxu0 0
      %2727 = vmatpush1.bf16.msra.mxu0 0
      %2728 = vmatprep.subr.bf16.mxu0 0
      %2729 = vmatpush1.bf16.msra.mxu0 0
      %2730 = vmatprep.mubr.bf16.mxu0 0
      %2731 = vmatmul.mubr.bf16.gmra.mrb[0].mxu0 %v2414
      %v2732 = vpop.f32.mrb[0].mxu0
      %v2733 = vadd.f32 0.0, %v2732
      %v2734 = vpop.f32.mrb[0].mxu0
      %v2735 = vpop.f32.mrb[0].mxu0
      %v2736 = vadd.f32 0.0, %v2735
      %v2737 = vpop.f32.mrb[0].mxu0
      %2738 = vmatprep.mubr.bf16.mxu0 0
      %2739 = vmatmul.mubr.bf16.gmra.mrb[0].mxu0 %v2417
      %v2740 = vpop.f32.mrb[0].mxu0
      %v2741 = vadd.f32 0.0, %v2740
      %v2742 = vpop.f32.mrb[0].mxu0
      %v2743 = vpop.f32.mrb[0].mxu0
      %v2744 = vadd.f32 0.0, %v2743
      %v2745 = vpop.f32.mrb[0].mxu0
      %2746 = vmatprep.mubr.bf16.mxu0 0
      %2747 = vmatmul.mubr.bf16.gmra.mrb[0].mxu0 %v2420
      %v2748 = vpop.f32.mrb[0].mxu0
      %v2749 = vadd.f32 0.0, %v2748
      %v2750 = vpop.f32.mrb[0].mxu0
      %v2751 = vpop.f32.mrb[0].mxu0
      %v2752 = vadd.f32 0.0, %v2751
      %v2753 = vpop.f32.mrb[0].mxu0
      %2754 = vmatprep.mubr.bf16.mxu0 0
      %2755 = vmatmul.mubr.bf16.gmra.mrb[0].mxu0 %v2423
      %v2756 = vpop.f32.mrb[0].mxu0
      %v2757 = vadd.f32 0.0, %v2756
      %v2758 = vpop.f32.mrb[0].mxu0
      %v2759 = vpop.f32.mrb[0].mxu0
      %v2760 = vadd.f32 0.0, %v2759
      %v2761 = vpop.f32.mrb[0].mxu0
      %2762 = vmatprep.mubr.bf16.mxu0 0
      %2763 = vmatmul.mubr.bf16.gmra.mrb[0].mxu0 %v2426
      %v2764 = vpop.f32.mrb[0].mxu0
      %v2765 = vadd.f32 0.0, %v2764
      %v2766 = vpop.f32.mrb[0].mxu0
      %v2767 = vpop.f32.mrb[0].mxu0
      %v2768 = vadd.f32 0.0, %v2767
      %v2769 = vpop.f32.mrb[0].mxu0
      %2770 = vmatprep.mubr.bf16.mxu0 0
      %2771 = vmatmul.mubr.bf16.gmra.mrb[0].mxu0 %v2429
      %v2772 = vpop.f32.mrb[0].mxu0
      %v2773 = vadd.f32 0.0, %v2772
      %v2774 = vpop.f32.mrb[0].mxu0
      %v2775 = vpop.f32.mrb[0].mxu0
      %v2776 = vpop.f32.mrb[0].mxu0
      %2777 = vdwg.mxu0
      %v2778 = vpack.c.bf16 %v2469, %v2466
      %v2779 = vpack.c.bf16 %v2477, %v2474
      %v2780 = vpack.c.bf16 %v2485, %v2482
      %v2781 = vpack.c.bf16 %v2493, %v2490
      %v2782 = vpack.c.bf16 %v2501, %v2498
      %v2783 = vpack.c.bf16 %v2555, %v2506
      %v2784 = vpack.c.bf16 %v2563, %v2558
      %v2785 = vpack.c.bf16 %v2571, %v2566
      %v2786 = vpack.c.bf16 %v2579, %v2574
      %v2787 = vpack.c.bf16 %v2587, %v2582
      %v2788 = vpack.c.bf16 %v2595, %v2590
      %v2789 = vpack.c.bf16 %v2647, %v2644
      %v2790 = vpack.c.bf16 %v2655, %v2652
      %v2791 = vpack.c.bf16 %v2663, %v2660
      %v2792 = vpack.c.bf16 %v2671, %v2668
      %v2793 = vpack.c.bf16 %v2679, %v2676
      %v2794 = vpack.c.bf16 %v2733, %v2684
      %v2795 = vpack.c.bf16 %v2741, %v2736
      %v2796 = vpack.c.bf16 %v2749, %v2744
      %v2797 = vpack.c.bf16 %v2757, %v2752
      %v2798 = vpack.c.bf16 %v2765, %v2760
      %v2799 = vpack.c.bf16 %v2773, %v2768
      %v2800 = vld [vmem:[%s13] sm:$0xff]
      %v2801 = vld [vmem:[%s13 + $0x8] sm:$0xf]
      %v2802 = vld [vmem:[%s13 + $0xc] sm:$0xff]
      %v2803 = vld [vmem:[%s13 + $0x14] sm:$0xf]
      %v2804 = vld [vmem:[%s13 + $0x18] sm:$0xff]
      %v2805 = vld [vmem:[%s13 + $0x20] sm:$0xf]
      %v2806 = vld [vmem:[%s13 + $0x24] sm:$0xff]
      %v2807 = vld [vmem:[%s13 + $0x2c] sm:$0xf]
      %v2808 = vld [vmem:[%s11] sm:$0x1]
      %v2810 = vlaneseq
      %v2811 = vshrl.u32 %v2810, 7
      %v2812 = vsub.s32 0, %v2811
      %v2813 = vrot.slane %v2808, %v2812
      %v2823 = vunpack.c.l.b16 %v2800
      %v2824 = vunpack.c.h.b16 %v2800
      %v2825 = vunpack.c.l.b16 %v2801
      %v2826 = vunpack.c.l.b16 %v2802
      %v2827 = vunpack.c.h.b16 %v2802
      %v2828 = vunpack.c.l.b16 %v2803
      %v2829 = vunpack.c.l.b16 %v2804
      %v2830 = vunpack.c.h.b16 %v2804
      %v2831 = vunpack.c.l.b16 %v2805
      %v2832 = vunpack.c.l.b16 %v2806
      %v2833 = vunpack.c.h.b16 %v2806
      %v2834 = vunpack.c.l.b16 %v2807
      %v2835 = vpack.c.b16 %v2826, %v2823
      %v2836 = vpack.c.b16 %v2827, %v2824
      %v2837 = vpack.c.b16 %v2828, %v2825
      %v2838 = vpack.c.b16 %v2832, %v2829
      %v2839 = vpack.c.b16 %v2833, %v2830
      %v2840 = vpack.c.b16 %v2834, %v2831
      %vm2845 = vcmask 785408
      %v2847 = vsel %vm2845, %v2837, 0
      %v2850 = vsel %vm2845, %v2840, 0
      %2852 = vmatprep.subr.bf16.mxu0 0
      %2853 = vmatpush1.bf16.msra.mxu0 %v2778
      %2854 = vmatprep.subr.bf16.mxu0 0
      %2855 = vmatpush1.bf16.msra.mxu0 %v2779
      %2856 = vmatprep.subr.bf16.mxu0 0
      %2857 = vmatpush1.bf16.msra.mxu0 %v2780
      %2858 = vmatprep.subr.bf16.mxu0 0
      %2859 = vmatpush1.bf16.msra.mxu0 %v2781
      %2860 = vmatprep.subr.bf16.mxu0 0
      %2861 = vmatpush1.bf16.msra.mxu0 %v2782
      %2862 = vmatprep.subr.bf16.mxu0 0
      %2863 = vmatpush1.bf16.msra.mxu0 %v2783
      %2864 = vmatprep.subr.bf16.mxu0 0
      %2865 = vmatpush1.bf16.msra.mxu0 %v2784
      %2866 = vmatprep.subr.bf16.mxu0 0
      %2867 = vmatpush1.bf16.msra.mxu0 %v2785
      %2868 = vmatprep.subr.bf16.mxu0 0
      %2869 = vmatpush1.bf16.msra.mxu0 %v2786
      %2870 = vmatprep.subr.bf16.mxu0 0
      %2871 = vmatpush1.bf16.msra.mxu0 %v2787
      %2872 = vmatprep.subr.bf16.mxu0 0
      %2873 = vmatpush1.bf16.msra.mxu0 %v2788
      %2874 = vmatprep.subr.bf16.mxu0 0
      %2875 = vmatpush1.bf16.msra.mxu0 %v2789
      %2876 = vmatprep.subr.bf16.mxu0 0
      %2877 = vmatpush1.bf16.msra.mxu0 %v2790
      %2878 = vmatprep.subr.bf16.mxu0 0
      %2879 = vmatpush1.bf16.msra.mxu0 %v2791
      %2880 = vmatprep.subr.bf16.mxu0 0
      %2881 = vmatpush1.bf16.msra.mxu0 %v2792
      %2882 = vmatprep.subr.bf16.mxu0 0
      %2883 = vmatpush1.bf16.msra.mxu0 %v2793
      %2884 = vmatprep.mubr.bf16.mxu0 %v2836
      %2885 = vmatmul.mubr.bf16.gmra.mrb[0].mxu0 %v2835
      %v2886 = vpop.f32.mrb[0].mxu0
      %v2887 = vadd.f32 %v2813, %v2886
      %v2888 = vpop.f32.mrb[0].mxu0
      %v2889 = vpop.f32.mrb[0].mxu0
      %v2890 = vadd.f32 %v2813, %v2889
      %v2891 = vpop.f32.mrb[0].mxu0
      %2892 = vmatprep.mubr.bf16.mxu0 %v2839
      %2893 = vmatmul.mubr.bf16.gmra.mrb[0].mxu0 %v2838
      %v2894 = vpop.f32.mrb[0].mxu0
      %v2895 = vadd.f32 %v2813, %v2894
      %v2896 = vpop.f32.mrb[0].mxu0
      %v2897 = vpop.f32.mrb[0].mxu0
      %v2898 = vadd.f32 %v2813, %v2897
      %v2899 = vpop.f32.mrb[0].mxu0
      %2900 = vdwg.mxu0
      %2901 = vmatprep.subr.bf16.mxu0 0
      %2902 = vmatpush1.bf16.msra.mxu0 %v2794
      %2903 = vmatprep.subr.bf16.mxu0 0
      %2904 = vmatpush1.bf16.msra.mxu0 %v2795
      %2905 = vmatprep.subr.bf16.mxu0 0
      %2906 = vmatpush1.bf16.msra.mxu0 %v2796
      %2907 = vmatprep.subr.bf16.mxu0 0
      %2908 = vmatpush1.bf16.msra.mxu0 %v2797
      %2909 = vmatprep.subr.bf16.mxu0 0
      %2910 = vmatpush1.bf16.msra.mxu0 %v2798
      %2911 = vmatprep.subr.bf16.mxu0 0
      %2912 = vmatpush1.bf16.msra.mxu0 %v2799
      %2913 = vmatprep.subr.bf16.mxu0 0
      %2914 = vmatpush1.bf16.msra.mxu0 0
      %2915 = vmatprep.subr.bf16.mxu0 0
      %2916 = vmatpush1.bf16.msra.mxu0 0
      %2917 = vmatprep.subr.bf16.mxu0 0
      %2918 = vmatpush1.bf16.msra.mxu0 0
      %2919 = vmatprep.subr.bf16.mxu0 0
      %2920 = vmatpush1.bf16.msra.mxu0 0
      %2921 = vmatprep.subr.bf16.mxu0 0
      %2922 = vmatpush1.bf16.msra.mxu0 0
      %2923 = vmatprep.subr.bf16.mxu0 0
      %2924 = vmatpush1.bf16.msra.mxu0 0
      %2925 = vmatprep.subr.bf16.mxu0 0
      %2926 = vmatpush1.bf16.msra.mxu0 0
      %2927 = vmatprep.subr.bf16.mxu0 0
      %2928 = vmatpush1.bf16.msra.mxu0 0
      %2929 = vmatprep.subr.bf16.mxu0 0
      %2930 = vmatpush1.bf16.msra.mxu0 0
      %2931 = vmatprep.subr.bf16.mxu0 0
      %2932 = vmatpush1.bf16.msra.mxu0 0
      %2933 = vmatprep.mubr.bf16.mxu0 0
      %2934 = vmatmul.mubr.bf16.gmra.mrb[0].mxu0 %v2847
      %v2935 = vpop.f32.mrb[0].mxu0
      %v2936 = vadd.f32 %v2887, %v2935
      %v2937 = vpop.f32.mrb[0].mxu0
      %v2938 = vpop.f32.mrb[0].mxu0
      %v2939 = vadd.f32 %v2890, %v2938
      %v2940 = vpop.f32.mrb[0].mxu0
      %2941 = vmatprep.mubr.bf16.mxu0 0
      %2942 = vmatmul.mubr.bf16.gmra.mrb[0].mxu0 %v2850
      %v2943 = vpop.f32.mrb[0].mxu0
      %v2944 = vadd.f32 %v2895, %v2943
      %v2945 = vpop.f32.mrb[0].mxu0
      %v2946 = vpop.f32.mrb[0].mxu0
      %v2947 = vadd.f32 %v2898, %v2946
      %v2948 = vpop.f32.mrb[0].mxu0
      %2949 = vdwg.mxu0
      %v2950 = vmax.f32 %v2936, 0.0
      %v2951 = vmax.f32 %v2939, 0.0
      %v2952 = vmax.f32 %v2944, 0.0
      %v2953 = vmax.f32 %v2947, 0.0
      %v2954 = vpack.c.bf16 %v2951, %v2950
      %v2955 = vpack.c.bf16 %v2953, %v2952
      %v2956 = vld [vmem:[%s15] sm:$0xf]
      %v2957 = vld [vmem:[%s15 + $0x4] sm:$0xf]
      %v2958 = vld [vmem:[%s15 + $0x8] sm:$0xf]
      %v2959 = vld [vmem:[%s15 + $0xc] sm:$0xf]
      %v2964 = vunpack.c.l.b16 %v2956
      %v2965 = vunpack.c.l.b16 %v2957
      %v2966 = vunpack.c.l.b16 %v2958
      %v2967 = vunpack.c.l.b16 %v2959
      %v2968 = vpack.c.b16 %v2965, %v2964
      %v2969 = vpack.c.b16 %v2967, %v2966
      %vm2972 = vcmask 261120
      %v2974 = vsel %vm2972, %v2954, 0
      %v2977 = vsel %vm2972, %v2955, 0
      %2979 = vmatprep.subr.bf16.mxu0 0
      %2980 = vmatpush1.bf16.msra.mxu0 %v2968
      %2981 = vmatprep.subr.bf16.mxu0 0
      %2982 = vmatpush1.bf16.msra.mxu0 %v2969
      %2983 = vmatprep.subr.bf16.mxu0 0
      %2984 = vmatpush1.bf16.msra.mxu0 0
      %2985 = vmatprep.subr.bf16.mxu0 0
      %2986 = vmatpush1.bf16.msra.mxu0 0
      %2987 = vmatprep.subr.bf16.mxu0 0
      %2988 = vmatpush1.bf16.msra.mxu0 0
      %2989 = vmatprep.subr.bf16.mxu0 0
      %2990 = vmatpush1.bf16.msra.mxu0 0
      %2991 = vmatprep.subr.bf16.mxu0 0
      %2992 = vmatpush1.bf16.msra.mxu0 0
      %2993 = vmatprep.subr.bf16.mxu0 0
      %2994 = vmatpush1.bf16.msra.mxu0 0
      %2995 = vmatprep.subr.bf16.mxu0 0
      %2996 = vmatpush1.bf16.msra.mxu0 0
      %2997 = vmatprep.subr.bf16.mxu0 0
      %2998 = vmatpush1.bf16.msra.mxu0 0
      %2999 = vmatprep.subr.bf16.mxu0 0
      %3000 = vmatpush1.bf16.msra.mxu0 0
      %3001 = vmatprep.subr.bf16.mxu0 0
      %3002 = vmatpush1.bf16.msra.mxu0 0
      %3003 = vmatprep.subr.bf16.mxu0 0
      %3004 = vmatpush1.bf16.msra.mxu0 0
      %3005 = vmatprep.subr.bf16.mxu0 0
      %3006 = vmatpush1.bf16.msra.mxu0 0
      %3007 = vmatprep.subr.bf16.mxu0 0
      %3008 = vmatpush1.bf16.msra.mxu0 0
      %3009 = vmatprep.subr.bf16.mxu0 0
      %3010 = vmatpush1.bf16.msra.mxu0 0
      %3011 = vmatprep.mubr.bf16.mxu0 0
      %3012 = vmatmul.mubr.bf16.gmra.mrb[0].mxu0 %v2974
      %v3013 = vpop.f32.mrb[0].mxu0
      %v3014 = vadd.f32 0.0, %v3013
      %v3015 = vpop.f32.mrb[0].mxu0
      %v3016 = vpop.f32.mrb[0].mxu0
      %v3017 = vadd.f32 0.0, %v3016
      %v3018 = vpop.f32.mrb[0].mxu0
      %3019 = vmatprep.mubr.bf16.mxu0 0
      %3020 = vmatmul.mubr.bf16.gmra.mrb[0].mxu0 %v2977
      %v3021 = vpop.f32.mrb[0].mxu0
      %v3022 = vadd.f32 0.0, %v3021
      %v3023 = vpop.f32.mrb[0].mxu0
      %v3024 = vpop.f32.mrb[0].mxu0
      %v3025 = vadd.f32 0.0, %v3024
      %v3026 = vpop.f32.mrb[0].mxu0
      %3027 = vdwg.mxu0
      %s3028 = scalar_lea.vmem %s15, 16
      %v3029 = vld [vmem:[%s3028] sm:$0xf]
      %v3030 = vld [vmem:[%s3028 + $0x4] sm:$0xf]
      %v3031 = vld [vmem:[%s3028 + $0x8] sm:$0xf]
      %v3032 = vld [vmem:[%s3028 + $0xc] sm:$0xf]
      %v3037 = vunpack.c.l.b16 %v3029
      %v3038 = vunpack.c.l.b16 %v3030
      %v3039 = vunpack.c.l.b16 %v3031
      %v3040 = vunpack.c.l.b16 %v3032
      %v3041 = vpack.c.b16 %v3038, %v3037
      %v3042 = vpack.c.b16 %v3040, %v3039
      %3045 = vmatprep.subr.bf16.mxu0 0
      %3046 = vmatpush1.bf16.msra.mxu0 %v3041
      %3047 = vmatprep.subr.bf16.mxu0 0
      %3048 = vmatpush1.bf16.msra.mxu0 %v3042
      %3049 = vmatprep.subr.bf16.mxu0 0
      %3050 = vmatpush1.bf16.msra.mxu0 0
      %3051 = vmatprep.subr.bf16.mxu0 0
      %3052 = vmatpush1.bf16.msra.mxu0 0
      %3053 = vmatprep.subr.bf16.mxu0 0
      %3054 = vmatpush1.bf16.msra.mxu0 0
      %3055 = vmatprep.subr.bf16.mxu0 0
      %3056 = vmatpush1.bf16.msra.mxu0 0
      %3057 = vmatprep.subr.bf16.mxu0 0
      %3058 = vmatpush1.bf16.msra.mxu0 0
      %3059 = vmatprep.subr.bf16.mxu0 0
      %3060 = vmatpush1.bf16.msra.mxu0 0
      %3061 = vmatprep.subr.bf16.mxu0 0
      %3062 = vmatpush1.bf16.msra.mxu0 0
      %3063 = vmatprep.subr.bf16.mxu0 0
      %3064 = vmatpush1.bf16.msra.mxu0 0
      %3065 = vmatprep.subr.bf16.mxu0 0
      %3066 = vmatpush1.bf16.msra.mxu0 0
      %3067 = vmatprep.subr.bf16.mxu0 0
      %3068 = vmatpush1.bf16.msra.mxu0 0
      %3069 = vmatprep.subr.bf16.mxu0 0
      %3070 = vmatpush1.bf16.msra.mxu0 0
      %3071 = vmatprep.subr.bf16.mxu0 0
      %3072 = vmatpush1.bf16.msra.mxu0 0
      %3073 = vmatprep.subr.bf16.mxu0 0
      %3074 = vmatpush1.bf16.msra.mxu0 0
      %3075 = vmatprep.subr.bf16.mxu0 0
      %3076 = vmatpush1.bf16.msra.mxu0 0
      %3077 = vmatprep.mubr.bf16.mxu0 0
      %3078 = vmatmul.mubr.bf16.gmra.mrb[0].mxu0 %v2974
      %v3079 = vpop.f32.mrb[0].mxu0
      %v3080 = vadd.f32 0.0, %v3079
      %v3081 = vpop.f32.mrb[0].mxu0
      %v3082 = vpop.f32.mrb[0].mxu0
      %v3083 = vadd.f32 0.0, %v3082
      %v3084 = vpop.f32.mrb[0].mxu0
      %3085 = vmatprep.mubr.bf16.mxu0 0
      %3086 = vmatmul.mubr.bf16.gmra.mrb[0].mxu0 %v2977
      %v3087 = vpop.f32.mrb[0].mxu0
      %v3088 = vadd.f32 0.0, %v3087
      %v3089 = vpop.f32.mrb[0].mxu0
      %v3090 = vpop.f32.mrb[0].mxu0
      %v3091 = vadd.f32 0.0, %v3090
      %v3092 = vpop.f32.mrb[0].mxu0
      %3093 = vdwg.mxu0
      %s3094 = scalar_lea.vmem %s15, 32
      %v3095 = vld [vmem:[%s3094] sm:$0xf]
      %v3096 = vld [vmem:[%s3094 + $0x4] sm:$0xf]
      %v3097 = vld [vmem:[%s3094 + $0x8] sm:$0xf]
      %v3098 = vld [vmem:[%s3094 + $0xc] sm:$0xf]
      %v3103 = vunpack.c.l.b16 %v3095
      %v3104 = vunpack.c.l.b16 %v3096
      %v3105 = vunpack.c.l.b16 %v3097
      %v3106 = vunpack.c.l.b16 %v3098
      %v3107 = vpack.c.b16 %v3104, %v3103
      %v3108 = vpack.c.b16 %v3106, %v3105
      %3111 = vmatprep.subr.bf16.mxu0 0
      %3112 = vmatpush1.bf16.msra.mxu0 %v3107
      %3113 = vmatprep.subr.bf16.mxu0 0
      %3114 = vmatpush1.bf16.msra.mxu0 %v3108
      %3115 = vmatprep.subr.bf16.mxu0 0
      %3116 = vmatpush1.bf16.msra.mxu0 0
      %3117 = vmatprep.subr.bf16.mxu0 0
      %3118 = vmatpush1.bf16.msra.mxu0 0
      %3119 = vmatprep.subr.bf16.mxu0 0
      %3120 = vmatpush1.bf16.msra.mxu0 0
      %3121 = vmatprep.subr.bf16.mxu0 0
      %3122 = vmatpush1.bf16.msra.mxu0 0
      %3123 = vmatprep.subr.bf16.mxu0 0
      %3124 = vmatpush1.bf16.msra.mxu0 0
      %3125 = vmatprep.subr.bf16.mxu0 0
      %3126 = vmatpush1.bf16.msra.mxu0 0
      %3127 = vmatprep.subr.bf16.mxu0 0
      %3128 = vmatpush1.bf16.msra.mxu0 0
      %3129 = vmatprep.subr.bf16.mxu0 0
      %3130 = vmatpush1.bf16.msra.mxu0 0
      %3131 = vmatprep.subr.bf16.mxu0 0
      %3132 = vmatpush1.bf16.msra.mxu0 0
      %3133 = vmatprep.subr.bf16.mxu0 0
      %3134 = vmatpush1.bf16.msra.mxu0 0
      %3135 = vmatprep.subr.bf16.mxu0 0
      %3136 = vmatpush1.bf16.msra.mxu0 0
      %3137 = vmatprep.subr.bf16.mxu0 0
      %3138 = vmatpush1.bf16.msra.mxu0 0
      %3139 = vmatprep.subr.bf16.mxu0 0
      %3140 = vmatpush1.bf16.msra.mxu0 0
      %3141 = vmatprep.subr.bf16.mxu0 0
      %3142 = vmatpush1.bf16.msra.mxu0 0
      %3143 = vmatprep.mubr.bf16.mxu0 0
      %3144 = vmatmul.mubr.bf16.gmra.mrb[0].mxu0 %v2974
      %v3145 = vpop.f32.mrb[0].mxu0
      %v3146 = vadd.f32 0.0, %v3145
      %v3147 = vpop.f32.mrb[0].mxu0
      %v3148 = vpop.f32.mrb[0].mxu0
      %v3149 = vadd.f32 0.0, %v3148
      %v3150 = vpop.f32.mrb[0].mxu0
      %3151 = vmatprep.mubr.bf16.mxu0 0
      %3152 = vmatmul.mubr.bf16.gmra.mrb[0].mxu0 %v2977
      %v3153 = vpop.f32.mrb[0].mxu0
      %v3154 = vadd.f32 0.0, %v3153
      %v3155 = vpop.f32.mrb[0].mxu0
      %v3156 = vpop.f32.mrb[0].mxu0
      %v3157 = vadd.f32 0.0, %v3156
      %v3158 = vpop.f32.mrb[0].mxu0
      %3159 = vdwg.mxu0
      %s3160 = scalar_lea.vmem %s15, 48
      %v3161 = vld [vmem:[%s3160] sm:$0xf]
      %v3162 = vld [vmem:[%s3160 + $0x4] sm:$0xf]
      %v3163 = vld [vmem:[%s3160 + $0x8] sm:$0xf]
      %v3164 = vld [vmem:[%s3160 + $0xc] sm:$0xf]
      %v3169 = vunpack.c.l.b16 %v3161
      %v3170 = vunpack.c.l.b16 %v3162
      %v3171 = vunpack.c.l.b16 %v3163
      %v3172 = vunpack.c.l.b16 %v3164
      %v3173 = vpack.c.b16 %v3170, %v3169
      %v3174 = vpack.c.b16 %v3172, %v3171
      %3177 = vmatprep.subr.bf16.mxu0 0
      %3178 = vmatpush1.bf16.msra.mxu0 %v3173
      %3179 = vmatprep.subr.bf16.mxu0 0
      %3180 = vmatpush1.bf16.msra.mxu0 %v3174
      %3181 = vmatprep.subr.bf16.mxu0 0
      %3182 = vmatpush1.bf16.msra.mxu0 0
      %3183 = vmatprep.subr.bf16.mxu0 0
      %3184 = vmatpush1.bf16.msra.mxu0 0
      %3185 = vmatprep.subr.bf16.mxu0 0
      %3186 = vmatpush1.bf16.msra.mxu0 0
      %3187 = vmatprep.subr.bf16.mxu0 0
      %3188 = vmatpush1.bf16.msra.mxu0 0
      %3189 = vmatprep.subr.bf16.mxu0 0
      %3190 = vmatpush1.bf16.msra.mxu0 0
      %3191 = vmatprep.subr.bf16.mxu0 0
      %3192 = vmatpush1.bf16.msra.mxu0 0
      %3193 = vmatprep.subr.bf16.mxu0 0
      %3194 = vmatpush1.bf16.msra.mxu0 0
      %3195 = vmatprep.subr.bf16.mxu0 0
      %3196 = vmatpush1.bf16.msra.mxu0 0
      %3197 = vmatprep.subr.bf16.mxu0 0
      %3198 = vmatpush1.bf16.msra.mxu0 0
      %3199 = vmatprep.subr.bf16.mxu0 0
      %3200 = vmatpush1.bf16.msra.mxu0 0
      %3201 = vmatprep.subr.bf16.mxu0 0
      %3202 = vmatpush1.bf16.msra.mxu0 0
      %3203 = vmatprep.subr.bf16.mxu0 0
      %3204 = vmatpush1.bf16.msra.mxu0 0
      %3205 = vmatprep.subr.bf16.mxu0 0
      %3206 = vmatpush1.bf16.msra.mxu0 0
      %3207 = vmatprep.subr.bf16.mxu0 0
      %3208 = vmatpush1.bf16.msra.mxu0 0
      %3209 = vmatprep.mubr.bf16.mxu0 0
      %3210 = vmatmul.mubr.bf16.gmra.mrb[0].mxu0 %v2974
      %v3211 = vpop.f32.mrb[0].mxu0
      %v3212 = vadd.f32 0.0, %v3211
      %v3213 = vpop.f32.mrb[0].mxu0
      %v3214 = vpop.f32.mrb[0].mxu0
      %v3215 = vadd.f32 0.0, %v3214
      %v3216 = vpop.f32.mrb[0].mxu0
      %3217 = vmatprep.mubr.bf16.mxu0 0
      %3218 = vmatmul.mubr.bf16.gmra.mrb[0].mxu0 %v2977
      %v3219 = vpop.f32.mrb[0].mxu0
      %v3220 = vadd.f32 0.0, %v3219
      %v3221 = vpop.f32.mrb[0].mxu0
      %v3222 = vpop.f32.mrb[0].mxu0
      %v3223 = vadd.f32 0.0, %v3222
      %v3224 = vpop.f32.mrb[0].mxu0
      %3225 = vdwg.mxu0
      %v3226 = vpack.c.bf16 %v3017, %v3014
      %v3227 = vpack.c.bf16 %v3025, %v3022
      %v3228 = vpack.c.bf16 %v3083, %v3080
      %v3229 = vpack.c.bf16 %v3091, %v3088
      %v3230 = vpack.c.bf16 %v3149, %v3146
      %v3231 = vpack.c.bf16 %v3157, %v3154
      %v3232 = vpack.c.bf16 %v3215, %v3212
      %v3233 = vpack.c.bf16 %v3223, %v3220
      %v3234 = vld [vmem:[%s19] sm:$0xf]
      %v3235 = vld [vmem:[%s19 + $0x4] sm:$0xf]
      %v3236 = vld [vmem:[%s17] sm:$0x1]
      %v3238 = vlaneseq
      %v3239 = vshrl.u32 %v3238, 7
      %v3240 = vsub.s32 0, %v3239
      %v3241 = vrot.slane %v3236, %v3240
      %v3245 = vunpack.c.l.b16 %v3234
      %v3246 = vunpack.c.l.b16 %v3235
      %v3247 = vpack.c.b16 %v3246, %v3245
      %3249 = vmatprep.subr.bf16.mxu0 0
      %3250 = vmatpush1.bf16.msra.mxu0 %v3226
      %3251 = vmatprep.subr.bf16.mxu0 0
      %3252 = vmatpush1.bf16.msra.mxu0 %v3227
      %3253 = vmatprep.subr.bf16.mxu0 0
      %3254 = vmatpush1.bf16.msra.mxu0 %v3228
      %3255 = vmatprep.subr.bf16.mxu0 0
      %3256 = vmatpush1.bf16.msra.mxu0 %v3229
      %3257 = vmatprep.subr.bf16.mxu0 0
      %3258 = vmatpush1.bf16.msra.mxu0 %v3230
      %3259 = vmatprep.subr.bf16.mxu0 0
      %3260 = vmatpush1.bf16.msra.mxu0 %v3231
      %3261 = vmatprep.subr.bf16.mxu0 0
      %3262 = vmatpush1.bf16.msra.mxu0 %v3232
      %3263 = vmatprep.subr.bf16.mxu0 0
      %3264 = vmatpush1.bf16.msra.mxu0 %v3233
      %3265 = vmatprep.subr.bf16.mxu0 0
      %3266 = vmatpush1.bf16.msra.mxu0 0
      %3267 = vmatprep.subr.bf16.mxu0 0
      %3268 = vmatpush1.bf16.msra.mxu0 0
      %3269 = vmatprep.subr.bf16.mxu0 0
      %3270 = vmatpush1.bf16.msra.mxu0 0
      %3271 = vmatprep.subr.bf16.mxu0 0
      %3272 = vmatpush1.bf16.msra.mxu0 0
      %3273 = vmatprep.subr.bf16.mxu0 0
      %3274 = vmatpush1.bf16.msra.mxu0 0
      %3275 = vmatprep.subr.bf16.mxu0 0
      %3276 = vmatpush1.bf16.msra.mxu0 0
      %3277 = vmatprep.subr.bf16.mxu0 0
      %3278 = vmatpush1.bf16.msra.mxu0 0
      %3279 = vmatprep.subr.bf16.mxu0 0
      %3280 = vmatpush1.bf16.msra.mxu0 0
      %3281 = vmatprep.mubr.bf16.mxu0 0
      %3282 = vmatmul.mubr.bf16.gmra.mrb[0].mxu0 %v3247
      %v3283 = vpop.f32.mrb[0].mxu0
      %v3284 = vadd.f32 %v3241, %v3283
      %v3285 = vpop.f32.mrb[0].mxu0
      %v3286 = vpop.f32.mrb[0].mxu0
      %v3287 = vadd.f32 %v3241, %v3286
      %v3288 = vpop.f32.mrb[0].mxu0
      %3289 = vdwg.mxu0
      %v3290 = vmax.f32 %v3284, 0.0
      %v3291 = vmax.f32 %v3287, 0.0
      %v3292 = vpack.c.bf16 %v3291, %v3290
      %v3293 = vld [vmem:[%s21] sm:$0xf]
      %v3294 = vld [vmem:[%s21 + $0x4] sm:$0xf]
      %v3295 = vld [vmem:[%s21 + $0x8] sm:$0xf]
      %v3296 = vld [vmem:[%s21 + $0xc] sm:$0xf]
      %v3297 = vld [vmem:[%s21 + $0x10] sm:$0xf]
      %v3298 = vld [vmem:[%s21 + $0x14] sm:$0xf]
      %v3299 = vld [vmem:[%s21 + $0x18] sm:$0xf]
      %v3300 = vld [vmem:[%s21 + $0x1c] sm:$0xf]
      %v3309 = vunpack.c.l.b16 %v3293
      %v3310 = vunpack.c.l.b16 %v3294
      %v3311 = vunpack.c.l.b16 %v3295
      %v3312 = vunpack.c.l.b16 %v3296
      %v3313 = vunpack.c.l.b16 %v3297
      %v3314 = vunpack.c.l.b16 %v3298
      %v3315 = vunpack.c.l.b16 %v3299
      %v3316 = vunpack.c.l.b16 %v3300
      %v3317 = vpack.c.b16 %v3310, %v3309
      %v3318 = vpack.c.b16 %v3312, %v3311
      %v3319 = vpack.c.b16 %v3314, %v3313
      %v3320 = vpack.c.b16 %v3316, %v3315
      %vm3325 = vcmask 523264
      %v3327 = vsel %vm3325, %v3292, 0
      %3329 = vmatprep.subr.bf16.mxu0 0
      %3330 = vmatpush1.bf16.msra.mxu0 %v3317
      %3331 = vmatprep.subr.bf16.mxu0 0
      %3332 = vmatpush1.bf16.msra.mxu0 %v3318
      %3333 = vmatprep.subr.bf16.mxu0 0
      %3334 = vmatpush1.bf16.msra.mxu0 %v3319
      %3335 = vmatprep.subr.bf16.mxu0 0
      %3336 = vmatpush1.bf16.msra.mxu0 %v3320
      %3337 = vmatprep.subr.bf16.mxu0 0
      %3338 = vmatpush1.bf16.msra.mxu0 0
      %3339 = vmatprep.subr.bf16.mxu0 0
      %3340 = vmatpush1.bf16.msra.mxu0 0
      %3341 = vmatprep.subr.bf16.mxu0 0
      %3342 = vmatpush1.bf16.msra.mxu0 0
      %3343 = vmatprep.subr.bf16.mxu0 0
      %3344 = vmatpush1.bf16.msra.mxu0 0
      %3345 = vmatprep.subr.bf16.mxu0 0
      %3346 = vmatpush1.bf16.msra.mxu0 0
      %3347 = vmatprep.subr.bf16.mxu0 0
      %3348 = vmatpush1.bf16.msra.mxu0 0
      %3349 = vmatprep.subr.bf16.mxu0 0
      %3350 = vmatpush1.bf16.msra.mxu0 0
      %3351 = vmatprep.subr.bf16.mxu0 0
      %3352 = vmatpush1.bf16.msra.mxu0 0
      %3353 = vmatprep.subr.bf16.mxu0 0
      %3354 = vmatpush1.bf16.msra.mxu0 0
      %3355 = vmatprep.subr.bf16.mxu0 0
      %3356 = vmatpush1.bf16.msra.mxu0 0
      %3357 = vmatprep.subr.bf16.mxu0 0
      %3358 = vmatpush1.bf16.msra.mxu0 0
      %3359 = vmatprep.subr.bf16.mxu0 0
      %3360 = vmatpush1.bf16.msra.mxu0 0
      %3361 = vmatprep.mubr.bf16.mxu0 0
      %3362 = vmatmul.mubr.bf16.gmra.mrb[0].mxu0 %v3327
      %v3363 = vpop.f32.mrb[0].mxu0
      %v3364 = vadd.f32 0.0, %v3363
      %v3365 = vpop.f32.mrb[0].mxu0
      %v3366 = vpop.f32.mrb[0].mxu0
      %v3367 = vadd.f32 0.0, %v3366
      %v3368 = vpop.f32.mrb[0].mxu0
      %3369 = vdwg.mxu0
      %s3370 = scalar_lea.vmem %s21, 32
      %v3371 = vld [vmem:[%s3370] sm:$0xf]
      %v3372 = vld [vmem:[%s3370 + $0x4] sm:$0xf]
      %v3373 = vld [vmem:[%s3370 + $0x8] sm:$0xf]
      %v3374 = vld [vmem:[%s3370 + $0xc] sm:$0xf]
      %v3375 = vld [vmem:[%s3370 + $0x10] sm:$0xf]
      %v3376 = vld [vmem:[%s3370 + $0x14] sm:$0xf]
      %v3377 = vld [vmem:[%s3370 + $0x18] sm:$0xf]
      %v3378 = vld [vmem:[%s3370 + $0x1c] sm:$0xf]
      %v3387 = vunpack.c.l.b16 %v3371
      %v3388 = vunpack.c.l.b16 %v3372
      %v3389 = vunpack.c.l.b16 %v3373
      %v3390 = vunpack.c.l.b16 %v3374
      %v3391 = vunpack.c.l.b16 %v3375
      %v3392 = vunpack.c.l.b16 %v3376
      %v3393 = vunpack.c.l.b16 %v3377
      %v3394 = vunpack.c.l.b16 %v3378
      %v3395 = vpack.c.b16 %v3388, %v3387
      %v3396 = vpack.c.b16 %v3390, %v3389
      %v3397 = vpack.c.b16 %v3392, %v3391
      %v3398 = vpack.c.b16 %v3394, %v3393
      %3403 = vmatprep.subr.bf16.mxu0 0
      %3404 = vmatpush1.bf16.msra.mxu0 %v3395
      %3405 = vmatprep.subr.bf16.mxu0 0
      %3406 = vmatpush1.bf16.msra.mxu0 %v3396
      %3407 = vmatprep.subr.bf16.mxu0 0
      %3408 = vmatpush1.bf16.msra.mxu0 %v3397
      %3409 = vmatprep.subr.bf16.mxu0 0
      %3410 = vmatpush1.bf16.msra.mxu0 %v3398
      %3411 = vmatprep.subr.bf16.mxu0 0
      %3412 = vmatpush1.bf16.msra.mxu0 0
      %3413 = vmatprep.subr.bf16.mxu0 0
      %3414 = vmatpush1.bf16.msra.mxu0 0
      %3415 = vmatprep.subr.bf16.mxu0 0
      %3416 = vmatpush1.bf16.msra.mxu0 0
      %3417 = vmatprep.subr.bf16.mxu0 0
      %3418 = vmatpush1.bf16.msra.mxu0 0
      %3419 = vmatprep.subr.bf16.mxu0 0
      %3420 = vmatpush1.bf16.msra.mxu0 0
      %3421 = vmatprep.subr.bf16.mxu0 0
      %3422 = vmatpush1.bf16.msra.mxu0 0
      %3423 = vmatprep.subr.bf16.mxu0 0
      %3424 = vmatpush1.bf16.msra.mxu0 0
      %3425 = vmatprep.subr.bf16.mxu0 0
      %3426 = vmatpush1.bf16.msra.mxu0 0
      %3427 = vmatprep.subr.bf16.mxu0 0
      %3428 = vmatpush1.bf16.msra.mxu0 0
      %3429 = vmatprep.subr.bf16.mxu0 0
      %3430 = vmatpush1.bf16.msra.mxu0 0
      %3431 = vmatprep.subr.bf16.mxu0 0
      %3432 = vmatpush1.bf16.msra.mxu0 0
      %3433 = vmatprep.subr.bf16.mxu0 0
      %3434 = vmatpush1.bf16.msra.mxu0 0
      %3435 = vmatprep.mubr.bf16.mxu0 0
      %3436 = vmatmul.mubr.bf16.gmra.mrb[0].mxu0 %v3327
      %v3437 = vpop.f32.mrb[0].mxu0
      %v3438 = vadd.f32 0.0, %v3437
      %v3439 = vpop.f32.mrb[0].mxu0
      %v3440 = vpop.f32.mrb[0].mxu0
      %v3441 = vadd.f32 0.0, %v3440
      %v3442 = vpop.f32.mrb[0].mxu0
      %3443 = vdwg.mxu0
      %s3444 = scalar_lea.vmem %s21, 64
      %v3445 = vld [vmem:[%s3444] sm:$0xf]
      %v3446 = vld [vmem:[%s3444 + $0x4] sm:$0xf]
      %v3447 = vld [vmem:[%s3444 + $0x8] sm:$0xf]
      %v3448 = vld [vmem:[%s3444 + $0xc] sm:$0xf]
      %v3449 = vld [vmem:[%s3444 + $0x10] sm:$0xf]
      %v3450 = vld [vmem:[%s3444 + $0x14] sm:$0xf]
      %v3451 = vld [vmem:[%s3444 + $0x18] sm:$0xf]
      %v3452 = vld [vmem:[%s3444 + $0x1c] sm:$0xf]
      %v3461 = vunpack.c.l.b16 %v3445
      %v3462 = vunpack.c.l.b16 %v3446
      %v3463 = vunpack.c.l.b16 %v3447
      %v3464 = vunpack.c.l.b16 %v3448
      %v3465 = vunpack.c.l.b16 %v3449
      %v3466 = vunpack.c.l.b16 %v3450
      %v3467 = vunpack.c.l.b16 %v3451
      %v3468 = vunpack.c.l.b16 %v3452
      %v3469 = vpack.c.b16 %v3462, %v3461
      %v3470 = vpack.c.b16 %v3464, %v3463
      %v3471 = vpack.c.b16 %v3466, %v3465
      %v3472 = vpack.c.b16 %v3468, %v3467
      %3477 = vmatprep.subr.bf16.mxu0 0
      %3478 = vmatpush1.bf16.msra.mxu0 %v3469
      %3479 = vmatprep.subr.bf16.mxu0 0
      %3480 = vmatpush1.bf16.msra.mxu0 %v3470
      %3481 = vmatprep.subr.bf16.mxu0 0
      %3482 = vmatpush1.bf16.msra.mxu0 %v3471
      %3483 = vmatprep.subr.bf16.mxu0 0
      %3484 = vmatpush1.bf16.msra.mxu0 %v3472
      %3485 = vmatprep.subr.bf16.mxu0 0
      %3486 = vmatpush1.bf16.msra.mxu0 0
      %3487 = vmatprep.subr.bf16.mxu0 0
      %3488 = vmatpush1.bf16.msra.mxu0 0
      %3489 = vmatprep.subr.bf16.mxu0 0
      %3490 = vmatpush1.bf16.msra.mxu0 0
      %3491 = vmatprep.subr.bf16.mxu0 0
      %3492 = vmatpush1.bf16.msra.mxu0 0
      %3493 = vmatprep.subr.bf16.mxu0 0
      %3494 = vmatpush1.bf16.msra.mxu0 0
      %3495 = vmatprep.subr.bf16.mxu0 0
      %3496 = vmatpush1.bf16.msra.mxu0 0
      %3497 = vmatprep.subr.bf16.mxu0 0
      %3498 = vmatpush1.bf16.msra.mxu0 0
      %3499 = vmatprep.subr.bf16.mxu0 0
      %3500 = vmatpush1.bf16.msra.mxu0 0
      %3501 = vmatprep.subr.bf16.mxu0 0
      %3502 = vmatpush1.bf16.msra.mxu0 0
      %3503 = vmatprep.subr.bf16.mxu0 0
      %3504 = vmatpush1.bf16.msra.mxu0 0
      %3505 = vmatprep.subr.bf16.mxu0 0
      %3506 = vmatpush1.bf16.msra.mxu0 0
      %3507 = vmatprep.subr.bf16.mxu0 0
      %3508 = vmatpush1.bf16.msra.mxu0 0
      %3509 = vmatprep.mubr.bf16.mxu0 0
      %3510 = vmatmul.mubr.bf16.gmra.mrb[0].mxu0 %v3327
      %v3511 = vpop.f32.mrb[0].mxu0
      %v3512 = vadd.f32 0.0, %v3511
      %v3513 = vpop.f32.mrb[0].mxu0
      %v3514 = vpop.f32.mrb[0].mxu0
      %v3515 = vadd.f32 0.0, %v3514
      %v3516 = vpop.f32.mrb[0].mxu0
      %3517 = vdwg.mxu0
      %s3518 = scalar_lea.vmem %s21, 96
      %v3519 = vld [vmem:[%s3518] sm:$0xf]
      %v3520 = vld [vmem:[%s3518 + $0x4] sm:$0xf]
      %v3521 = vld [vmem:[%s3518 + $0x8] sm:$0xf]
      %v3522 = vld [vmem:[%s3518 + $0xc] sm:$0xf]
      %v3523 = vld [vmem:[%s3518 + $0x10] sm:$0xf]
      %v3524 = vld [vmem:[%s3518 + $0x14] sm:$0xf]
      %v3525 = vld [vmem:[%s3518 + $0x18] sm:$0xf]
      %v3526 = vld [vmem:[%s3518 + $0x1c] sm:$0xf]
      %v3535 = vunpack.c.l.b16 %v3519
      %v3536 = vunpack.c.l.b16 %v3520
      %v3537 = vunpack.c.l.b16 %v3521
      %v3538 = vunpack.c.l.b16 %v3522
      %v3539 = vunpack.c.l.b16 %v3523
      %v3540 = vunpack.c.l.b16 %v3524
      %v3541 = vunpack.c.l.b16 %v3525
      %v3542 = vunpack.c.l.b16 %v3526
      %v3543 = vpack.c.b16 %v3536, %v3535
      %v3544 = vpack.c.b16 %v3538, %v3537
      %v3545 = vpack.c.b16 %v3540, %v3539
      %v3546 = vpack.c.b16 %v3542, %v3541
      %3551 = vmatprep.subr.bf16.mxu0 0
      %3552 = vmatpush1.bf16.msra.mxu0 %v3543
      %3553 = vmatprep.subr.bf16.mxu0 0
      %3554 = vmatpush1.bf16.msra.mxu0 %v3544
      %3555 = vmatprep.subr.bf16.mxu0 0
      %3556 = vmatpush1.bf16.msra.mxu0 %v3545
      %3557 = vmatprep.subr.bf16.mxu0 0
      %3558 = vmatpush1.bf16.msra.mxu0 %v3546
      %3559 = vmatprep.subr.bf16.mxu0 0
      %3560 = vmatpush1.bf16.msra.mxu0 0
      %3561 = vmatprep.subr.bf16.mxu0 0
      %3562 = vmatpush1.bf16.msra.mxu0 0
      %3563 = vmatprep.subr.bf16.mxu0 0
      %3564 = vmatpush1.bf16.msra.mxu0 0
      %3565 = vmatprep.subr.bf16.mxu0 0
      %3566 = vmatpush1.bf16.msra.mxu0 0
      %3567 = vmatprep.subr.bf16.mxu0 0
      %3568 = vmatpush1.bf16.msra.mxu0 0
      %3569 = vmatprep.subr.bf16.mxu0 0
      %3570 = vmatpush1.bf16.msra.mxu0 0
      %3571 = vmatprep.subr.bf16.mxu0 0
      %3572 = vmatpush1.bf16.msra.mxu0 0
      %3573 = vmatprep.subr.bf16.mxu0 0
      %3574 = vmatpush1.bf16.msra.mxu0 0
      %3575 = vmatprep.subr.bf16.mxu0 0
      %3576 = vmatpush1.bf16.msra.mxu0 0
      %3577 = vmatprep.subr.bf16.mxu0 0
      %3578 = vmatpush1.bf16.msra.mxu0 0
      %3579 = vmatprep.subr.bf16.mxu0 0
      %3580 = vmatpush1.bf16.msra.mxu0 0
      %3581 = vmatprep.subr.bf16.mxu0 0
      %3582 = vmatpush1.bf16.msra.mxu0 0
      %3583 = vmatprep.mubr.bf16.mxu0 0
      %3584 = vmatmul.mubr.bf16.gmra.mrb[0].mxu0 %v3327
      %v3585 = vpop.f32.mrb[0].mxu0
      %v3586 = vadd.f32 0.0, %v3585
      %v3587 = vpop.f32.mrb[0].mxu0
      %v3588 = vpop.f32.mrb[0].mxu0
      %v3589 = vadd.f32 0.0, %v3588
      %v3590 = vpop.f32.mrb[0].mxu0
      %3591 = vdwg.mxu0
      %v3592 = vpack.c.bf16 %v3367, %v3364
      %v3593 = vpack.c.bf16 %v3441, %v3438
      %v3594 = vpack.c.bf16 %v3515, %v3512
      %v3595 = vpack.c.bf16 %v3589, %v3586
      %v3596 = vld [vmem:[%s25] sm:$0xf]
      %v3597 = vld [vmem:[%s23] sm:$0x1]
      %v3599 = vlaneseq
      %v3600 = vshrl.u32 %v3599, 7
      %v3601 = vsub.s32 0, %v3600
      %v3602 = vrot.slane %v3597, %v3601
      %v3605 = vsel %vm3325, %v3596, 0
      %3607 = vmatprep.subr.bf16.mxu0 0
      %3608 = vmatpush1.bf16.msra.mxu0 %v3592
      %3609 = vmatprep.subr.bf16.mxu0 0
      %3610 = vmatpush1.bf16.msra.mxu0 %v3593
      %3611 = vmatprep.subr.bf16.mxu0 0
      %3612 = vmatpush1.bf16.msra.mxu0 %v3594
      %3613 = vmatprep.subr.bf16.mxu0 0
      %3614 = vmatpush1.bf16.msra.mxu0 %v3595
      %3615 = vmatprep.subr.bf16.mxu0 0
      %3616 = vmatpush1.bf16.msra.mxu0 0
      %3617 = vmatprep.subr.bf16.mxu0 0
      %3618 = vmatpush1.bf16.msra.mxu0 0
      %3619 = vmatprep.subr.bf16.mxu0 0
      %3620 = vmatpush1.bf16.msra.mxu0 0
      %3621 = vmatprep.subr.bf16.mxu0 0
      %3622 = vmatpush1.bf16.msra.mxu0 0
      %3623 = vmatprep.subr.bf16.mxu0 0
      %3624 = vmatpush1.bf16.msra.mxu0 0
      %3625 = vmatprep.subr.bf16.mxu0 0
      %3626 = vmatpush1.bf16.msra.mxu0 0
      %3627 = vmatprep.subr.bf16.mxu0 0
      %3628 = vmatpush1.bf16.msra.mxu0 0
      %3629 = vmatprep.subr.bf16.mxu0 0
      %3630 = vmatpush1.bf16.msra.mxu0 0
      %3631 = vmatprep.subr.bf16.mxu0 0
      %3632 = vmatpush1.bf16.msra.mxu0 0
      %3633 = vmatprep.subr.bf16.mxu0 0
      %3634 = vmatpush1.bf16.msra.mxu0 0
      %3635 = vmatprep.subr.bf16.mxu0 0
      %3636 = vmatpush1.bf16.msra.mxu0 0
      %3637 = vmatprep.subr.bf16.mxu0 0
      %3638 = vmatpush1.bf16.msra.mxu0 0
      %3639 = vmatprep.mubr.bf16.mxu0 0
      %3640 = vmatmul.mubr.bf16.gmra.mrb[0].mxu0 %v3605
      %v3641 = vpop.f32.mrb[0].mxu0
      %v3642 = vadd.f32 %v3602, %v3641
      %v3643 = vpop.f32.mrb[0].mxu0
      %v3644 = vpop.f32.mrb[0].mxu0
      %v3645 = vpop.f32.mrb[0].mxu0
      %3646 = vdwg.mxu0
      %v3647 = vmax.f32 %v3642, 0.0
      %v3648 = vpack.c.bf16 %v3647, %v3647
      %v3649 = vld [vmem:[%s27] sm:$0xf]
      %v3650 = vld [vmem:[%s27 + $0x4] sm:$0xf]
      %v3651 = vld [vmem:[%s27 + $0x8] sm:$0xf]
      %v3652 = vld [vmem:[%s27 + $0xc] sm:$0xf]
      %v3653 = vld [vmem:[%s27 + $0x10] sm:$0xf]
      %v3654 = vld [vmem:[%s27 + $0x14] sm:$0xf]
      %v3655 = vld [vmem:[%s27 + $0x18] sm:$0xf]
      %v3656 = vld [vmem:[%s27 + $0x1c] sm:$0xf]
      %v3665 = vunpack.c.l.b16 %v3649
      %v3666 = vunpack.c.l.b16 %v3650
      %v3667 = vunpack.c.l.b16 %v3651
      %v3668 = vunpack.c.l.b16 %v3652
      %v3669 = vunpack.c.l.b16 %v3653
      %v3670 = vunpack.c.l.b16 %v3654
      %v3671 = vunpack.c.l.b16 %v3655
      %v3672 = vunpack.c.l.b16 %v3656
      %v3673 = vpack.c.b16 %v3666, %v3665
      %v3674 = vpack.c.b16 %v3668, %v3667
      %v3675 = vpack.c.b16 %v3670, %v3669
      %v3676 = vpack.c.b16 %v3672, %v3671
      %v3682 = vsel %vm3325, %v3648, 0
      %3684 = vmatprep.subr.bf16.mxu0 0
      %3685 = vmatpush1.bf16.msra.mxu0 %v3673
      %3686 = vmatprep.subr.bf16.mxu0 0
      %3687 = vmatpush1.bf16.msra.mxu0 %v3674
      %3688 = vmatprep.subr.bf16.mxu0 0
      %3689 = vmatpush1.bf16.msra.mxu0 %v3675
      %3690 = vmatprep.subr.bf16.mxu0 0
      %3691 = vmatpush1.bf16.msra.mxu0 %v3676
      %3692 = vmatprep.subr.bf16.mxu0 0
      %3693 = vmatpush1.bf16.msra.mxu0 0
      %3694 = vmatprep.subr.bf16.mxu0 0
      %3695 = vmatpush1.bf16.msra.mxu0 0
      %3696 = vmatprep.subr.bf16.mxu0 0
      %3697 = vmatpush1.bf16.msra.mxu0 0
      %3698 = vmatprep.subr.bf16.mxu0 0
      %3699 = vmatpush1.bf16.msra.mxu0 0
      %3700 = vmatprep.subr.bf16.mxu0 0
      %3701 = vmatpush1.bf16.msra.mxu0 0
      %3702 = vmatprep.subr.bf16.mxu0 0
      %3703 = vmatpush1.bf16.msra.mxu0 0
      %3704 = vmatprep.subr.bf16.mxu0 0
      %3705 = vmatpush1.bf16.msra.mxu0 0
      %3706 = vmatprep.subr.bf16.mxu0 0
      %3707 = vmatpush1.bf16.msra.mxu0 0
      %3708 = vmatprep.subr.bf16.mxu0 0
      %3709 = vmatpush1.bf16.msra.mxu0 0
      %3710 = vmatprep.subr.bf16.mxu0 0
      %3711 = vmatpush1.bf16.msra.mxu0 0
      %3712 = vmatprep.subr.bf16.mxu0 0
      %3713 = vmatpush1.bf16.msra.mxu0 0
      %3714 = vmatprep.subr.bf16.mxu0 0
      %3715 = vmatpush1.bf16.msra.mxu0 0
      %3716 = vmatprep.mubr.bf16.mxu0 0
      %3717 = vmatmul.mubr.bf16.gmra.mrb[0].mxu0 %v3682
      %v3718 = vpop.f32.mrb[0].mxu0
      %v3719 = vadd.f32 0.0, %v3718
      %v3720 = vpop.f32.mrb[0].mxu0
      %v3721 = vpop.f32.mrb[0].mxu0
      %v3722 = vpop.f32.mrb[0].mxu0
      %3723 = vdwg.mxu0
      %s3724 = scalar_lea.vmem %s27, 32
      %v3725 = vld [vmem:[%s3724] sm:$0xf]
      %v3726 = vld [vmem:[%s3724 + $0x4] sm:$0xf]
      %v3727 = vld [vmem:[%s3724 + $0x8] sm:$0xf]
      %v3728 = vld [vmem:[%s3724 + $0xc] sm:$0xf]
      %v3729 = vld [vmem:[%s3724 + $0x10] sm:$0xf]
      %v3730 = vld [vmem:[%s3724 + $0x14] sm:$0xf]
      %v3731 = vld [vmem:[%s3724 + $0x18] sm:$0xf]
      %v3732 = vld [vmem:[%s3724 + $0x1c] sm:$0xf]
      %v3741 = vunpack.c.l.b16 %v3725
      %v3742 = vunpack.c.l.b16 %v3726
      %v3743 = vunpack.c.l.b16 %v3727
      %v3744 = vunpack.c.l.b16 %v3728
      %v3745 = vunpack.c.l.b16 %v3729
      %v3746 = vunpack.c.l.b16 %v3730
      %v3747 = vunpack.c.l.b16 %v3731
      %v3748 = vunpack.c.l.b16 %v3732
      %v3749 = vpack.c.b16 %v3742, %v3741
      %v3750 = vpack.c.b16 %v3744, %v3743
      %v3751 = vpack.c.b16 %v3746, %v3745
      %v3752 = vpack.c.b16 %v3748, %v3747
      %3757 = vmatprep.subr.bf16.mxu0 0
      %3758 = vmatpush1.bf16.msra.mxu0 %v3749
      %3759 = vmatprep.subr.bf16.mxu0 0
      %3760 = vmatpush1.bf16.msra.mxu0 %v3750
      %3761 = vmatprep.subr.bf16.mxu0 0
      %3762 = vmatpush1.bf16.msra.mxu0 %v3751
      %3763 = vmatprep.subr.bf16.mxu0 0
      %3764 = vmatpush1.bf16.msra.mxu0 %v3752
      %3765 = vmatprep.subr.bf16.mxu0 0
      %3766 = vmatpush1.bf16.msra.mxu0 0
      %3767 = vmatprep.subr.bf16.mxu0 0
      %3768 = vmatpush1.bf16.msra.mxu0 0
      %3769 = vmatprep.subr.bf16.mxu0 0
      %3770 = vmatpush1.bf16.msra.mxu0 0
      %3771 = vmatprep.subr.bf16.mxu0 0
      %3772 = vmatpush1.bf16.msra.mxu0 0
      %3773 = vmatprep.subr.bf16.mxu0 0
      %3774 = vmatpush1.bf16.msra.mxu0 0
      %3775 = vmatprep.subr.bf16.mxu0 0
      %3776 = vmatpush1.bf16.msra.mxu0 0
      %3777 = vmatprep.subr.bf16.mxu0 0
      %3778 = vmatpush1.bf16.msra.mxu0 0
      %3779 = vmatprep.subr.bf16.mxu0 0
      %3780 = vmatpush1.bf16.msra.mxu0 0
      %3781 = vmatprep.subr.bf16.mxu0 0
      %3782 = vmatpush1.bf16.msra.mxu0 0
      %3783 = vmatprep.subr.bf16.mxu0 0
      %3784 = vmatpush1.bf16.msra.mxu0 0
      %3785 = vmatprep.subr.bf16.mxu0 0
      %3786 = vmatpush1.bf16.msra.mxu0 0
      %3787 = vmatprep.subr.bf16.mxu0 0
      %3788 = vmatpush1.bf16.msra.mxu0 0
      %3789 = vmatprep.mubr.bf16.mxu0 0
      %3790 = vmatmul.mubr.bf16.gmra.mrb[0].mxu0 %v3682
      %v3791 = vpop.f32.mrb[0].mxu0
      %v3792 = vadd.f32 0.0, %v3791
      %v3793 = vpop.f32.mrb[0].mxu0
      %v3794 = vpop.f32.mrb[0].mxu0
      %v3795 = vpop.f32.mrb[0].mxu0
      %3796 = vdwg.mxu0
      %s3797 = scalar_lea.vmem %s27, 64
      %v3798 = vld [vmem:[%s3797] sm:$0xf]
      %v3799 = vld [vmem:[%s3797 + $0x4] sm:$0xf]
      %v3800 = vld [vmem:[%s3797 + $0x8] sm:$0xf]
      %v3801 = vld [vmem:[%s3797 + $0xc] sm:$0xf]
      %v3802 = vld [vmem:[%s3797 + $0x10] sm:$0xf]
      %v3803 = vld [vmem:[%s3797 + $0x14] sm:$0xf]
      %v3804 = vld [vmem:[%s3797 + $0x18] sm:$0xf]
      %v3805 = vld [vmem:[%s3797 + $0x1c] sm:$0xf]
      %v3814 = vunpack.c.l.b16 %v3798
      %v3815 = vunpack.c.l.b16 %v3799
      %v3816 = vunpack.c.l.b16 %v3800
      %v3817 = vunpack.c.l.b16 %v3801
      %v3818 = vunpack.c.l.b16 %v3802
      %v3819 = vunpack.c.l.b16 %v3803
      %v3820 = vunpack.c.l.b16 %v3804
      %v3821 = vunpack.c.l.b16 %v3805
      %v3822 = vpack.c.b16 %v3815, %v3814
      %v3823 = vpack.c.b16 %v3817, %v3816
      %v3824 = vpack.c.b16 %v3819, %v3818
      %v3825 = vpack.c.b16 %v3821, %v3820
      %3830 = vmatprep.subr.bf16.mxu0 0
      %3831 = vmatpush1.bf16.msra.mxu0 %v3822
      %3832 = vmatprep.subr.bf16.mxu0 0
      %3833 = vmatpush1.bf16.msra.mxu0 %v3823
      %3834 = vmatprep.subr.bf16.mxu0 0
      %3835 = vmatpush1.bf16.msra.mxu0 %v3824
      %3836 = vmatprep.subr.bf16.mxu0 0
      %3837 = vmatpush1.bf16.msra.mxu0 %v3825
      %3838 = vmatprep.subr.bf16.mxu0 0
      %3839 = vmatpush1.bf16.msra.mxu0 0
      %3840 = vmatprep.subr.bf16.mxu0 0
      %3841 = vmatpush1.bf16.msra.mxu0 0
      %3842 = vmatprep.subr.bf16.mxu0 0
      %3843 = vmatpush1.bf16.msra.mxu0 0
      %3844 = vmatprep.subr.bf16.mxu0 0
      %3845 = vmatpush1.bf16.msra.mxu0 0
      %3846 = vmatprep.subr.bf16.mxu0 0
      %3847 = vmatpush1.bf16.msra.mxu0 0
      %3848 = vmatprep.subr.bf16.mxu0 0
      %3849 = vmatpush1.bf16.msra.mxu0 0
      %3850 = vmatprep.subr.bf16.mxu0 0
      %3851 = vmatpush1.bf16.msra.mxu0 0
      %3852 = vmatprep.subr.bf16.mxu0 0
      %3853 = vmatpush1.bf16.msra.mxu0 0
      %3854 = vmatprep.subr.bf16.mxu0 0
      %3855 = vmatpush1.bf16.msra.mxu0 0
      %3856 = vmatprep.subr.bf16.mxu0 0
      %3857 = vmatpush1.bf16.msra.mxu0 0
      %3858 = vmatprep.subr.bf16.mxu0 0
      %3859 = vmatpush1.bf16.msra.mxu0 0
      %3860 = vmatprep.subr.bf16.mxu0 0
      %3861 = vmatpush1.bf16.msra.mxu0 0
      %3862 = vmatprep.mubr.bf16.mxu0 0
      %3863 = vmatmul.mubr.bf16.gmra.mrb[0].mxu0 %v3682
      %v3864 = vpop.f32.mrb[0].mxu0
      %v3865 = vadd.f32 0.0, %v3864
      %v3866 = vpop.f32.mrb[0].mxu0
      %v3867 = vpop.f32.mrb[0].mxu0
      %v3868 = vpop.f32.mrb[0].mxu0
      %3869 = vdwg.mxu0
      %s3870 = scalar_lea.vmem %s27, 96
      %v3871 = vld [vmem:[%s3870] sm:$0xf]
      %v3872 = vld [vmem:[%s3870 + $0x4] sm:$0xf]
      %v3873 = vld [vmem:[%s3870 + $0x8] sm:$0xf]
      %v3874 = vld [vmem:[%s3870 + $0xc] sm:$0xf]
      %v3875 = vld [vmem:[%s3870 + $0x10] sm:$0xf]
      %v3876 = vld [vmem:[%s3870 + $0x14] sm:$0xf]
      %v3877 = vld [vmem:[%s3870 + $0x18] sm:$0xf]
      %v3878 = vld [vmem:[%s3870 + $0x1c] sm:$0xf]
      %v3887 = vunpack.c.l.b16 %v3871
      %v3888 = vunpack.c.l.b16 %v3872
      %v3889 = vunpack.c.l.b16 %v3873
      %v3890 = vunpack.c.l.b16 %v3874
      %v3891 = vunpack.c.l.b16 %v3875
      %v3892 = vunpack.c.l.b16 %v3876
      %v3893 = vunpack.c.l.b16 %v3877
      %v3894 = vunpack.c.l.b16 %v3878
      %v3895 = vpack.c.b16 %v3888, %v3887
      %v3896 = vpack.c.b16 %v3890, %v3889
      %v3897 = vpack.c.b16 %v3892, %v3891
      %v3898 = vpack.c.b16 %v3894, %v3893
      %3903 = vmatprep.subr.bf16.mxu0 0
      %3904 = vmatpush1.bf16.msra.mxu0 %v3895
      %3905 = vmatprep.subr.bf16.mxu0 0
      %3906 = vmatpush1.bf16.msra.mxu0 %v3896
      %3907 = vmatprep.subr.bf16.mxu0 0
      %3908 = vmatpush1.bf16.msra.mxu0 %v3897
      %3909 = vmatprep.subr.bf16.mxu0 0
      %3910 = vmatpush1.bf16.msra.mxu0 %v3898
      %3911 = vmatprep.subr.bf16.mxu0 0
      %3912 = vmatpush1.bf16.msra.mxu0 0
      %3913 = vmatprep.subr.bf16.mxu0 0
      %3914 = vmatpush1.bf16.msra.mxu0 0
      %3915 = vmatprep.subr.bf16.mxu0 0
      %3916 = vmatpush1.bf16.msra.mxu0 0
      %3917 = vmatprep.subr.bf16.mxu0 0
      %3918 = vmatpush1.bf16.msra.mxu0 0
      %3919 = vmatprep.subr.bf16.mxu0 0
      %3920 = vmatpush1.bf16.msra.mxu0 0
      %3921 = vmatprep.subr.bf16.mxu0 0
      %3922 = vmatpush1.bf16.msra.mxu0 0
      %3923 = vmatprep.subr.bf16.mxu0 0
      %3924 = vmatpush1.bf16.msra.mxu0 0
      %3925 = vmatprep.subr.bf16.mxu0 0
      %3926 = vmatpush1.bf16.msra.mxu0 0
      %3927 = vmatprep.subr.bf16.mxu0 0
      %3928 = vmatpush1.bf16.msra.mxu0 0
      %3929 = vmatprep.subr.bf16.mxu0 0
      %3930 = vmatpush1.bf16.msra.mxu0 0
      %3931 = vmatprep.subr.bf16.mxu0 0
      %3932 = vmatpush1.bf16.msra.mxu0 0
      %3933 = vmatprep.subr.bf16.mxu0 0
      %3934 = vmatpush1.bf16.msra.mxu0 0
      %3935 = vmatprep.mubr.bf16.mxu0 0
      %3936 = vmatmul.mubr.bf16.gmra.mrb[0].mxu0 %v3682
      %v3937 = vpop.f32.mrb[0].mxu0
      %v3938 = vadd.f32 0.0, %v3937
      %v3939 = vpop.f32.mrb[0].mxu0
      %v3940 = vpop.f32.mrb[0].mxu0
      %v3941 = vpop.f32.mrb[0].mxu0
      %3942 = vdwg.mxu0
      %v3943 = vpack.c.bf16 %v3792, %v3719
      %v3944 = vpack.c.bf16 %v3938, %v3865
      %v3945 = vld [vmem:[%s31] sm:$0xf]
      %v3946 = vld [vmem:[%s29] sm:$0x1]
      %v3948 = vlaneseq
      %v3949 = vshrl.u32 %v3948, 7
      %v3950 = vsub.s32 0, %v3949
      %v3951 = vrot.slane %v3946, %v3950
      %v3954 = vsel %vm2972, %v3945, 0
      %3956 = vmatprep.subr.bf16.mxu0 0
      %3957 = vmatpush1.bf16.msra.mxu0 %v3943
      %3958 = vmatprep.subr.bf16.mxu0 0
      %3959 = vmatpush1.bf16.msra.mxu0 %v3944
      %3960 = vmatprep.subr.bf16.mxu0 0
      %3961 = vmatpush1.bf16.msra.mxu0 0
      %3962 = vmatprep.subr.bf16.mxu0 0
      %3963 = vmatpush1.bf16.msra.mxu0 0
      %3964 = vmatprep.subr.bf16.mxu0 0
      %3965 = vmatpush1.bf16.msra.mxu0 0
      %3966 = vmatprep.subr.bf16.mxu0 0
      %3967 = vmatpush1.bf16.msra.mxu0 0
      %3968 = vmatprep.subr.bf16.mxu0 0
      %3969 = vmatpush1.bf16.msra.mxu0 0
      %3970 = vmatprep.subr.bf16.mxu0 0
      %3971 = vmatpush1.bf16.msra.mxu0 0
      %3972 = vmatprep.subr.bf16.mxu0 0
      %3973 = vmatpush1.bf16.msra.mxu0 0
      %3974 = vmatprep.subr.bf16.mxu0 0
      %3975 = vmatpush1.bf16.msra.mxu0 0
      %3976 = vmatprep.subr.bf16.mxu0 0
      %3977 = vmatpush1.bf16.msra.mxu0 0
      %3978 = vmatprep.subr.bf16.mxu0 0
      %3979 = vmatpush1.bf16.msra.mxu0 0
      %3980 = vmatprep.subr.bf16.mxu0 0
      %3981 = vmatpush1.bf16.msra.mxu0 0
      %3982 = vmatprep.subr.bf16.mxu0 0
      %3983 = vmatpush1.bf16.msra.mxu0 0
      %3984 = vmatprep.subr.bf16.mxu0 0
      %3985 = vmatpush1.bf16.msra.mxu0 0
      %3986 = vmatprep.subr.bf16.mxu0 0
      %3987 = vmatpush1.bf16.msra.mxu0 0
      %3988 = vmatprep.mubr.bf16.mxu0 0
      %3989 = vmatmul.mubr.bf16.gmra.mrb[0].mxu0 %v3954
      %v3990 = vpop.f32.mrb[0].mxu0
      %v3991 = vadd.f32 %v3951, %v3990
      %v3992 = vpop.f32.mrb[0].mxu0
      %v3993 = vpop.f32.mrb[0].mxu0
      %v3994 = vpop.f32.mrb[0].mxu0
      %3995 = vdwg.mxu0
      %v3996 = vpack.c.bf16 %v3991, %v3991
      %v3997 = vld [vmem:[%s33] sm:$0xf]
      %v3998 = vld [vmem:[%s33 + $0x4] sm:$0xf]
      %v3999 = vld [vmem:[%s33 + $0x8] sm:$0xf]
      %v4000 = vld [vmem:[%s33 + $0xc] sm:$0xf]
      %v4001 = vld [vmem:[%s33 + $0x10] sm:$0xf]
      %v4002 = vld [vmem:[%s33 + $0x14] sm:$0xf]
      %v4003 = vld [vmem:[%s33 + $0x18] sm:$0xf]
      %v4004 = vld [vmem:[%s33 + $0x1c] sm:$0xf]
      %v4005 = vld [vmem:[%s33 + $0x20] sm:$0xf]
      %v4006 = vld [vmem:[%s33 + $0x24] sm:$0xf]
      %v4007 = vld [vmem:[%s33 + $0x28] sm:$0xf]
      %v4008 = vld [vmem:[%s33 + $0x2c] sm:$0xf]
      %v4009 = vld [vmem:[%s33 + $0x30] sm:$0xf]
      %v4010 = vld [vmem:[%s33 + $0x34] sm:$0xf]
      %v4011 = vld [vmem:[%s33 + $0x38] sm:$0xf]
      %v4012 = vld [vmem:[%s33 + $0x3c] sm:$0xf]
      %v4029 = vunpack.c.l.b16 %v3997
      %v4030 = vunpack.c.l.b16 %v3998
      %v4031 = vunpack.c.l.b16 %v3999
      %v4032 = vunpack.c.l.b16 %v4000
      %v4033 = vunpack.c.l.b16 %v4001
      %v4034 = vunpack.c.l.b16 %v4002
      %v4035 = vunpack.c.l.b16 %v4003
      %v4036 = vunpack.c.l.b16 %v4004
      %v4037 = vunpack.c.l.b16 %v4005
      %v4038 = vunpack.c.l.b16 %v4006
      %v4039 = vunpack.c.l.b16 %v4007
      %v4040 = vunpack.c.l.b16 %v4008
      %v4041 = vunpack.c.l.b16 %v4009
      %v4042 = vunpack.c.l.b16 %v4010
      %v4043 = vunpack.c.l.b16 %v4011
      %v4044 = vunpack.c.l.b16 %v4012
      %v4045 = vpack.c.b16 %v4030, %v4029
      %v4046 = vpack.c.b16 %v4032, %v4031
      %v4047 = vpack.c.b16 %v4034, %v4033
      %v4048 = vpack.c.b16 %v4036, %v4035
      %v4049 = vpack.c.b16 %v4038, %v4037
      %v4050 = vpack.c.b16 %v4040, %v4039
      %v4051 = vpack.c.b16 %v4042, %v4041
      %v4052 = vpack.c.b16 %v4044, %v4043
      %4061 = vmatprep.subr.bf16.mxu0 0
      %4062 = vmatpush1.bf16.msra.mxu0 %v4045
      %4063 = vmatprep.subr.bf16.mxu0 0
      %4064 = vmatpush1.bf16.msra.mxu0 %v4046
      %4065 = vmatprep.subr.bf16.mxu0 0
      %4066 = vmatpush1.bf16.msra.mxu0 %v4047
      %4067 = vmatprep.subr.bf16.mxu0 0
      %4068 = vmatpush1.bf16.msra.mxu0 %v4048
      %4069 = vmatprep.subr.bf16.mxu0 0
      %4070 = vmatpush1.bf16.msra.mxu0 %v4049
      %4071 = vmatprep.subr.bf16.mxu0 0
      %4072 = vmatpush1.bf16.msra.mxu0 %v4050
      %4073 = vmatprep.subr.bf16.mxu0 0
      %4074 = vmatpush1.bf16.msra.mxu0 %v4051
      %4075 = vmatprep.subr.bf16.mxu0 0
      %4076 = vmatpush1.bf16.msra.mxu0 %v4052
      %4077 = vmatprep.subr.bf16.mxu0 0
      %4078 = vmatpush1.bf16.msra.mxu0 0
      %4079 = vmatprep.subr.bf16.mxu0 0
      %4080 = vmatpush1.bf16.msra.mxu0 0
      %4081 = vmatprep.subr.bf16.mxu0 0
      %4082 = vmatpush1.bf16.msra.mxu0 0
      %4083 = vmatprep.subr.bf16.mxu0 0
      %4084 = vmatpush1.bf16.msra.mxu0 0
      %4085 = vmatprep.subr.bf16.mxu0 0
      %4086 = vmatpush1.bf16.msra.mxu0 0
      %4087 = vmatprep.subr.bf16.mxu0 0
      %4088 = vmatpush1.bf16.msra.mxu0 0
      %4089 = vmatprep.subr.bf16.mxu0 0
      %4090 = vmatpush1.bf16.msra.mxu0 0
      %4091 = vmatprep.subr.bf16.mxu0 0
      %4092 = vmatpush1.bf16.msra.mxu0 0
      %4093 = vmatprep.mubr.bf16.mxu0 0
      %4094 = vmatmul.mubr.bf16.gmra.mrb[0].mxu0 %v3996
      %v4095 = vpop.f32.mrb[0].mxu0
      %v4096 = vadd.f32 0.0, %v4095
      %v4097 = vpop.f32.mrb[0].mxu0
      %v4098 = vpop.f32.mrb[0].mxu0
      %v4099 = vpop.f32.mrb[0].mxu0
      %4100 = vdwg.mxu0
      %s4101 = scalar_lea.vmem %s33, 64
      %v4102 = vld [vmem:[%s4101] sm:$0xf]
      %v4103 = vld [vmem:[%s4101 + $0x4] sm:$0xf]
      %v4104 = vld [vmem:[%s4101 + $0x8] sm:$0xf]
      %v4105 = vld [vmem:[%s4101 + $0xc] sm:$0xf]
      %v4106 = vld [vmem:[%s4101 + $0x10] sm:$0xf]
      %v4107 = vld [vmem:[%s4101 + $0x14] sm:$0xf]
      %v4108 = vld [vmem:[%s4101 + $0x18] sm:$0xf]
      %v4109 = vld [vmem:[%s4101 + $0x1c] sm:$0xf]
      %v4110 = vld [vmem:[%s4101 + $0x20] sm:$0xf]
      %v4111 = vld [vmem:[%s4101 + $0x24] sm:$0xf]
      %v4112 = vld [vmem:[%s4101 + $0x28] sm:$0xf]
      %v4113 = vld [vmem:[%s4101 + $0x2c] sm:$0xf]
      %v4114 = vld [vmem:[%s4101 + $0x30] sm:$0xf]
      %v4115 = vld [vmem:[%s4101 + $0x34] sm:$0xf]
      %v4116 = vld [vmem:[%s4101 + $0x38] sm:$0xf]
      %v4117 = vld [vmem:[%s4101 + $0x3c] sm:$0xf]
      %v4134 = vunpack.c.l.b16 %v4102
      %v4135 = vunpack.c.l.b16 %v4103
      %v4136 = vunpack.c.l.b16 %v4104
      %v4137 = vunpack.c.l.b16 %v4105
      %v4138 = vunpack.c.l.b16 %v4106
      %v4139 = vunpack.c.l.b16 %v4107
      %v4140 = vunpack.c.l.b16 %v4108
      %v4141 = vunpack.c.l.b16 %v4109
      %v4142 = vunpack.c.l.b16 %v4110
      %v4143 = vunpack.c.l.b16 %v4111
      %v4144 = vunpack.c.l.b16 %v4112
      %v4145 = vunpack.c.l.b16 %v4113
      %v4146 = vunpack.c.l.b16 %v4114
      %v4147 = vunpack.c.l.b16 %v4115
      %v4148 = vunpack.c.l.b16 %v4116
      %v4149 = vunpack.c.l.b16 %v4117
      %v4150 = vpack.c.b16 %v4135, %v4134
      %v4151 = vpack.c.b16 %v4137, %v4136
      %v4152 = vpack.c.b16 %v4139, %v4138
      %v4153 = vpack.c.b16 %v4141, %v4140
      %v4154 = vpack.c.b16 %v4143, %v4142
      %v4155 = vpack.c.b16 %v4145, %v4144
      %v4156 = vpack.c.b16 %v4147, %v4146
      %v4157 = vpack.c.b16 %v4149, %v4148
      %4166 = vmatprep.subr.bf16.mxu0 0
      %4167 = vmatpush1.bf16.msra.mxu0 %v4150
      %4168 = vmatprep.subr.bf16.mxu0 0
      %4169 = vmatpush1.bf16.msra.mxu0 %v4151
      %4170 = vmatprep.subr.bf16.mxu0 0
      %4171 = vmatpush1.bf16.msra.mxu0 %v4152
      %4172 = vmatprep.subr.bf16.mxu0 0
      %4173 = vmatpush1.bf16.msra.mxu0 %v4153
      %4174 = vmatprep.subr.bf16.mxu0 0
      %4175 = vmatpush1.bf16.msra.mxu0 %v4154
      %4176 = vmatprep.subr.bf16.mxu0 0
      %4177 = vmatpush1.bf16.msra.mxu0 %v4155
      %4178 = vmatprep.subr.bf16.mxu0 0
      %4179 = vmatpush1.bf16.msra.mxu0 %v4156
      %4180 = vmatprep.subr.bf16.mxu0 0
      %4181 = vmatpush1.bf16.msra.mxu0 %v4157
      %4182 = vmatprep.subr.bf16.mxu0 0
      %4183 = vmatpush1.bf16.msra.mxu0 0
      %4184 = vmatprep.subr.bf16.mxu0 0
      %4185 = vmatpush1.bf16.msra.mxu0 0
      %4186 = vmatprep.subr.bf16.mxu0 0
      %4187 = vmatpush1.bf16.msra.mxu0 0
      %4188 = vmatprep.subr.bf16.mxu0 0
      %4189 = vmatpush1.bf16.msra.mxu0 0
      %4190 = vmatprep.subr.bf16.mxu0 0
      %4191 = vmatpush1.bf16.msra.mxu0 0
      %4192 = vmatprep.subr.bf16.mxu0 0
      %4193 = vmatpush1.bf16.msra.mxu0 0
      %4194 = vmatprep.subr.bf16.mxu0 0
      %4195 = vmatpush1.bf16.msra.mxu0 0
      %4196 = vmatprep.subr.bf16.mxu0 0
      %4197 = vmatpush1.bf16.msra.mxu0 0
      %4198 = vmatprep.mubr.bf16.mxu0 0
      %4199 = vmatmul.mubr.bf16.gmra.mrb[0].mxu0 %v3996
      %v4200 = vpop.f32.mrb[0].mxu0
      %v4201 = vadd.f32 0.0, %v4200
      %v4202 = vpop.f32.mrb[0].mxu0
      %v4203 = vpop.f32.mrb[0].mxu0
      %v4204 = vpop.f32.mrb[0].mxu0
      %4205 = vdwg.mxu0
      %s4206 = scalar_lea.vmem %s33, 128
      %v4207 = vld [vmem:[%s4206] sm:$0xf]
      %v4208 = vld [vmem:[%s4206 + $0x4] sm:$0xf]
      %v4209 = vld [vmem:[%s4206 + $0x8] sm:$0xf]
      %v4210 = vld [vmem:[%s4206 + $0xc] sm:$0xf]
      %v4211 = vld [vmem:[%s4206 + $0x10] sm:$0xf]
      %v4212 = vld [vmem:[%s4206 + $0x14] sm:$0xf]
      %v4213 = vld [vmem:[%s4206 + $0x18] sm:$0xf]
      %v4214 = vld [vmem:[%s4206 + $0x1c] sm:$0xf]
      %v4215 = vld [vmem:[%s4206 + $0x20] sm:$0xf]
      %v4216 = vld [vmem:[%s4206 + $0x24] sm:$0xf]
      %v4217 = vld [vmem:[%s4206 + $0x28] sm:$0xf]
      %v4218 = vld [vmem:[%s4206 + $0x2c] sm:$0xf]
      %v4219 = vld [vmem:[%s4206 + $0x30] sm:$0xf]
      %v4220 = vld [vmem:[%s4206 + $0x34] sm:$0xf]
      %v4221 = vld [vmem:[%s4206 + $0x38] sm:$0xf]
      %v4222 = vld [vmem:[%s4206 + $0x3c] sm:$0xf]
      %v4239 = vunpack.c.l.b16 %v4207
      %v4240 = vunpack.c.l.b16 %v4208
      %v4241 = vunpack.c.l.b16 %v4209
      %v4242 = vunpack.c.l.b16 %v4210
      %v4243 = vunpack.c.l.b16 %v4211
      %v4244 = vunpack.c.l.b16 %v4212
      %v4245 = vunpack.c.l.b16 %v4213
      %v4246 = vunpack.c.l.b16 %v4214
      %v4247 = vunpack.c.l.b16 %v4215
      %v4248 = vunpack.c.l.b16 %v4216
      %v4249 = vunpack.c.l.b16 %v4217
      %v4250 = vunpack.c.l.b16 %v4218
      %v4251 = vunpack.c.l.b16 %v4219
      %v4252 = vunpack.c.l.b16 %v4220
      %v4253 = vunpack.c.l.b16 %v4221
      %v4254 = vunpack.c.l.b16 %v4222
      %v4255 = vpack.c.b16 %v4240, %v4239
      %v4256 = vpack.c.b16 %v4242, %v4241
      %v4257 = vpack.c.b16 %v4244, %v4243
      %v4258 = vpack.c.b16 %v4246, %v4245
      %v4259 = vpack.c.b16 %v4248, %v4247
      %v4260 = vpack.c.b16 %v4250, %v4249
      %v4261 = vpack.c.b16 %v4252, %v4251
      %v4262 = vpack.c.b16 %v4254, %v4253
      %4271 = vmatprep.subr.bf16.mxu0 0
      %4272 = vmatpush1.bf16.msra.mxu0 %v4255
      %4273 = vmatprep.subr.bf16.mxu0 0
      %4274 = vmatpush1.bf16.msra.mxu0 %v4256
      %4275 = vmatprep.subr.bf16.mxu0 0
      %4276 = vmatpush1.bf16.msra.mxu0 %v4257
      %4277 = vmatprep.subr.bf16.mxu0 0
      %4278 = vmatpush1.bf16.msra.mxu0 %v4258
      %4279 = vmatprep.subr.bf16.mxu0 0
      %4280 = vmatpush1.bf16.msra.mxu0 %v4259
      %4281 = vmatprep.subr.bf16.mxu0 0
      %4282 = vmatpush1.bf16.msra.mxu0 %v4260
      %4283 = vmatprep.subr.bf16.mxu0 0
      %4284 = vmatpush1.bf16.msra.mxu0 %v4261
      %4285 = vmatprep.subr.bf16.mxu0 0
      %4286 = vmatpush1.bf16.msra.mxu0 %v4262
      %4287 = vmatprep.subr.bf16.mxu0 0
      %4288 = vmatpush1.bf16.msra.mxu0 0
      %4289 = vmatprep.subr.bf16.mxu0 0
      %4290 = vmatpush1.bf16.msra.mxu0 0
      %4291 = vmatprep.subr.bf16.mxu0 0
      %4292 = vmatpush1.bf16.msra.mxu0 0
      %4293 = vmatprep.subr.bf16.mxu0 0
      %4294 = vmatpush1.bf16.msra.mxu0 0
      %4295 = vmatprep.subr.bf16.mxu0 0
      %4296 = vmatpush1.bf16.msra.mxu0 0
      %4297 = vmatprep.subr.bf16.mxu0 0
      %4298 = vmatpush1.bf16.msra.mxu0 0
      %4299 = vmatprep.subr.bf16.mxu0 0
      %4300 = vmatpush1.bf16.msra.mxu0 0
      %4301 = vmatprep.subr.bf16.mxu0 0
      %4302 = vmatpush1.bf16.msra.mxu0 0
      %4303 = vmatprep.mubr.bf16.mxu0 0
      %4304 = vmatmul.mubr.bf16.gmra.mrb[0].mxu0 %v3996
      %v4305 = vpop.f32.mrb[0].mxu0
      %v4306 = vadd.f32 0.0, %v4305
      %v4307 = vpop.f32.mrb[0].mxu0
      %v4308 = vpop.f32.mrb[0].mxu0
      %v4309 = vpop.f32.mrb[0].mxu0
      %4310 = vdwg.mxu0
      %s4311 = scalar_lea.vmem %s33, 192
      %v4312 = vld [vmem:[%s4311] sm:$0xf]
      %v4313 = vld [vmem:[%s4311 + $0x4] sm:$0xf]
      %v4314 = vld [vmem:[%s4311 + $0x8] sm:$0xf]
      %v4315 = vld [vmem:[%s4311 + $0xc] sm:$0xf]
      %v4316 = vld [vmem:[%s4311 + $0x10] sm:$0xf]
      %v4317 = vld [vmem:[%s4311 + $0x14] sm:$0xf]
      %v4318 = vld [vmem:[%s4311 + $0x18] sm:$0xf]
      %v4319 = vld [vmem:[%s4311 + $0x1c] sm:$0xf]
      %v4320 = vld [vmem:[%s4311 + $0x20] sm:$0xf]
      %v4321 = vld [vmem:[%s4311 + $0x24] sm:$0xf]
      %v4322 = vld [vmem:[%s4311 + $0x28] sm:$0xf]
      %v4323 = vld [vmem:[%s4311 + $0x2c] sm:$0xf]
      %v4324 = vld [vmem:[%s4311 + $0x30] sm:$0xf]
      %v4325 = vld [vmem:[%s4311 + $0x34] sm:$0xf]
      %v4326 = vld [vmem:[%s4311 + $0x38] sm:$0xf]
      %v4327 = vld [vmem:[%s4311 + $0x3c] sm:$0xf]
      %v4344 = vunpack.c.l.b16 %v4312
      %v4345 = vunpack.c.l.b16 %v4313
      %v4346 = vunpack.c.l.b16 %v4314
      %v4347 = vunpack.c.l.b16 %v4315
      %v4348 = vunpack.c.l.b16 %v4316
      %v4349 = vunpack.c.l.b16 %v4317
      %v4350 = vunpack.c.l.b16 %v4318
      %v4351 = vunpack.c.l.b16 %v4319
      %v4352 = vunpack.c.l.b16 %v4320
      %v4353 = vunpack.c.l.b16 %v4321
      %v4354 = vunpack.c.l.b16 %v4322
      %v4355 = vunpack.c.l.b16 %v4323
      %v4356 = vunpack.c.l.b16 %v4324
      %v4357 = vunpack.c.l.b16 %v4325
      %v4358 = vunpack.c.l.b16 %v4326
      %v4359 = vunpack.c.l.b16 %v4327
      %v4360 = vpack.c.b16 %v4345, %v4344
      %v4361 = vpack.c.b16 %v4347, %v4346
      %v4362 = vpack.c.b16 %v4349, %v4348
      %v4363 = vpack.c.b16 %v4351, %v4350
      %v4364 = vpack.c.b16 %v4353, %v4352
      %v4365 = vpack.c.b16 %v4355, %v4354
      %v4366 = vpack.c.b16 %v4357, %v4356
      %v4367 = vpack.c.b16 %v4359, %v4358
      %4376 = vmatprep.subr.bf16.mxu0 0
      %4377 = vmatpush1.bf16.msra.mxu0 %v4360
      %4378 = vmatprep.subr.bf16.mxu0 0
      %4379 = vmatpush1.bf16.msra.mxu0 %v4361
      %4380 = vmatprep.subr.bf16.mxu0 0
      %4381 = vmatpush1.bf16.msra.mxu0 %v4362
      %4382 = vmatprep.subr.bf16.mxu0 0
      %4383 = vmatpush1.bf16.msra.mxu0 %v4363
      %4384 = vmatprep.subr.bf16.mxu0 0
      %4385 = vmatpush1.bf16.msra.mxu0 %v4364
      %4386 = vmatprep.subr.bf16.mxu0 0
      %4387 = vmatpush1.bf16.msra.mxu0 %v4365
      %4388 = vmatprep.subr.bf16.mxu0 0
      %4389 = vmatpush1.bf16.msra.mxu0 %v4366
      %4390 = vmatprep.subr.bf16.mxu0 0
      %4391 = vmatpush1.bf16.msra.mxu0 %v4367
      %4392 = vmatprep.subr.bf16.mxu0 0
      %4393 = vmatpush1.bf16.msra.mxu0 0
      %4394 = vmatprep.subr.bf16.mxu0 0
      %4395 = vmatpush1.bf16.msra.mxu0 0
      %4396 = vmatprep.subr.bf16.mxu0 0
      %4397 = vmatpush1.bf16.msra.mxu0 0
      %4398 = vmatprep.subr.bf16.mxu0 0
      %4399 = vmatpush1.bf16.msra.mxu0 0
      %4400 = vmatprep.subr.bf16.mxu0 0
      %4401 = vmatpush1.bf16.msra.mxu0 0
      %4402 = vmatprep.subr.bf16.mxu0 0
      %4403 = vmatpush1.bf16.msra.mxu0 0
      %4404 = vmatprep.subr.bf16.mxu0 0
      %4405 = vmatpush1.bf16.msra.mxu0 0
      %4406 = vmatprep.subr.bf16.mxu0 0
      %4407 = vmatpush1.bf16.msra.mxu0 0
      %4408 = vmatprep.mubr.bf16.mxu0 0
      %4409 = vmatmul.mubr.bf16.gmra.mrb[0].mxu0 %v3996
      %v4410 = vpop.f32.mrb[0].mxu0
      %v4411 = vadd.f32 0.0, %v4410
      %v4412 = vpop.f32.mrb[0].mxu0
      %v4413 = vpop.f32.mrb[0].mxu0
      %v4414 = vpop.f32.mrb[0].mxu0
      %4415 = vdwg.mxu0
      %v4416 = vpack.c.bf16 %v4201, %v4096
      %v4417 = vpack.c.bf16 %v4411, %v4306
      %v4418 = vld [vmem:[%s37] sm:$0xf]
      %v4419 = vld [vmem:[%s35] sm:$0x1]
      %v4421 = vlaneseq
      %v4422 = vshrl.u32 %v4421, 7
      %v4423 = vsub.s32 0, %v4422
      %v4424 = vrot.slane %v4419, %v4423
      %v4427 = vsel %vm2972, %v4418, 0
      %4429 = vmatprep.subr.bf16.mxu0 0
      %4430 = vmatpush1.bf16.msra.mxu0 %v4416
      %4431 = vmatprep.subr.bf16.mxu0 0
      %4432 = vmatpush1.bf16.msra.mxu0 %v4417
      %4433 = vmatprep.subr.bf16.mxu0 0
      %4434 = vmatpush1.bf16.msra.mxu0 0
      %4435 = vmatprep.subr.bf16.mxu0 0
      %4436 = vmatpush1.bf16.msra.mxu0 0
      %4437 = vmatprep.subr.bf16.mxu0 0
      %4438 = vmatpush1.bf16.msra.mxu0 0
      %4439 = vmatprep.subr.bf16.mxu0 0
      %4440 = vmatpush1.bf16.msra.mxu0 0
      %4441 = vmatprep.subr.bf16.mxu0 0
      %4442 = vmatpush1.bf16.msra.mxu0 0
      %4443 = vmatprep.subr.bf16.mxu0 0
      %4444 = vmatpush1.bf16.msra.mxu0 0
      %4445 = vmatprep.subr.bf16.mxu0 0
      %4446 = vmatpush1.bf16.msra.mxu0 0
      %4447 = vmatprep.subr.bf16.mxu0 0
      %4448 = vmatpush1.bf16.msra.mxu0 0
      %4449 = vmatprep.subr.bf16.mxu0 0
      %4450 = vmatpush1.bf16.msra.mxu0 0
      %4451 = vmatprep.subr.bf16.mxu0 0
      %4452 = vmatpush1.bf16.msra.mxu0 0
      %4453 = vmatprep.subr.bf16.mxu0 0
      %4454 = vmatpush1.bf16.msra.mxu0 0
      %4455 = vmatprep.subr.bf16.mxu0 0
      %4456 = vmatpush1.bf16.msra.mxu0 0
      %4457 = vmatprep.subr.bf16.mxu0 0
      %4458 = vmatpush1.bf16.msra.mxu0 0
      %4459 = vmatprep.subr.bf16.mxu0 0
      %4460 = vmatpush1.bf16.msra.mxu0 0
      %4461 = vmatprep.mubr.bf16.mxu0 0
      %4462 = vmatmul.mubr.bf16.gmra.mrb[0].mxu0 %v4427
      %v4463 = vpop.f32.mrb[0].mxu0
      %v4464 = vadd.f32 %v4424, %v4463
      %v4465 = vpop.f32.mrb[0].mxu0
      %v4466 = vpop.f32.mrb[0].mxu0
      %v4467 = vpop.f32.mrb[0].mxu0
      %4468 = vdwg.mxu0
      %v4469 = vmax.f32 %v4464, 0.0
      %v4470 = vpack.c.bf16 %v4469, %v4469
      %v4471 = vld [vmem:[%s39] sm:$0xf]
      %v4472 = vld [vmem:[%s39 + $0x4] sm:$0xf]
      %v4473 = vld [vmem:[%s39 + $0x8] sm:$0xf]
      %v4474 = vld [vmem:[%s39 + $0xc] sm:$0xf]
      %v4475 = vld [vmem:[%s39 + $0x10] sm:$0xf]
      %v4476 = vld [vmem:[%s39 + $0x14] sm:$0xf]
      %v4477 = vld [vmem:[%s39 + $0x18] sm:$0xf]
      %v4478 = vld [vmem:[%s39 + $0x1c] sm:$0xf]
      %v4487 = vunpack.c.l.b16 %v4471
      %v4488 = vunpack.c.l.b16 %v4472
      %v4489 = vunpack.c.l.b16 %v4473
      %v4490 = vunpack.c.l.b16 %v4474
      %v4491 = vunpack.c.l.b16 %v4475
      %v4492 = vunpack.c.l.b16 %v4476
      %v4493 = vunpack.c.l.b16 %v4477
      %v4494 = vunpack.c.l.b16 %v4478
      %v4495 = vpack.c.b16 %v4488, %v4487
      %v4496 = vpack.c.b16 %v4490, %v4489
      %v4497 = vpack.c.b16 %v4492, %v4491
      %v4498 = vpack.c.b16 %v4494, %v4493
      %v4504 = vsel %vm3325, %v4470, 0
      %4506 = vmatprep.subr.bf16.mxu0 0
      %4507 = vmatpush1.bf16.msra.mxu0 %v4495
      %4508 = vmatprep.subr.bf16.mxu0 0
      %4509 = vmatpush1.bf16.msra.mxu0 %v4496
      %4510 = vmatprep.subr.bf16.mxu0 0
      %4511 = vmatpush1.bf16.msra.mxu0 %v4497
      %4512 = vmatprep.subr.bf16.mxu0 0
      %4513 = vmatpush1.bf16.msra.mxu0 %v4498
      %4514 = vmatprep.subr.bf16.mxu0 0
      %4515 = vmatpush1.bf16.msra.mxu0 0
      %4516 = vmatprep.subr.bf16.mxu0 0
      %4517 = vmatpush1.bf16.msra.mxu0 0
      %4518 = vmatprep.subr.bf16.mxu0 0
      %4519 = vmatpush1.bf16.msra.mxu0 0
      %4520 = vmatprep.subr.bf16.mxu0 0
      %4521 = vmatpush1.bf16.msra.mxu0 0
      %4522 = vmatprep.subr.bf16.mxu0 0
      %4523 = vmatpush1.bf16.msra.mxu0 0
      %4524 = vmatprep.subr.bf16.mxu0 0
      %4525 = vmatpush1.bf16.msra.mxu0 0
      %4526 = vmatprep.subr.bf16.mxu0 0
      %4527 = vmatpush1.bf16.msra.mxu0 0
      %4528 = vmatprep.subr.bf16.mxu0 0
      %4529 = vmatpush1.bf16.msra.mxu0 0
      %4530 = vmatprep.subr.bf16.mxu0 0
      %4531 = vmatpush1.bf16.msra.mxu0 0
      %4532 = vmatprep.subr.bf16.mxu0 0
      %4533 = vmatpush1.bf16.msra.mxu0 0
      %4534 = vmatprep.subr.bf16.mxu0 0
      %4535 = vmatpush1.bf16.msra.mxu0 0
      %4536 = vmatprep.subr.bf16.mxu0 0
      %4537 = vmatpush1.bf16.msra.mxu0 0
      %4538 = vmatprep.mubr.bf16.mxu0 0
      %4539 = vmatmul.mubr.bf16.gmra.mrb[0].mxu0 %v4504
      %v4540 = vpop.f32.mrb[0].mxu0
      %v4541 = vadd.f32 0.0, %v4540
      %v4542 = vpop.f32.mrb[0].mxu0
      %v4543 = vpop.f32.mrb[0].mxu0
      %v4544 = vpop.f32.mrb[0].mxu0
      %4545 = vdwg.mxu0
      %s4546 = scalar_lea.vmem %s39, 32
      %v4547 = vld [vmem:[%s4546] sm:$0xf]
      %v4548 = vld [vmem:[%s4546 + $0x4] sm:$0xf]
      %v4549 = vld [vmem:[%s4546 + $0x8] sm:$0xf]
      %v4550 = vld [vmem:[%s4546 + $0xc] sm:$0xf]
      %v4551 = vld [vmem:[%s4546 + $0x10] sm:$0xf]
      %v4552 = vld [vmem:[%s4546 + $0x14] sm:$0xf]
      %v4553 = vld [vmem:[%s4546 + $0x18] sm:$0xf]
      %v4554 = vld [vmem:[%s4546 + $0x1c] sm:$0xf]
      %v4563 = vunpack.c.l.b16 %v4547
      %v4564 = vunpack.c.l.b16 %v4548
      %v4565 = vunpack.c.l.b16 %v4549
      %v4566 = vunpack.c.l.b16 %v4550
      %v4567 = vunpack.c.l.b16 %v4551
      %v4568 = vunpack.c.l.b16 %v4552
      %v4569 = vunpack.c.l.b16 %v4553
      %v4570 = vunpack.c.l.b16 %v4554
      %v4571 = vpack.c.b16 %v4564, %v4563
      %v4572 = vpack.c.b16 %v4566, %v4565
      %v4573 = vpack.c.b16 %v4568, %v4567
      %v4574 = vpack.c.b16 %v4570, %v4569
      %4579 = vmatprep.subr.bf16.mxu0 0
      %4580 = vmatpush1.bf16.msra.mxu0 %v4571
      %4581 = vmatprep.subr.bf16.mxu0 0
      %4582 = vmatpush1.bf16.msra.mxu0 %v4572
      %4583 = vmatprep.subr.bf16.mxu0 0
      %4584 = vmatpush1.bf16.msra.mxu0 %v4573
      %4585 = vmatprep.subr.bf16.mxu0 0
      %4586 = vmatpush1.bf16.msra.mxu0 %v4574
      %4587 = vmatprep.subr.bf16.mxu0 0
      %4588 = vmatpush1.bf16.msra.mxu0 0
      %4589 = vmatprep.subr.bf16.mxu0 0
      %4590 = vmatpush1.bf16.msra.mxu0 0
      %4591 = vmatprep.subr.bf16.mxu0 0
      %4592 = vmatpush1.bf16.msra.mxu0 0
      %4593 = vmatprep.subr.bf16.mxu0 0
      %4594 = vmatpush1.bf16.msra.mxu0 0
      %4595 = vmatprep.subr.bf16.mxu0 0
      %4596 = vmatpush1.bf16.msra.mxu0 0
      %4597 = vmatprep.subr.bf16.mxu0 0
      %4598 = vmatpush1.bf16.msra.mxu0 0
      %4599 = vmatprep.subr.bf16.mxu0 0
      %4600 = vmatpush1.bf16.msra.mxu0 0
      %4601 = vmatprep.subr.bf16.mxu0 0
      %4602 = vmatpush1.bf16.msra.mxu0 0
      %4603 = vmatprep.subr.bf16.mxu0 0
      %4604 = vmatpush1.bf16.msra.mxu0 0
      %4605 = vmatprep.subr.bf16.mxu0 0
      %4606 = vmatpush1.bf16.msra.mxu0 0
      %4607 = vmatprep.subr.bf16.mxu0 0
      %4608 = vmatpush1.bf16.msra.mxu0 0
      %4609 = vmatprep.subr.bf16.mxu0 0
      %4610 = vmatpush1.bf16.msra.mxu0 0
      %4611 = vmatprep.mubr.bf16.mxu0 0
      %4612 = vmatmul.mubr.bf16.gmra.mrb[0].mxu0 %v4504
      %v4613 = vpop.f32.mrb[0].mxu0
      %v4614 = vadd.f32 0.0, %v4613
      %v4615 = vpop.f32.mrb[0].mxu0
      %v4616 = vpop.f32.mrb[0].mxu0
      %v4617 = vpop.f32.mrb[0].mxu0
      %4618 = vdwg.mxu0
      %s4619 = scalar_lea.vmem %s39, 64
      %v4620 = vld [vmem:[%s4619] sm:$0xf]
      %v4621 = vld [vmem:[%s4619 + $0x4] sm:$0xf]
      %v4622 = vld [vmem:[%s4619 + $0x8] sm:$0xf]
      %v4623 = vld [vmem:[%s4619 + $0xc] sm:$0xf]
      %v4624 = vld [vmem:[%s4619 + $0x10] sm:$0xf]
      %v4625 = vld [vmem:[%s4619 + $0x14] sm:$0xf]
      %v4626 = vld [vmem:[%s4619 + $0x18] sm:$0xf]
      %v4627 = vld [vmem:[%s4619 + $0x1c] sm:$0xf]
      %v4636 = vunpack.c.l.b16 %v4620
      %v4637 = vunpack.c.l.b16 %v4621
      %v4638 = vunpack.c.l.b16 %v4622
      %v4639 = vunpack.c.l.b16 %v4623
      %v4640 = vunpack.c.l.b16 %v4624
      %v4641 = vunpack.c.l.b16 %v4625
      %v4642 = vunpack.c.l.b16 %v4626
      %v4643 = vunpack.c.l.b16 %v4627
      %v4644 = vpack.c.b16 %v4637, %v4636
      %v4645 = vpack.c.b16 %v4639, %v4638
      %v4646 = vpack.c.b16 %v4641, %v4640
      %v4647 = vpack.c.b16 %v4643, %v4642
      %4652 = vmatprep.subr.bf16.mxu0 0
      %4653 = vmatpush1.bf16.msra.mxu0 %v4644
      %4654 = vmatprep.subr.bf16.mxu0 0
      %4655 = vmatpush1.bf16.msra.mxu0 %v4645
      %4656 = vmatprep.subr.bf16.mxu0 0
      %4657 = vmatpush1.bf16.msra.mxu0 %v4646
      %4658 = vmatprep.subr.bf16.mxu0 0
      %4659 = vmatpush1.bf16.msra.mxu0 %v4647
      %4660 = vmatprep.subr.bf16.mxu0 0
      %4661 = vmatpush1.bf16.msra.mxu0 0
      %4662 = vmatprep.subr.bf16.mxu0 0
      %4663 = vmatpush1.bf16.msra.mxu0 0
      %4664 = vmatprep.subr.bf16.mxu0 0
      %4665 = vmatpush1.bf16.msra.mxu0 0
      %4666 = vmatprep.subr.bf16.mxu0 0
      %4667 = vmatpush1.bf16.msra.mxu0 0
      %4668 = vmatprep.subr.bf16.mxu0 0
      %4669 = vmatpush1.bf16.msra.mxu0 0
      %4670 = vmatprep.subr.bf16.mxu0 0
      %4671 = vmatpush1.bf16.msra.mxu0 0
      %4672 = vmatprep.subr.bf16.mxu0 0
      %4673 = vmatpush1.bf16.msra.mxu0 0
      %4674 = vmatprep.subr.bf16.mxu0 0
      %4675 = vmatpush1.bf16.msra.mxu0 0
      %4676 = vmatprep.subr.bf16.mxu0 0
      %4677 = vmatpush1.bf16.msra.mxu0 0
      %4678 = vmatprep.subr.bf16.mxu0 0
      %4679 = vmatpush1.bf16.msra.mxu0 0
      %4680 = vmatprep.subr.bf16.mxu0 0
      %4681 = vmatpush1.bf16.msra.mxu0 0
      %4682 = vmatprep.subr.bf16.mxu0 0
      %4683 = vmatpush1.bf16.msra.mxu0 0
      %4684 = vmatprep.mubr.bf16.mxu0 0
      %4685 = vmatmul.mubr.bf16.gmra.mrb[0].mxu0 %v4504
      %v4686 = vpop.f32.mrb[0].mxu0
      %v4687 = vadd.f32 0.0, %v4686
      %v4688 = vpop.f32.mrb[0].mxu0
      %v4689 = vpop.f32.mrb[0].mxu0
      %v4690 = vpop.f32.mrb[0].mxu0
      %4691 = vdwg.mxu0
      %s4692 = scalar_lea.vmem %s39, 96
      %v4693 = vld [vmem:[%s4692] sm:$0xf]
      %v4694 = vld [vmem:[%s4692 + $0x4] sm:$0xf]
      %v4695 = vld [vmem:[%s4692 + $0x8] sm:$0xf]
      %v4696 = vld [vmem:[%s4692 + $0xc] sm:$0xf]
      %v4697 = vld [vmem:[%s4692 + $0x10] sm:$0xf]
      %v4698 = vld [vmem:[%s4692 + $0x14] sm:$0xf]
      %v4699 = vld [vmem:[%s4692 + $0x18] sm:$0xf]
      %v4700 = vld [vmem:[%s4692 + $0x1c] sm:$0xf]
      %v4709 = vunpack.c.l.b16 %v4693
      %v4710 = vunpack.c.l.b16 %v4694
      %v4711 = vunpack.c.l.b16 %v4695
      %v4712 = vunpack.c.l.b16 %v4696
      %v4713 = vunpack.c.l.b16 %v4697
      %v4714 = vunpack.c.l.b16 %v4698
      %v4715 = vunpack.c.l.b16 %v4699
      %v4716 = vunpack.c.l.b16 %v4700
      %v4717 = vpack.c.b16 %v4710, %v4709
      %v4718 = vpack.c.b16 %v4712, %v4711
      %v4719 = vpack.c.b16 %v4714, %v4713
      %v4720 = vpack.c.b16 %v4716, %v4715
      %4725 = vmatprep.subr.bf16.mxu0 0
      %4726 = vmatpush1.bf16.msra.mxu0 %v4717
      %4727 = vmatprep.subr.bf16.mxu0 0
      %4728 = vmatpush1.bf16.msra.mxu0 %v4718
      %4729 = vmatprep.subr.bf16.mxu0 0
      %4730 = vmatpush1.bf16.msra.mxu0 %v4719
      %4731 = vmatprep.subr.bf16.mxu0 0
      %4732 = vmatpush1.bf16.msra.mxu0 %v4720
      %4733 = vmatprep.subr.bf16.mxu0 0
      %4734 = vmatpush1.bf16.msra.mxu0 0
      %4735 = vmatprep.subr.bf16.mxu0 0
      %4736 = vmatpush1.bf16.msra.mxu0 0
      %4737 = vmatprep.subr.bf16.mxu0 0
      %4738 = vmatpush1.bf16.msra.mxu0 0
      %4739 = vmatprep.subr.bf16.mxu0 0
      %4740 = vmatpush1.bf16.msra.mxu0 0
      %4741 = vmatprep.subr.bf16.mxu0 0
      %4742 = vmatpush1.bf16.msra.mxu0 0
      %4743 = vmatprep.subr.bf16.mxu0 0
      %4744 = vmatpush1.bf16.msra.mxu0 0
      %4745 = vmatprep.subr.bf16.mxu0 0
      %4746 = vmatpush1.bf16.msra.mxu0 0
      %4747 = vmatprep.subr.bf16.mxu0 0
      %4748 = vmatpush1.bf16.msra.mxu0 0
      %4749 = vmatprep.subr.bf16.mxu0 0
      %4750 = vmatpush1.bf16.msra.mxu0 0
      %4751 = vmatprep.subr.bf16.mxu0 0
      %4752 = vmatpush1.bf16.msra.mxu0 0
      %4753 = vmatprep.subr.bf16.mxu0 0
      %4754 = vmatpush1.bf16.msra.mxu0 0
      %4755 = vmatprep.subr.bf16.mxu0 0
      %4756 = vmatpush1.bf16.msra.mxu0 0
      %4757 = vmatprep.mubr.bf16.mxu0 0
      %4758 = vmatmul.mubr.bf16.gmra.mrb[0].mxu0 %v4504
      %v4759 = vpop.f32.mrb[0].mxu0
      %v4760 = vadd.f32 0.0, %v4759
      %v4761 = vpop.f32.mrb[0].mxu0
      %v4762 = vpop.f32.mrb[0].mxu0
      %v4763 = vpop.f32.mrb[0].mxu0
      %4764 = vdwg.mxu0
      %v4765 = vpack.c.bf16 %v4614, %v4541
      %v4766 = vpack.c.bf16 %v4760, %v4687
      %v4767 = vld [vmem:[%s43] sm:$0xf]
      %v4768 = vld [vmem:[%s43 + $0x4] sm:$0xf]
      %v4769 = vld [vmem:[%s41] sm:$0x1]
      %v4771 = vlaneseq
      %v4772 = vshrl.u32 %v4771, 7
      %v4773 = vsub.s32 0, %v4772
      %v4774 = vrot.slane %v4769, %v4773
      %v4778 = vunpack.c.l.b16 %v4767
      %v4779 = vunpack.c.l.b16 %v4768
      %v4780 = vpack.c.b16 %v4779, %v4778
      %v4782 = vsel %vm2972, %v4780, 0
      %4784 = vmatprep.subr.bf16.mxu0 0
      %4785 = vmatpush1.bf16.msra.mxu0 %v4765
      %4786 = vmatprep.subr.bf16.mxu0 0
      %4787 = vmatpush1.bf16.msra.mxu0 %v4766
      %4788 = vmatprep.subr.bf16.mxu0 0
      %4789 = vmatpush1.bf16.msra.mxu0 0
      %4790 = vmatprep.subr.bf16.mxu0 0
      %4791 = vmatpush1.bf16.msra.mxu0 0
      %4792 = vmatprep.subr.bf16.mxu0 0
      %4793 = vmatpush1.bf16.msra.mxu0 0
      %4794 = vmatprep.subr.bf16.mxu0 0
      %4795 = vmatpush1.bf16.msra.mxu0 0
      %4796 = vmatprep.subr.bf16.mxu0 0
      %4797 = vmatpush1.bf16.msra.mxu0 0
      %4798 = vmatprep.subr.bf16.mxu0 0
      %4799 = vmatpush1.bf16.msra.mxu0 0
      %4800 = vmatprep.subr.bf16.mxu0 0
      %4801 = vmatpush1.bf16.msra.mxu0 0
      %4802 = vmatprep.subr.bf16.mxu0 0
      %4803 = vmatpush1.bf16.msra.mxu0 0
      %4804 = vmatprep.subr.bf16.mxu0 0
      %4805 = vmatpush1.bf16.msra.mxu0 0
      %4806 = vmatprep.subr.bf16.mxu0 0
      %4807 = vmatpush1.bf16.msra.mxu0 0
      %4808 = vmatprep.subr.bf16.mxu0 0
      %4809 = vmatpush1.bf16.msra.mxu0 0
      %4810 = vmatprep.subr.bf16.mxu0 0
      %4811 = vmatpush1.bf16.msra.mxu0 0
      %4812 = vmatprep.subr.bf16.mxu0 0
      %4813 = vmatpush1.bf16.msra.mxu0 0
      %4814 = vmatprep.subr.bf16.mxu0 0
      %4815 = vmatpush1.bf16.msra.mxu0 0
      %4816 = vmatprep.mubr.bf16.mxu0 0
      %4817 = vmatmul.mubr.bf16.gmra.mrb[0].mxu0 %v4782
      %v4818 = vpop.f32.mrb[0].mxu0
      %v4819 = vadd.f32 %v4774, %v4818
      %v4820 = vpop.f32.mrb[0].mxu0
      %v4821 = vpop.f32.mrb[0].mxu0
      %v4822 = vadd.f32 %v4774, %v4821
      %v4823 = vpop.f32.mrb[0].mxu0
      %4824 = vdwg.mxu0
      %v4825 = vmax.f32 %v4819, 0.0
      %v4826 = vmax.f32 %v4822, 0.0
      %v4827 = vpack.c.bf16 %v4826, %v4825
      %v4828 = vld [vmem:[%s45] sm:$0xf]
      %v4829 = vld [vmem:[%s45 + $0x4] sm:$0xf]
      %v4830 = vld [vmem:[%s45 + $0x8] sm:$0xf]
      %v4831 = vld [vmem:[%s45 + $0xc] sm:$0xf]
      %v4832 = vld [vmem:[%s45 + $0x10] sm:$0xf]
      %v4833 = vld [vmem:[%s45 + $0x14] sm:$0xf]
      %v4834 = vld [vmem:[%s45 + $0x18] sm:$0xf]
      %v4835 = vld [vmem:[%s45 + $0x1c] sm:$0xf]
      %v4844 = vunpack.c.l.b16 %v4828
      %v4845 = vunpack.c.l.b16 %v4829
      %v4846 = vunpack.c.l.b16 %v4830
      %v4847 = vunpack.c.l.b16 %v4831
      %v4848 = vunpack.c.l.b16 %v4832
      %v4849 = vunpack.c.l.b16 %v4833
      %v4850 = vunpack.c.l.b16 %v4834
      %v4851 = vunpack.c.l.b16 %v4835
      %v4852 = vpack.c.b16 %v4845, %v4844
      %v4853 = vpack.c.b16 %v4847, %v4846
      %v4854 = vpack.c.b16 %v4849, %v4848
      %v4855 = vpack.c.b16 %v4851, %v4850
      %v4861 = vsel %vm3325, %v4827, 0
      %4863 = vmatprep.subr.bf16.mxu0 0
      %4864 = vmatpush1.bf16.msra.mxu0 %v4852
      %4865 = vmatprep.subr.bf16.mxu0 0
      %4866 = vmatpush1.bf16.msra.mxu0 %v4853
      %4867 = vmatprep.subr.bf16.mxu0 0
      %4868 = vmatpush1.bf16.msra.mxu0 %v4854
      %4869 = vmatprep.subr.bf16.mxu0 0
      %4870 = vmatpush1.bf16.msra.mxu0 %v4855
      %4871 = vmatprep.subr.bf16.mxu0 0
      %4872 = vmatpush1.bf16.msra.mxu0 0
      %4873 = vmatprep.subr.bf16.mxu0 0
      %4874 = vmatpush1.bf16.msra.mxu0 0
      %4875 = vmatprep.subr.bf16.mxu0 0
      %4876 = vmatpush1.bf16.msra.mxu0 0
      %4877 = vmatprep.subr.bf16.mxu0 0
      %4878 = vmatpush1.bf16.msra.mxu0 0
      %4879 = vmatprep.subr.bf16.mxu0 0
      %4880 = vmatpush1.bf16.msra.mxu0 0
      %4881 = vmatprep.subr.bf16.mxu0 0
      %4882 = vmatpush1.bf16.msra.mxu0 0
      %4883 = vmatprep.subr.bf16.mxu0 0
      %4884 = vmatpush1.bf16.msra.mxu0 0
      %4885 = vmatprep.subr.bf16.mxu0 0
      %4886 = vmatpush1.bf16.msra.mxu0 0
      %4887 = vmatprep.subr.bf16.mxu0 0
      %4888 = vmatpush1.bf16.msra.mxu0 0
      %4889 = vmatprep.subr.bf16.mxu0 0
      %4890 = vmatpush1.bf16.msra.mxu0 0
      %4891 = vmatprep.subr.bf16.mxu0 0
      %4892 = vmatpush1.bf16.msra.mxu0 0
      %4893 = vmatprep.subr.bf16.mxu0 0
      %4894 = vmatpush1.bf16.msra.mxu0 0
      %4895 = vmatprep.mubr.bf16.mxu0 0
      %4896 = vmatmul.mubr.bf16.gmra.mrb[0].mxu0 %v4861
      %v4897 = vpop.f32.mrb[0].mxu0
      %v4898 = vadd.f32 0.0, %v4897
      %v4899 = vpop.f32.mrb[0].mxu0
      %v4900 = vpop.f32.mrb[0].mxu0
      %v4901 = vadd.f32 0.0, %v4900
      %v4902 = vpop.f32.mrb[0].mxu0
      %4903 = vdwg.mxu0
      %s4904 = scalar_lea.vmem %s45, 32
      %v4905 = vld [vmem:[%s4904] sm:$0xf]
      %v4906 = vld [vmem:[%s4904 + $0x4] sm:$0xf]
      %v4907 = vld [vmem:[%s4904 + $0x8] sm:$0xf]
      %v4908 = vld [vmem:[%s4904 + $0xc] sm:$0xf]
      %v4909 = vld [vmem:[%s4904 + $0x10] sm:$0xf]
      %v4910 = vld [vmem:[%s4904 + $0x14] sm:$0xf]
      %v4911 = vld [vmem:[%s4904 + $0x18] sm:$0xf]
      %v4912 = vld [vmem:[%s4904 + $0x1c] sm:$0xf]
      %v4921 = vunpack.c.l.b16 %v4905
      %v4922 = vunpack.c.l.b16 %v4906
      %v4923 = vunpack.c.l.b16 %v4907
      %v4924 = vunpack.c.l.b16 %v4908
      %v4925 = vunpack.c.l.b16 %v4909
      %v4926 = vunpack.c.l.b16 %v4910
      %v4927 = vunpack.c.l.b16 %v4911
      %v4928 = vunpack.c.l.b16 %v4912
      %v4929 = vpack.c.b16 %v4922, %v4921
      %v4930 = vpack.c.b16 %v4924, %v4923
      %v4931 = vpack.c.b16 %v4926, %v4925
      %v4932 = vpack.c.b16 %v4928, %v4927
      %4937 = vmatprep.subr.bf16.mxu0 0
      %4938 = vmatpush1.bf16.msra.mxu0 %v4929
      %4939 = vmatprep.subr.bf16.mxu0 0
      %4940 = vmatpush1.bf16.msra.mxu0 %v4930
      %4941 = vmatprep.subr.bf16.mxu0 0
      %4942 = vmatpush1.bf16.msra.mxu0 %v4931
      %4943 = vmatprep.subr.bf16.mxu0 0
      %4944 = vmatpush1.bf16.msra.mxu0 %v4932
      %4945 = vmatprep.subr.bf16.mxu0 0
      %4946 = vmatpush1.bf16.msra.mxu0 0
      %4947 = vmatprep.subr.bf16.mxu0 0
      %4948 = vmatpush1.bf16.msra.mxu0 0
      %4949 = vmatprep.subr.bf16.mxu0 0
      %4950 = vmatpush1.bf16.msra.mxu0 0
      %4951 = vmatprep.subr.bf16.mxu0 0
      %4952 = vmatpush1.bf16.msra.mxu0 0
      %4953 = vmatprep.subr.bf16.mxu0 0
      %4954 = vmatpush1.bf16.msra.mxu0 0
      %4955 = vmatprep.subr.bf16.mxu0 0
      %4956 = vmatpush1.bf16.msra.mxu0 0
      %4957 = vmatprep.subr.bf16.mxu0 0
      %4958 = vmatpush1.bf16.msra.mxu0 0
      %4959 = vmatprep.subr.bf16.mxu0 0
      %4960 = vmatpush1.bf16.msra.mxu0 0
      %4961 = vmatprep.subr.bf16.mxu0 0
      %4962 = vmatpush1.bf16.msra.mxu0 0
      %4963 = vmatprep.subr.bf16.mxu0 0
      %4964 = vmatpush1.bf16.msra.mxu0 0
      %4965 = vmatprep.subr.bf16.mxu0 0
      %4966 = vmatpush1.bf16.msra.mxu0 0
      %4967 = vmatprep.subr.bf16.mxu0 0
      %4968 = vmatpush1.bf16.msra.mxu0 0
      %4969 = vmatprep.mubr.bf16.mxu0 0
      %4970 = vmatmul.mubr.bf16.gmra.mrb[0].mxu0 %v4861
      %v4971 = vpop.f32.mrb[0].mxu0
      %v4972 = vadd.f32 0.0, %v4971
      %v4973 = vpop.f32.mrb[0].mxu0
      %v4974 = vpop.f32.mrb[0].mxu0
      %v4975 = vadd.f32 0.0, %v4974
      %v4976 = vpop.f32.mrb[0].mxu0
      %4977 = vdwg.mxu0
      %s4978 = scalar_lea.vmem %s45, 64
      %v4979 = vld [vmem:[%s4978] sm:$0xf]
      %v4980 = vld [vmem:[%s4978 + $0x4] sm:$0xf]
      %v4981 = vld [vmem:[%s4978 + $0x8] sm:$0xf]
      %v4982 = vld [vmem:[%s4978 + $0xc] sm:$0xf]
      %v4983 = vld [vmem:[%s4978 + $0x10] sm:$0xf]
      %v4984 = vld [vmem:[%s4978 + $0x14] sm:$0xf]
      %v4985 = vld [vmem:[%s4978 + $0x18] sm:$0xf]
      %v4986 = vld [vmem:[%s4978 + $0x1c] sm:$0xf]
      %v4995 = vunpack.c.l.b16 %v4979
      %v4996 = vunpack.c.l.b16 %v4980
      %v4997 = vunpack.c.l.b16 %v4981
      %v4998 = vunpack.c.l.b16 %v4982
      %v4999 = vunpack.c.l.b16 %v4983
      %v5000 = vunpack.c.l.b16 %v4984
      %v5001 = vunpack.c.l.b16 %v4985
      %v5002 = vunpack.c.l.b16 %v4986
      %v5003 = vpack.c.b16 %v4996, %v4995
      %v5004 = vpack.c.b16 %v4998, %v4997
      %v5005 = vpack.c.b16 %v5000, %v4999
      %v5006 = vpack.c.b16 %v5002, %v5001
      %5011 = vmatprep.subr.bf16.mxu0 0
      %5012 = vmatpush1.bf16.msra.mxu0 %v5003
      %5013 = vmatprep.subr.bf16.mxu0 0
      %5014 = vmatpush1.bf16.msra.mxu0 %v5004
      %5015 = vmatprep.subr.bf16.mxu0 0
      %5016 = vmatpush1.bf16.msra.mxu0 %v5005
      %5017 = vmatprep.subr.bf16.mxu0 0
      %5018 = vmatpush1.bf16.msra.mxu0 %v5006
      %5019 = vmatprep.subr.bf16.mxu0 0
      %5020 = vmatpush1.bf16.msra.mxu0 0
      %5021 = vmatprep.subr.bf16.mxu0 0
      %5022 = vmatpush1.bf16.msra.mxu0 0
      %5023 = vmatprep.subr.bf16.mxu0 0
      %5024 = vmatpush1.bf16.msra.mxu0 0
      %5025 = vmatprep.subr.bf16.mxu0 0
      %5026 = vmatpush1.bf16.msra.mxu0 0
      %5027 = vmatprep.subr.bf16.mxu0 0
      %5028 = vmatpush1.bf16.msra.mxu0 0
      %5029 = vmatprep.subr.bf16.mxu0 0
      %5030 = vmatpush1.bf16.msra.mxu0 0
      %5031 = vmatprep.subr.bf16.mxu0 0
      %5032 = vmatpush1.bf16.msra.mxu0 0
      %5033 = vmatprep.subr.bf16.mxu0 0
      %5034 = vmatpush1.bf16.msra.mxu0 0
      %5035 = vmatprep.subr.bf16.mxu0 0
      %5036 = vmatpush1.bf16.msra.mxu0 0
      %5037 = vmatprep.subr.bf16.mxu0 0
      %5038 = vmatpush1.bf16.msra.mxu0 0
      %5039 = vmatprep.subr.bf16.mxu0 0
      %5040 = vmatpush1.bf16.msra.mxu0 0
      %5041 = vmatprep.subr.bf16.mxu0 0
      %5042 = vmatpush1.bf16.msra.mxu0 0
      %5043 = vmatprep.mubr.bf16.mxu0 0
      %5044 = vmatmul.mubr.bf16.gmra.mrb[0].mxu0 %v4861
      %v5045 = vpop.f32.mrb[0].mxu0
      %v5046 = vadd.f32 0.0, %v5045
      %v5047 = vpop.f32.mrb[0].mxu0
      %v5048 = vpop.f32.mrb[0].mxu0
      %v5049 = vadd.f32 0.0, %v5048
      %v5050 = vpop.f32.mrb[0].mxu0
      %5051 = vdwg.mxu0
      %s5052 = scalar_lea.vmem %s45, 96
      %v5053 = vld [vmem:[%s5052] sm:$0xf]
      %v5054 = vld [vmem:[%s5052 + $0x4] sm:$0xf]
      %v5055 = vld [vmem:[%s5052 + $0x8] sm:$0xf]
      %v5056 = vld [vmem:[%s5052 + $0xc] sm:$0xf]
      %v5057 = vld [vmem:[%s5052 + $0x10] sm:$0xf]
      %v5058 = vld [vmem:[%s5052 + $0x14] sm:$0xf]
      %v5059 = vld [vmem:[%s5052 + $0x18] sm:$0xf]
      %v5060 = vld [vmem:[%s5052 + $0x1c] sm:$0xf]
      %v5069 = vunpack.c.l.b16 %v5053
      %v5070 = vunpack.c.l.b16 %v5054
      %v5071 = vunpack.c.l.b16 %v5055
      %v5072 = vunpack.c.l.b16 %v5056
      %v5073 = vunpack.c.l.b16 %v5057
      %v5074 = vunpack.c.l.b16 %v5058
      %v5075 = vunpack.c.l.b16 %v5059
      %v5076 = vunpack.c.l.b16 %v5060
      %v5077 = vpack.c.b16 %v5070, %v5069
      %v5078 = vpack.c.b16 %v5072, %v5071
      %v5079 = vpack.c.b16 %v5074, %v5073
      %v5080 = vpack.c.b16 %v5076, %v5075
      %5085 = vmatprep.subr.bf16.mxu0 0
      %5086 = vmatpush1.bf16.msra.mxu0 %v5077
      %5087 = vmatprep.subr.bf16.mxu0 0
      %5088 = vmatpush1.bf16.msra.mxu0 %v5078
      %5089 = vmatprep.subr.bf16.mxu0 0
      %5090 = vmatpush1.bf16.msra.mxu0 %v5079
      %5091 = vmatprep.subr.bf16.mxu0 0
      %5092 = vmatpush1.bf16.msra.mxu0 %v5080
      %5093 = vmatprep.subr.bf16.mxu0 0
      %5094 = vmatpush1.bf16.msra.mxu0 0
      %5095 = vmatprep.subr.bf16.mxu0 0
      %5096 = vmatpush1.bf16.msra.mxu0 0
      %5097 = vmatprep.subr.bf16.mxu0 0
      %5098 = vmatpush1.bf16.msra.mxu0 0
      %5099 = vmatprep.subr.bf16.mxu0 0
      %5100 = vmatpush1.bf16.msra.mxu0 0
      %5101 = vmatprep.subr.bf16.mxu0 0
      %5102 = vmatpush1.bf16.msra.mxu0 0
      %5103 = vmatprep.subr.bf16.mxu0 0
      %5104 = vmatpush1.bf16.msra.mxu0 0
      %5105 = vmatprep.subr.bf16.mxu0 0
      %5106 = vmatpush1.bf16.msra.mxu0 0
      %5107 = vmatprep.subr.bf16.mxu0 0
      %5108 = vmatpush1.bf16.msra.mxu0 0
      %5109 = vmatprep.subr.bf16.mxu0 0
      %5110 = vmatpush1.bf16.msra.mxu0 0
      %5111 = vmatprep.subr.bf16.mxu0 0
      %5112 = vmatpush1.bf16.msra.mxu0 0
      %5113 = vmatprep.subr.bf16.mxu0 0
      %5114 = vmatpush1.bf16.msra.mxu0 0
      %5115 = vmatprep.subr.bf16.mxu0 0
      %5116 = vmatpush1.bf16.msra.mxu0 0
      %5117 = vmatprep.mubr.bf16.mxu0 0
      %5118 = vmatmul.mubr.bf16.gmra.mrb[0].mxu0 %v4861
      %v5119 = vpop.f32.mrb[0].mxu0
      %v5120 = vadd.f32 0.0, %v5119
      %v5121 = vpop.f32.mrb[0].mxu0
      %v5122 = vpop.f32.mrb[0].mxu0
      %v5123 = vadd.f32 0.0, %v5122
      %v5124 = vpop.f32.mrb[0].mxu0
      %5125 = vdwg.mxu0
      %v5126 = vpack.c.bf16 %v4901, %v4898
      %v5127 = vpack.c.bf16 %v4975, %v4972
      %v5128 = vpack.c.bf16 %v5049, %v5046
      %v5129 = vpack.c.bf16 %v5123, %v5120
      %v5130 = vld [vmem:[%s49] sm:$0xf]
      %v5131 = vld [vmem:[%s49 + $0x4] sm:$0xf]
      %v5132 = vld [vmem:[%s49 + $0x8] sm:$0xf]
      %v5133 = vld [vmem:[%s49 + $0xc] sm:$0xf]
      %v5134 = vld [vmem:[%s47] sm:$0x1]
      %v5136 = vlaneseq
      %v5137 = vshrl.u32 %v5136, 7
      %v5138 = vsub.s32 0, %v5137
      %v5139 = vrot.slane %v5134, %v5138
      %v5145 = vunpack.c.l.b16 %v5130
      %v5146 = vunpack.c.l.b16 %v5131
      %v5147 = vunpack.c.l.b16 %v5132
      %v5148 = vunpack.c.l.b16 %v5133
      %v5149 = vpack.c.b16 %v5146, %v5145
      %v5150 = vpack.c.b16 %v5148, %v5147
      %v5152 = vsel %vm3325, %v5149, 0
      %v5155 = vsel %vm3325, %v5150, 0
      %5157 = vmatprep.subr.bf16.mxu0 0
      %5158 = vmatpush1.bf16.msra.mxu0 %v5126
      %5159 = vmatprep.subr.bf16.mxu0 0
      %5160 = vmatpush1.bf16.msra.mxu0 %v5127
      %5161 = vmatprep.subr.bf16.mxu0 0
      %5162 = vmatpush1.bf16.msra.mxu0 %v5128
      %5163 = vmatprep.subr.bf16.mxu0 0
      %5164 = vmatpush1.bf16.msra.mxu0 %v5129
      %5165 = vmatprep.subr.bf16.mxu0 0
      %5166 = vmatpush1.bf16.msra.mxu0 0
      %5167 = vmatprep.subr.bf16.mxu0 0
      %5168 = vmatpush1.bf16.msra.mxu0 0
      %5169 = vmatprep.subr.bf16.mxu0 0
      %5170 = vmatpush1.bf16.msra.mxu0 0
      %5171 = vmatprep.subr.bf16.mxu0 0
      %5172 = vmatpush1.bf16.msra.mxu0 0
      %5173 = vmatprep.subr.bf16.mxu0 0
      %5174 = vmatpush1.bf16.msra.mxu0 0
      %5175 = vmatprep.subr.bf16.mxu0 0
      %5176 = vmatpush1.bf16.msra.mxu0 0
      %5177 = vmatprep.subr.bf16.mxu0 0
      %5178 = vmatpush1.bf16.msra.mxu0 0
      %5179 = vmatprep.subr.bf16.mxu0 0
      %5180 = vmatpush1.bf16.msra.mxu0 0
      %5181 = vmatprep.subr.bf16.mxu0 0
      %5182 = vmatpush1.bf16.msra.mxu0 0
      %5183 = vmatprep.subr.bf16.mxu0 0
      %5184 = vmatpush1.bf16.msra.mxu0 0
      %5185 = vmatprep.subr.bf16.mxu0 0
      %5186 = vmatpush1.bf16.msra.mxu0 0
      %5187 = vmatprep.subr.bf16.mxu0 0
      %5188 = vmatpush1.bf16.msra.mxu0 0
      %5189 = vmatprep.mubr.bf16.mxu0 0
      %5190 = vmatmul.mubr.bf16.gmra.mrb[0].mxu0 %v5152
      %v5191 = vpop.f32.mrb[0].mxu0
      %v5192 = vadd.f32 %v5139, %v5191
      %v5193 = vpop.f32.mrb[0].mxu0
      %v5194 = vpop.f32.mrb[0].mxu0
      %v5195 = vadd.f32 %v5139, %v5194
      %v5196 = vpop.f32.mrb[0].mxu0
      %5197 = vmatprep.mubr.bf16.mxu0 0
      %5198 = vmatmul.mubr.bf16.gmra.mrb[0].mxu0 %v5155
      %v5199 = vpop.f32.mrb[0].mxu0
      %v5200 = vadd.f32 %v5139, %v5199
      %v5201 = vpop.f32.mrb[0].mxu0
      %v5202 = vpop.f32.mrb[0].mxu0
      %v5203 = vadd.f32 %v5139, %v5202
      %v5204 = vpop.f32.mrb[0].mxu0
      %5205 = vdwg.mxu0
      %v5206 = vmax.f32 %v5192, 0.0
      %v5207 = vmax.f32 %v5195, 0.0
      %v5208 = vmax.f32 %v5200, 0.0
      %v5209 = vmax.f32 %v5203, 0.0
      %v5210 = vpack.c.bf16 %v5207, %v5206
      %v5211 = vpack.c.bf16 %v5209, %v5208
      %v5212 = vld [vmem:[%s51] sm:$0xf]
      %v5213 = vld [vmem:[%s51 + $0x4] sm:$0xf]
      %v5214 = vld [vmem:[%s51 + $0x8] sm:$0xf]
      %v5215 = vld [vmem:[%s51 + $0xc] sm:$0xf]
      %v5220 = vunpack.c.l.b16 %v5212
      %v5221 = vunpack.c.l.b16 %v5213
      %v5222 = vunpack.c.l.b16 %v5214
      %v5223 = vunpack.c.l.b16 %v5215
      %v5224 = vpack.c.b16 %v5221, %v5220
      %v5225 = vpack.c.b16 %v5223, %v5222
      %v5229 = vsel %vm2972, %v5210, 0
      %v5232 = vsel %vm2972, %v5211, 0
      %5234 = vmatprep.subr.bf16.mxu0 0
      %5235 = vmatpush1.bf16.msra.mxu0 %v5224
      %5236 = vmatprep.subr.bf16.mxu0 0
      %5237 = vmatpush1.bf16.msra.mxu0 %v5225
      %5238 = vmatprep.subr.bf16.mxu0 0
      %5239 = vmatpush1.bf16.msra.mxu0 0
      %5240 = vmatprep.subr.bf16.mxu0 0
      %5241 = vmatpush1.bf16.msra.mxu0 0
      %5242 = vmatprep.subr.bf16.mxu0 0
      %5243 = vmatpush1.bf16.msra.mxu0 0
      %5244 = vmatprep.subr.bf16.mxu0 0
      %5245 = vmatpush1.bf16.msra.mxu0 0
      %5246 = vmatprep.subr.bf16.mxu0 0
      %5247 = vmatpush1.bf16.msra.mxu0 0
      %5248 = vmatprep.subr.bf16.mxu0 0
      %5249 = vmatpush1.bf16.msra.mxu0 0
      %5250 = vmatprep.subr.bf16.mxu0 0
      %5251 = vmatpush1.bf16.msra.mxu0 0
      %5252 = vmatprep.subr.bf16.mxu0 0
      %5253 = vmatpush1.bf16.msra.mxu0 0
      %5254 = vmatprep.subr.bf16.mxu0 0
      %5255 = vmatpush1.bf16.msra.mxu0 0
      %5256 = vmatprep.subr.bf16.mxu0 0
      %5257 = vmatpush1.bf16.msra.mxu0 0
      %5258 = vmatprep.subr.bf16.mxu0 0
      %5259 = vmatpush1.bf16.msra.mxu0 0
      %5260 = vmatprep.subr.bf16.mxu0 0
      %5261 = vmatpush1.bf16.msra.mxu0 0
      %5262 = vmatprep.subr.bf16.mxu0 0
      %5263 = vmatpush1.bf16.msra.mxu0 0
      %5264 = vmatprep.subr.bf16.mxu0 0
      %5265 = vmatpush1.bf16.msra.mxu0 0
      %5266 = vmatprep.mubr.bf16.mxu0 0
      %5267 = vmatmul.mubr.bf16.gmra.mrb[0].mxu0 %v5229
      %v5268 = vpop.f32.mrb[0].mxu0
      %v5269 = vadd.f32 0.0, %v5268
      %v5270 = vpop.f32.mrb[0].mxu0
      %v5271 = vpop.f32.mrb[0].mxu0
      %v5272 = vadd.f32 0.0, %v5271
      %v5273 = vpop.f32.mrb[0].mxu0
      %5274 = vmatprep.mubr.bf16.mxu0 0
      %5275 = vmatmul.mubr.bf16.gmra.mrb[0].mxu0 %v5232
      %v5276 = vpop.f32.mrb[0].mxu0
      %v5277 = vadd.f32 0.0, %v5276
      %v5278 = vpop.f32.mrb[0].mxu0
      %v5279 = vpop.f32.mrb[0].mxu0
      %v5280 = vadd.f32 0.0, %v5279
      %v5281 = vpop.f32.mrb[0].mxu0
      %5282 = vdwg.mxu0
      %s5283 = scalar_lea.vmem %s51, 16
      %v5284 = vld [vmem:[%s5283] sm:$0xf]
      %v5285 = vld [vmem:[%s5283 + $0x4] sm:$0xf]
      %v5286 = vld [vmem:[%s5283 + $0x8] sm:$0xf]
      %v5287 = vld [vmem:[%s5283 + $0xc] sm:$0xf]
      %v5292 = vunpack.c.l.b16 %v5284
      %v5293 = vunpack.c.l.b16 %v5285
      %v5294 = vunpack.c.l.b16 %v5286
      %v5295 = vunpack.c.l.b16 %v5287
      %v5296 = vpack.c.b16 %v5293, %v5292
      %v5297 = vpack.c.b16 %v5295, %v5294
      %5300 = vmatprep.subr.bf16.mxu0 0
      %5301 = vmatpush1.bf16.msra.mxu0 %v5296
      %5302 = vmatprep.subr.bf16.mxu0 0
      %5303 = vmatpush1.bf16.msra.mxu0 %v5297
      %5304 = vmatprep.subr.bf16.mxu0 0
      %5305 = vmatpush1.bf16.msra.mxu0 0
      %5306 = vmatprep.subr.bf16.mxu0 0
      %5307 = vmatpush1.bf16.msra.mxu0 0
      %5308 = vmatprep.subr.bf16.mxu0 0
      %5309 = vmatpush1.bf16.msra.mxu0 0
      %5310 = vmatprep.subr.bf16.mxu0 0
      %5311 = vmatpush1.bf16.msra.mxu0 0
      %5312 = vmatprep.subr.bf16.mxu0 0
      %5313 = vmatpush1.bf16.msra.mxu0 0
      %5314 = vmatprep.subr.bf16.mxu0 0
      %5315 = vmatpush1.bf16.msra.mxu0 0
      %5316 = vmatprep.subr.bf16.mxu0 0
      %5317 = vmatpush1.bf16.msra.mxu0 0
      %5318 = vmatprep.subr.bf16.mxu0 0
      %5319 = vmatpush1.bf16.msra.mxu0 0
      %5320 = vmatprep.subr.bf16.mxu0 0
      %5321 = vmatpush1.bf16.msra.mxu0 0
      %5322 = vmatprep.subr.bf16.mxu0 0
      %5323 = vmatpush1.bf16.msra.mxu0 0
      %5324 = vmatprep.subr.bf16.mxu0 0
      %5325 = vmatpush1.bf16.msra.mxu0 0
      %5326 = vmatprep.subr.bf16.mxu0 0
      %5327 = vmatpush1.bf16.msra.mxu0 0
      %5328 = vmatprep.subr.bf16.mxu0 0
      %5329 = vmatpush1.bf16.msra.mxu0 0
      %5330 = vmatprep.subr.bf16.mxu0 0
      %5331 = vmatpush1.bf16.msra.mxu0 0
      %5332 = vmatprep.mubr.bf16.mxu0 0
      %5333 = vmatmul.mubr.bf16.gmra.mrb[0].mxu0 %v5229
      %v5334 = vpop.f32.mrb[0].mxu0
      %v5335 = vadd.f32 0.0, %v5334
      %v5336 = vpop.f32.mrb[0].mxu0
      %v5337 = vpop.f32.mrb[0].mxu0
      %v5338 = vadd.f32 0.0, %v5337
      %v5339 = vpop.f32.mrb[0].mxu0
      %5340 = vmatprep.mubr.bf16.mxu0 0
      %5341 = vmatmul.mubr.bf16.gmra.mrb[0].mxu0 %v5232
      %v5342 = vpop.f32.mrb[0].mxu0
      %v5343 = vadd.f32 0.0, %v5342
      %v5344 = vpop.f32.mrb[0].mxu0
      %v5345 = vpop.f32.mrb[0].mxu0
      %v5346 = vadd.f32 0.0, %v5345
      %v5347 = vpop.f32.mrb[0].mxu0
      %5348 = vdwg.mxu0
      %s5349 = scalar_lea.vmem %s51, 32
      %v5350 = vld [vmem:[%s5349] sm:$0xf]
      %v5351 = vld [vmem:[%s5349 + $0x4] sm:$0xf]
      %v5352 = vld [vmem:[%s5349 + $0x8] sm:$0xf]
      %v5353 = vld [vmem:[%s5349 + $0xc] sm:$0xf]
      %v5358 = vunpack.c.l.b16 %v5350
      %v5359 = vunpack.c.l.b16 %v5351
      %v5360 = vunpack.c.l.b16 %v5352
      %v5361 = vunpack.c.l.b16 %v5353
      %v5362 = vpack.c.b16 %v5359, %v5358
      %v5363 = vpack.c.b16 %v5361, %v5360
      %5366 = vmatprep.subr.bf16.mxu0 0
      %5367 = vmatpush1.bf16.msra.mxu0 %v5362
      %5368 = vmatprep.subr.bf16.mxu0 0
      %5369 = vmatpush1.bf16.msra.mxu0 %v5363
      %5370 = vmatprep.subr.bf16.mxu0 0
      %5371 = vmatpush1.bf16.msra.mxu0 0
      %5372 = vmatprep.subr.bf16.mxu0 0
      %5373 = vmatpush1.bf16.msra.mxu0 0
      %5374 = vmatprep.subr.bf16.mxu0 0
      %5375 = vmatpush1.bf16.msra.mxu0 0
      %5376 = vmatprep.subr.bf16.mxu0 0
      %5377 = vmatpush1.bf16.msra.mxu0 0
      %5378 = vmatprep.subr.bf16.mxu0 0
      %5379 = vmatpush1.bf16.msra.mxu0 0
      %5380 = vmatprep.subr.bf16.mxu0 0
      %5381 = vmatpush1.bf16.msra.mxu0 0
      %5382 = vmatprep.subr.bf16.mxu0 0
      %5383 = vmatpush1.bf16.msra.mxu0 0
      %5384 = vmatprep.subr.bf16.mxu0 0
      %5385 = vmatpush1.bf16.msra.mxu0 0
      %5386 = vmatprep.subr.bf16.mxu0 0
      %5387 = vmatpush1.bf16.msra.mxu0 0
      %5388 = vmatprep.subr.bf16.mxu0 0
      %5389 = vmatpush1.bf16.msra.mxu0 0
      %5390 = vmatprep.subr.bf16.mxu0 0
      %5391 = vmatpush1.bf16.msra.mxu0 0
      %5392 = vmatprep.subr.bf16.mxu0 0
      %5393 = vmatpush1.bf16.msra.mxu0 0
      %5394 = vmatprep.subr.bf16.mxu0 0
      %5395 = vmatpush1.bf16.msra.mxu0 0
      %5396 = vmatprep.subr.bf16.mxu0 0
      %5397 = vmatpush1.bf16.msra.mxu0 0
      %5398 = vmatprep.mubr.bf16.mxu0 0
      %5399 = vmatmul.mubr.bf16.gmra.mrb[0].mxu0 %v5229
      %v5400 = vpop.f32.mrb[0].mxu0
      %v5401 = vadd.f32 0.0, %v5400
      %v5402 = vpop.f32.mrb[0].mxu0
      %v5403 = vpop.f32.mrb[0].mxu0
      %v5404 = vadd.f32 0.0, %v5403
      %v5405 = vpop.f32.mrb[0].mxu0
      %5406 = vmatprep.mubr.bf16.mxu0 0
      %5407 = vmatmul.mubr.bf16.gmra.mrb[0].mxu0 %v5232
      %v5408 = vpop.f32.mrb[0].mxu0
      %v5409 = vadd.f32 0.0, %v5408
      %v5410 = vpop.f32.mrb[0].mxu0
      %v5411 = vpop.f32.mrb[0].mxu0
      %v5412 = vadd.f32 0.0, %v5411
      %v5413 = vpop.f32.mrb[0].mxu0
      %5414 = vdwg.mxu0
      %s5415 = scalar_lea.vmem %s51, 48
      %v5416 = vld [vmem:[%s5415] sm:$0xf]
      %v5417 = vld [vmem:[%s5415 + $0x4] sm:$0xf]
      %v5418 = vld [vmem:[%s5415 + $0x8] sm:$0xf]
      %v5419 = vld [vmem:[%s5415 + $0xc] sm:$0xf]
      %v5424 = vunpack.c.l.b16 %v5416
      %v5425 = vunpack.c.l.b16 %v5417
      %v5426 = vunpack.c.l.b16 %v5418
      %v5427 = vunpack.c.l.b16 %v5419
      %v5428 = vpack.c.b16 %v5425, %v5424
      %v5429 = vpack.c.b16 %v5427, %v5426
      %5432 = vmatprep.subr.bf16.mxu0 0
      %5433 = vmatpush1.bf16.msra.mxu0 %v5428
      %5434 = vmatprep.subr.bf16.mxu0 0
      %5435 = vmatpush1.bf16.msra.mxu0 %v5429
      %5436 = vmatprep.subr.bf16.mxu0 0
      %5437 = vmatpush1.bf16.msra.mxu0 0
      %5438 = vmatprep.subr.bf16.mxu0 0
      %5439 = vmatpush1.bf16.msra.mxu0 0
      %5440 = vmatprep.subr.bf16.mxu0 0
      %5441 = vmatpush1.bf16.msra.mxu0 0
      %5442 = vmatprep.subr.bf16.mxu0 0
      %5443 = vmatpush1.bf16.msra.mxu0 0
      %5444 = vmatprep.subr.bf16.mxu0 0
      %5445 = vmatpush1.bf16.msra.mxu0 0
      %5446 = vmatprep.subr.bf16.mxu0 0
      %5447 = vmatpush1.bf16.msra.mxu0 0
      %5448 = vmatprep.subr.bf16.mxu0 0
      %5449 = vmatpush1.bf16.msra.mxu0 0
      %5450 = vmatprep.subr.bf16.mxu0 0
      %5451 = vmatpush1.bf16.msra.mxu0 0
      %5452 = vmatprep.subr.bf16.mxu0 0
      %5453 = vmatpush1.bf16.msra.mxu0 0
      %5454 = vmatprep.subr.bf16.mxu0 0
      %5455 = vmatpush1.bf16.msra.mxu0 0
      %5456 = vmatprep.subr.bf16.mxu0 0
      %5457 = vmatpush1.bf16.msra.mxu0 0
      %5458 = vmatprep.subr.bf16.mxu0 0
      %5459 = vmatpush1.bf16.msra.mxu0 0
      %5460 = vmatprep.subr.bf16.mxu0 0
      %5461 = vmatpush1.bf16.msra.mxu0 0
      %5462 = vmatprep.subr.bf16.mxu0 0
      %5463 = vmatpush1.bf16.msra.mxu0 0
      %5464 = vmatprep.mubr.bf16.mxu0 0
      %5465 = vmatmul.mubr.bf16.gmra.mrb[0].mxu0 %v5229
      %v5466 = vpop.f32.mrb[0].mxu0
      %v5467 = vadd.f32 0.0, %v5466
      %v5468 = vpop.f32.mrb[0].mxu0
      %v5469 = vpop.f32.mrb[0].mxu0
      %v5470 = vadd.f32 0.0, %v5469
      %v5471 = vpop.f32.mrb[0].mxu0
      %5472 = vmatprep.mubr.bf16.mxu0 0
      %5473 = vmatmul.mubr.bf16.gmra.mrb[0].mxu0 %v5232
      %v5474 = vpop.f32.mrb[0].mxu0
      %v5475 = vadd.f32 0.0, %v5474
      %v5476 = vpop.f32.mrb[0].mxu0
      %v5477 = vpop.f32.mrb[0].mxu0
      %v5478 = vadd.f32 0.0, %v5477
      %v5479 = vpop.f32.mrb[0].mxu0
      %5480 = vdwg.mxu0
      %v5481 = vpack.c.bf16 %v5272, %v5269
      %v5482 = vpack.c.bf16 %v5280, %v5277
      %v5483 = vpack.c.bf16 %v5338, %v5335
      %v5484 = vpack.c.bf16 %v5346, %v5343
      %v5485 = vpack.c.bf16 %v5404, %v5401
      %v5486 = vpack.c.bf16 %v5412, %v5409
      %v5487 = vpack.c.bf16 %v5470, %v5467
      %v5488 = vpack.c.bf16 %v5478, %v5475
      %v5489 = vld [vmem:[%s55] sm:$0xf]
      %v5490 = vld [vmem:[%s55 + $0x4] sm:$0xf]
      %v5491 = vld [vmem:[%s55 + $0x8] sm:$0xf]
      %v5492 = vld [vmem:[%s55 + $0xc] sm:$0xf]
      %v5493 = vld [vmem:[%s55 + $0x10] sm:$0xf]
      %v5494 = vld [vmem:[%s55 + $0x14] sm:$0xf]
      %v5495 = vld [vmem:[%s55 + $0x18] sm:$0xf]
      %v5496 = vld [vmem:[%s55 + $0x1c] sm:$0xf]
      %v5497 = vld [vmem:[%s55 + $0x20] sm:$0xf]
      %v5498 = vld [vmem:[%s55 + $0x24] sm:$0xf]
      %v5499 = vld [vmem:[%s55 + $0x28] sm:$0xf]
      %v5500 = vld [vmem:[%s53] sm:$0x1]
      %v5502 = vlaneseq
      %v5503 = vshrl.u32 %v5502, 7
      %v5504 = vsub.s32 0, %v5503
      %v5505 = vrot.slane %v5500, %v5504
      %v5518 = vunpack.c.l.b16 %v5489
      %v5519 = vunpack.c.l.b16 %v5490
      %v5520 = vunpack.c.l.b16 %v5491
      %v5521 = vunpack.c.l.b16 %v5492
      %v5522 = vunpack.c.l.b16 %v5493
      %v5523 = vunpack.c.l.b16 %v5494
      %v5524 = vunpack.c.l.b16 %v5495
      %v5525 = vunpack.c.l.b16 %v5496
      %v5526 = vunpack.c.l.b16 %v5497
      %v5527 = vunpack.c.l.b16 %v5498
      %v5528 = vunpack.c.l.b16 %v5499
      %v5529 = vpack.c.b16 %v5519, %v5518
      %v5530 = vpack.c.b16 %v5521, %v5520
      %v5531 = vpack.c.b16 %v5523, %v5522
      %v5532 = vpack.c.b16 %v5525, %v5524
      %v5533 = vpack.c.b16 %v5527, %v5526
      %v5534 = vpack.c.b16 %v5528, %v5528
      %5541 = vmatprep.subr.bf16.mxu0 0
      %5542 = vmatpush1.bf16.msra.mxu0 %v5481
      %5543 = vmatprep.subr.bf16.mxu0 0
      %5544 = vmatpush1.bf16.msra.mxu0 %v5482
      %5545 = vmatprep.subr.bf16.mxu0 0
      %5546 = vmatpush1.bf16.msra.mxu0 %v5483
      %5547 = vmatprep.subr.bf16.mxu0 0
      %5548 = vmatpush1.bf16.msra.mxu0 %v5484
      %5549 = vmatprep.subr.bf16.mxu0 0
      %5550 = vmatpush1.bf16.msra.mxu0 %v5485
      %5551 = vmatprep.subr.bf16.mxu0 0
      %5552 = vmatpush1.bf16.msra.mxu0 %v5486
      %5553 = vmatprep.subr.bf16.mxu0 0
      %5554 = vmatpush1.bf16.msra.mxu0 %v5487
      %5555 = vmatprep.subr.bf16.mxu0 0
      %5556 = vmatpush1.bf16.msra.mxu0 %v5488
      %5557 = vmatprep.subr.bf16.mxu0 0
      %5558 = vmatpush1.bf16.msra.mxu0 0
      %5559 = vmatprep.subr.bf16.mxu0 0
      %5560 = vmatpush1.bf16.msra.mxu0 0
      %5561 = vmatprep.subr.bf16.mxu0 0
      %5562 = vmatpush1.bf16.msra.mxu0 0
      %5563 = vmatprep.subr.bf16.mxu0 0
      %5564 = vmatpush1.bf16.msra.mxu0 0
      %5565 = vmatprep.subr.bf16.mxu0 0
      %5566 = vmatpush1.bf16.msra.mxu0 0
      %5567 = vmatprep.subr.bf16.mxu0 0
      %5568 = vmatpush1.bf16.msra.mxu0 0
      %5569 = vmatprep.subr.bf16.mxu0 0
      %5570 = vmatpush1.bf16.msra.mxu0 0
      %5571 = vmatprep.subr.bf16.mxu0 0
      %5572 = vmatpush1.bf16.msra.mxu0 0
      %5573 = vmatprep.mubr.bf16.mxu0 0
      %5574 = vmatmul.mubr.bf16.gmra.mrb[0].mxu0 %v5529
      %v5575 = vpop.f32.mrb[0].mxu0
      %v5576 = vadd.f32 %v5505, %v5575
      %v5577 = vpop.f32.mrb[0].mxu0
      %v5578 = vpop.f32.mrb[0].mxu0
      %v5579 = vadd.f32 %v5505, %v5578
      %v5580 = vpop.f32.mrb[0].mxu0
      %5581 = vmatprep.mubr.bf16.mxu0 0
      %5582 = vmatmul.mubr.bf16.gmra.mrb[0].mxu0 %v5530
      %v5583 = vpop.f32.mrb[0].mxu0
      %v5584 = vadd.f32 %v5505, %v5583
      %v5585 = vpop.f32.mrb[0].mxu0
      %v5586 = vpop.f32.mrb[0].mxu0
      %v5587 = vadd.f32 %v5505, %v5586
      %v5588 = vpop.f32.mrb[0].mxu0
      %5589 = vmatprep.mubr.bf16.mxu0 0
      %5590 = vmatmul.mubr.bf16.gmra.mrb[0].mxu0 %v5531
      %v5591 = vpop.f32.mrb[0].mxu0
      %v5592 = vadd.f32 %v5505, %v5591
      %v5593 = vpop.f32.mrb[0].mxu0
      %v5594 = vpop.f32.mrb[0].mxu0
      %v5595 = vadd.f32 %v5505, %v5594
      %v5596 = vpop.f32.mrb[0].mxu0
      %5597 = vmatprep.mubr.bf16.mxu0 0
      %5598 = vmatmul.mubr.bf16.gmra.mrb[0].mxu0 %v5532
      %v5599 = vpop.f32.mrb[0].mxu0
      %v5600 = vadd.f32 %v5505, %v5599
      %v5601 = vpop.f32.mrb[0].mxu0
      %v5602 = vpop.f32.mrb[0].mxu0
      %v5603 = vadd.f32 %v5505, %v5602
      %v5604 = vpop.f32.mrb[0].mxu0
      %5605 = vmatprep.mubr.bf16.mxu0 0
      %5606 = vmatmul.mubr.bf16.gmra.mrb[0].mxu0 %v5533
      %v5607 = vpop.f32.mrb[0].mxu0
      %v5608 = vadd.f32 %v5505, %v5607
      %v5609 = vpop.f32.mrb[0].mxu0
      %v5610 = vpop.f32.mrb[0].mxu0
      %v5611 = vadd.f32 %v5505, %v5610
      %v5612 = vpop.f32.mrb[0].mxu0
      %5613 = vmatprep.mubr.bf16.mxu0 0
      %5614 = vmatmul.mubr.bf16.gmra.mrb[0].mxu0 %v5534
      %v5615 = vpop.f32.mrb[0].mxu0
      %v5616 = vadd.f32 %v5505, %v5615
      %v5617 = vpop.f32.mrb[0].mxu0
      %v5618 = vpop.f32.mrb[0].mxu0
      %v5619 = vpop.f32.mrb[0].mxu0
      %5620 = vdwg.mxu0
      %v5621 = vmax.f32 %v5576, 0.0
      %v5622 = vmax.f32 %v5579, 0.0
      %v5623 = vmax.f32 %v5584, 0.0
      %v5624 = vmax.f32 %v5587, 0.0
      %v5625 = vmax.f32 %v5592, 0.0
      %v5626 = vmax.f32 %v5595, 0.0
      %v5627 = vmax.f32 %v5600, 0.0
      %v5628 = vmax.f32 %v5603, 0.0
      %v5629 = vmax.f32 %v5608, 0.0
      %v5630 = vmax.f32 %v5611, 0.0
      %v5631 = vmax.f32 %v5616, 0.0
      %v5632 = vpack.c.bf16 %v5622, %v5621
      %v5633 = vpack.c.bf16 %v5624, %v5623
      %v5634 = vpack.c.bf16 %v5626, %v5625
      %v5635 = vpack.c.bf16 %v5628, %v5627
      %v5636 = vpack.c.bf16 %v5630, %v5629
      %v5637 = vpack.c.bf16 %v5631, %v5631
      %v5638 = vld [vmem:[%s57] sm:$0xf]
      %v5639 = vld [vmem:[%s57 + $0x4] sm:$0xf]
      %v5642 = vunpack.c.l.b16 %v5638
      %v5643 = vunpack.c.l.b16 %v5639
      %v5644 = vpack.c.b16 %v5643, %v5642
      %v5647 = vsel %vm2412, %v5632, 0
      %v5650 = vsel %vm2412, %v5633, 0
      %v5653 = vsel %vm2412, %v5634, 0
      %v5656 = vsel %vm2412, %v5635, 0
      %v5659 = vsel %vm2412, %v5636, 0
      %v5662 = vsel %vm2412, %v5637, 0
      %5664 = vmatprep.subr.bf16.mxu0 0
      %5665 = vmatpush1.bf16.msra.mxu0 %v5644
      %5666 = vmatprep.subr.bf16.mxu0 0
      %5667 = vmatpush1.bf16.msra.mxu0 0
      %5668 = vmatprep.subr.bf16.mxu0 0
      %5669 = vmatpush1.bf16.msra.mxu0 0
      %5670 = vmatprep.subr.bf16.mxu0 0
      %5671 = vmatpush1.bf16.msra.mxu0 0
      %5672 = vmatprep.subr.bf16.mxu0 0
      %5673 = vmatpush1.bf16.msra.mxu0 0
      %5674 = vmatprep.subr.bf16.mxu0 0
      %5675 = vmatpush1.bf16.msra.mxu0 0
      %5676 = vmatprep.subr.bf16.mxu0 0
      %5677 = vmatpush1.bf16.msra.mxu0 0
      %5678 = vmatprep.subr.bf16.mxu0 0
      %5679 = vmatpush1.bf16.msra.mxu0 0
      %5680 = vmatprep.subr.bf16.mxu0 0
      %5681 = vmatpush1.bf16.msra.mxu0 0
      %5682 = vmatprep.subr.bf16.mxu0 0
      %5683 = vmatpush1.bf16.msra.mxu0 0
      %5684 = vmatprep.subr.bf16.mxu0 0
      %5685 = vmatpush1.bf16.msra.mxu0 0
      %5686 = vmatprep.subr.bf16.mxu0 0
      %5687 = vmatpush1.bf16.msra.mxu0 0
      %5688 = vmatprep.subr.bf16.mxu0 0
      %5689 = vmatpush1.bf16.msra.mxu0 0
      %5690 = vmatprep.subr.bf16.mxu0 0
      %5691 = vmatpush1.bf16.msra.mxu0 0
      %5692 = vmatprep.subr.bf16.mxu0 0
      %5693 = vmatpush1.bf16.msra.mxu0 0
      %5694 = vmatprep.subr.bf16.mxu0 0
      %5695 = vmatpush1.bf16.msra.mxu0 0
      %5696 = vmatprep.mubr.bf16.mxu0 0
      %5697 = vmatmul.mubr.bf16.gmra.mrb[0].mxu0 %v5647
      %v5698 = vpop.f32.mrb[0].mxu0
      %v5699 = vadd.f32 0.0, %v5698
      %v5700 = vpop.f32.mrb[0].mxu0
      %v5701 = vpop.f32.mrb[0].mxu0
      %v5702 = vadd.f32 0.0, %v5701
      %v5703 = vpop.f32.mrb[0].mxu0
      %5704 = vmatprep.mubr.bf16.mxu0 0
      %5705 = vmatmul.mubr.bf16.gmra.mrb[0].mxu0 %v5650
      %v5706 = vpop.f32.mrb[0].mxu0
      %v5707 = vadd.f32 0.0, %v5706
      %v5708 = vpop.f32.mrb[0].mxu0
      %v5709 = vpop.f32.mrb[0].mxu0
      %v5710 = vadd.f32 0.0, %v5709
      %v5711 = vpop.f32.mrb[0].mxu0
      %5712 = vmatprep.mubr.bf16.mxu0 0
      %5713 = vmatmul.mubr.bf16.gmra.mrb[0].mxu0 %v5653
      %v5714 = vpop.f32.mrb[0].mxu0
      %v5715 = vadd.f32 0.0, %v5714
      %v5716 = vpop.f32.mrb[0].mxu0
      %v5717 = vpop.f32.mrb[0].mxu0
      %v5718 = vadd.f32 0.0, %v5717
      %v5719 = vpop.f32.mrb[0].mxu0
      %5720 = vmatprep.mubr.bf16.mxu0 0
      %5721 = vmatmul.mubr.bf16.gmra.mrb[0].mxu0 %v5656
      %v5722 = vpop.f32.mrb[0].mxu0
      %v5723 = vadd.f32 0.0, %v5722
      %v5724 = vpop.f32.mrb[0].mxu0
      %v5725 = vpop.f32.mrb[0].mxu0
      %v5726 = vadd.f32 0.0, %v5725
      %v5727 = vpop.f32.mrb[0].mxu0
      %5728 = vmatprep.mubr.bf16.mxu0 0
      %5729 = vmatmul.mubr.bf16.gmra.mrb[0].mxu0 %v5659
      %v5730 = vpop.f32.mrb[0].mxu0
      %v5731 = vadd.f32 0.0, %v5730
      %v5732 = vpop.f32.mrb[0].mxu0
      %v5733 = vpop.f32.mrb[0].mxu0
      %v5734 = vadd.f32 0.0, %v5733
      %v5735 = vpop.f32.mrb[0].mxu0
      %5736 = vmatprep.mubr.bf16.mxu0 0
      %5737 = vmatmul.mubr.bf16.gmra.mrb[0].mxu0 %v5662
      %v5738 = vpop.f32.mrb[0].mxu0
      %v5739 = vadd.f32 0.0, %v5738
      %v5740 = vpop.f32.mrb[0].mxu0
      %v5741 = vpop.f32.mrb[0].mxu0
      %v5742 = vpop.f32.mrb[0].mxu0
      %5743 = vdwg.mxu0
      %s5744 = scalar_lea.vmem %s57, 8
      %v5745 = vld [vmem:[%s5744] sm:$0xf]
      %v5746 = vld [vmem:[%s5744 + $0x4] sm:$0xf]
      %v5749 = vunpack.c.l.b16 %v5745
      %v5750 = vunpack.c.l.b16 %v5746
      %v5751 = vpack.c.b16 %v5750, %v5749
      %5753 = vmatprep.subr.bf16.mxu0 0
      %5754 = vmatpush1.bf16.msra.mxu0 %v5751
      %5755 = vmatprep.subr.bf16.mxu0 0
      %5756 = vmatpush1.bf16.msra.mxu0 0
      %5757 = vmatprep.subr.bf16.mxu0 0
      %5758 = vmatpush1.bf16.msra.mxu0 0
      %5759 = vmatprep.subr.bf16.mxu0 0
      %5760 = vmatpush1.bf16.msra.mxu0 0
      %5761 = vmatprep.subr.bf16.mxu0 0
      %5762 = vmatpush1.bf16.msra.mxu0 0
      %5763 = vmatprep.subr.bf16.mxu0 0
      %5764 = vmatpush1.bf16.msra.mxu0 0
      %5765 = vmatprep.subr.bf16.mxu0 0
      %5766 = vmatpush1.bf16.msra.mxu0 0
      %5767 = vmatprep.subr.bf16.mxu0 0
      %5768 = vmatpush1.bf16.msra.mxu0 0
      %5769 = vmatprep.subr.bf16.mxu0 0
      %5770 = vmatpush1.bf16.msra.mxu0 0
      %5771 = vmatprep.subr.bf16.mxu0 0
      %5772 = vmatpush1.bf16.msra.mxu0 0
      %5773 = vmatprep.subr.bf16.mxu0 0
      %5774 = vmatpush1.bf16.msra.mxu0 0
      %5775 = vmatprep.subr.bf16.mxu0 0
      %5776 = vmatpush1.bf16.msra.mxu0 0
      %5777 = vmatprep.subr.bf16.mxu0 0
      %5778 = vmatpush1.bf16.msra.mxu0 0
      %5779 = vmatprep.subr.bf16.mxu0 0
      %5780 = vmatpush1.bf16.msra.mxu0 0
      %5781 = vmatprep.subr.bf16.mxu0 0
      %5782 = vmatpush1.bf16.msra.mxu0 0
      %5783 = vmatprep.subr.bf16.mxu0 0
      %5784 = vmatpush1.bf16.msra.mxu0 0
      %5785 = vmatprep.mubr.bf16.mxu0 0
      %5786 = vmatmul.mubr.bf16.gmra.mrb[0].mxu0 %v5647
      %v5787 = vpop.f32.mrb[0].mxu0
      %v5788 = vadd.f32 0.0, %v5787
      %v5789 = vpop.f32.mrb[0].mxu0
      %v5790 = vpop.f32.mrb[0].mxu0
      %v5791 = vadd.f32 0.0, %v5790
      %v5792 = vpop.f32.mrb[0].mxu0
      %5793 = vmatprep.mubr.bf16.mxu0 0
      %5794 = vmatmul.mubr.bf16.gmra.mrb[0].mxu0 %v5650
      %v5795 = vpop.f32.mrb[0].mxu0
      %v5796 = vadd.f32 0.0, %v5795
      %v5797 = vpop.f32.mrb[0].mxu0
      %v5798 = vpop.f32.mrb[0].mxu0
      %v5799 = vadd.f32 0.0, %v5798
      %v5800 = vpop.f32.mrb[0].mxu0
      %5801 = vmatprep.mubr.bf16.mxu0 0
      %5802 = vmatmul.mubr.bf16.gmra.mrb[0].mxu0 %v5653
      %v5803 = vpop.f32.mrb[0].mxu0
      %v5804 = vadd.f32 0.0, %v5803
      %v5805 = vpop.f32.mrb[0].mxu0
      %v5806 = vpop.f32.mrb[0].mxu0
      %v5807 = vadd.f32 0.0, %v5806
      %v5808 = vpop.f32.mrb[0].mxu0
      %5809 = vmatprep.mubr.bf16.mxu0 0
      %5810 = vmatmul.mubr.bf16.gmra.mrb[0].mxu0 %v5656
      %v5811 = vpop.f32.mrb[0].mxu0
      %v5812 = vadd.f32 0.0, %v5811
      %v5813 = vpop.f32.mrb[0].mxu0
      %v5814 = vpop.f32.mrb[0].mxu0
      %v5815 = vadd.f32 0.0, %v5814
      %v5816 = vpop.f32.mrb[0].mxu0
      %5817 = vmatprep.mubr.bf16.mxu0 0
      %5818 = vmatmul.mubr.bf16.gmra.mrb[0].mxu0 %v5659
      %v5819 = vpop.f32.mrb[0].mxu0
      %v5820 = vadd.f32 0.0, %v5819
      %v5821 = vpop.f32.mrb[0].mxu0
      %v5822 = vpop.f32.mrb[0].mxu0
      %v5823 = vadd.f32 0.0, %v5822
      %v5824 = vpop.f32.mrb[0].mxu0
      %5825 = vmatprep.mubr.bf16.mxu0 0
      %5826 = vmatmul.mubr.bf16.gmra.mrb[0].mxu0 %v5662
      %v5827 = vpop.f32.mrb[0].mxu0
      %v5828 = vadd.f32 0.0, %v5827
      %v5829 = vpop.f32.mrb[0].mxu0
      %v5830 = vpop.f32.mrb[0].mxu0
      %v5831 = vpop.f32.mrb[0].mxu0
      %5832 = vdwg.mxu0
      %s5833 = scalar_lea.vmem %s57, 16
      %v5834 = vld [vmem:[%s5833] sm:$0xf]
      %v5835 = vld [vmem:[%s5833 + $0x4] sm:$0xf]
      %v5838 = vunpack.c.l.b16 %v5834
      %v5839 = vunpack.c.l.b16 %v5835
      %v5840 = vpack.c.b16 %v5839, %v5838
      %5842 = vmatprep.subr.bf16.mxu0 0
      %5843 = vmatpush1.bf16.msra.mxu0 %v5840
      %5844 = vmatprep.subr.bf16.mxu0 0
      %5845 = vmatpush1.bf16.msra.mxu0 0
      %5846 = vmatprep.subr.bf16.mxu0 0
      %5847 = vmatpush1.bf16.msra.mxu0 0
      %5848 = vmatprep.subr.bf16.mxu0 0
      %5849 = vmatpush1.bf16.msra.mxu0 0
      %5850 = vmatprep.subr.bf16.mxu0 0
      %5851 = vmatpush1.bf16.msra.mxu0 0
      %5852 = vmatprep.subr.bf16.mxu0 0
      %5853 = vmatpush1.bf16.msra.mxu0 0
      %5854 = vmatprep.subr.bf16.mxu0 0
      %5855 = vmatpush1.bf16.msra.mxu0 0
      %5856 = vmatprep.subr.bf16.mxu0 0
      %5857 = vmatpush1.bf16.msra.mxu0 0
      %5858 = vmatprep.subr.bf16.mxu0 0
      %5859 = vmatpush1.bf16.msra.mxu0 0
      %5860 = vmatprep.subr.bf16.mxu0 0
      %5861 = vmatpush1.bf16.msra.mxu0 0
      %5862 = vmatprep.subr.bf16.mxu0 0
      %5863 = vmatpush1.bf16.msra.mxu0 0
      %5864 = vmatprep.subr.bf16.mxu0 0
      %5865 = vmatpush1.bf16.msra.mxu0 0
      %5866 = vmatprep.subr.bf16.mxu0 0
      %5867 = vmatpush1.bf16.msra.mxu0 0
      %5868 = vmatprep.subr.bf16.mxu0 0
      %5869 = vmatpush1.bf16.msra.mxu0 0
      %5870 = vmatprep.subr.bf16.mxu0 0
      %5871 = vmatpush1.bf16.msra.mxu0 0
      %5872 = vmatprep.subr.bf16.mxu0 0
      %5873 = vmatpush1.bf16.msra.mxu0 0
      %5874 = vmatprep.mubr.bf16.mxu0 0
      %5875 = vmatmul.mubr.bf16.gmra.mrb[0].mxu0 %v5647
      %v5876 = vpop.f32.mrb[0].mxu0
      %v5877 = vadd.f32 0.0, %v5876
      %v5878 = vpop.f32.mrb[0].mxu0
      %v5879 = vpop.f32.mrb[0].mxu0
      %v5880 = vadd.f32 0.0, %v5879
      %v5881 = vpop.f32.mrb[0].mxu0
      %5882 = vmatprep.mubr.bf16.mxu0 0
      %5883 = vmatmul.mubr.bf16.gmra.mrb[0].mxu0 %v5650
      %v5884 = vpop.f32.mrb[0].mxu0
      %v5885 = vadd.f32 0.0, %v5884
      %v5886 = vpop.f32.mrb[0].mxu0
      %v5887 = vpop.f32.mrb[0].mxu0
      %v5888 = vadd.f32 0.0, %v5887
      %v5889 = vpop.f32.mrb[0].mxu0
      %5890 = vmatprep.mubr.bf16.mxu0 0
      %5891 = vmatmul.mubr.bf16.gmra.mrb[0].mxu0 %v5653
      %v5892 = vpop.f32.mrb[0].mxu0
      %v5893 = vadd.f32 0.0, %v5892
      %v5894 = vpop.f32.mrb[0].mxu0
      %v5895 = vpop.f32.mrb[0].mxu0
      %v5896 = vadd.f32 0.0, %v5895
      %v5897 = vpop.f32.mrb[0].mxu0
      %5898 = vmatprep.mubr.bf16.mxu0 0
      %5899 = vmatmul.mubr.bf16.gmra.mrb[0].mxu0 %v5656
      %v5900 = vpop.f32.mrb[0].mxu0
      %v5901 = vadd.f32 0.0, %v5900
      %v5902 = vpop.f32.mrb[0].mxu0
      %v5903 = vpop.f32.mrb[0].mxu0
      %v5904 = vadd.f32 0.0, %v5903
      %v5905 = vpop.f32.mrb[0].mxu0
      %5906 = vmatprep.mubr.bf16.mxu0 0
      %5907 = vmatmul.mubr.bf16.gmra.mrb[0].mxu0 %v5659
      %v5908 = vpop.f32.mrb[0].mxu0
      %v5909 = vadd.f32 0.0, %v5908
      %v5910 = vpop.f32.mrb[0].mxu0
      %v5911 = vpop.f32.mrb[0].mxu0
      %v5912 = vadd.f32 0.0, %v5911
      %v5913 = vpop.f32.mrb[0].mxu0
      %5914 = vmatprep.mubr.bf16.mxu0 0
      %5915 = vmatmul.mubr.bf16.gmra.mrb[0].mxu0 %v5662
      %v5916 = vpop.f32.mrb[0].mxu0
      %v5917 = vadd.f32 0.0, %v5916
      %v5918 = vpop.f32.mrb[0].mxu0
      %v5919 = vpop.f32.mrb[0].mxu0
      %v5920 = vpop.f32.mrb[0].mxu0
      %5921 = vdwg.mxu0
      %s5922 = scalar_lea.vmem %s57, 24
      %v5923 = vld [vmem:[%s5922] sm:$0xf]
      %v5924 = vld [vmem:[%s5922 + $0x4] sm:$0xf]
      %v5927 = vunpack.c.l.b16 %v5923
      %v5928 = vunpack.c.l.b16 %v5924
      %v5929 = vpack.c.b16 %v5928, %v5927
      %5931 = vmatprep.subr.bf16.mxu0 0
      %5932 = vmatpush1.bf16.msra.mxu0 %v5929
      %5933 = vmatprep.subr.bf16.mxu0 0
      %5934 = vmatpush1.bf16.msra.mxu0 0
      %5935 = vmatprep.subr.bf16.mxu0 0
      %5936 = vmatpush1.bf16.msra.mxu0 0
      %5937 = vmatprep.subr.bf16.mxu0 0
      %5938 = vmatpush1.bf16.msra.mxu0 0
      %5939 = vmatprep.subr.bf16.mxu0 0
      %5940 = vmatpush1.bf16.msra.mxu0 0
      %5941 = vmatprep.subr.bf16.mxu0 0
      %5942 = vmatpush1.bf16.msra.mxu0 0
      %5943 = vmatprep.subr.bf16.mxu0 0
      %5944 = vmatpush1.bf16.msra.mxu0 0
      %5945 = vmatprep.subr.bf16.mxu0 0
      %5946 = vmatpush1.bf16.msra.mxu0 0
      %5947 = vmatprep.subr.bf16.mxu0 0
      %5948 = vmatpush1.bf16.msra.mxu0 0
      %5949 = vmatprep.subr.bf16.mxu0 0
      %5950 = vmatpush1.bf16.msra.mxu0 0
      %5951 = vmatprep.subr.bf16.mxu0 0
      %5952 = vmatpush1.bf16.msra.mxu0 0
      %5953 = vmatprep.subr.bf16.mxu0 0
      %5954 = vmatpush1.bf16.msra.mxu0 0
      %5955 = vmatprep.subr.bf16.mxu0 0
      %5956 = vmatpush1.bf16.msra.mxu0 0
      %5957 = vmatprep.subr.bf16.mxu0 0
      %5958 = vmatpush1.bf16.msra.mxu0 0
      %5959 = vmatprep.subr.bf16.mxu0 0
      %5960 = vmatpush1.bf16.msra.mxu0 0
      %5961 = vmatprep.subr.bf16.mxu0 0
      %5962 = vmatpush1.bf16.msra.mxu0 0
      %5963 = vmatprep.mubr.bf16.mxu0 0
      %5964 = vmatmul.mubr.bf16.gmra.mrb[0].mxu0 %v5647
      %v5965 = vpop.f32.mrb[0].mxu0
      %v5966 = vadd.f32 0.0, %v5965
      %v5967 = vpop.f32.mrb[0].mxu0
      %v5968 = vpop.f32.mrb[0].mxu0
      %v5969 = vadd.f32 0.0, %v5968
      %v5970 = vpop.f32.mrb[0].mxu0
      %5971 = vmatprep.mubr.bf16.mxu0 0
      %5972 = vmatmul.mubr.bf16.gmra.mrb[0].mxu0 %v5650
      %v5973 = vpop.f32.mrb[0].mxu0
      %v5974 = vadd.f32 0.0, %v5973
      %v5975 = vpop.f32.mrb[0].mxu0
      %v5976 = vpop.f32.mrb[0].mxu0
      %v5977 = vadd.f32 0.0, %v5976
      %v5978 = vpop.f32.mrb[0].mxu0
      %5979 = vmatprep.mubr.bf16.mxu0 0
      %5980 = vmatmul.mubr.bf16.gmra.mrb[0].mxu0 %v5653
      %v5981 = vpop.f32.mrb[0].mxu0
      %v5982 = vadd.f32 0.0, %v5981
      %v5983 = vpop.f32.mrb[0].mxu0
      %v5984 = vpop.f32.mrb[0].mxu0
      %v5985 = vadd.f32 0.0, %v5984
      %v5986 = vpop.f32.mrb[0].mxu0
      %5987 = vmatprep.mubr.bf16.mxu0 0
      %5988 = vmatmul.mubr.bf16.gmra.mrb[0].mxu0 %v5656
      %v5989 = vpop.f32.mrb[0].mxu0
      %v5990 = vadd.f32 0.0, %v5989
      %v5991 = vpop.f32.mrb[0].mxu0
      %v5992 = vpop.f32.mrb[0].mxu0
      %v5993 = vadd.f32 0.0, %v5992
      %v5994 = vpop.f32.mrb[0].mxu0
      %5995 = vmatprep.mubr.bf16.mxu0 0
      %5996 = vmatmul.mubr.bf16.gmra.mrb[0].mxu0 %v5659
      %v5997 = vpop.f32.mrb[0].mxu0
      %v5998 = vadd.f32 0.0, %v5997
      %v5999 = vpop.f32.mrb[0].mxu0
      %v6000 = vpop.f32.mrb[0].mxu0
      %v6001 = vadd.f32 0.0, %v6000
      %v6002 = vpop.f32.mrb[0].mxu0
      %6003 = vmatprep.mubr.bf16.mxu0 0
      %6004 = vmatmul.mubr.bf16.gmra.mrb[0].mxu0 %v5662
      %v6005 = vpop.f32.mrb[0].mxu0
      %v6006 = vadd.f32 0.0, %v6005
      %v6007 = vpop.f32.mrb[0].mxu0
      %v6008 = vpop.f32.mrb[0].mxu0
      %v6009 = vpop.f32.mrb[0].mxu0
      %6010 = vdwg.mxu0
      %v6011 = vpack.c.bf16 %v5702, %v5699
      %v6012 = vpack.c.bf16 %v5710, %v5707
      %v6013 = vpack.c.bf16 %v5718, %v5715
      %v6014 = vpack.c.bf16 %v5726, %v5723
      %v6015 = vpack.c.bf16 %v5734, %v5731
      %v6016 = vpack.c.bf16 %v5788, %v5739
      %v6017 = vpack.c.bf16 %v5796, %v5791
      %v6018 = vpack.c.bf16 %v5804, %v5799
      %v6019 = vpack.c.bf16 %v5812, %v5807
      %v6020 = vpack.c.bf16 %v5820, %v5815
      %v6021 = vpack.c.bf16 %v5828, %v5823
      %v6022 = vpack.c.bf16 %v5880, %v5877
      %v6023 = vpack.c.bf16 %v5888, %v5885
      %v6024 = vpack.c.bf16 %v5896, %v5893
      %v6025 = vpack.c.bf16 %v5904, %v5901
      %v6026 = vpack.c.bf16 %v5912, %v5909
      %v6027 = vpack.c.bf16 %v5966, %v5917
      %v6028 = vpack.c.bf16 %v5974, %v5969
      %v6029 = vpack.c.bf16 %v5982, %v5977
      %v6030 = vpack.c.bf16 %v5990, %v5985
      %v6031 = vpack.c.bf16 %v5998, %v5993
      %v6032 = vpack.c.bf16 %v6006, %v6001
      %v6033 = vld [vmem:[%s61] sm:$0xff]
      %v6034 = vld [vmem:[%s61 + $0x8] sm:$0xf]
      %v6035 = vld [vmem:[%s61 + $0xc] sm:$0xff]
      %v6036 = vld [vmem:[%s61 + $0x14] sm:$0xf]
      %v6037 = vld [vmem:[%s61 + $0x18] sm:$0xff]
      %v6038 = vld [vmem:[%s61 + $0x20] sm:$0xf]
      %v6039 = vld [vmem:[%s61 + $0x24] sm:$0xff]
      %v6040 = vld [vmem:[%s61 + $0x2c] sm:$0xf]
      %v6041 = vld [vmem:[%s61 + $0x30] sm:$0xff]
      %v6042 = vld [vmem:[%s61 + $0x38] sm:$0xf]
      %v6043 = vld [vmem:[%s61 + $0x3c] sm:$0xff]
      %v6044 = vld [vmem:[%s61 + $0x44] sm:$0xf]
      %v6045 = vld [vmem:[%s61 + $0x48] sm:$0xff]
      %v6046 = vld [vmem:[%s61 + $0x50] sm:$0xf]
      %v6047 = vld [vmem:[%s61 + $0x54] sm:$0xff]
      %v6048 = vld [vmem:[%s61 + $0x5c] sm:$0xf]
      %v6049 = vld [vmem:[%s61 + $0x60] sm:$0xff]
      %v6050 = vld [vmem:[%s61 + $0x68] sm:$0xf]
      %v6051 = vld [vmem:[%s61 + $0x6c] sm:$0xff]
      %v6052 = vld [vmem:[%s61 + $0x74] sm:$0xf]
      %v6053 = vld [vmem:[%s61 + $0x78] sm:$0xff]
      %v6054 = vld [vmem:[%s61 + $0x80] sm:$0xf]
      %v6055 = vld [vmem:[%s61 + $0x84] sm:$0xff]
      %v6056 = vld [vmem:[%s61 + $0x8c] sm:$0xf]
      %v6057 = vld [vmem:[%s61 + $0x90] sm:$0xff]
      %v6058 = vld [vmem:[%s61 + $0x98] sm:$0xf]
      %v6059 = vld [vmem:[%s61 + $0x9c] sm:$0xff]
      %v6060 = vld [vmem:[%s61 + $0xa4] sm:$0xf]
      %v6061 = vld [vmem:[%s61 + $0xa8] sm:$0xff]
      %v6062 = vld [vmem:[%s61 + $0xb0] sm:$0xf]
      %v6063 = vld [vmem:[%s61 + $0xb4] sm:$0xff]
      %v6064 = vld [vmem:[%s61 + $0xbc] sm:$0xf]
      %v6065 = vld [vmem:[%s61 + $0xc0] sm:$0xff]
      %v6066 = vld [vmem:[%s61 + $0xc8] sm:$0xf]
      %v6067 = vld [vmem:[%s61 + $0xcc] sm:$0xff]
      %v6068 = vld [vmem:[%s61 + $0xd4] sm:$0xf]
      %v6069 = vld [vmem:[%s61 + $0xd8] sm:$0xff]
      %v6070 = vld [vmem:[%s61 + $0xe0] sm:$0xf]
      %v6071 = vld [vmem:[%s61 + $0xe4] sm:$0xff]
      %v6072 = vld [vmem:[%s61 + $0xec] sm:$0xf]
      %v6073 = vld [vmem:[%s61 + $0xf0] sm:$0xff]
      %v6074 = vld [vmem:[%s61 + $0xf8] sm:$0xf]
      %v6075 = vld [vmem:[%s61 + $0xfc] sm:$0xff]
      %v6076 = vld [vmem:[%s61 + $0x104] sm:$0xf]
      %v6077 = vld [vmem:[%s61 + $0x108] sm:$0xff]
      %v6078 = vld [vmem:[%s61 + $0x110] sm:$0xf]
      %v6079 = vld [vmem:[%s61 + $0x114] sm:$0xff]
      %v6080 = vld [vmem:[%s61 + $0x11c] sm:$0xf]
      %v6081 = vld [vmem:[%s61 + $0x120] sm:$0xff]
      %v6082 = vld [vmem:[%s61 + $0x128] sm:$0xf]
      %v6083 = vld [vmem:[%s61 + $0x12c] sm:$0xff]
      %v6084 = vld [vmem:[%s61 + $0x134] sm:$0xf]
      %v6085 = vld [vmem:[%s61 + $0x138] sm:$0xff]
      %v6086 = vld [vmem:[%s61 + $0x140] sm:$0xf]
      %v6087 = vld [vmem:[%s61 + $0x144] sm:$0xff]
      %v6088 = vld [vmem:[%s61 + $0x14c] sm:$0xf]
      %v6089 = vld [vmem:[%s61 + $0x150] sm:$0xff]
      %v6090 = vld [vmem:[%s61 + $0x158] sm:$0xf]
      %v6091 = vld [vmem:[%s61 + $0x15c] sm:$0xff]
      %v6092 = vld [vmem:[%s61 + $0x164] sm:$0xf]
      %v6093 = vld [vmem:[%s61 + $0x168] sm:$0xff]
      %v6094 = vld [vmem:[%s61 + $0x170] sm:$0xf]
      %v6095 = vld [vmem:[%s61 + $0x174] sm:$0xff]
      %v6096 = vld [vmem:[%s61 + $0x17c] sm:$0xf]
      %v6097 = vld [vmem:[%s59] sm:$0x1]
      %v6099 = vlaneseq
      %v6100 = vshrl.u32 %v6099, 7
      %v6101 = vsub.s32 0, %v6100
      %v6102 = vrot.slane %v6097, %v6101
      %v6168 = vunpack.c.l.b16 %v6033
      %v6169 = vunpack.c.h.b16 %v6033
      %v6170 = vunpack.c.l.b16 %v6034
      %v6171 = vunpack.c.l.b16 %v6035
      %v6172 = vunpack.c.h.b16 %v6035
      %v6173 = vunpack.c.l.b16 %v6036
      %v6174 = vunpack.c.l.b16 %v6037
      %v6175 = vunpack.c.h.b16 %v6037
      %v6176 = vunpack.c.l.b16 %v6038
      %v6177 = vunpack.c.l.b16 %v6039
      %v6178 = vunpack.c.h.b16 %v6039
      %v6179 = vunpack.c.l.b16 %v6040
      %v6180 = vunpack.c.l.b16 %v6041
      %v6181 = vunpack.c.h.b16 %v6041
      %v6182 = vunpack.c.l.b16 %v6042
      %v6183 = vunpack.c.l.b16 %v6043
      %v6184 = vunpack.c.h.b16 %v6043
      %v6185 = vunpack.c.l.b16 %v6044
      %v6186 = vunpack.c.l.b16 %v6045
      %v6187 = vunpack.c.h.b16 %v6045
      %v6188 = vunpack.c.l.b16 %v6046
      %v6189 = vunpack.c.l.b16 %v6047
      %v6190 = vunpack.c.h.b16 %v6047
      %v6191 = vunpack.c.l.b16 %v6048
      %v6192 = vunpack.c.l.b16 %v6049
      %v6193 = vunpack.c.h.b16 %v6049
      %v6194 = vunpack.c.l.b16 %v6050
      %v6195 = vunpack.c.l.b16 %v6051
      %v6196 = vunpack.c.h.b16 %v6051
      %v6197 = vunpack.c.l.b16 %v6052
      %v6198 = vunpack.c.l.b16 %v6053
      %v6199 = vunpack.c.h.b16 %v6053
      %v6200 = vunpack.c.l.b16 %v6054
      %v6201 = vunpack.c.l.b16 %v6055
      %v6202 = vunpack.c.h.b16 %v6055
      %v6203 = vunpack.c.l.b16 %v6056
      %v6204 = vunpack.c.l.b16 %v6057
      %v6205 = vunpack.c.h.b16 %v6057
      %v6206 = vunpack.c.l.b16 %v6058
      %v6207 = vunpack.c.l.b16 %v6059
      %v6208 = vunpack.c.h.b16 %v6059
      %v6209 = vunpack.c.l.b16 %v6060
      %v6210 = vunpack.c.l.b16 %v6061
      %v6211 = vunpack.c.h.b16 %v6061
      %v6212 = vunpack.c.l.b16 %v6062
      %v6213 = vunpack.c.l.b16 %v6063
      %v6214 = vunpack.c.h.b16 %v6063
      %v6215 = vunpack.c.l.b16 %v6064
      %v6216 = vunpack.c.l.b16 %v6065
      %v6217 = vunpack.c.h.b16 %v6065
      %v6218 = vunpack.c.l.b16 %v6066
      %v6219 = vunpack.c.l.b16 %v6067
      %v6220 = vunpack.c.h.b16 %v6067
      %v6221 = vunpack.c.l.b16 %v6068
      %v6222 = vunpack.c.l.b16 %v6069
      %v6223 = vunpack.c.h.b16 %v6069
      %v6224 = vunpack.c.l.b16 %v6070
      %v6225 = vunpack.c.l.b16 %v6071
      %v6226 = vunpack.c.h.b16 %v6071
      %v6227 = vunpack.c.l.b16 %v6072
      %v6228 = vunpack.c.l.b16 %v6073
      %v6229 = vunpack.c.h.b16 %v6073
      %v6230 = vunpack.c.l.b16 %v6074
      %v6231 = vunpack.c.l.b16 %v6075
      %v6232 = vunpack.c.h.b16 %v6075
      %v6233 = vunpack.c.l.b16 %v6076
      %v6234 = vunpack.c.l.b16 %v6077
      %v6235 = vunpack.c.h.b16 %v6077
      %v6236 = vunpack.c.l.b16 %v6078
      %v6237 = vunpack.c.l.b16 %v6079
      %v6238 = vunpack.c.h.b16 %v6079
      %v6239 = vunpack.c.l.b16 %v6080
      %v6240 = vunpack.c.l.b16 %v6081
      %v6241 = vunpack.c.h.b16 %v6081
      %v6242 = vunpack.c.l.b16 %v6082
      %v6243 = vunpack.c.l.b16 %v6083
      %v6244 = vunpack.c.h.b16 %v6083
      %v6245 = vunpack.c.l.b16 %v6084
      %v6246 = vunpack.c.l.b16 %v6085
      %v6247 = vunpack.c.h.b16 %v6085
      %v6248 = vunpack.c.l.b16 %v6086
      %v6249 = vunpack.c.l.b16 %v6087
      %v6250 = vunpack.c.h.b16 %v6087
      %v6251 = vunpack.c.l.b16 %v6088
      %v6252 = vunpack.c.l.b16 %v6089
      %v6253 = vunpack.c.h.b16 %v6089
      %v6254 = vunpack.c.l.b16 %v6090
      %v6255 = vunpack.c.l.b16 %v6091
      %v6256 = vunpack.c.h.b16 %v6091
      %v6257 = vunpack.c.l.b16 %v6092
      %v6258 = vunpack.c.l.b16 %v6093
      %v6259 = vunpack.c.h.b16 %v6093
      %v6260 = vunpack.c.l.b16 %v6094
      %v6261 = vunpack.c.l.b16 %v6095
      %v6262 = vunpack.c.h.b16 %v6095
      %v6263 = vunpack.c.l.b16 %v6096
      %v6264 = vpack.c.b16 %v6171, %v6168
      %v6265 = vpack.c.b16 %v6172, %v6169
      %v6266 = vpack.c.b16 %v6173, %v6170
      %v6267 = vpack.c.b16 %v6177, %v6174
      %v6268 = vpack.c.b16 %v6178, %v6175
      %v6269 = vpack.c.b16 %v6179, %v6176
      %v6270 = vpack.c.b16 %v6183, %v6180
      %v6271 = vpack.c.b16 %v6184, %v6181
      %v6272 = vpack.c.b16 %v6185, %v6182
      %v6273 = vpack.c.b16 %v6189, %v6186
      %v6274 = vpack.c.b16 %v6190, %v6187
      %v6275 = vpack.c.b16 %v6191, %v6188
      %v6276 = vpack.c.b16 %v6195, %v6192
      %v6277 = vpack.c.b16 %v6196, %v6193
      %v6278 = vpack.c.b16 %v6197, %v6194
      %v6279 = vpack.c.b16 %v6201, %v6198
      %v6280 = vpack.c.b16 %v6202, %v6199
      %v6281 = vpack.c.b16 %v6203, %v6200
      %v6282 = vpack.c.b16 %v6207, %v6204
      %v6283 = vpack.c.b16 %v6208, %v6205
      %v6284 = vpack.c.b16 %v6209, %v6206
      %v6285 = vpack.c.b16 %v6213, %v6210
      %v6286 = vpack.c.b16 %v6214, %v6211
      %v6287 = vpack.c.b16 %v6215, %v6212
      %v6288 = vpack.c.b16 %v6219, %v6216
      %v6289 = vpack.c.b16 %v6220, %v6217
      %v6290 = vpack.c.b16 %v6221, %v6218
      %v6291 = vpack.c.b16 %v6225, %v6222
      %v6292 = vpack.c.b16 %v6226, %v6223
      %v6293 = vpack.c.b16 %v6227, %v6224
      %v6294 = vpack.c.b16 %v6231, %v6228
      %v6295 = vpack.c.b16 %v6232, %v6229
      %v6296 = vpack.c.b16 %v6233, %v6230
      %v6297 = vpack.c.b16 %v6237, %v6234
      %v6298 = vpack.c.b16 %v6238, %v6235
      %v6299 = vpack.c.b16 %v6239, %v6236
      %v6300 = vpack.c.b16 %v6243, %v6240
      %v6301 = vpack.c.b16 %v6244, %v6241
      %v6302 = vpack.c.b16 %v6245, %v6242
      %v6303 = vpack.c.b16 %v6249, %v6246
      %v6304 = vpack.c.b16 %v6250, %v6247
      %v6305 = vpack.c.b16 %v6251, %v6248
      %v6306 = vpack.c.b16 %v6255, %v6252
      %v6307 = vpack.c.b16 %v6256, %v6253
      %v6308 = vpack.c.b16 %v6257, %v6254
      %v6309 = vpack.c.b16 %v6261, %v6258
      %v6310 = vpack.c.b16 %v6262, %v6259
      %v6311 = vpack.c.b16 %v6263, %v6260
      %v6345 = vsel %vm2845, %v6266, 0
      %v6348 = vsel %vm2845, %v6269, 0
      %v6351 = vsel %vm2845, %v6272, 0
      %v6354 = vsel %vm2845, %v6275, 0
      %v6357 = vsel %vm2845, %v6278, 0
      %v6360 = vsel %vm2845, %v6281, 0
      %v6363 = vsel %vm2845, %v6284, 0
      %v6366 = vsel %vm2845, %v6287, 0
      %v6369 = vsel %vm2845, %v6290, 0
      %v6372 = vsel %vm2845, %v6293, 0
      %v6375 = vsel %vm2845, %v6296, 0
      %v6378 = vsel %vm2845, %v6299, 0
      %v6381 = vsel %vm2845, %v6302, 0
      %v6384 = vsel %vm2845, %v6305, 0
      %v6387 = vsel %vm2845, %v6308, 0
      %v6390 = vsel %vm2845, %v6311, 0
      %6392 = vmatprep.subr.bf16.mxu0 0
      %6393 = vmatpush1.bf16.msra.mxu0 %v6011
      %6394 = vmatprep.subr.bf16.mxu0 0
      %6395 = vmatpush1.bf16.msra.mxu0 %v6012
      %6396 = vmatprep.subr.bf16.mxu0 0
      %6397 = vmatpush1.bf16.msra.mxu0 %v6013
      %6398 = vmatprep.subr.bf16.mxu0 0
      %6399 = vmatpush1.bf16.msra.mxu0 %v6014
      %6400 = vmatprep.subr.bf16.mxu0 0
      %6401 = vmatpush1.bf16.msra.mxu0 %v6015
      %6402 = vmatprep.subr.bf16.mxu0 0
      %6403 = vmatpush1.bf16.msra.mxu0 %v6016
      %6404 = vmatprep.subr.bf16.mxu0 0
      %6405 = vmatpush1.bf16.msra.mxu0 %v6017
      %6406 = vmatprep.subr.bf16.mxu0 0
      %6407 = vmatpush1.bf16.msra.mxu0 %v6018
      %6408 = vmatprep.subr.bf16.mxu0 0
      %6409 = vmatpush1.bf16.msra.mxu0 %v6019
      %6410 = vmatprep.subr.bf16.mxu0 0
      %6411 = vmatpush1.bf16.msra.mxu0 %v6020
      %6412 = vmatprep.subr.bf16.mxu0 0
      %6413 = vmatpush1.bf16.msra.mxu0 %v6021
      %6414 = vmatprep.subr.bf16.mxu0 0
      %6415 = vmatpush1.bf16.msra.mxu0 %v6022
      %6416 = vmatprep.subr.bf16.mxu0 0
      %6417 = vmatpush1.bf16.msra.mxu0 %v6023
      %6418 = vmatprep.subr.bf16.mxu0 0
      %6419 = vmatpush1.bf16.msra.mxu0 %v6024
      %6420 = vmatprep.subr.bf16.mxu0 0
      %6421 = vmatpush1.bf16.msra.mxu0 %v6025
      %6422 = vmatprep.subr.bf16.mxu0 0
      %6423 = vmatpush1.bf16.msra.mxu0 %v6026
      %6424 = vmatprep.mubr.bf16.mxu0 %v6265
      %6425 = vmatmul.mubr.bf16.gmra.mrb[0].mxu0 %v6264
      %v6426 = vpop.f32.mrb[0].mxu0
      %v6427 = vadd.f32 %v6102, %v6426
      %v6428 = vpop.f32.mrb[0].mxu0
      %v6429 = vpop.f32.mrb[0].mxu0
      %v6430 = vadd.f32 %v6102, %v6429
      %v6431 = vpop.f32.mrb[0].mxu0
      %6432 = vmatprep.mubr.bf16.mxu0 %v6268
      %6433 = vmatmul.mubr.bf16.gmra.mrb[0].mxu0 %v6267
      %v6434 = vpop.f32.mrb[0].mxu0
      %v6435 = vadd.f32 %v6102, %v6434
      %v6436 = vpop.f32.mrb[0].mxu0
      %v6437 = vpop.f32.mrb[0].mxu0
      %v6438 = vadd.f32 %v6102, %v6437
      %v6439 = vpop.f32.mrb[0].mxu0
      %6440 = vmatprep.mubr.bf16.mxu0 %v6271
      %6441 = vmatmul.mubr.bf16.gmra.mrb[0].mxu0 %v6270
      %v6442 = vpop.f32.mrb[0].mxu0
      %v6443 = vadd.f32 %v6102, %v6442
      %v6444 = vpop.f32.mrb[0].mxu0
      %v6445 = vpop.f32.mrb[0].mxu0
      %v6446 = vadd.f32 %v6102, %v6445
      %v6447 = vpop.f32.mrb[0].mxu0
      %6448 = vmatprep.mubr.bf16.mxu0 %v6274
      %6449 = vmatmul.mubr.bf16.gmra.mrb[0].mxu0 %v6273
      %v6450 = vpop.f32.mrb[0].mxu0
      %v6451 = vadd.f32 %v6102, %v6450
      %v6452 = vpop.f32.mrb[0].mxu0
      %v6453 = vpop.f32.mrb[0].mxu0
      %v6454 = vadd.f32 %v6102, %v6453
      %v6455 = vpop.f32.mrb[0].mxu0
      %6456 = vmatprep.mubr.bf16.mxu0 %v6277
      %6457 = vmatmul.mubr.bf16.gmra.mrb[0].mxu0 %v6276
      %v6458 = vpop.f32.mrb[0].mxu0
      %v6459 = vadd.f32 %v6102, %v6458
      %v6460 = vpop.f32.mrb[0].mxu0
      %v6461 = vpop.f32.mrb[0].mxu0
      %v6462 = vadd.f32 %v6102, %v6461
      %v6463 = vpop.f32.mrb[0].mxu0
      %6464 = vmatprep.mubr.bf16.mxu0 %v6280
      %6465 = vmatmul.mubr.bf16.gmra.mrb[0].mxu0 %v6279
      %v6466 = vpop.f32.mrb[0].mxu0
      %v6467 = vadd.f32 %v6102, %v6466
      %v6468 = vpop.f32.mrb[0].mxu0
      %v6469 = vpop.f32.mrb[0].mxu0
      %v6470 = vadd.f32 %v6102, %v6469
      %v6471 = vpop.f32.mrb[0].mxu0
      %6472 = vmatprep.mubr.bf16.mxu0 %v6283
      %6473 = vmatmul.mubr.bf16.gmra.mrb[0].mxu0 %v6282
      %v6474 = vpop.f32.mrb[0].mxu0
      %v6475 = vadd.f32 %v6102, %v6474
      %v6476 = vpop.f32.mrb[0].mxu0
      %v6477 = vpop.f32.mrb[0].mxu0
      %v6478 = vadd.f32 %v6102, %v6477
      %v6479 = vpop.f32.mrb[0].mxu0
      %6480 = vmatprep.mubr.bf16.mxu0 %v6286
      %6481 = vmatmul.mubr.bf16.gmra.mrb[0].mxu0 %v6285
      %v6482 = vpop.f32.mrb[0].mxu0
      %v6483 = vadd.f32 %v6102, %v6482
      %v6484 = vpop.f32.mrb[0].mxu0
      %v6485 = vpop.f32.mrb[0].mxu0
      %v6486 = vadd.f32 %v6102, %v6485
      %v6487 = vpop.f32.mrb[0].mxu0
      %6488 = vmatprep.mubr.bf16.mxu0 %v6289
      %6489 = vmatmul.mubr.bf16.gmra.mrb[0].mxu0 %v6288
      %v6490 = vpop.f32.mrb[0].mxu0
      %v6491 = vadd.f32 %v6102, %v6490
      %v6492 = vpop.f32.mrb[0].mxu0
      %v6493 = vpop.f32.mrb[0].mxu0
      %v6494 = vadd.f32 %v6102, %v6493
      %v6495 = vpop.f32.mrb[0].mxu0
      %6496 = vmatprep.mubr.bf16.mxu0 %v6292
      %6497 = vmatmul.mubr.bf16.gmra.mrb[0].mxu0 %v6291
      %v6498 = vpop.f32.mrb[0].mxu0
      %v6499 = vadd.f32 %v6102, %v6498
      %v6500 = vpop.f32.mrb[0].mxu0
      %v6501 = vpop.f32.mrb[0].mxu0
      %v6502 = vadd.f32 %v6102, %v6501
      %v6503 = vpop.f32.mrb[0].mxu0
      %6504 = vmatprep.mubr.bf16.mxu0 %v6295
      %6505 = vmatmul.mubr.bf16.gmra.mrb[0].mxu0 %v6294
      %v6506 = vpop.f32.mrb[0].mxu0
      %v6507 = vadd.f32 %v6102, %v6506
      %v6508 = vpop.f32.mrb[0].mxu0
      %v6509 = vpop.f32.mrb[0].mxu0
      %v6510 = vadd.f32 %v6102, %v6509
      %v6511 = vpop.f32.mrb[0].mxu0
      %6512 = vmatprep.mubr.bf16.mxu0 %v6298
      %6513 = vmatmul.mubr.bf16.gmra.mrb[0].mxu0 %v6297
      %v6514 = vpop.f32.mrb[0].mxu0
      %v6515 = vadd.f32 %v6102, %v6514
      %v6516 = vpop.f32.mrb[0].mxu0
      %v6517 = vpop.f32.mrb[0].mxu0
      %v6518 = vadd.f32 %v6102, %v6517
      %v6519 = vpop.f32.mrb[0].mxu0
      %6520 = vmatprep.mubr.bf16.mxu0 %v6301
      %6521 = vmatmul.mubr.bf16.gmra.mrb[0].mxu0 %v6300
      %v6522 = vpop.f32.mrb[0].mxu0
      %v6523 = vadd.f32 %v6102, %v6522
      %v6524 = vpop.f32.mrb[0].mxu0
      %v6525 = vpop.f32.mrb[0].mxu0
      %v6526 = vadd.f32 %v6102, %v6525
      %v6527 = vpop.f32.mrb[0].mxu0
      %6528 = vmatprep.mubr.bf16.mxu0 %v6304
      %6529 = vmatmul.mubr.bf16.gmra.mrb[0].mxu0 %v6303
      %v6530 = vpop.f32.mrb[0].mxu0
      %v6531 = vadd.f32 %v6102, %v6530
      %v6532 = vpop.f32.mrb[0].mxu0
      %v6533 = vpop.f32.mrb[0].mxu0
      %v6534 = vadd.f32 %v6102, %v6533
      %v6535 = vpop.f32.mrb[0].mxu0
      %6536 = vmatprep.mubr.bf16.mxu0 %v6307
      %6537 = vmatmul.mubr.bf16.gmra.mrb[0].mxu0 %v6306
      %v6538 = vpop.f32.mrb[0].mxu0
      %v6539 = vadd.f32 %v6102, %v6538
      %v6540 = vpop.f32.mrb[0].mxu0
      %v6541 = vpop.f32.mrb[0].mxu0
      %v6542 = vadd.f32 %v6102, %v6541
      %v6543 = vpop.f32.mrb[0].mxu0
      %6544 = vmatprep.mubr.bf16.mxu0 %v6310
      %6545 = vmatmul.mubr.bf16.gmra.mrb[0].mxu0 %v6309
      %v6546 = vpop.f32.mrb[0].mxu0
      %v6547 = vadd.f32 %v6102, %v6546
      %v6548 = vpop.f32.mrb[0].mxu0
      %v6549 = vpop.f32.mrb[0].mxu0
      %v6550 = vadd.f32 %v6102, %v6549
      %v6551 = vpop.f32.mrb[0].mxu0
      %6552 = vdwg.mxu0
      %6553 = vmatprep.subr.bf16.mxu0 0
      %6554 = vmatpush1.bf16.msra.mxu0 %v6027
      %6555 = vmatprep.subr.bf16.mxu0 0
      %6556 = vmatpush1.bf16.msra.mxu0 %v6028
      %6557 = vmatprep.subr.bf16.mxu0 0
      %6558 = vmatpush1.bf16.msra.mxu0 %v6029
      %6559 = vmatprep.subr.bf16.mxu0 0
      %6560 = vmatpush1.bf16.msra.mxu0 %v6030
      %6561 = vmatprep.subr.bf16.mxu0 0
      %6562 = vmatpush1.bf16.msra.mxu0 %v6031
      %6563 = vmatprep.subr.bf16.mxu0 0
      %6564 = vmatpush1.bf16.msra.mxu0 %v6032
      %6565 = vmatprep.subr.bf16.mxu0 0
      %6566 = vmatpush1.bf16.msra.mxu0 0
      %6567 = vmatprep.subr.bf16.mxu0 0
      %6568 = vmatpush1.bf16.msra.mxu0 0
      %6569 = vmatprep.subr.bf16.mxu0 0
      %6570 = vmatpush1.bf16.msra.mxu0 0
      %6571 = vmatprep.subr.bf16.mxu0 0
      %6572 = vmatpush1.bf16.msra.mxu0 0
      %6573 = vmatprep.subr.bf16.mxu0 0
      %6574 = vmatpush1.bf16.msra.mxu0 0
      %6575 = vmatprep.subr.bf16.mxu0 0
      %6576 = vmatpush1.bf16.msra.mxu0 0
      %6577 = vmatprep.subr.bf16.mxu0 0
      %6578 = vmatpush1.bf16.msra.mxu0 0
      %6579 = vmatprep.subr.bf16.mxu0 0
      %6580 = vmatpush1.bf16.msra.mxu0 0
      %6581 = vmatprep.subr.bf16.mxu0 0
      %6582 = vmatpush1.bf16.msra.mxu0 0
      %6583 = vmatprep.subr.bf16.mxu0 0
      %6584 = vmatpush1.bf16.msra.mxu0 0
      %6585 = vmatprep.mubr.bf16.mxu0 0
      %6586 = vmatmul.mubr.bf16.gmra.mrb[0].mxu0 %v6345
      %v6587 = vpop.f32.mrb[0].mxu0
      %v6588 = vadd.f32 %v6427, %v6587
      %v6589 = vpop.f32.mrb[0].mxu0
      %v6590 = vpop.f32.mrb[0].mxu0
      %v6591 = vadd.f32 %v6430, %v6590
      %v6592 = vpop.f32.mrb[0].mxu0
      %6593 = vmatprep.mubr.bf16.mxu0 0
      %6594 = vmatmul.mubr.bf16.gmra.mrb[0].mxu0 %v6348
      %v6595 = vpop.f32.mrb[0].mxu0
      %v6596 = vadd.f32 %v6435, %v6595
      %v6597 = vpop.f32.mrb[0].mxu0
      %v6598 = vpop.f32.mrb[0].mxu0
      %v6599 = vadd.f32 %v6438, %v6598
      %v6600 = vpop.f32.mrb[0].mxu0
      %6601 = vmatprep.mubr.bf16.mxu0 0
      %6602 = vmatmul.mubr.bf16.gmra.mrb[0].mxu0 %v6351
      %v6603 = vpop.f32.mrb[0].mxu0
      %v6604 = vadd.f32 %v6443, %v6603
      %v6605 = vpop.f32.mrb[0].mxu0
      %v6606 = vpop.f32.mrb[0].mxu0
      %v6607 = vadd.f32 %v6446, %v6606
      %v6608 = vpop.f32.mrb[0].mxu0
      %6609 = vmatprep.mubr.bf16.mxu0 0
      %6610 = vmatmul.mubr.bf16.gmra.mrb[0].mxu0 %v6354
      %v6611 = vpop.f32.mrb[0].mxu0
      %v6612 = vadd.f32 %v6451, %v6611
      %v6613 = vpop.f32.mrb[0].mxu0
      %v6614 = vpop.f32.mrb[0].mxu0
      %v6615 = vadd.f32 %v6454, %v6614
      %v6616 = vpop.f32.mrb[0].mxu0
      %6617 = vmatprep.mubr.bf16.mxu0 0
      %6618 = vmatmul.mubr.bf16.gmra.mrb[0].mxu0 %v6357
      %v6619 = vpop.f32.mrb[0].mxu0
      %v6620 = vadd.f32 %v6459, %v6619
      %v6621 = vpop.f32.mrb[0].mxu0
      %v6622 = vpop.f32.mrb[0].mxu0
      %v6623 = vadd.f32 %v6462, %v6622
      %v6624 = vpop.f32.mrb[0].mxu0
      %6625 = vmatprep.mubr.bf16.mxu0 0
      %6626 = vmatmul.mubr.bf16.gmra.mrb[0].mxu0 %v6360
      %v6627 = vpop.f32.mrb[0].mxu0
      %v6628 = vadd.f32 %v6467, %v6627
      %v6629 = vpop.f32.mrb[0].mxu0
      %v6630 = vpop.f32.mrb[0].mxu0
      %v6631 = vadd.f32 %v6470, %v6630
      %v6632 = vpop.f32.mrb[0].mxu0
      %6633 = vmatprep.mubr.bf16.mxu0 0
      %6634 = vmatmul.mubr.bf16.gmra.mrb[0].mxu0 %v6363
      %v6635 = vpop.f32.mrb[0].mxu0
      %v6636 = vadd.f32 %v6475, %v6635
      %v6637 = vpop.f32.mrb[0].mxu0
      %v6638 = vpop.f32.mrb[0].mxu0
      %v6639 = vadd.f32 %v6478, %v6638
      %v6640 = vpop.f32.mrb[0].mxu0
      %6641 = vmatprep.mubr.bf16.mxu0 0
      %6642 = vmatmul.mubr.bf16.gmra.mrb[0].mxu0 %v6366
      %v6643 = vpop.f32.mrb[0].mxu0
      %v6644 = vadd.f32 %v6483, %v6643
      %v6645 = vpop.f32.mrb[0].mxu0
      %v6646 = vpop.f32.mrb[0].mxu0
      %v6647 = vadd.f32 %v6486, %v6646
      %v6648 = vpop.f32.mrb[0].mxu0
      %6649 = vmatprep.mubr.bf16.mxu0 0
      %6650 = vmatmul.mubr.bf16.gmra.mrb[0].mxu0 %v6369
      %v6651 = vpop.f32.mrb[0].mxu0
      %v6652 = vadd.f32 %v6491, %v6651
      %v6653 = vpop.f32.mrb[0].mxu0
      %v6654 = vpop.f32.mrb[0].mxu0
      %v6655 = vadd.f32 %v6494, %v6654
      %v6656 = vpop.f32.mrb[0].mxu0
      %6657 = vmatprep.mubr.bf16.mxu0 0
      %6658 = vmatmul.mubr.bf16.gmra.mrb[0].mxu0 %v6372
      %v6659 = vpop.f32.mrb[0].mxu0
      %v6660 = vadd.f32 %v6499, %v6659
      %v6661 = vpop.f32.mrb[0].mxu0
      %v6662 = vpop.f32.mrb[0].mxu0
      %v6663 = vadd.f32 %v6502, %v6662
      %v6664 = vpop.f32.mrb[0].mxu0
      %6665 = vmatprep.mubr.bf16.mxu0 0
      %6666 = vmatmul.mubr.bf16.gmra.mrb[0].mxu0 %v6375
      %v6667 = vpop.f32.mrb[0].mxu0
      %v6668 = vadd.f32 %v6507, %v6667
      %v6669 = vpop.f32.mrb[0].mxu0
      %v6670 = vpop.f32.mrb[0].mxu0
      %v6671 = vadd.f32 %v6510, %v6670
      %v6672 = vpop.f32.mrb[0].mxu0
      %6673 = vmatprep.mubr.bf16.mxu0 0
      %6674 = vmatmul.mubr.bf16.gmra.mrb[0].mxu0 %v6378
      %v6675 = vpop.f32.mrb[0].mxu0
      %v6676 = vadd.f32 %v6515, %v6675
      %v6677 = vpop.f32.mrb[0].mxu0
      %v6678 = vpop.f32.mrb[0].mxu0
      %v6679 = vadd.f32 %v6518, %v6678
      %v6680 = vpop.f32.mrb[0].mxu0
      %6681 = vmatprep.mubr.bf16.mxu0 0
      %6682 = vmatmul.mubr.bf16.gmra.mrb[0].mxu0 %v6381
      %v6683 = vpop.f32.mrb[0].mxu0
      %v6684 = vadd.f32 %v6523, %v6683
      %v6685 = vpop.f32.mrb[0].mxu0
      %v6686 = vpop.f32.mrb[0].mxu0
      %v6687 = vadd.f32 %v6526, %v6686
      %v6688 = vpop.f32.mrb[0].mxu0
      %6689 = vmatprep.mubr.bf16.mxu0 0
      %6690 = vmatmul.mubr.bf16.gmra.mrb[0].mxu0 %v6384
      %v6691 = vpop.f32.mrb[0].mxu0
      %v6692 = vadd.f32 %v6531, %v6691
      %v6693 = vpop.f32.mrb[0].mxu0
      %v6694 = vpop.f32.mrb[0].mxu0
      %v6695 = vadd.f32 %v6534, %v6694
      %v6696 = vpop.f32.mrb[0].mxu0
      %6697 = vmatprep.mubr.bf16.mxu0 0
      %6698 = vmatmul.mubr.bf16.gmra.mrb[0].mxu0 %v6387
      %v6699 = vpop.f32.mrb[0].mxu0
      %v6700 = vadd.f32 %v6539, %v6699
      %v6701 = vpop.f32.mrb[0].mxu0
      %v6702 = vpop.f32.mrb[0].mxu0
      %v6703 = vadd.f32 %v6542, %v6702
      %v6704 = vpop.f32.mrb[0].mxu0
      %6705 = vmatprep.mubr.bf16.mxu0 0
      %6706 = vmatmul.mubr.bf16.gmra.mrb[0].mxu0 %v6390
      %v6707 = vpop.f32.mrb[0].mxu0
      %v6708 = vadd.f32 %v6547, %v6707
      %v6709 = vpop.f32.mrb[0].mxu0
      %v6710 = vpop.f32.mrb[0].mxu0
      %v6711 = vadd.f32 %v6550, %v6710
      %v6712 = vpop.f32.mrb[0].mxu0
      %6713 = vdwg.mxu0
      %v6714 = vxor.u32 %v6588, 2147483648
      %v6715 = vxor.u32 %v6591, 2147483648
      %v6716 = vxor.u32 %v6596, 2147483648
      %v6717 = vxor.u32 %v6599, 2147483648
      %v6718 = vxor.u32 %v6604, 2147483648
      %v6719 = vxor.u32 %v6607, 2147483648
      %v6720 = vxor.u32 %v6612, 2147483648
      %v6721 = vxor.u32 %v6615, 2147483648
      %v6722 = vxor.u32 %v6620, 2147483648
      %v6723 = vxor.u32 %v6623, 2147483648
      %v6724 = vxor.u32 %v6628, 2147483648
      %v6725 = vxor.u32 %v6631, 2147483648
      %v6726 = vxor.u32 %v6636, 2147483648
      %v6727 = vxor.u32 %v6639, 2147483648
      %v6728 = vxor.u32 %v6644, 2147483648
      %v6729 = vxor.u32 %v6647, 2147483648
      %v6730 = vxor.u32 %v6652, 2147483648
      %v6731 = vxor.u32 %v6655, 2147483648
      %v6732 = vxor.u32 %v6660, 2147483648
      %v6733 = vxor.u32 %v6663, 2147483648
      %v6734 = vxor.u32 %v6668, 2147483648
      %v6735 = vxor.u32 %v6671, 2147483648
      %v6736 = vxor.u32 %v6676, 2147483648
      %v6737 = vxor.u32 %v6679, 2147483648
      %v6738 = vxor.u32 %v6684, 2147483648
      %v6739 = vxor.u32 %v6687, 2147483648
      %v6740 = vxor.u32 %v6692, 2147483648
      %v6741 = vxor.u32 %v6695, 2147483648
      %v6742 = vxor.u32 %v6700, 2147483648
      %v6743 = vxor.u32 %v6703, 2147483648
      %v6744 = vxor.u32 %v6708, 2147483648
      %v6745 = vxor.u32 %v6711, 2147483648
      %v6746 = vmul.f32 %v6714, 1.442695
      %v6747 = vpow.pop %v6746
      %v6748 = vmul.f32 %v6715, 1.442695
      %v6749 = vpow.pop %v6748
      %v6750 = vmul.f32 %v6716, 1.442695
      %v6751 = vpow.pop %v6750
      %v6752 = vmul.f32 %v6717, 1.442695
      %v6753 = vpow.pop %v6752
      %v6754 = vmul.f32 %v6718, 1.442695
      %v6755 = vpow.pop %v6754
      %v6756 = vmul.f32 %v6719, 1.442695
      %v6757 = vpow.pop %v6756
      %v6758 = vmul.f32 %v6720, 1.442695
      %v6759 = vpow.pop %v6758
      %v6760 = vmul.f32 %v6721, 1.442695
      %v6761 = vpow.pop %v6760
      %v6762 = vmul.f32 %v6722, 1.442695
      %v6763 = vpow.pop %v6762
      %v6764 = vmul.f32 %v6723, 1.442695
      %v6765 = vpow.pop %v6764
      %v6766 = vmul.f32 %v6724, 1.442695
      %v6767 = vpow.pop %v6766
      %v6768 = vmul.f32 %v6725, 1.442695
      %v6769 = vpow.pop %v6768
      %v6770 = vmul.f32 %v6726, 1.442695
      %v6771 = vpow.pop %v6770
      %v6772 = vmul.f32 %v6727, 1.442695
      %v6773 = vpow.pop %v6772
      %v6774 = vmul.f32 %v6728, 1.442695
      %v6775 = vpow.pop %v6774
      %v6776 = vmul.f32 %v6729, 1.442695
      %v6777 = vpow.pop %v6776
      %v6778 = vmul.f32 %v6730, 1.442695
      %v6779 = vpow.pop %v6778
      %v6780 = vmul.f32 %v6731, 1.442695
      %v6781 = vpow.pop %v6780
      %v6782 = vmul.f32 %v6732, 1.442695
      %v6783 = vpow.pop %v6782
      %v6784 = vmul.f32 %v6733, 1.442695
      %v6785 = vpow.pop %v6784
      %v6786 = vmul.f32 %v6734, 1.442695
      %v6787 = vpow.pop %v6786
      %v6788 = vmul.f32 %v6735, 1.442695
      %v6789 = vpow.pop %v6788
      %v6790 = vmul.f32 %v6736, 1.442695
      %v6791 = vpow.pop %v6790
      %v6792 = vmul.f32 %v6737, 1.442695
      %v6793 = vpow.pop %v6792
      %v6794 = vmul.f32 %v6738, 1.442695
      %v6795 = vpow.pop %v6794
      %v6796 = vmul.f32 %v6739, 1.442695
      %v6797 = vpow.pop %v6796
      %v6798 = vmul.f32 %v6740, 1.442695
      %v6799 = vpow.pop %v6798
      %v6800 = vmul.f32 %v6741, 1.442695
      %v6801 = vpow.pop %v6800
      %v6802 = vmul.f32 %v6742, 1.442695
      %v6803 = vpow.pop %v6802
      %v6804 = vmul.f32 %v6743, 1.442695
      %v6805 = vpow.pop %v6804
      %v6806 = vmul.f32 %v6744, 1.442695
      %v6807 = vpow.pop %v6806
      %v6808 = vmul.f32 %v6745, 1.442695
      %v6809 = vpow.pop %v6808
      %v6810 = vadd.f32 %v6747, 1.0
      %v6811 = vadd.f32 %v6749, 1.0
      %v6812 = vadd.f32 %v6751, 1.0
      %v6813 = vadd.f32 %v6753, 1.0
      %v6814 = vadd.f32 %v6755, 1.0
      %v6815 = vadd.f32 %v6757, 1.0
      %v6816 = vadd.f32 %v6759, 1.0
      %v6817 = vadd.f32 %v6761, 1.0
      %v6818 = vadd.f32 %v6763, 1.0
      %v6819 = vadd.f32 %v6765, 1.0
      %v6820 = vadd.f32 %v6767, 1.0
      %v6821 = vadd.f32 %v6769, 1.0
      %v6822 = vadd.f32 %v6771, 1.0
      %v6823 = vadd.f32 %v6773, 1.0
      %v6824 = vadd.f32 %v6775, 1.0
      %v6825 = vadd.f32 %v6777, 1.0
      %v6826 = vadd.f32 %v6779, 1.0
      %v6827 = vadd.f32 %v6781, 1.0
      %v6828 = vadd.f32 %v6783, 1.0
      %v6829 = vadd.f32 %v6785, 1.0
      %v6830 = vadd.f32 %v6787, 1.0
      %v6831 = vadd.f32 %v6789, 1.0
      %v6832 = vadd.f32 %v6791, 1.0
      %v6833 = vadd.f32 %v6793, 1.0
      %v6834 = vadd.f32 %v6795, 1.0
      %v6835 = vadd.f32 %v6797, 1.0
      %v6836 = vadd.f32 %v6799, 1.0
      %v6837 = vadd.f32 %v6801, 1.0
      %v6838 = vadd.f32 %v6803, 1.0
      %v6839 = vadd.f32 %v6805, 1.0
      %v6840 = vadd.f32 %v6807, 1.0
      %v6841 = vadd.f32 %v6809, 1.0
      %v6842 = vrcp.pop %v6810
      %v6843 = vmul.f32 1.0, %v6842
      %v6844 = vrcp.pop %v6811
      %v6845 = vmul.f32 1.0, %v6844
      %v6846 = vrcp.pop %v6812
      %v6847 = vmul.f32 1.0, %v6846
      %v6848 = vrcp.pop %v6813
      %v6849 = vmul.f32 1.0, %v6848
      %v6850 = vrcp.pop %v6814
      %v6851 = vmul.f32 1.0, %v6850
      %v6852 = vrcp.pop %v6815
      %v6853 = vmul.f32 1.0, %v6852
      %v6854 = vrcp.pop %v6816
      %v6855 = vmul.f32 1.0, %v6854
      %v6856 = vrcp.pop %v6817
      %v6857 = vmul.f32 1.0, %v6856
      %v6858 = vrcp.pop %v6818
      %v6859 = vmul.f32 1.0, %v6858
      %v6860 = vrcp.pop %v6819
      %v6861 = vmul.f32 1.0, %v6860
      %v6862 = vrcp.pop %v6820
      %v6863 = vmul.f32 1.0, %v6862
      %v6864 = vrcp.pop %v6821
      %v6865 = vmul.f32 1.0, %v6864
      %v6866 = vrcp.pop %v6822
      %v6867 = vmul.f32 1.0, %v6866
      %v6868 = vrcp.pop %v6823
      %v6869 = vmul.f32 1.0, %v6868
      %v6870 = vrcp.pop %v6824
      %v6871 = vmul.f32 1.0, %v6870
      %v6872 = vrcp.pop %v6825
      %v6873 = vmul.f32 1.0, %v6872
      %v6874 = vrcp.pop %v6826
      %v6875 = vmul.f32 1.0, %v6874
      %v6876 = vrcp.pop %v6827
      %v6877 = vmul.f32 1.0, %v6876
      %v6878 = vrcp.pop %v6828
      %v6879 = vmul.f32 1.0, %v6878
      %v6880 = vrcp.pop %v6829
      %v6881 = vmul.f32 1.0, %v6880
      %v6882 = vrcp.pop %v6830
      %v6883 = vmul.f32 1.0, %v6882
      %v6884 = vrcp.pop %v6831
      %v6885 = vmul.f32 1.0, %v6884
      %v6886 = vrcp.pop %v6832
      %v6887 = vmul.f32 1.0, %v6886
      %v6888 = vrcp.pop %v6833
      %v6889 = vmul.f32 1.0, %v6888
      %v6890 = vrcp.pop %v6834
      %v6891 = vmul.f32 1.0, %v6890
      %v6892 = vrcp.pop %v6835
      %v6893 = vmul.f32 1.0, %v6892
      %v6894 = vrcp.pop %v6836
      %v6895 = vmul.f32 1.0, %v6894
      %v6896 = vrcp.pop %v6837
      %v6897 = vmul.f32 1.0, %v6896
      %v6898 = vrcp.pop %v6838
      %v6899 = vmul.f32 1.0, %v6898
      %v6900 = vrcp.pop %v6839
      %v6901 = vmul.f32 1.0, %v6900
      %v6902 = vrcp.pop %v6840
      %v6903 = vmul.f32 1.0, %v6902
      %v6904 = vrcp.pop %v6841
      %v6905 = vmul.f32 1.0, %v6904
      %6906 = vst.msk [vmem:[%s958] sm:$0xff] %vm1009, %v6843
      %6907 = vst.msk [vmem:[%s958 + $0x8] sm:$0xff] %vm1009, %v6845
      %6908 = vst.msk [vmem:[%s958 + $0x10] sm:$0xff] %vm1009, %v6847
      %6909 = vst.msk [vmem:[%s958 + $0x18] sm:$0xff] %vm1009, %v6849
      %6910 = vst.msk [vmem:[%s958 + $0x20] sm:$0xff] %vm1009, %v6851
      %6911 = vst.msk [vmem:[%s958 + $0x28] sm:$0xff] %vm1009, %v6853
      %6912 = vst.msk [vmem:[%s958 + $0x30] sm:$0xff] %vm1009, %v6855
      %6913 = vst.msk [vmem:[%s958 + $0x38] sm:$0xff] %vm1009, %v6857
      %6914 = vst.msk [vmem:[%s958 + $0x40] sm:$0xff] %vm1009, %v6859
      %6915 = vst.msk [vmem:[%s958 + $0x48] sm:$0xff] %vm1009, %v6861
      %6916 = vst.msk [vmem:[%s958 + $0x50] sm:$0xff] %vm1009, %v6863
      %6917 = vst.msk [vmem:[%s958 + $0x58] sm:$0xff] %vm1009, %v6865
      %6918 = vst.msk [vmem:[%s958 + $0x60] sm:$0xff] %vm1009, %v6867
      %6919 = vst.msk [vmem:[%s958 + $0x68] sm:$0xff] %vm1009, %v6869
      %6920 = vst.msk [vmem:[%s958 + $0x70] sm:$0xff] %vm1009, %v6871
      %6921 = vst.msk [vmem:[%s958 + $0x78] sm:$0xff] %vm1009, %v6873
      %6922 = vst.msk [vmem:[%s958 + $0x80] sm:$0xff] %vm1009, %v6875
      %6923 = vst.msk [vmem:[%s958 + $0x88] sm:$0xff] %vm1009, %v6877
      %6924 = vst.msk [vmem:[%s958 + $0x90] sm:$0xff] %vm1009, %v6879
      %6925 = vst.msk [vmem:[%s958 + $0x98] sm:$0xff] %vm1009, %v6881
      %6926 = vst.msk [vmem:[%s958 + $0xa0] sm:$0xff] %vm1009, %v6883
      %6927 = vst.msk [vmem:[%s958 + $0xa8] sm:$0xff] %vm1009, %v6885
      %6928 = vst.msk [vmem:[%s958 + $0xb0] sm:$0xff] %vm1009, %v6887
      %6929 = vst.msk [vmem:[%s958 + $0xb8] sm:$0xff] %vm1009, %v6889
      %6930 = vst.msk [vmem:[%s958 + $0xc0] sm:$0xff] %vm1009, %v6891
      %6931 = vst.msk [vmem:[%s958 + $0xc8] sm:$0xff] %vm1009, %v6893
      %6932 = vst.msk [vmem:[%s958 + $0xd0] sm:$0xff] %vm1009, %v6895
      %6933 = vst.msk [vmem:[%s958 + $0xd8] sm:$0xff] %vm1009, %v6897
      %6934 = vst.msk [vmem:[%s958 + $0xe0] sm:$0xff] %vm1009, %v6899
      %6935 = vst.msk [vmem:[%s958 + $0xe8] sm:$0xff] %vm1009, %v6901
      %6936 = vst.msk [vmem:[%s958 + $0xf0] sm:$0xff] %vm1009, %v6903
      %6937 = vst.msk [vmem:[%s958 + $0xf8] sm:$0xff] %vm1009, %v6905
      %p6938 = scmp.lt.s32.totalorder %s74, 1
      %s6939 = scalar_select %p6938, %s74, 1
      %s6940 = smul.addr %s6939, 32
      %s6941 = smul.addr %s6940, 8
      %s6942 = scalar_lea.vmem %s63, %s6941
      // Predicated region
      $region145: #{cnn_ae_forward.1} parent=143 // pred_check
        %p6943 = pneg %p748
      $region146: #{cnn_ae_forward.1} parent=143 // pred_check_branch
        %6945 = sbr.rel (%p6943) target = $region148
      $region147: #{cnn_ae_forward.1} parent=143 // pred_region
        _
      $region148: #{cnn_ae_forward.1} parent=143 // pred_fallthru
        _
    $region144: #{cnn_ae_forward.1} parent=5 // pred_fallthru
      _
    %p6946 = scmp.le.s32.totalorder 2, %s69
    // Predicated region
    $region149: #{cnn_ae_forward.1} parent=5 // pred_check
      %p6947 = pneg %p6946
    $region150: #{cnn_ae_forward.1} parent=5 // pred_check_branch
      %6949 = sbr.rel (%p6947) target = $region152
    $region151: #{cnn_ae_forward.1} parent=5 // pred_region
      %s6950 = ssub.s32 %s69, 2
      // Predicated region
      $region153: #{cnn_ae_forward.1} parent=151 // pred_check
        %p6951 = pneg %p754
      $region154: #{cnn_ae_forward.1} parent=151 // pred_check_branch
        %6953 = sbr.rel (%p6951) target = $region156
      $region155: #{cnn_ae_forward.1} parent=151 // pred_region
        %p6954 = scmp.lt.s32.totalorder %s75, 1
        %s6955 = scalar_select %p6954, %s75, 1
        %s6956 = smul.addr %s6955, 32
        %s6957 = smul.addr %s6956, 8
        %s6958 = scalar_lea.vmem %s63, %s6957
      $region156: #{cnn_ae_forward.1} parent=151 // pred_fallthru
        _
    $region152: #{cnn_ae_forward.1} parent=5 // pred_fallthru
      _
  $region6: #{cnn_ae_forward.1} parent=0 // loop_footer
    %s73 = sadd.s32 1, %s69
  $region7: #{cnn_ae_forward.1} parent=0 // loop_footer_branch
    %68 = sbr.rel target = $region3
  $region8: #{cnn_ae_forward.1} parent=0 // loop_exit
    _

</llo_original>
